<compile_context>
chip_gen: v7x
topology: tpu7x:2x2x1
jax: 0.10.0
libtpu: 0.0.40
codegen_flags: <defaults>
</compile_context>

<pallas_src>
import functools
import numpy as np
import jax
import jax.numpy as jnp
from jax import lax
from jax.experimental import pallas as pl
from jax.experimental.pallas import tpu as pltpu


# ----------------------------------------------------------------------------
# Pallas kernel
# ----------------------------------------------------------------------------
def _attention_net_kernel(head, scale, eps, has_downsample, mm_dtype,
                          q_ref, k_ref, v_ref, m_ref,
                          wq_ref, bq_ref, wk_ref, bk_ref, wv_ref, bv_ref,
                          wfc_ref, bfc_ref, g_ref, beta_ref, o_ref):
    f32 = jnp.float32
    TB, Lq, Cq = q_ref.shape
    _, Lk, Ck = k_ref.shape
    U = wfc_ref.shape[0]
    dh = U // head

    c = lambda a: a.astype(mm_dtype)   # matmul-operand cast (no-op for f32)

    # Flatten the batch tile into the matmul M dimension.
    q2 = q_ref[...].reshape(TB * Lq, Cq)
    k2 = k_ref[...].reshape(TB * Lk, Ck)
    v2 = v_ref[...].reshape(TB * Lk, Ck)

    # Fused Q(+downsample) / K / V projections on [TB*L, C] slabs.
    qfull = jnp.dot(c(q2), c(wq_ref[...]), preferred_element_type=f32) + bq_ref[...]
    kp = jnp.dot(c(k2), c(wk_ref[...]), preferred_element_type=f32) + bk_ref[...]
    vp = jnp.dot(c(v2), c(wv_ref[...]), preferred_element_type=f32) + bv_ref[...]

    if has_downsample:
        qp, resid = qfull[:, :U], qfull[:, U:]
    else:
        qp, resid = qfull, q2.astype(f32)

    qp3 = qp.reshape(TB, Lq, U)
    kp3 = kp.reshape(TB, Lk, U)
    vp3 = vp.reshape(TB, Lk, U)

    # Additive mask bias, hoisted out of the head loop.  Finite (-1e30), so a
    # fully-masked row gives a uniform softmax instead of NaN; for rows with
    # any valid key it is numerically identical to masked_fill(-inf).
    keep = m_ref[...] != 0                                  # [TB, 1, Lk]
    bias = jnp.where(keep, f32(0.0), f32(-1e30))
    bias = jnp.broadcast_to(bias, (TB, Lq, Lk))             # hoisted broadcast
    inv_scale = f32(1.0 / scale)

    wfc = wfc_ref[...]
    # fc(concat_h attn_h) == sum_h attn_h @ Wfc[h*dh:(h+1)*dh, :], so the
    # per-head concatenate is replaced by an fc accumulator.
    fc = jnp.zeros((TB * Lq, U), f32)
    for h in range(head):
        sl = slice(h * dh, (h + 1) * dh)
        qh = qp3[:, :, sl]                                  # [TB, Lq, dh]
        kh = kp3[:, :, sl]                                  # [TB, Lk, dh]
        vh = vp3[:, :, sl]                                  # [TB, Lk, dh]
        s = jnp.einsum("bqd,bkd->bqk", c(qh), c(kh),
                       preferred_element_type=f32)          # [TB, Lq, Lk]
        s = s * inv_scale + bias
        m = jnp.max(s, axis=-1, keepdims=True)
        e = jnp.exp(s - m)
        denom = jnp.sum(e, axis=-1, keepdims=True)
        p = e * pl.reciprocal(denom, approx=True)           # softmax(dim=-1)
        oh = jnp.einsum("bqk,bkd->bqd", c(p), c(vh),
                        preferred_element_type=f32)         # [TB, Lq, dh]
        fc = fc + jnp.dot(c(oh.reshape(TB * Lq, dh)), c(wfc[sl, :]),
                          preferred_element_type=f32)

    x = fc + bfc_ref[...] + resid                           # [TB*Lq, U]

    # LayerNorm over last dim (PyTorch semantics: biased variance, eps inside sqrt).
    mu = jnp.mean(x, axis=-1, keepdims=True)
    d = x - mu
    var = jnp.mean(d * d, axis=-1, keepdims=True)
    y = d * lax.rsqrt(var + f32(eps))
    y = y * g_ref[...] + beta_ref[...]

    # TODO(synk): a lane-dense (TB, Lq*U) output slab would remove the masked
    # 32-lane stores; kept as (TB, Lq, U) since the in-kernel relayout cost of
    # the required reshape is unverified for small U.
    o_ref[...] = y.reshape(TB, Lq, U).astype(o_ref.dtype)


# ----------------------------------------------------------------------------
# Wrapper
# ----------------------------------------------------------------------------
def attention_net_forward(params, query, key, value, mask, *, head,
                          tb=None, matmul_dtype=jnp.float32):
    B, Lq, Cq = query.shape
    _, Lk, Ck = key.shape
    U = params["wq"].shape[0]                 # out_channels / num_unit
    assert U % head == 0
    scale = 1 + int(np.sqrt(Ck))              # scale_factor_d
    has_downsample = Cq != U

    # Batch-tile: TB batch elements per grid step.  Pick the largest divisor
    # of B that still leaves >= 2 grid steps (keeps both v7x TensorCores busy).
    # Per-step VMEM at these channel sizes is far below the 32 MiB default
    # scoped limit (and v7x's 64 MiB physical VMEM), so no explicit cap needed.
    if tb is None:
        tb = B if B <= 1 else max(d for d in range(1, B // 2 + 1) if B % d == 0)
    assert tb >= 1 and B % tb == 0
    grid = (B // tb,)

    mask_i32 = mask.astype(jnp.int32).reshape(B, 1, Lk)

    # Pre-transpose weights to [in, out]; biases as [1, out] rows.  When a
    # downsample projection exists, fuse it with Q into one [Cq, 2U] matmul.
    wq_t = params["wq"].T
    bq = params["bq"].reshape(1, U)
    if has_downsample:
        wq_t = jnp.concatenate([wq_t, params["wd"].T], axis=1)     # [Cq, 2U]
        bq = jnp.concatenate([bq, params["bd"].reshape(1, U)], axis=1)
    wk_t, bk = params["wk"].T, params["bk"].reshape(1, U)
    wv_t, bv = params["wv"].T, params["bv"].reshape(1, U)
    wfc_t, bfc = params["wfc"].T, params["bfc"].reshape(1, U)
    gamma, beta = params["gamma"].reshape(1, U), params["beta"].reshape(1, U)

    inputs = [query, key, value, mask_i32,
              wq_t, bq, wk_t, bk, wv_t, bv, wfc_t, bfc, gamma, beta]

    def wspec(shape):
        return pl.BlockSpec(shape, lambda b: (0,) * len(shape))

    in_specs = [
        pl.BlockSpec((tb, Lq, Cq), lambda b: (b, 0, 0)),
        pl.BlockSpec((tb, Lk, Ck), lambda b: (b, 0, 0)),
        pl.BlockSpec((tb, Lk, Ck), lambda b: (b, 0, 0)),
        pl.BlockSpec((tb, 1, Lk), lambda b: (b, 0, 0)),
        wspec(wq_t.shape), wspec(bq.shape),
        wspec(wk_t.shape), wspec(bk.shape),
        wspec(wv_t.shape), wspec(bv.shape),
        wspec(wfc_t.shape), wspec(bfc.shape),
        wspec(gamma.shape), wspec(beta.shape),
    ]

    # Advisory cost estimate so XLA does not treat the fused call as free.
    dh = U // head
    flops = (2 * B * Lq * Cq * (2 * U if has_downsample else U)
             + 2 * 2 * B * Lk * Ck * U
             + 2 * 2 * B * head * Lq * Lk * dh
             + 2 * B * Lq * U * U
             + B * (6 * head * Lq * Lk + 12 * Lq * U))
    in_bytes = sum(int(np.prod(a.shape)) * a.dtype.itemsize for a in inputs)
    out_bytes = B * Lq * U * 4
    cost = pl.CostEstimate(flops=int(flops),
                           transcendentals=int(B * head * Lq * Lk),
                           bytes_accessed=int(in_bytes + out_bytes))

    kernel = functools.partial(_attention_net_kernel, head, scale, 1e-5,
                               has_downsample, matmul_dtype)

    return pl.pallas_call(
        kernel,
        out_shape=jax.ShapeDtypeStruct((B, Lq, U), jnp.float32),
        grid_spec=pltpu.PrefetchScalarGridSpec(
            num_scalar_prefetch=0,
            grid=grid,
            in_specs=in_specs,
            out_specs=pl.BlockSpec((tb, Lq, U), lambda b: (b, 0, 0)),
        ),
        compiler_params=pltpu.CompilerParams(
            dimension_semantics=("parallel",)),
        cost_estimate=cost,
    )(*inputs)


# ----------------------------------------------------------------------------
# Pure-JAX reference (mirrors the PyTorch forward)
# ----------------------------------------------------------------------------
def ref_attention_net(params, query, key, value, mask, *, head, eps=1e-5):
    B, Lq, Cq = query.shape
    _, Lk, Ck = key.shape
    U = params["wq"].shape[0]
    scale = 1 + int(np.sqrt(Ck))
    dh = U // head

    qp = query @ params["wq"].T + params["bq"]
    kp = key @ params["wk"].T + params["bk"]
    vp = value @ params["wv"].T + params["bv"]

    def split_heads(x):
        b, L, _ = x.shape
        return x.reshape(b, L, head, dh).transpose(2, 0, 1, 3)   # [H,B,L,dh]

    qh, kh, vh = split_heads(qp), split_heads(kp), split_heads(vp)
    scores = jnp.einsum("hbqd,hbkd->hbqk", qh, kh) / scale
    m = mask[None, :, None, :]
    scores = jnp.where(m, scores, -jnp.inf)
    probs = jax.nn.softmax(scores, axis=-1)
    out = jnp.einsum("hbqk,hbkd->hbqd", probs, vh)
    out = out.transpose(1, 2, 0, 3).reshape(B, Lq, U)

    fc = out @ params["wfc"].T + params["bfc"]
    resid = query @ params["wd"].T + params["bd"] if Cq != U else query
    x = fc + resid
    mu = x.mean(-1, keepdims=True)
    var = ((x - mu) ** 2).mean(-1, keepdims=True)
    y = (x - mu) / jnp.sqrt(var + eps)
    return y * params["gamma"] + params["beta"]


# ----------------------------------------------------------------------------
# Deterministic parameter init (Xavier-uniform-ish; synthetic, no checkpoints)
# ----------------------------------------------------------------------------
def init_params(key, q_channels, k_channels, out_channels):
    ks = jax.random.split(key, 10)

    def xavier(k, fan_out, fan_in):
        bound = float(np.sqrt(6.0 / (fan_in + fan_out)))
        return jax.random.uniform(k, (fan_out, fan_in), jnp.float32, -bound, bound)

    U = out_channels
    params = {
        "wq": xavier(ks[0], U, q_channels), "bq": jnp.zeros((U,), jnp.float32),
        "wk": xavier(ks[1], U, k_channels), "bk": jnp.zeros((U,), jnp.float32),
        "wv": xavier(ks[2], U, k_channels), "bv": jnp.zeros((U,), jnp.float32),
        "wfc": xavier(ks[3], U, U),
        "bfc": jax.random.uniform(ks[4], (U,), jnp.float32, -0.1, 0.1),
        "gamma": jnp.ones((U,), jnp.float32),
        "beta": jnp.zeros((U,), jnp.float32),
    }
    if q_channels != out_channels:
        params["wd"] = xavier(ks[5], U, q_channels)
        params["bd"] = jax.random.uniform(ks[6], (U,), jnp.float32, -0.1, 0.1)
    return params


if __name__ == "__main__":
    B, Lq, Lk = 16, 8, 16
    q_channels, k_channels, out_channels, head = 16, 24, 32, 4

    root = jax.random.PRNGKey(0)
    kp, kq, kk, kv, km = jax.random.split(root, 5)

    params = init_params(kp, q_channels, k_channels, out_channels)
    query = jax.random.normal(kq, (B, Lq, q_channels), jnp.float32)
    key = jax.random.normal(kk, (B, Lk, k_channels), jnp.float32)
    value = jax.random.normal(kv, (B, Lk, k_channels), jnp.float32)
    # Boolean mask over key positions; guarantee at least one valid key per row
    # so the (-inf) reference softmax stays finite (matches typical usage).
    mask = jax.random.bernoulli(km, 0.7, (B, Lk))
    mask = mask.at[:, 0].set(True)

    out = attention_net_forward(params, query, key, value, mask, head=head)
    out = jax.block_until_ready(out)

    ref = ref_attention_net(params, query, key, value, mask, head=head)
    # Slightly looser tolerance only because of the EUP approximate reciprocal
    # in the softmax denominator; everything else is f32-exact math.
    np.testing.assert_allclose(np.asarray(out), np.asarray(ref),
                               rtol=2e-3, atol=2e-3)
    print("KERNEL_OK")
</pallas_src>

<mosaic_0001>
module attributes {stable_mosaic.version = 11 : i64} {
  func.func @_attention_net_kernel(%arg0: i32, %arg1: memref<8x8x16xf32, #tpu.memory_space<vmem>>, %arg2: memref<8x16x24xf32, #tpu.memory_space<vmem>>, %arg3: memref<8x16x24xf32, #tpu.memory_space<vmem>>, %arg4: memref<8x1x16xi32, #tpu.memory_space<vmem>>, %arg5: memref<16x64xf32, #tpu.memory_space<vmem>>, %arg6: memref<1x64xf32, #tpu.memory_space<vmem>>, %arg7: memref<24x32xf32, #tpu.memory_space<vmem>>, %arg8: memref<1x32xf32, #tpu.memory_space<vmem>>, %arg9: memref<24x32xf32, #tpu.memory_space<vmem>>, %arg10: memref<1x32xf32, #tpu.memory_space<vmem>>, %arg11: memref<32x32xf32, #tpu.memory_space<vmem>>, %arg12: memref<1x32xf32, #tpu.memory_space<vmem>>, %arg13: memref<1x32xf32, #tpu.memory_space<vmem>>, %arg14: memref<1x32xf32, #tpu.memory_space<vmem>>, %arg15: memref<8x8x32xf32, #tpu.memory_space<vmem>>) attributes {dimension_semantics = [#tpu.dimension_semantics<parallel>], iteration_bounds = array<i64: 2>, scalar_prefetch = 0 : i64, scratch_operands = 0 : i64, tpu.core_type = #tpu.core_type<tc>, window_params = [{transform_indices = @transform_0, window_bounds = array<i64: 8, 8, 16>}, {transform_indices = @transform_1, window_bounds = array<i64: 8, 16, 24>}, {transform_indices = @transform_2, window_bounds = array<i64: 8, 16, 24>}, {transform_indices = @transform_3, window_bounds = array<i64: 8, 1, 16>}, {pipeline_mode = #tpu.pipeline_mode<synchronous>, transform_indices = @transform_4, window_bounds = array<i64: 16, 64>}, {pipeline_mode = #tpu.pipeline_mode<synchronous>, transform_indices = @transform_5, window_bounds = array<i64: 1, 64>}, {pipeline_mode = #tpu.pipeline_mode<synchronous>, transform_indices = @transform_6, window_bounds = array<i64: 24, 32>}, {pipeline_mode = #tpu.pipeline_mode<synchronous>, transform_indices = @transform_7, window_bounds = array<i64: 1, 32>}, {pipeline_mode = #tpu.pipeline_mode<synchronous>, transform_indices = @transform_8, window_bounds = array<i64: 24, 32>}, {pipeline_mode = #tpu.pipeline_mode<synchronous>, transform_indices = @transform_9, window_bounds = array<i64: 1, 32>}, {pipeline_mode = #tpu.pipeline_mode<synchronous>, transform_indices = @transform_10, window_bounds = array<i64: 32, 32>}, {pipeline_mode = #tpu.pipeline_mode<synchronous>, transform_indices = @transform_11, window_bounds = array<i64: 1, 32>}, {pipeline_mode = #tpu.pipeline_mode<synchronous>, transform_indices = @transform_12, window_bounds = array<i64: 1, 32>}, {pipeline_mode = #tpu.pipeline_mode<synchronous>, transform_indices = @transform_13, window_bounds = array<i64: 1, 32>}, {transform_indices = @transform_14, window_bounds = array<i64: 8, 8, 32>}]} {
    %c0 = arith.constant 0 : index
    %c0_0 = arith.constant 0 : index
    %c0_1 = arith.constant 0 : index
    %0 = vector.load %arg1[%c0, %c0_0, %c0_1] : memref<8x8x16xf32, #tpu.memory_space<vmem>>, vector<8x8x16xf32>
    %1 = vector.shape_cast %0 : vector<8x8x16xf32> to vector<64x16xf32>
    %c0_2 = arith.constant 0 : index
    %c0_3 = arith.constant 0 : index
    %c0_4 = arith.constant 0 : index
    %2 = vector.load %arg2[%c0_2, %c0_3, %c0_4] : memref<8x16x24xf32, #tpu.memory_space<vmem>>, vector<8x16x24xf32>
    %3 = vector.shape_cast %2 : vector<8x16x24xf32> to vector<128x24xf32>
    %c0_5 = arith.constant 0 : index
    %c0_6 = arith.constant 0 : index
    %c0_7 = arith.constant 0 : index
    %4 = vector.load %arg3[%c0_5, %c0_6, %c0_7] : memref<8x16x24xf32, #tpu.memory_space<vmem>>, vector<8x16x24xf32>
    %5 = vector.shape_cast %4 : vector<8x16x24xf32> to vector<128x24xf32>
    %c0_8 = arith.constant 0 : index
    %c0_9 = arith.constant 0 : index
    %6 = vector.load %arg5[%c0_8, %c0_9] : memref<16x64xf32, #tpu.memory_space<vmem>>, vector<16x64xf32>
    %cst = arith.constant dense<0.000000e+00> : vector<64x64xf32>
    %7 = tpu.matmul %1, %6, %cst {dimension_numbers = #tpu.dot_dimension_numbers<[1], [0], [0], [1], [0, 0, 1, 1], [], []>} : vector<64x16xf32>, vector<16x64xf32>, vector<64x64xf32> -> vector<64x64xf32>
    %c0_10 = arith.constant 0 : index
    %c0_11 = arith.constant 0 : index
    %8 = vector.load %arg6[%c0_10, %c0_11] : memref<1x64xf32, #tpu.memory_space<vmem>>, vector<1x64xf32>
    %9 = vector.broadcast %8 : vector<1x64xf32> to vector<64x64xf32>
    %10 = arith.addf %7, %9 : vector<64x64xf32>
    %c0_12 = arith.constant 0 : index
    %c0_13 = arith.constant 0 : index
    %11 = vector.load %arg7[%c0_12, %c0_13] : memref<24x32xf32, #tpu.memory_space<vmem>>, vector<24x32xf32>
    %cst_14 = arith.constant dense<0.000000e+00> : vector<128x32xf32>
    %12 = tpu.matmul %3, %11, %cst_14 {dimension_numbers = #tpu.dot_dimension_numbers<[1], [0], [0], [1], [0, 0, 1, 1], [], []>} : vector<128x24xf32>, vector<24x32xf32>, vector<128x32xf32> -> vector<128x32xf32>
    %c0_15 = arith.constant 0 : index
    %c0_16 = arith.constant 0 : index
    %13 = vector.load %arg8[%c0_15, %c0_16] : memref<1x32xf32, #tpu.memory_space<vmem>>, vector<1x32xf32>
    %14 = vector.broadcast %13 : vector<1x32xf32> to vector<128x32xf32>
    %15 = arith.addf %12, %14 : vector<128x32xf32>
    %c0_17 = arith.constant 0 : index
    %c0_18 = arith.constant 0 : index
    %16 = vector.load %arg9[%c0_17, %c0_18] : memref<24x32xf32, #tpu.memory_space<vmem>>, vector<24x32xf32>
    %cst_19 = arith.constant dense<0.000000e+00> : vector<128x32xf32>
    %17 = tpu.matmul %5, %16, %cst_19 {dimension_numbers = #tpu.dot_dimension_numbers<[1], [0], [0], [1], [0, 0, 1, 1], [], []>} : vector<128x24xf32>, vector<24x32xf32>, vector<128x32xf32> -> vector<128x32xf32>
    %c0_20 = arith.constant 0 : index
    %c0_21 = arith.constant 0 : index
    %18 = vector.load %arg10[%c0_20, %c0_21] : memref<1x32xf32, #tpu.memory_space<vmem>>, vector<1x32xf32>
    %19 = vector.broadcast %18 : vector<1x32xf32> to vector<128x32xf32>
    %20 = arith.addf %17, %19 : vector<128x32xf32>
    %21 = vector.extract_strided_slice %10 {offsets = [0, 0], sizes = [64, 32], strides = [1, 1]} : vector<64x64xf32> to vector<64x32xf32>
    %22 = vector.extract_strided_slice %10 {offsets = [0, 32], sizes = [64, 32], strides = [1, 1]} : vector<64x64xf32> to vector<64x32xf32>
    %23 = vector.shape_cast %21 : vector<64x32xf32> to vector<8x8x32xf32>
    %24 = vector.shape_cast %15 : vector<128x32xf32> to vector<8x16x32xf32>
    %25 = vector.shape_cast %20 : vector<128x32xf32> to vector<8x16x32xf32>
    %c0_22 = arith.constant 0 : index
    %c0_23 = arith.constant 0 : index
    %c0_24 = arith.constant 0 : index
    %26 = vector.load %arg4[%c0_22, %c0_23, %c0_24] : memref<8x1x16xi32, #tpu.memory_space<vmem>>, vector<8x1x16xi32>
    %c0_i32 = arith.constant 0 : i32
    %27 = vector.broadcast %c0_i32 : i32 to vector<8x1x16xi32>
    %28 = arith.cmpi ne, %26, %27 : vector<8x1x16xi32>
    %cst_25 = arith.constant 0.000000e+00 : f32
    %cst_26 = arith.constant -1.000000e+30 : f32
    %29 = vector.broadcast %cst_25 : f32 to vector<8x1x16xf32>
    %30 = vector.broadcast %cst_26 : f32 to vector<8x1x16xf32>
    %31 = arith.select %28, %29, %30 : vector<8x1x16xi1>, vector<8x1x16xf32>
    %32 = vector.shape_cast %31 : vector<8x1x16xf32> to vector<8x1x16xf32>
    %33 = vector.broadcast %32 : vector<8x1x16xf32> to vector<8x8x16xf32>
    %c0_27 = arith.constant 0 : index
    %c0_28 = arith.constant 0 : index
    %34 = vector.load %arg11[%c0_27, %c0_28] : memref<32x32xf32, #tpu.memory_space<vmem>>, vector<32x32xf32>
    %cst_29 = arith.constant 0.000000e+00 : f32
    %35 = vector.broadcast %cst_29 : f32 to vector<64x32xf32>
    %36 = vector.extract_strided_slice %23 {offsets = [0, 0, 0], sizes = [8, 8, 8], strides = [1, 1, 1]} : vector<8x8x32xf32> to vector<8x8x8xf32>
    %37 = vector.extract_strided_slice %24 {offsets = [0, 0, 0], sizes = [8, 16, 8], strides = [1, 1, 1]} : vector<8x16x32xf32> to vector<8x16x8xf32>
    %38 = vector.extract_strided_slice %25 {offsets = [0, 0, 0], sizes = [8, 16, 8], strides = [1, 1, 1]} : vector<8x16x32xf32> to vector<8x16x8xf32>
    "tpu.trace_start"() <{level = 10 : i32, message = "bqd,bkd->bqk"}> : () -> ()
    %cst_30 = arith.constant dense<0.000000e+00> : vector<8x8x16xf32>
    %39 = tpu.matmul %36, %37, %cst_30 {dimension_numbers = #tpu.dot_dimension_numbers<[2], [2], [1], [1], [0, 0, 0, 1, 1, 1], [0], [0]>} : vector<8x8x8xf32>, vector<8x16x8xf32>, vector<8x8x16xf32> -> vector<8x8x16xf32>
    "tpu.trace_stop"() : () -> ()
    %cst_31 = arith.constant 2.000000e-01 : f32
    %40 = vector.broadcast %cst_31 : f32 to vector<8x8x16xf32>
    %41 = arith.mulf %39, %40 : vector<8x8x16xf32>
    %42 = arith.addf %41, %33 : vector<8x8x16xf32>
    %cst_32 = arith.constant dense<0xFF800000> : vector<8x8xf32>
    %43 = vector.multi_reduction <maximumf>, %42, %cst_32 [2] : vector<8x8x16xf32> to vector<8x8xf32>
    %44 = vector.shape_cast %43 : vector<8x8xf32> to vector<8x8x1xf32>
    %45 = vector.broadcast %44 : vector<8x8x1xf32> to vector<8x8x16xf32>
    %46 = arith.subf %42, %45 : vector<8x8x16xf32>
    %47 = math.exp %46 : vector<8x8x16xf32>
    %cst_33 = arith.constant dense<0.000000e+00> : vector<8x8xf32>
    %48 = vector.multi_reduction <add>, %47, %cst_33 [2] : vector<8x8x16xf32> to vector<8x8xf32>
    %49 = vector.shape_cast %48 : vector<8x8xf32> to vector<8x8x1xf32>
    %50 = tpu.reciprocal %49 {approx = true} : vector<8x8x1xf32> -> vector<8x8x1xf32>
    %51 = vector.broadcast %50 : vector<8x8x1xf32> to vector<8x8x16xf32>
    %52 = arith.mulf %47, %51 : vector<8x8x16xf32>
    "tpu.trace_start"() <{level = 10 : i32, message = "bqk,bkd->bqd"}> : () -> ()
    %cst_34 = arith.constant dense<0.000000e+00> : vector<8x8x8xf32>
    %53 = tpu.matmul %52, %38, %cst_34 {dimension_numbers = #tpu.dot_dimension_numbers<[2], [1], [1], [2], [0, 0, 0, 1, 1, 2], [0], [0]>} : vector<8x8x16xf32>, vector<8x16x8xf32>, vector<8x8x8xf32> -> vector<8x8x8xf32>
    "tpu.trace_stop"() : () -> ()
    %54 = vector.shape_cast %53 : vector<8x8x8xf32> to vector<64x8xf32>
    %55 = vector.extract_strided_slice %34 {offsets = [0, 0], sizes = [8, 32], strides = [1, 1]} : vector<32x32xf32> to vector<8x32xf32>
    %cst_35 = arith.constant dense<0.000000e+00> : vector<64x32xf32>
    %56 = tpu.matmul %54, %55, %cst_35 {dimension_numbers = #tpu.dot_dimension_numbers<[1], [0], [0], [1], [0, 0, 1, 1], [], []>} : vector<64x8xf32>, vector<8x32xf32>, vector<64x32xf32> -> vector<64x32xf32>
    %57 = arith.addf %35, %56 : vector<64x32xf32>
    %58 = vector.extract_strided_slice %23 {offsets = [0, 0, 8], sizes = [8, 8, 8], strides = [1, 1, 1]} : vector<8x8x32xf32> to vector<8x8x8xf32>
    %59 = vector.extract_strided_slice %24 {offsets = [0, 0, 8], sizes = [8, 16, 8], strides = [1, 1, 1]} : vector<8x16x32xf32> to vector<8x16x8xf32>
    %60 = vector.extract_strided_slice %25 {offsets = [0, 0, 8], sizes = [8, 16, 8], strides = [1, 1, 1]} : vector<8x16x32xf32> to vector<8x16x8xf32>
    "tpu.trace_start"() <{level = 10 : i32, message = "bqd,bkd->bqk"}> : () -> ()
    %cst_36 = arith.constant dense<0.000000e+00> : vector<8x8x16xf32>
    %61 = tpu.matmul %58, %59, %cst_36 {dimension_numbers = #tpu.dot_dimension_numbers<[2], [2], [1], [1], [0, 0, 0, 1, 1, 1], [0], [0]>} : vector<8x8x8xf32>, vector<8x16x8xf32>, vector<8x8x16xf32> -> vector<8x8x16xf32>
    "tpu.trace_stop"() : () -> ()
    %cst_37 = arith.constant 2.000000e-01 : f32
    %62 = vector.broadcast %cst_37 : f32 to vector<8x8x16xf32>
    %63 = arith.mulf %61, %62 : vector<8x8x16xf32>
    %64 = arith.addf %63, %33 : vector<8x8x16xf32>
    %cst_38 = arith.constant dense<0xFF800000> : vector<8x8xf32>
    %65 = vector.multi_reduction <maximumf>, %64, %cst_38 [2] : vector<8x8x16xf32> to vector<8x8xf32>
    %66 = vector.shape_cast %65 : vector<8x8xf32> to vector<8x8x1xf32>
    %67 = vector.broadcast %66 : vector<8x8x1xf32> to vector<8x8x16xf32>
    %68 = arith.subf %64, %67 : vector<8x8x16xf32>
    %69 = math.exp %68 : vector<8x8x16xf32>
    %cst_39 = arith.constant dense<0.000000e+00> : vector<8x8xf32>
    %70 = vector.multi_reduction <add>, %69, %cst_39 [2] : vector<8x8x16xf32> to vector<8x8xf32>
    %71 = vector.shape_cast %70 : vector<8x8xf32> to vector<8x8x1xf32>
    %72 = tpu.reciprocal %71 {approx = true} : vector<8x8x1xf32> -> vector<8x8x1xf32>
    %73 = vector.broadcast %72 : vector<8x8x1xf32> to vector<8x8x16xf32>
    %74 = arith.mulf %69, %73 : vector<8x8x16xf32>
    "tpu.trace_start"() <{level = 10 : i32, message = "bqk,bkd->bqd"}> : () -> ()
    %cst_40 = arith.constant dense<0.000000e+00> : vector<8x8x8xf32>
    %75 = tpu.matmul %74, %60, %cst_40 {dimension_numbers = #tpu.dot_dimension_numbers<[2], [1], [1], [2], [0, 0, 0, 1, 1, 2], [0], [0]>} : vector<8x8x16xf32>, vector<8x16x8xf32>, vector<8x8x8xf32> -> vector<8x8x8xf32>
    "tpu.trace_stop"() : () -> ()
    %76 = vector.shape_cast %75 : vector<8x8x8xf32> to vector<64x8xf32>
    %77 = vector.extract_strided_slice %34 {offsets = [8, 0], sizes = [8, 32], strides = [1, 1]} : vector<32x32xf32> to vector<8x32xf32>
    %cst_41 = arith.constant dense<0.000000e+00> : vector<64x32xf32>
    %78 = tpu.matmul %76, %77, %cst_41 {dimension_numbers = #tpu.dot_dimension_numbers<[1], [0], [0], [1], [0, 0, 1, 1], [], []>} : vector<64x8xf32>, vector<8x32xf32>, vector<64x32xf32> -> vector<64x32xf32>
    %79 = arith.addf %57, %78 : vector<64x32xf32>
    %80 = vector.extract_strided_slice %23 {offsets = [0, 0, 16], sizes = [8, 8, 8], strides = [1, 1, 1]} : vector<8x8x32xf32> to vector<8x8x8xf32>
    %81 = vector.extract_strided_slice %24 {offsets = [0, 0, 16], sizes = [8, 16, 8], strides = [1, 1, 1]} : vector<8x16x32xf32> to vector<8x16x8xf32>
    %82 = vector.extract_strided_slice %25 {offsets = [0, 0, 16], sizes = [8, 16, 8], strides = [1, 1, 1]} : vector<8x16x32xf32> to vector<8x16x8xf32>
    "tpu.trace_start"() <{level = 10 : i32, message = "bqd,bkd->bqk"}> : () -> ()
    %cst_42 = arith.constant dense<0.000000e+00> : vector<8x8x16xf32>
    %83 = tpu.matmul %80, %81, %cst_42 {dimension_numbers = #tpu.dot_dimension_numbers<[2], [2], [1], [1], [0, 0, 0, 1, 1, 1], [0], [0]>} : vector<8x8x8xf32>, vector<8x16x8xf32>, vector<8x8x16xf32> -> vector<8x8x16xf32>
    "tpu.trace_stop"() : () -> ()
    %cst_43 = arith.constant 2.000000e-01 : f32
    %84 = vector.broadcast %cst_43 : f32 to vector<8x8x16xf32>
    %85 = arith.mulf %83, %84 : vector<8x8x16xf32>
    %86 = arith.addf %85, %33 : vector<8x8x16xf32>
    %cst_44 = arith.constant dense<0xFF800000> : vector<8x8xf32>
    %87 = vector.multi_reduction <maximumf>, %86, %cst_44 [2] : vector<8x8x16xf32> to vector<8x8xf32>
    %88 = vector.shape_cast %87 : vector<8x8xf32> to vector<8x8x1xf32>
    %89 = vector.broadcast %88 : vector<8x8x1xf32> to vector<8x8x16xf32>
    %90 = arith.subf %86, %89 : vector<8x8x16xf32>
    %91 = math.exp %90 : vector<8x8x16xf32>
    %cst_45 = arith.constant dense<0.000000e+00> : vector<8x8xf32>
    %92 = vector.multi_reduction <add>, %91, %cst_45 [2] : vector<8x8x16xf32> to vector<8x8xf32>
    %93 = vector.shape_cast %92 : vector<8x8xf32> to vector<8x8x1xf32>
    %94 = tpu.reciprocal %93 {approx = true} : vector<8x8x1xf32> -> vector<8x8x1xf32>
    %95 = vector.broadcast %94 : vector<8x8x1xf32> to vector<8x8x16xf32>
    %96 = arith.mulf %91, %95 : vector<8x8x16xf32>
    "tpu.trace_start"() <{level = 10 : i32, message = "bqk,bkd->bqd"}> : () -> ()
    %cst_46 = arith.constant dense<0.000000e+00> : vector<8x8x8xf32>
    %97 = tpu.matmul %96, %82, %cst_46 {dimension_numbers = #tpu.dot_dimension_numbers<[2], [1], [1], [2], [0, 0, 0, 1, 1, 2], [0], [0]>} : vector<8x8x16xf32>, vector<8x16x8xf32>, vector<8x8x8xf32> -> vector<8x8x8xf32>
    "tpu.trace_stop"() : () -> ()
    %98 = vector.shape_cast %97 : vector<8x8x8xf32> to vector<64x8xf32>
    %99 = vector.extract_strided_slice %34 {offsets = [16, 0], sizes = [8, 32], strides = [1, 1]} : vector<32x32xf32> to vector<8x32xf32>
    %cst_47 = arith.constant dense<0.000000e+00> : vector<64x32xf32>
    %100 = tpu.matmul %98, %99, %cst_47 {dimension_numbers = #tpu.dot_dimension_numbers<[1], [0], [0], [1], [0, 0, 1, 1], [], []>} : vector<64x8xf32>, vector<8x32xf32>, vector<64x32xf32> -> vector<64x32xf32>
    %101 = arith.addf %79, %100 : vector<64x32xf32>
    %102 = vector.extract_strided_slice %23 {offsets = [0, 0, 24], sizes = [8, 8, 8], strides = [1, 1, 1]} : vector<8x8x32xf32> to vector<8x8x8xf32>
    %103 = vector.extract_strided_slice %24 {offsets = [0, 0, 24], sizes = [8, 16, 8], strides = [1, 1, 1]} : vector<8x16x32xf32> to vector<8x16x8xf32>
    %104 = vector.extract_strided_slice %25 {offsets = [0, 0, 24], sizes = [8, 16, 8], strides = [1, 1, 1]} : vector<8x16x32xf32> to vector<8x16x8xf32>
    "tpu.trace_start"() <{level = 10 : i32, message = "bqd,bkd->bqk"}> : () -> ()
    %cst_48 = arith.constant dense<0.000000e+00> : vector<8x8x16xf32>
    %105 = tpu.matmul %102, %103, %cst_48 {dimension_numbers = #tpu.dot_dimension_numbers<[2], [2], [1], [1], [0, 0, 0, 1, 1, 1], [0], [0]>} : vector<8x8x8xf32>, vector<8x16x8xf32>, vector<8x8x16xf32> -> vector<8x8x16xf32>
    "tpu.trace_stop"() : () -> ()
    %cst_49 = arith.constant 2.000000e-01 : f32
    %106 = vector.broadcast %cst_49 : f32 to vector<8x8x16xf32>
    %107 = arith.mulf %105, %106 : vector<8x8x16xf32>
    %108 = arith.addf %107, %33 : vector<8x8x16xf32>
    %cst_50 = arith.constant dense<0xFF800000> : vector<8x8xf32>
    %109 = vector.multi_reduction <maximumf>, %108, %cst_50 [2] : vector<8x8x16xf32> to vector<8x8xf32>
    %110 = vector.shape_cast %109 : vector<8x8xf32> to vector<8x8x1xf32>
    %111 = vector.broadcast %110 : vector<8x8x1xf32> to vector<8x8x16xf32>
    %112 = arith.subf %108, %111 : vector<8x8x16xf32>
    %113 = math.exp %112 : vector<8x8x16xf32>
    %cst_51 = arith.constant dense<0.000000e+00> : vector<8x8xf32>
    %114 = vector.multi_reduction <add>, %113, %cst_51 [2] : vector<8x8x16xf32> to vector<8x8xf32>
    %115 = vector.shape_cast %114 : vector<8x8xf32> to vector<8x8x1xf32>
    %116 = tpu.reciprocal %115 {approx = true} : vector<8x8x1xf32> -> vector<8x8x1xf32>
    %117 = vector.broadcast %116 : vector<8x8x1xf32> to vector<8x8x16xf32>
    %118 = arith.mulf %113, %117 : vector<8x8x16xf32>
    "tpu.trace_start"() <{level = 10 : i32, message = "bqk,bkd->bqd"}> : () -> ()
    %cst_52 = arith.constant dense<0.000000e+00> : vector<8x8x8xf32>
    %119 = tpu.matmul %118, %104, %cst_52 {dimension_numbers = #tpu.dot_dimension_numbers<[2], [1], [1], [2], [0, 0, 0, 1, 1, 2], [0], [0]>} : vector<8x8x16xf32>, vector<8x16x8xf32>, vector<8x8x8xf32> -> vector<8x8x8xf32>
    "tpu.trace_stop"() : () -> ()
    %120 = vector.shape_cast %119 : vector<8x8x8xf32> to vector<64x8xf32>
    %121 = vector.extract_strided_slice %34 {offsets = [24, 0], sizes = [8, 32], strides = [1, 1]} : vector<32x32xf32> to vector<8x32xf32>
    %cst_53 = arith.constant dense<0.000000e+00> : vector<64x32xf32>
    %122 = tpu.matmul %120, %121, %cst_53 {dimension_numbers = #tpu.dot_dimension_numbers<[1], [0], [0], [1], [0, 0, 1, 1], [], []>} : vector<64x8xf32>, vector<8x32xf32>, vector<64x32xf32> -> vector<64x32xf32>
    %123 = arith.addf %101, %122 : vector<64x32xf32>
    %c0_54 = arith.constant 0 : index
    %c0_55 = arith.constant 0 : index
    %124 = vector.load %arg12[%c0_54, %c0_55] : memref<1x32xf32, #tpu.memory_space<vmem>>, vector<1x32xf32>
    %125 = vector.broadcast %124 : vector<1x32xf32> to vector<64x32xf32>
    %126 = arith.addf %123, %125 : vector<64x32xf32>
    %127 = arith.addf %126, %22 : vector<64x32xf32>
    %cst_56 = arith.constant dense<0.000000e+00> : vector<64xf32>
    %128 = vector.multi_reduction <add>, %127, %cst_56 [1] : vector<64x32xf32> to vector<64xf32>
    %129 = vector.shape_cast %128 : vector<64xf32> to vector<64x1xf32>
    %cst_57 = arith.constant 3.200000e+01 : f32
    %130 = vector.broadcast %cst_57 : f32 to vector<64x1xf32>
    %131 = arith.divf %129, %130 : vector<64x1xf32>
    %132 = vector.broadcast %131 : vector<64x1xf32> to vector<64x32xf32>
    %133 = arith.subf %127, %132 : vector<64x32xf32>
    %134 = arith.mulf %133, %133 : vector<64x32xf32>
    %cst_58 = arith.constant dense<0.000000e+00> : vector<64xf32>
    %135 = vector.multi_reduction <add>, %134, %cst_58 [1] : vector<64x32xf32> to vector<64xf32>
    %136 = vector.shape_cast %135 : vector<64xf32> to vector<64x1xf32>
    %cst_59 = arith.constant 3.200000e+01 : f32
    %137 = vector.broadcast %cst_59 : f32 to vector<64x1xf32>
    %138 = arith.divf %136, %137 : vector<64x1xf32>
    %cst_60 = arith.constant 9.99999974E-6 : f32
    %139 = vector.broadcast %cst_60 : f32 to vector<64x1xf32>
    %140 = arith.addf %138, %139 : vector<64x1xf32>
    %141 = math.rsqrt %140 : vector<64x1xf32>
    %142 = vector.broadcast %141 : vector<64x1xf32> to vector<64x32xf32>
    %143 = arith.mulf %133, %142 : vector<64x32xf32>
    %c0_61 = arith.constant 0 : index
    %c0_62 = arith.constant 0 : index
    %144 = vector.load %arg13[%c0_61, %c0_62] : memref<1x32xf32, #tpu.memory_space<vmem>>, vector<1x32xf32>
    %145 = vector.broadcast %144 : vector<1x32xf32> to vector<64x32xf32>
    %146 = arith.mulf %143, %145 : vector<64x32xf32>
    %c0_63 = arith.constant 0 : index
    %c0_64 = arith.constant 0 : index
    %147 = vector.load %arg14[%c0_63, %c0_64] : memref<1x32xf32, #tpu.memory_space<vmem>>, vector<1x32xf32>
    %148 = vector.broadcast %147 : vector<1x32xf32> to vector<64x32xf32>
    %149 = arith.addf %146, %148 : vector<64x32xf32>
    %150 = vector.shape_cast %149 : vector<64x32xf32> to vector<8x8x32xf32>
    %c0_65 = arith.constant 0 : index
    %c0_66 = arith.constant 0 : index
    %c0_67 = arith.constant 0 : index
    %151 = vector.load %arg15[%c0_65, %c0_66, %c0_67] : memref<8x8x32xf32, #tpu.memory_space<vmem>>, vector<8x8x32xf32>
    tpu.vector_store %arg15[%c0_65, %c0_66, %c0_67], %150 {strides = array<i32>} : memref<8x8x32xf32, #tpu.memory_space<vmem>>, vector<8x8x32xf32>,
    return
  }
  func.func @transform_0(%arg0: i32) -> (i32, i32, i32) {
    %c0_i32 = arith.constant 0 : i32
    %c0_i32_0 = arith.constant 0 : i32
    %c0_i32_1 = arith.constant 0 : i32
    return %arg0, %c0_i32, %c0_i32_0 : i32, i32, i32
  }
  func.func @transform_1(%arg0: i32) -> (i32, i32, i32) {
    %c0_i32 = arith.constant 0 : i32
    %c0_i32_0 = arith.constant 0 : i32
    %c0_i32_1 = arith.constant 0 : i32
    return %arg0, %c0_i32, %c0_i32_0 : i32, i32, i32
  }
  func.func @transform_2(%arg0: i32) -> (i32, i32, i32) {
    %c0_i32 = arith.constant 0 : i32
    %c0_i32_0 = arith.constant 0 : i32
    %c0_i32_1 = arith.constant 0 : i32
    return %arg0, %c0_i32, %c0_i32_0 : i32, i32, i32
  }
  func.func @transform_3(%arg0: i32) -> (i32, i32, i32) {
    %c0_i32 = arith.constant 0 : i32
    %c0_i32_0 = arith.constant 0 : i32
    %c0_i32_1 = arith.constant 0 : i32
    return %arg0, %c0_i32, %c0_i32_0 : i32, i32, i32
  }
  func.func @transform_4(%arg0: i32) -> (i32, i32) {
    %c0_i32 = arith.constant 0 : i32
    %c0_i32_0 = arith.constant 0 : i32
    %c0_i32_1 = arith.constant 0 : i32
    return %c0_i32, %c0_i32_0 : i32, i32
  }
  func.func @transform_5(%arg0: i32) -> (i32, i32) {
    %c0_i32 = arith.constant 0 : i32
    %c0_i32_0 = arith.constant 0 : i32
    %c0_i32_1 = arith.constant 0 : i32
    return %c0_i32, %c0_i32_0 : i32, i32
  }
  func.func @transform_6(%arg0: i32) -> (i32, i32) {
    %c0_i32 = arith.constant 0 : i32
    %c0_i32_0 = arith.constant 0 : i32
    %c0_i32_1 = arith.constant 0 : i32
    return %c0_i32, %c0_i32_0 : i32, i32
  }
  func.func @transform_7(%arg0: i32) -> (i32, i32) {
    %c0_i32 = arith.constant 0 : i32
    %c0_i32_0 = arith.constant 0 : i32
    %c0_i32_1 = arith.constant 0 : i32
    return %c0_i32, %c0_i32_0 : i32, i32
  }
  func.func @transform_8(%arg0: i32) -> (i32, i32) {
    %c0_i32 = arith.constant 0 : i32
    %c0_i32_0 = arith.constant 0 : i32
    %c0_i32_1 = arith.constant 0 : i32
    return %c0_i32, %c0_i32_0 : i32, i32
  }
  func.func @transform_9(%arg0: i32) -> (i32, i32) {
    %c0_i32 = arith.constant 0 : i32
    %c0_i32_0 = arith.constant 0 : i32
    %c0_i32_1 = arith.constant 0 : i32
    return %c0_i32, %c0_i32_0 : i32, i32
  }
  func.func @transform_10(%arg0: i32) -> (i32, i32) {
    %c0_i32 = arith.constant 0 : i32
    %c0_i32_0 = arith.constant 0 : i32
    %c0_i32_1 = arith.constant 0 : i32
    return %c0_i32, %c0_i32_0 : i32, i32
  }
  func.func @transform_11(%arg0: i32) -> (i32, i32) {
    %c0_i32 = arith.constant 0 : i32
    %c0_i32_0 = arith.constant 0 : i32
    %c0_i32_1 = arith.constant 0 : i32
    return %c0_i32, %c0_i32_0 : i32, i32
  }
  func.func @transform_12(%arg0: i32) -> (i32, i32) {
    %c0_i32 = arith.constant 0 : i32
    %c0_i32_0 = arith.constant 0 : i32
    %c0_i32_1 = arith.constant 0 : i32
    return %c0_i32, %c0_i32_0 : i32, i32
  }
  func.func @transform_13(%arg0: i32) -> (i32, i32) {
    %c0_i32 = arith.constant 0 : i32
    %c0_i32_0 = arith.constant 0 : i32
    %c0_i32_1 = arith.constant 0 : i32
    return %c0_i32, %c0_i32_0 : i32, i32
  }
  func.func @transform_14(%arg0: i32) -> (i32, i32, i32) {
    %c0_i32 = arith.constant 0 : i32
    %c0_i32_0 = arith.constant 0 : i32
    %c0_i32_1 = arith.constant 0 : i32
    return %arg0, %c0_i32, %c0_i32_0 : i32, i32, i32
  }
}

</mosaic_0001>

<llo_original>
// kernel: tpu_custom_call.1
$region0: #{tpu_custom_call.1}
  #allocation0 [shape = 'u32[]', space=smem, size = 0x4, offset = 0x4, fixed_abs, tag = 'smem constant byte address 0x4 - core index']
  #allocation1 [shape = 'u32[144,128]{1,0:T(1,128)}', space=vmem, size = 0x12000, scoped, tag = 'internal scratch']
  %s0 = inlined_call_operand.hbm [shape: f32[16,8,16], index: 0, kind: input, shape index: {}]
  %s1 = inlined_call_operand.hbm [shape: f32[16,16,24], index: 1, kind: input, shape index: {}]
  %s2 = inlined_call_operand.hbm [shape: f32[16,16,24], index: 2, kind: input, shape index: {}]
  %s3 = inlined_call_operand.hbm [shape: s32[16,1,16], index: 3, kind: input, shape index: {}]
  %s4 = inlined_call_operand.hbm [shape: f32[16,64], index: 4, kind: input, shape index: {}]
  %s5 = inlined_call_operand.vmem [shape: f32[1,64], index: 5, kind: input, shape index: {}]
  %s6 = inlined_call_operand.hbm [shape: f32[24,32], index: 6, kind: input, shape index: {}]
  %s7 = inlined_call_operand.vmem [shape: f32[1,32], index: 7, kind: input, shape index: {}]
  %s8 = inlined_call_operand.hbm [shape: f32[24,32], index: 8, kind: input, shape index: {}]
  %s9 = inlined_call_operand.vmem [shape: f32[1,32], index: 9, kind: input, shape index: {}]
  %s10 = inlined_call_operand.vmem [shape: f32[32,32], index: 10, kind: input, shape index: {}]
  %s11 = inlined_call_operand.vmem [shape: f32[1,32], index: 11, kind: input, shape index: {}]
  %s12 = inlined_call_operand.vmem [shape: f32[1,32], index: 12, kind: input, shape index: {}]
  %s13 = inlined_call_operand.vmem [shape: f32[1,32], index: 13, kind: input, shape index: {}]
  %s14 = inlined_call_operand.hbm [shape: f32[16,8,32], index: 14, kind: output, shape index: {}]
  %s15 = sld [smem:[#allocation0]]
  $region117: #{tpu_custom_call.1} parent=0
    _
  %s17 = ssub.s32 1, %s15
  %s18 = scalar_select 0, %s17, %s15
  $region1: #{tpu_custom_call.1} parent=0
    #allocation2 [shape = 'u8[65536]{0}', space=vmem, size = 0x10000, scoped, tag = 'input window, operand 0']
    #allocation3 [shape = 's32[2]{0}', space=sflag, size = 0x8, scoped, tag = 'scoped memory for tpu_custom_call.1']
    #allocation4 [shape = 's32[2]{0}', space=sflag, size = 0x8, scoped, tag = 'scoped memory for tpu_custom_call.1']
    #allocation5 [shape = 'u8[131072]{0}', space=vmem, size = 0x20000, scoped, tag = 'input window, operand 1']
    #allocation6 [shape = 's32[2]{0}', space=sflag, size = 0x8, scoped, tag = 'scoped memory for tpu_custom_call.1']
    #allocation7 [shape = 'u8[131072]{0}', space=vmem, size = 0x20000, scoped, tag = 'input window, operand 2']
    #allocation8 [shape = 'u8[8192]{0}', space=vmem, size = 0x2000, scoped, tag = 'input window, operand 3']
    #allocation9 [shape = 's32[2]{0}', space=sflag, size = 0x8, scoped, tag = 'scoped memory for tpu_custom_call.1']
    #allocation10 [shape = 'u8[8192]{0}', space=vmem, size = 0x2000, scoped, tag = 'input window, operand 4, single buffered']
    #allocation11 [shape = 'u8[12288]{0}', space=vmem, size = 0x3000, scoped, tag = 'input window, operand 6, single buffered']
    #allocation12 [shape = 's32[1]{0}', space=sflag, size = 0x4, scoped, tag = 'scoped memory for tpu_custom_call.1']
    #allocation13 [shape = 'u8[12288]{0}', space=vmem, size = 0x3000, scoped, tag = 'input window, operand 8, single buffered']
    #allocation14 [shape = 'u8[65536]{0}', space=vmem, size = 0x10000, scoped, tag = 'output window, operand 0']
    %19 = vsyncpa [#allocation3], 0
    %s20 = scalar_lea.sflag [#allocation3], 1
    %21 = vsyncpa %s20, 0
    %22 = vsyncpa [#allocation6], 0
    %s23 = scalar_lea.sflag [#allocation6], 1
    %24 = vsyncpa %s23, 0
    %25 = vsyncpa [#allocation9], 0
    %s26 = scalar_lea.sflag [#allocation9], 1
    %27 = vsyncpa %s26, 0
    %28 = vsyncpa [#allocation12], 0
    %29 = vsyncpa [#allocation4], 0
    %s30 = scalar_lea.sflag [#allocation4], 1
    %31 = vsyncpa %s30, 0
    loop: start=0, step=1, limit=4
    $region2: #{tpu_custom_call.1} parent=1 // loop_pre_header
      _
    $region3: #{tpu_custom_call.1} parent=1 // loop_header
      %s33 = sphi 0, %s37
      %p34 = scmp.ge.s32.totalorder %s33, 4
      %s43 = sphi 0, %s45
      %s46 = sphi 0, %s43
      %s47 = sphi 0, %s46
      %s63 = sphi 0, %s47
      %s69 = sphi 0, %s71
      %s72 = sphi 0, %s69
      %s73 = sphi 0, %s72
      %s89 = sphi 0, %s73
      %s95 = sphi 0, %s97
      %s98 = sphi 0, %s95
      %s99 = sphi 0, %s98
      %s115 = sphi 0, %s99
      %s121 = sphi 0, %s123
      %s124 = sphi 0, %s121
      %s125 = sphi 0, %s124
      %s141 = sphi 0, %s125
      %s145 = sphi 0, %s145
      %s147 = sphi 0, %s145
      %s148 = sphi 0, %s147
      %s162 = sphi 0, %s148
      %s166 = sphi 0, %s166
      %s168 = sphi 0, %s166
      %s169 = sphi 0, %s168
      %s183 = sphi 0, %s169
      %s187 = sphi 0, %s187
      %s189 = sphi 0, %s187
      %s190 = sphi 0, %s189
      %s204 = sphi 0, %s190
      %s208 = sphi 0, %s208
      %s210 = sphi 0, %s208
      %s211 = sphi 0, %s210
      %s225 = sphi 0, %s211
      %s229 = sphi 0, %s229
      %s231 = sphi 0, %s229
      %s232 = sphi 0, %s231
      %s246 = sphi 0, %s232
      %s250 = sphi 0, %s250
      %s252 = sphi 0, %s250
      %s253 = sphi 0, %s252
      %s267 = sphi 0, %s253
      %s271 = sphi 0, %s271
      %s273 = sphi 0, %s271
      %s274 = sphi 0, %s273
      %s288 = sphi 0, %s274
      %s292 = sphi 0, %s292
      %s294 = sphi 0, %s292
      %s295 = sphi 0, %s294
      %s309 = sphi 0, %s295
      %s313 = sphi 0, %s313
      %s315 = sphi 0, %s313
      %s316 = sphi 0, %s315
      %s330 = sphi 0, %s316
      %s334 = sphi 0, %s334
      %s336 = sphi 0, %s334
      %s337 = sphi 0, %s336
      %s351 = sphi 0, %s337
      %s357 = sphi 0, %s359
      %s360 = sphi 0, %s357
      %s361 = sphi 0, %s360
      %s377 = sphi 0, %s361
    $region4: #{tpu_custom_call.1} parent=1 // loop_header_branch
      %36 = sbr.rel (%p34) target = $region8
    $region5: #{tpu_custom_call.1} parent=1 // loop_body
      %s38 = ssub.s32 %s33, 1
      %s39 = ssub.s32 %s33, 2
      %s40 = sadd.s32 %s33, 1
      %s41 = ssub.s32 %s33, %s40
      %p42 = scmp.eq.s32.totalorder %s41, 0
      %s44 = sadd.s32 %s43, 1
      %s45 = scalar_select %p42, %s43, %s44
      %p48 = pneg %p42
      %p49 = scmp.eq.s32.totalorder %s33, 1
      %p50 = por %p48, %p49
      %p51 = scmp.ne.s32.totalorder %s43, %s46
      %p52 = scmp.eq.s32.totalorder %s33, 0
      %p53 = por %p51, %p52
      %p54 = scmp.ne.s32.totalorder %s43, %s46
      %p55 = scmp.eq.s32.totalorder %s38, 1
      %p56 = por %p54, %p55
      %p57 = scmp.ne.s32.totalorder %s46, %s47
      %p58 = scmp.eq.s32.totalorder %s38, 0
      %p59 = por %p57, %p58
      %p60 = scmp.ne.s32.totalorder %s46, %s47
      %p61 = scmp.eq.s32.totalorder %s39, 1
      %p62 = por %p60, %p61
      %p64 = scmp.ne.s32.totalorder %s47, %s63
      %p65 = scmp.eq.s32.totalorder %s39, 0
      %p66 = por %p64, %p65
      %s67 = ssub.s32 %s33, %s40
      %p68 = scmp.eq.s32.totalorder %s67, 0
      %s70 = sadd.s32 %s69, 1
      %s71 = scalar_select %p68, %s69, %s70
      %p74 = pneg %p68
      %p75 = scmp.eq.s32.totalorder %s33, 1
      %p76 = por %p74, %p75
      %p77 = scmp.ne.s32.totalorder %s69, %s72
      %p78 = scmp.eq.s32.totalorder %s33, 0
      %p79 = por %p77, %p78
      %p80 = scmp.ne.s32.totalorder %s69, %s72
      %p81 = scmp.eq.s32.totalorder %s38, 1
      %p82 = por %p80, %p81
      %p83 = scmp.ne.s32.totalorder %s72, %s73
      %p84 = scmp.eq.s32.totalorder %s38, 0
      %p85 = por %p83, %p84
      %p86 = scmp.ne.s32.totalorder %s72, %s73
      %p87 = scmp.eq.s32.totalorder %s39, 1
      %p88 = por %p86, %p87
      %p90 = scmp.ne.s32.totalorder %s73, %s89
      %p91 = scmp.eq.s32.totalorder %s39, 0
      %p92 = por %p90, %p91
      %s93 = ssub.s32 %s33, %s40
      %p94 = scmp.eq.s32.totalorder %s93, 0
      %s96 = sadd.s32 %s95, 1
      %s97 = scalar_select %p94, %s95, %s96
      %p100 = pneg %p94
      %p101 = scmp.eq.s32.totalorder %s33, 1
      %p102 = por %p100, %p101
      %p103 = scmp.ne.s32.totalorder %s95, %s98
      %p104 = scmp.eq.s32.totalorder %s33, 0
      %p105 = por %p103, %p104
      %p106 = scmp.ne.s32.totalorder %s95, %s98
      %p107 = scmp.eq.s32.totalorder %s38, 1
      %p108 = por %p106, %p107
      %p109 = scmp.ne.s32.totalorder %s98, %s99
      %p110 = scmp.eq.s32.totalorder %s38, 0
      %p111 = por %p109, %p110
      %p112 = scmp.ne.s32.totalorder %s98, %s99
      %p113 = scmp.eq.s32.totalorder %s39, 1
      %p114 = por %p112, %p113
      %p116 = scmp.ne.s32.totalorder %s99, %s115
      %p117 = scmp.eq.s32.totalorder %s39, 0
      %p118 = por %p116, %p117
      %s119 = ssub.s32 %s33, %s40
      %p120 = scmp.eq.s32.totalorder %s119, 0
      %s122 = sadd.s32 %s121, 1
      %s123 = scalar_select %p120, %s121, %s122
      %p126 = pneg %p120
      %p127 = scmp.eq.s32.totalorder %s33, 1
      %p128 = por %p126, %p127
      %p129 = scmp.ne.s32.totalorder %s121, %s124
      %p130 = scmp.eq.s32.totalorder %s33, 0
      %p131 = por %p129, %p130
      %p132 = scmp.ne.s32.totalorder %s121, %s124
      %p133 = scmp.eq.s32.totalorder %s38, 1
      %p134 = por %p132, %p133
      %p135 = scmp.ne.s32.totalorder %s124, %s125
      %p136 = scmp.eq.s32.totalorder %s38, 0
      %p137 = por %p135, %p136
      %p138 = scmp.ne.s32.totalorder %s124, %s125
      %p139 = scmp.eq.s32.totalorder %s39, 1
      %p140 = por %p138, %p139
      %p142 = scmp.ne.s32.totalorder %s125, %s141
      %p143 = scmp.eq.s32.totalorder %s39, 0
      %p144 = por %p142, %p143
      %s146 = sadd.s32 %s145, 1
      %p149 = scmp.eq.s32.totalorder %s33, 1
      %p150 = scmp.ne.s32.totalorder %s145, %s147
      %p151 = scmp.eq.s32.totalorder %s33, 0
      %p152 = por %p150, %p151
      %p153 = scmp.ne.s32.totalorder %s145, %s147
      %p154 = scmp.eq.s32.totalorder %s38, 1
      %p155 = por %p153, %p154
      %p156 = scmp.ne.s32.totalorder %s147, %s148
      %p157 = scmp.eq.s32.totalorder %s38, 0
      %p158 = por %p156, %p157
      %p159 = scmp.ne.s32.totalorder %s147, %s148
      %p160 = scmp.eq.s32.totalorder %s39, 1
      %p161 = por %p159, %p160
      %p163 = scmp.ne.s32.totalorder %s148, %s162
      %p164 = scmp.eq.s32.totalorder %s39, 0
      %p165 = por %p163, %p164
      %s167 = sadd.s32 %s166, 1
      %p170 = scmp.eq.s32.totalorder %s33, 1
      %p171 = scmp.ne.s32.totalorder %s166, %s168
      %p172 = scmp.eq.s32.totalorder %s33, 0
      %p173 = por %p171, %p172
      %p174 = scmp.ne.s32.totalorder %s166, %s168
      %p175 = scmp.eq.s32.totalorder %s38, 1
      %p176 = por %p174, %p175
      %p177 = scmp.ne.s32.totalorder %s168, %s169
      %p178 = scmp.eq.s32.totalorder %s38, 0
      %p179 = por %p177, %p178
      %p180 = scmp.ne.s32.totalorder %s168, %s169
      %p181 = scmp.eq.s32.totalorder %s39, 1
      %p182 = por %p180, %p181
      %p184 = scmp.ne.s32.totalorder %s169, %s183
      %p185 = scmp.eq.s32.totalorder %s39, 0
      %p186 = por %p184, %p185
      %s188 = sadd.s32 %s187, 1
      %p191 = scmp.eq.s32.totalorder %s33, 1
      %p192 = scmp.ne.s32.totalorder %s187, %s189
      %p193 = scmp.eq.s32.totalorder %s33, 0
      %p194 = por %p192, %p193
      %p195 = scmp.ne.s32.totalorder %s187, %s189
      %p196 = scmp.eq.s32.totalorder %s38, 1
      %p197 = por %p195, %p196
      %p198 = scmp.ne.s32.totalorder %s189, %s190
      %p199 = scmp.eq.s32.totalorder %s38, 0
      %p200 = por %p198, %p199
      %p201 = scmp.ne.s32.totalorder %s189, %s190
      %p202 = scmp.eq.s32.totalorder %s39, 1
      %p203 = por %p201, %p202
      %p205 = scmp.ne.s32.totalorder %s190, %s204
      %p206 = scmp.eq.s32.totalorder %s39, 0
      %p207 = por %p205, %p206
      %s209 = sadd.s32 %s208, 1
      %p212 = scmp.eq.s32.totalorder %s33, 1
      %p213 = scmp.ne.s32.totalorder %s208, %s210
      %p214 = scmp.eq.s32.totalorder %s33, 0
      %p215 = por %p213, %p214
      %p216 = scmp.ne.s32.totalorder %s208, %s210
      %p217 = scmp.eq.s32.totalorder %s38, 1
      %p218 = por %p216, %p217
      %p219 = scmp.ne.s32.totalorder %s210, %s211
      %p220 = scmp.eq.s32.totalorder %s38, 0
      %p221 = por %p219, %p220
      %p222 = scmp.ne.s32.totalorder %s210, %s211
      %p223 = scmp.eq.s32.totalorder %s39, 1
      %p224 = por %p222, %p223
      %p226 = scmp.ne.s32.totalorder %s211, %s225
      %p227 = scmp.eq.s32.totalorder %s39, 0
      %p228 = por %p226, %p227
      %s230 = sadd.s32 %s229, 1
      %p233 = scmp.eq.s32.totalorder %s33, 1
      %p234 = scmp.ne.s32.totalorder %s229, %s231
      %p235 = scmp.eq.s32.totalorder %s33, 0
      %p236 = por %p234, %p235
      %p237 = scmp.ne.s32.totalorder %s229, %s231
      %p238 = scmp.eq.s32.totalorder %s38, 1
      %p239 = por %p237, %p238
      %p240 = scmp.ne.s32.totalorder %s231, %s232
      %p241 = scmp.eq.s32.totalorder %s38, 0
      %p242 = por %p240, %p241
      %p243 = scmp.ne.s32.totalorder %s231, %s232
      %p244 = scmp.eq.s32.totalorder %s39, 1
      %p245 = por %p243, %p244
      %p247 = scmp.ne.s32.totalorder %s232, %s246
      %p248 = scmp.eq.s32.totalorder %s39, 0
      %p249 = por %p247, %p248
      %s251 = sadd.s32 %s250, 1
      %p254 = scmp.eq.s32.totalorder %s33, 1
      %p255 = scmp.ne.s32.totalorder %s250, %s252
      %p256 = scmp.eq.s32.totalorder %s33, 0
      %p257 = por %p255, %p256
      %p258 = scmp.ne.s32.totalorder %s250, %s252
      %p259 = scmp.eq.s32.totalorder %s38, 1
      %p260 = por %p258, %p259
      %p261 = scmp.ne.s32.totalorder %s252, %s253
      %p262 = scmp.eq.s32.totalorder %s38, 0
      %p263 = por %p261, %p262
      %p264 = scmp.ne.s32.totalorder %s252, %s253
      %p265 = scmp.eq.s32.totalorder %s39, 1
      %p266 = por %p264, %p265
      %p268 = scmp.ne.s32.totalorder %s253, %s267
      %p269 = scmp.eq.s32.totalorder %s39, 0
      %p270 = por %p268, %p269
      %s272 = sadd.s32 %s271, 1
      %p275 = scmp.eq.s32.totalorder %s33, 1
      %p276 = scmp.ne.s32.totalorder %s271, %s273
      %p277 = scmp.eq.s32.totalorder %s33, 0
      %p278 = por %p276, %p277
      %p279 = scmp.ne.s32.totalorder %s271, %s273
      %p280 = scmp.eq.s32.totalorder %s38, 1
      %p281 = por %p279, %p280
      %p282 = scmp.ne.s32.totalorder %s273, %s274
      %p283 = scmp.eq.s32.totalorder %s38, 0
      %p284 = por %p282, %p283
      %p285 = scmp.ne.s32.totalorder %s273, %s274
      %p286 = scmp.eq.s32.totalorder %s39, 1
      %p287 = por %p285, %p286
      %p289 = scmp.ne.s32.totalorder %s274, %s288
      %p290 = scmp.eq.s32.totalorder %s39, 0
      %p291 = por %p289, %p290
      %s293 = sadd.s32 %s292, 1
      %p296 = scmp.eq.s32.totalorder %s33, 1
      %p297 = scmp.ne.s32.totalorder %s292, %s294
      %p298 = scmp.eq.s32.totalorder %s33, 0
      %p299 = por %p297, %p298
      %p300 = scmp.ne.s32.totalorder %s292, %s294
      %p301 = scmp.eq.s32.totalorder %s38, 1
      %p302 = por %p300, %p301
      %p303 = scmp.ne.s32.totalorder %s294, %s295
      %p304 = scmp.eq.s32.totalorder %s38, 0
      %p305 = por %p303, %p304
      %p306 = scmp.ne.s32.totalorder %s294, %s295
      %p307 = scmp.eq.s32.totalorder %s39, 1
      %p308 = por %p306, %p307
      %p310 = scmp.ne.s32.totalorder %s295, %s309
      %p311 = scmp.eq.s32.totalorder %s39, 0
      %p312 = por %p310, %p311
      %s314 = sadd.s32 %s313, 1
      %p317 = scmp.eq.s32.totalorder %s33, 1
      %p318 = scmp.ne.s32.totalorder %s313, %s315
      %p319 = scmp.eq.s32.totalorder %s33, 0
      %p320 = por %p318, %p319
      %p321 = scmp.ne.s32.totalorder %s313, %s315
      %p322 = scmp.eq.s32.totalorder %s38, 1
      %p323 = por %p321, %p322
      %p324 = scmp.ne.s32.totalorder %s315, %s316
      %p325 = scmp.eq.s32.totalorder %s38, 0
      %p326 = por %p324, %p325
      %p327 = scmp.ne.s32.totalorder %s315, %s316
      %p328 = scmp.eq.s32.totalorder %s39, 1
      %p329 = por %p327, %p328
      %p331 = scmp.ne.s32.totalorder %s316, %s330
      %p332 = scmp.eq.s32.totalorder %s39, 0
      %p333 = por %p331, %p332
      %s335 = sadd.s32 %s334, 1
      %p338 = scmp.eq.s32.totalorder %s33, 1
      %p339 = scmp.ne.s32.totalorder %s334, %s336
      %p340 = scmp.eq.s32.totalorder %s33, 0
      %p341 = por %p339, %p340
      %p342 = scmp.ne.s32.totalorder %s334, %s336
      %p343 = scmp.eq.s32.totalorder %s38, 1
      %p344 = por %p342, %p343
      %p345 = scmp.ne.s32.totalorder %s336, %s337
      %p346 = scmp.eq.s32.totalorder %s38, 0
      %p347 = por %p345, %p346
      %p348 = scmp.ne.s32.totalorder %s336, %s337
      %p349 = scmp.eq.s32.totalorder %s39, 1
      %p350 = por %p348, %p349
      %p352 = scmp.ne.s32.totalorder %s337, %s351
      %p353 = scmp.eq.s32.totalorder %s39, 0
      %p354 = por %p352, %p353
      %s355 = ssub.s32 %s33, %s40
      %p356 = scmp.eq.s32.totalorder %s355, 0
      %s358 = sadd.s32 %s357, 1
      %s359 = scalar_select %p356, %s357, %s358
      %p362 = pneg %p356
      %p363 = scmp.eq.s32.totalorder %s33, 1
      %p364 = por %p362, %p363
      %p365 = scmp.ne.s32.totalorder %s357, %s360
      %p366 = scmp.eq.s32.totalorder %s33, 0
      %p367 = por %p365, %p366
      %p368 = scmp.ne.s32.totalorder %s357, %s360
      %p369 = scmp.eq.s32.totalorder %s38, 1
      %p370 = por %p368, %p369
      %p371 = scmp.ne.s32.totalorder %s360, %s361
      %p372 = scmp.eq.s32.totalorder %s38, 0
      %p373 = por %p371, %p372
      %p374 = scmp.ne.s32.totalorder %s360, %s361
      %p375 = scmp.eq.s32.totalorder %s39, 1
      %p376 = por %p374, %p375
      %p378 = scmp.ne.s32.totalorder %s361, %s377
      %p379 = scmp.eq.s32.totalorder %s39, 0
      %p380 = por %p378, %p379
      %p381 = scmp.le.s32.totalorder 1, %s33
      %p382 = scmp.lt.s32.totalorder %s33, 3
      %p383 = pnand %p381, %p382
      %p384 = pneg %p383
      // Predicated region
      $region9: #{tpu_custom_call.1} parent=5 // pred_check
        _
      $region10: #{tpu_custom_call.1} parent=5 // pred_check_branch
        %386 = sbr.rel (%p383) target = $region12
      $region11: #{tpu_custom_call.1} parent=5 // pred_region
        %s387 = ssub.s32 %s33, 1
        // Predicated region
        $region13: #{tpu_custom_call.1} parent=11 // pred_check
          %p388 = pneg %p158
        $region14: #{tpu_custom_call.1} parent=11 // pred_check_branch
          %390 = sbr.rel (%p388) target = $region16
        $region15: #{tpu_custom_call.1} parent=11 // pred_region
          %s392 = ssub.s32 256, 256
          %393 = vsyncadd [#allocation9], %s392
          %s394 = sshll.u32 [#allocation10], 4
          %s395 = int_to_ptr.vmem [resolvable:$true] %s394
          %400 = dma.hbm_to_vmem [thread:$0]  %s4, 256, %s395, [#allocation9], 128, 128, 8
        $region16: #{tpu_custom_call.1} parent=11 // pred_fallthru
          _
        // Predicated region
        $region17: #{tpu_custom_call.1} parent=11 // pred_check
          %p401 = pneg %p179
        $region18: #{tpu_custom_call.1} parent=11 // pred_check_branch
          %403 = sbr.rel (%p401) target = $region20
        $region19: #{tpu_custom_call.1} parent=11 // pred_region
          _
        $region20: #{tpu_custom_call.1} parent=11 // pred_fallthru
          _
        // Predicated region
        $region21: #{tpu_custom_call.1} parent=11 // pred_check
          %p404 = pneg %p200
        $region22: #{tpu_custom_call.1} parent=11 // pred_check_branch
          %406 = sbr.rel (%p404) target = $region24
        $region23: #{tpu_custom_call.1} parent=11 // pred_region
          %s408 = ssub.s32 384, 384
          %409 = vsyncadd [#allocation12], %s408
          %s410 = sshll.u32 [#allocation11], 4
          %s411 = int_to_ptr.vmem [resolvable:$true] %s410
          %416 = dma.hbm_to_vmem [thread:$0]  %s6, 384, %s411, [#allocation12], 128, 128, 8
        $region24: #{tpu_custom_call.1} parent=11 // pred_fallthru
          _
        // Predicated region
        $region25: #{tpu_custom_call.1} parent=11 // pred_check
          %p417 = pneg %p221
        $region26: #{tpu_custom_call.1} parent=11 // pred_check_branch
          %419 = sbr.rel (%p417) target = $region28
        $region27: #{tpu_custom_call.1} parent=11 // pred_region
          _
        $region28: #{tpu_custom_call.1} parent=11 // pred_fallthru
          _
        // Predicated region
        $region29: #{tpu_custom_call.1} parent=11 // pred_check
          %p420 = pneg %p242
        $region30: #{tpu_custom_call.1} parent=11 // pred_check_branch
          %422 = sbr.rel (%p420) target = $region32
        $region31: #{tpu_custom_call.1} parent=11 // pred_region
          %s424 = ssub.s32 384, 384
          %425 = vsyncadd [#allocation12], %s424
          %s426 = sshll.u32 [#allocation13], 4
          %s427 = int_to_ptr.vmem [resolvable:$true] %s426
          %432 = dma.hbm_to_vmem [thread:$0]  %s8, 384, %s427, [#allocation12], 128, 128, 8
        $region32: #{tpu_custom_call.1} parent=11 // pred_fallthru
          _
        // Predicated region
        $region33: #{tpu_custom_call.1} parent=11 // pred_check
          %p433 = pneg %p263
        $region34: #{tpu_custom_call.1} parent=11 // pred_check_branch
          %435 = sbr.rel (%p433) target = $region36
        $region35: #{tpu_custom_call.1} parent=11 // pred_region
          _
        $region36: #{tpu_custom_call.1} parent=11 // pred_fallthru
          _
        // Predicated region
        $region37: #{tpu_custom_call.1} parent=11 // pred_check
          %p436 = pneg %p284
        $region38: #{tpu_custom_call.1} parent=11 // pred_check_branch
          %438 = sbr.rel (%p436) target = $region40
        $region39: #{tpu_custom_call.1} parent=11 // pred_region
          _
        $region40: #{tpu_custom_call.1} parent=11 // pred_fallthru
          _
        // Predicated region
        $region41: #{tpu_custom_call.1} parent=11 // pred_check
          %p439 = pneg %p305
        $region42: #{tpu_custom_call.1} parent=11 // pred_check_branch
          %441 = sbr.rel (%p439) target = $region44
        $region43: #{tpu_custom_call.1} parent=11 // pred_region
          _
        $region44: #{tpu_custom_call.1} parent=11 // pred_fallthru
          _
        // Predicated region
        $region45: #{tpu_custom_call.1} parent=11 // pred_check
          %p442 = pneg %p326
        $region46: #{tpu_custom_call.1} parent=11 // pred_check_branch
          %444 = sbr.rel (%p442) target = $region48
        $region47: #{tpu_custom_call.1} parent=11 // pred_region
          _
        $region48: #{tpu_custom_call.1} parent=11 // pred_fallthru
          _
        // Predicated region
        $region49: #{tpu_custom_call.1} parent=11 // pred_check
          %p445 = pneg %p347
        $region50: #{tpu_custom_call.1} parent=11 // pred_check_branch
          %447 = sbr.rel (%p445) target = $region52
        $region51: #{tpu_custom_call.1} parent=11 // pred_region
          _
        $region52: #{tpu_custom_call.1} parent=11 // pred_fallthru
          _
      $region12: #{tpu_custom_call.1} parent=5 // pred_fallthru
        _
      %p448 = scmp.lt.s32.totalorder %s33, 2
      // Predicated region
      $region53: #{tpu_custom_call.1} parent=5 // pred_check
        %p449 = pneg %p448
      $region54: #{tpu_custom_call.1} parent=5 // pred_check_branch
        %451 = sbr.rel (%p449) target = $region56
      $region55: #{tpu_custom_call.1} parent=5 // pred_region
        // Predicated region
        $region57: #{tpu_custom_call.1} parent=55 // pred_check
          %p452 = pneg %p53
        $region58: #{tpu_custom_call.1} parent=55 // pred_check_branch
          %454 = sbr.rel (%p452) target = $region60
        $region59: #{tpu_custom_call.1} parent=55 // pred_region
          %s455 = sand.u32 %s43, 1
          %s456 = scalar_lea.sflag [#allocation3], %s455
          %s457 = sand.u32 %s43, 1
          %s458 = smul.addr %s457, 64
          %s459 = scalar_lea.vmem [#allocation2], %s458
          %s460 = smul.u32 8, %s33
          %s462 = ssub.s32 1024, 1024
          %463 = vsyncadd %s456, %s462
          %s464 = smul.addr %s460, 128
          %s465 = scalar_lea.hbm %s0, %s464
          %s466 = sshll.u32 %s459, 4
          %s467 = int_to_ptr.vmem [resolvable:$true] %s466
          %472 = dma.hbm_to_vmem [thread:$0]  %s465, 1024, %s467, %s456, 128, 128, 8
        $region60: #{tpu_custom_call.1} parent=55 // pred_fallthru
          _
        // Predicated region
        $region61: #{tpu_custom_call.1} parent=55 // pred_check
          %p473 = pneg %p79
        $region62: #{tpu_custom_call.1} parent=55 // pred_check_branch
          %475 = sbr.rel (%p473) target = $region64
        $region63: #{tpu_custom_call.1} parent=55 // pred_region
          %s476 = sand.u32 %s33, 1
          %s477 = scalar_lea.sflag [#allocation6], %s476
          %s478 = sand.u32 %s69, 1
          %s479 = smul.addr %s478, 128
          %s480 = scalar_lea.vmem [#allocation5], %s479
          %s481 = smul.u32 8, %s33
          %s483 = ssub.s32 2048, 2048
          %484 = vsyncadd %s477, %s483
          %s485 = smul.addr %s481, 2
          %s486 = smul.addr %s485, 128
          %s487 = scalar_lea.hbm %s1, %s486
          %s488 = sshll.u32 %s480, 4
          %s489 = int_to_ptr.vmem [resolvable:$true] %s488
          %494 = dma.hbm_to_vmem [thread:$0]  %s487, 2048, %s489, %s477, 128, 128, 8
        $region64: #{tpu_custom_call.1} parent=55 // pred_fallthru
          _
        // Predicated region
        $region65: #{tpu_custom_call.1} parent=55 // pred_check
          %p495 = pneg %p105
        $region66: #{tpu_custom_call.1} parent=55 // pred_check_branch
          %497 = sbr.rel (%p495) target = $region68
        $region67: #{tpu_custom_call.1} parent=55 // pred_region
          %s498 = sand.u32 %s33, 1
          %s499 = scalar_lea.sflag [#allocation6], %s498
          %s500 = sand.u32 %s95, 1
          %s501 = smul.addr %s500, 128
          %s502 = scalar_lea.vmem [#allocation7], %s501
          %s503 = smul.u32 8, %s33
          %s505 = ssub.s32 2048, 2048
          %506 = vsyncadd %s499, %s505
          %s507 = smul.addr %s503, 2
          %s508 = smul.addr %s507, 128
          %s509 = scalar_lea.hbm %s2, %s508
          %s510 = sshll.u32 %s502, 4
          %s511 = int_to_ptr.vmem [resolvable:$true] %s510
          %516 = dma.hbm_to_vmem [thread:$0]  %s509, 2048, %s511, %s499, 128, 128, 8
        $region68: #{tpu_custom_call.1} parent=55 // pred_fallthru
          _
        // Predicated region
        $region69: #{tpu_custom_call.1} parent=55 // pred_check
          %p517 = pneg %p131
        $region70: #{tpu_custom_call.1} parent=55 // pred_check_branch
          %519 = sbr.rel (%p517) target = $region72
        $region71: #{tpu_custom_call.1} parent=55 // pred_region
          %s520 = sand.u32 %s33, 1
          %s521 = scalar_lea.sflag [#allocation9], %s520
          %s522 = sand.u32 %s121, 1
          %s523 = smul.addr %s522, 8
          %s524 = scalar_lea.vmem [#allocation8], %s523
          %s525 = smul.u32 8, %s33
          %s527 = ssub.s32 128, 128
          %528 = vsyncadd %s521, %s527
          %s529 = smul.addr %s525, 16
          %s530 = scalar_lea.hbm %s3, %s529
          %s531 = sshll.u32 %s524, 4
          %s532 = int_to_ptr.vmem [resolvable:$true] %s531
          %537 = dma.hbm_to_vmem [thread:$0]  %s530, 128, %s532, %s521, 16, 16, 1
        $region72: #{tpu_custom_call.1} parent=55 // pred_fallthru
          _
      $region56: #{tpu_custom_call.1} parent=5 // pred_fallthru
        _
      %p538 = scmp.le.s32.totalorder 1, %s33
      %p539 = scmp.lt.s32.totalorder %s33, 3
      %p540 = pnand %p538, %p539
      %p541 = pneg %p540
      // Predicated region
      $region73: #{tpu_custom_call.1} parent=5 // pred_check
        _
      $region74: #{tpu_custom_call.1} parent=5 // pred_check_branch
        %543 = sbr.rel (%p540) target = $region76
      $region75: #{tpu_custom_call.1} parent=5 // pred_region
        %s544 = ssub.s32 %s33, 1
        %s545 = sand.u32 %s46, 1
        %s546 = scalar_lea.sflag [#allocation3], %s545
        %s547 = sand.u32 %s46, 1
        %s548 = smul.addr %s547, 64
        %s549 = scalar_lea.vmem [#allocation2], %s548
        // Predicated region
        $region77: #{tpu_custom_call.1} parent=75 // pred_check
          %p550 = pneg %p59
        $region78: #{tpu_custom_call.1} parent=75 // pred_check_branch
          %552 = sbr.rel (%p550) target = $region80
        $region79: #{tpu_custom_call.1} parent=75 // pred_region
          %553 = dma.done %s546, 1024
        $region80: #{tpu_custom_call.1} parent=75 // pred_fallthru
          _
        %s554 = sand.u32 %s38, 1
        %s555 = scalar_lea.sflag [#allocation6], %s554
        %s556 = sand.u32 %s72, 1
        %s557 = smul.addr %s556, 128
        %s558 = scalar_lea.vmem [#allocation5], %s557
        // Predicated region
        $region81: #{tpu_custom_call.1} parent=75 // pred_check
          %p559 = pneg %p85
        $region82: #{tpu_custom_call.1} parent=75 // pred_check_branch
          %561 = sbr.rel (%p559) target = $region84
        $region83: #{tpu_custom_call.1} parent=75 // pred_region
          %562 = dma.done %s555, 2048
        $region84: #{tpu_custom_call.1} parent=75 // pred_fallthru
          _
        %s563 = sand.u32 %s38, 1
        %s564 = scalar_lea.sflag [#allocation6], %s563
        %s565 = sand.u32 %s98, 1
        %s566 = smul.addr %s565, 128
        %s567 = scalar_lea.vmem [#allocation7], %s566
        // Predicated region
        $region85: #{tpu_custom_call.1} parent=75 // pred_check
          %p568 = pneg %p111
        $region86: #{tpu_custom_call.1} parent=75 // pred_check_branch
          %570 = sbr.rel (%p568) target = $region88
        $region87: #{tpu_custom_call.1} parent=75 // pred_region
          %571 = dma.done %s564, 2048
        $region88: #{tpu_custom_call.1} parent=75 // pred_fallthru
          _
        %s572 = sand.u32 %s38, 1
        %s573 = scalar_lea.sflag [#allocation9], %s572
        %s574 = sand.u32 %s124, 1
        %s575 = smul.addr %s574, 8
        %s576 = scalar_lea.vmem [#allocation8], %s575
        // Predicated region
        $region89: #{tpu_custom_call.1} parent=75 // pred_check
          %p577 = pneg %p137
        $region90: #{tpu_custom_call.1} parent=75 // pred_check_branch
          %579 = sbr.rel (%p577) target = $region92
        $region91: #{tpu_custom_call.1} parent=75 // pred_region
          %580 = dma.done %s573, 128
        $region92: #{tpu_custom_call.1} parent=75 // pred_fallthru
          _
        // Predicated region
        $region93: #{tpu_custom_call.1} parent=75 // pred_check
          %p581 = pneg %p158
        $region94: #{tpu_custom_call.1} parent=75 // pred_check_branch
          %583 = sbr.rel (%p581) target = $region96
        $region95: #{tpu_custom_call.1} parent=75 // pred_region
          %584 = dma.done [#allocation9], 256
        $region96: #{tpu_custom_call.1} parent=75 // pred_fallthru
          _
        // Predicated region
        $region97: #{tpu_custom_call.1} parent=75 // pred_check
          %p585 = pneg %p200
        $region98: #{tpu_custom_call.1} parent=75 // pred_check_branch
          %587 = sbr.rel (%p585) target = $region100
        $region99: #{tpu_custom_call.1} parent=75 // pred_region
          %588 = dma.done [#allocation12], 384
        $region100: #{tpu_custom_call.1} parent=75 // pred_fallthru
          _
        // Predicated region
        $region101: #{tpu_custom_call.1} parent=75 // pred_check
          %p589 = pneg %p242
        $region102: #{tpu_custom_call.1} parent=75 // pred_check_branch
          %591 = sbr.rel (%p589) target = $region104
        $region103: #{tpu_custom_call.1} parent=75 // pred_region
          %592 = dma.done [#allocation12], 384
        $region104: #{tpu_custom_call.1} parent=75 // pred_fallthru
          _
        %s593 = sand.u32 %s46, 1
        %s594 = scalar_lea.sflag [#allocation3], %s593
        %s595 = sand.u32 %s46, 1
        %s596 = smul.addr %s595, 64
        %s597 = scalar_lea.vmem [#allocation2], %s596
        %p598 = pneg %p59
        %p599 = pneg %p56
        %s600 = sand.u32 %s38, 1
        %s601 = scalar_lea.sflag [#allocation6], %s600
        %s602 = sand.u32 %s72, 1
        %s603 = smul.addr %s602, 128
        %s604 = scalar_lea.vmem [#allocation5], %s603
        %p605 = pneg %p85
        %p606 = pneg %p82
        %s607 = sand.u32 %s38, 1
        %s608 = scalar_lea.sflag [#allocation6], %s607
        %s609 = sand.u32 %s98, 1
        %s610 = smul.addr %s609, 128
        %s611 = scalar_lea.vmem [#allocation7], %s610
        %p612 = pneg %p111
        %p613 = pneg %p108
        %s614 = sand.u32 %s38, 1
        %s615 = scalar_lea.sflag [#allocation9], %s614
        %s616 = sand.u32 %s124, 1
        %s617 = smul.addr %s616, 8
        %s618 = scalar_lea.vmem [#allocation8], %s617
        %p619 = pneg %p137
        %p620 = pneg %p134
        %p621 = pneg %p158
        %p622 = pneg %p155
        %p623 = pneg %p179
        %p624 = pneg %p176
        %p625 = pneg %p200
        %p626 = pneg %p197
        %p627 = pneg %p221
        %p628 = pneg %p218
        %p629 = pneg %p242
        %p630 = pneg %p239
        %p631 = pneg %p263
        %p632 = pneg %p260
        %p633 = pneg %p284
        %p634 = pneg %p281
        %p635 = pneg %p305
        %p636 = pneg %p302
        %p637 = pneg %p326
        %p638 = pneg %p323
        %p639 = pneg %p347
        %p640 = pneg %p344
        %p641 = pneg %p373
        %p642 = pneg %p370
        %s643 = sand.u32 %s360, 1
        %s644 = scalar_lea.sflag [#allocation4], %s643
        %s645 = sand.u32 %s360, 1
        %s646 = smul.addr %s645, 64
        %s647 = scalar_lea.vmem [#allocation14], %s646
        %s648 = smul.u32 8, %s38
        %s649 = smul.u32 8, %s38
        %s650 = smul.u32 8, %s38
        %s651 = smul.u32 8, %s38
        %s652 = smul.u32 8, %s38
        %v653 = vld [vmem:[%s549] sm:$0xff]
        %v654 = vld [vmem:[%s549 + $0x8] sm:$0xff]
        %v655 = vld [vmem:[%s549 + $0x10] sm:$0xff]
        %v656 = vld [vmem:[%s549 + $0x18] sm:$0xff]
        %v657 = vld [vmem:[%s549 + $0x20] sm:$0xff]
        %v658 = vld [vmem:[%s549 + $0x28] sm:$0xff]
        %v659 = vld [vmem:[%s549 + $0x30] sm:$0xff]
        %v660 = vld [vmem:[%s549 + $0x38] sm:$0xff]
        %v661 = vld [vmem:[%s558] sm:$0xff]
        %v662 = vld [vmem:[%s558 + $0x8] sm:$0xff]
        %v663 = vld [vmem:[%s558 + $0x10] sm:$0xff]
        %v664 = vld [vmem:[%s558 + $0x18] sm:$0xff]
        %v665 = vld [vmem:[%s558 + $0x20] sm:$0xff]
        %v666 = vld [vmem:[%s558 + $0x28] sm:$0xff]
        %v667 = vld [vmem:[%s558 + $0x30] sm:$0xff]
        %v668 = vld [vmem:[%s558 + $0x38] sm:$0xff]
        %v669 = vld [vmem:[%s558 + $0x40] sm:$0xff]
        %v670 = vld [vmem:[%s558 + $0x48] sm:$0xff]
        %v671 = vld [vmem:[%s558 + $0x50] sm:$0xff]
        %v672 = vld [vmem:[%s558 + $0x58] sm:$0xff]
        %v673 = vld [vmem:[%s558 + $0x60] sm:$0xff]
        %v674 = vld [vmem:[%s558 + $0x68] sm:$0xff]
        %v675 = vld [vmem:[%s558 + $0x70] sm:$0xff]
        %v676 = vld [vmem:[%s558 + $0x78] sm:$0xff]
        %v677 = vld [vmem:[%s567] sm:$0xff]
        %v678 = vld [vmem:[%s567 + $0x8] sm:$0xff]
        %v679 = vld [vmem:[%s567 + $0x10] sm:$0xff]
        %v680 = vld [vmem:[%s567 + $0x18] sm:$0xff]
        %v681 = vld [vmem:[%s567 + $0x20] sm:$0xff]
        %v682 = vld [vmem:[%s567 + $0x28] sm:$0xff]
        %v683 = vld [vmem:[%s567 + $0x30] sm:$0xff]
        %v684 = vld [vmem:[%s567 + $0x38] sm:$0xff]
        %v685 = vld [vmem:[%s567 + $0x40] sm:$0xff]
        %v686 = vld [vmem:[%s567 + $0x48] sm:$0xff]
        %v687 = vld [vmem:[%s567 + $0x50] sm:$0xff]
        %v688 = vld [vmem:[%s567 + $0x58] sm:$0xff]
        %v689 = vld [vmem:[%s567 + $0x60] sm:$0xff]
        %v690 = vld [vmem:[%s567 + $0x68] sm:$0xff]
        %v691 = vld [vmem:[%s567 + $0x70] sm:$0xff]
        %v692 = vld [vmem:[%s567 + $0x78] sm:$0xff]
        %v693 = vld [vmem:[#allocation10] sm:$0xff]
        %v694 = vld [vmem:[#allocation10 + $0x8] sm:$0xff]
        %v695 = vld [vmem:[%s5] sm:$0x1]
        %v697 = vlaneseq
        %v698 = vshrl.u32 %v697, 7
        %v699 = vsub.s32 0, %v698
        %v700 = vrot.slane %v695, %v699
        %vm702 = vcmask 130048
        %v704 = vsel %vm702, %v653, 0
        %v707 = vsel %vm702, %v654, 0
        %v710 = vsel %vm702, %v655, 0
        %v713 = vsel %vm702, %v656, 0
        %v716 = vsel %vm702, %v657, 0
        %v719 = vsel %vm702, %v658, 0
        %v722 = vsel %vm702, %v659, 0
        %v725 = vsel %vm702, %v660, 0
        %727 = vmatprep.subr.mxu0 0.0
        %728 = vmatpush1.msra.mxu0 %v693
        %729 = vmatprep.subr.mxu0 0.0
        %730 = vmatpush1.msra.mxu0 %v694
        %731 = vmatprep.subr.mxu0 0.0
        %732 = vmatpush1.msra.mxu0 0.0
        %733 = vmatprep.subr.mxu0 0.0
        %734 = vmatpush1.msra.mxu0 0.0
        %735 = vmatprep.subr.mxu0 0.0
        %736 = vmatpush1.msra.mxu0 0.0
        %737 = vmatprep.subr.mxu0 0.0
        %738 = vmatpush1.msra.mxu0 0.0
        %739 = vmatprep.subr.mxu0 0.0
        %740 = vmatpush1.msra.mxu0 0.0
        %741 = vmatprep.subr.mxu0 0.0
        %742 = vmatpush1.msra.mxu0 0.0
        %743 = vmatprep.subr.mxu0 0.0
        %744 = vmatpush1.msra.mxu0 0.0
        %745 = vmatprep.subr.mxu0 0.0
        %746 = vmatpush1.msra.mxu0 0.0
        %747 = vmatprep.subr.mxu0 0.0
        %748 = vmatpush1.msra.mxu0 0.0
        %749 = vmatprep.subr.mxu0 0.0
        %750 = vmatpush1.msra.mxu0 0.0
        %751 = vmatprep.subr.mxu0 0.0
        %752 = vmatpush1.msra.mxu0 0.0
        %753 = vmatprep.subr.mxu0 0.0
        %754 = vmatpush1.msra.mxu0 0.0
        %755 = vmatprep.subr.mxu0 0.0
        %756 = vmatpush1.msra.mxu0 0.0
        %757 = vmatprep.subr.mxu0 0.0
        %758 = vmatpush1.msra.mxu0 0.0
        %759 = vmatprep.subr.mxu0 0.0
        %760 = vmatpush1.msra.mxu0 0.0
        %761 = vmatprep.subr.mxu0 0.0
        %762 = vmatpush1.msra.mxu0 0.0
        %763 = vmatprep.subr.mxu0 0.0
        %764 = vmatpush1.msra.mxu0 0.0
        %765 = vmatprep.subr.mxu0 0.0
        %766 = vmatpush1.msra.mxu0 0.0
        %767 = vmatprep.subr.mxu0 0.0
        %768 = vmatpush1.msra.mxu0 0.0
        %769 = vmatprep.subr.mxu0 0.0
        %770 = vmatpush1.msra.mxu0 0.0
        %771 = vmatprep.subr.mxu0 0.0
        %772 = vmatpush1.msra.mxu0 0.0
        %773 = vmatprep.subr.mxu0 0.0
        %774 = vmatpush1.msra.mxu0 0.0
        %775 = vmatprep.subr.mxu0 0.0
        %776 = vmatpush1.msra.mxu0 0.0
        %777 = vmatprep.subr.mxu0 0.0
        %778 = vmatpush1.msra.mxu0 0.0
        %779 = vmatprep.subr.mxu0 0.0
        %780 = vmatpush1.msra.mxu0 0.0
        %781 = vmatprep.subr.mxu0 0.0
        %782 = vmatpush1.msra.mxu0 0.0
        %783 = vmatprep.subr.mxu0 0.0
        %784 = vmatpush1.msra.mxu0 0.0
        %785 = vmatprep.subr.mxu0 0.0
        %786 = vmatpush1.msra.mxu0 0.0
        %787 = vmatprep.subr.mxu0 0.0
        %788 = vmatpush1.msra.mxu0 0.0
        %789 = vmatprep.subr.mxu0 0.0
        %790 = vmatpush1.msra.mxu0 0.0
        %791 = vmatprep.mubr.f32.mxu0 0.0
        %792 = vmatmul.mubr.f32.gmra.mrb[0].mxu0 %v704
        %v793 = vpop.f32.mrb[0].mxu0
        %v794 = vadd.f32 %v700, %v793
        %v795 = vpop.f32.mrb[0].mxu0
        %796 = vmatprep.mubr.f32.mxu0 0.0
        %797 = vmatmul.mubr.f32.gmra.mrb[0].mxu0 %v707
        %v798 = vpop.f32.mrb[0].mxu0
        %v799 = vadd.f32 %v700, %v798
        %v800 = vpop.f32.mrb[0].mxu0
        %801 = vmatprep.mubr.f32.mxu0 0.0
        %802 = vmatmul.mubr.f32.gmra.mrb[0].mxu0 %v710
        %v803 = vpop.f32.mrb[0].mxu0
        %v804 = vadd.f32 %v700, %v803
        %v805 = vpop.f32.mrb[0].mxu0
        %806 = vmatprep.mubr.f32.mxu0 0.0
        %807 = vmatmul.mubr.f32.gmra.mrb[0].mxu0 %v713
        %v808 = vpop.f32.mrb[0].mxu0
        %v809 = vadd.f32 %v700, %v808
        %v810 = vpop.f32.mrb[0].mxu0
        %811 = vmatprep.mubr.f32.mxu0 0.0
        %812 = vmatmul.mubr.f32.gmra.mrb[0].mxu0 %v716
        %v813 = vpop.f32.mrb[0].mxu0
        %v814 = vadd.f32 %v700, %v813
        %v815 = vpop.f32.mrb[0].mxu0
        %816 = vmatprep.mubr.f32.mxu0 0.0
        %817 = vmatmul.mubr.f32.gmra.mrb[0].mxu0 %v719
        %v818 = vpop.f32.mrb[0].mxu0
        %v819 = vadd.f32 %v700, %v818
        %v820 = vpop.f32.mrb[0].mxu0
        %821 = vmatprep.mubr.f32.mxu0 0.0
        %822 = vmatmul.mubr.f32.gmra.mrb[0].mxu0 %v722
        %v823 = vpop.f32.mrb[0].mxu0
        %v824 = vadd.f32 %v700, %v823
        %v825 = vpop.f32.mrb[0].mxu0
        %826 = vmatprep.mubr.f32.mxu0 0.0
        %827 = vmatmul.mubr.f32.gmra.mrb[0].mxu0 %v725
        %v828 = vpop.f32.mrb[0].mxu0
        %v829 = vadd.f32 %v700, %v828
        %v830 = vpop.f32.mrb[0].mxu0
        %831 = vdwg.mxu0
        %v832 = vld [vmem:[#allocation11] sm:$0xff]
        %v833 = vld [vmem:[#allocation11 + $0x8] sm:$0xff]
        %v834 = vld [vmem:[#allocation11 + $0x10] sm:$0xff]
        %v835 = vld [vmem:[%s7] sm:$0x1]
        %v837 = vlaneseq
        %v838 = vshrl.u32 %v837, 7
        %v839 = vsub.s32 0, %v838
        %v840 = vrot.slane %v835, %v839
        %vm842 = vcmask 195584
        %v844 = vsel %vm842, %v661, 0
        %v847 = vsel %vm842, %v662, 0
        %v850 = vsel %vm842, %v663, 0
        %v853 = vsel %vm842, %v664, 0
        %v856 = vsel %vm842, %v665, 0
        %v859 = vsel %vm842, %v666, 0
        %v862 = vsel %vm842, %v667, 0
        %v865 = vsel %vm842, %v668, 0
        %v868 = vsel %vm842, %v669, 0
        %v871 = vsel %vm842, %v670, 0
        %v874 = vsel %vm842, %v671, 0
        %v877 = vsel %vm842, %v672, 0
        %v880 = vsel %vm842, %v673, 0
        %v883 = vsel %vm842, %v674, 0
        %v886 = vsel %vm842, %v675, 0
        %v889 = vsel %vm842, %v676, 0
        %891 = vmatprep.subr.mxu0 0.0
        %892 = vmatpush1.msra.mxu0 %v832
        %893 = vmatprep.subr.mxu0 0.0
        %894 = vmatpush1.msra.mxu0 %v833
        %895 = vmatprep.subr.mxu0 0.0
        %896 = vmatpush1.msra.mxu0 %v834
        %897 = vmatprep.subr.mxu0 0.0
        %898 = vmatpush1.msra.mxu0 0.0
        %899 = vmatprep.subr.mxu0 0.0
        %900 = vmatpush1.msra.mxu0 0.0
        %901 = vmatprep.subr.mxu0 0.0
        %902 = vmatpush1.msra.mxu0 0.0
        %903 = vmatprep.subr.mxu0 0.0
        %904 = vmatpush1.msra.mxu0 0.0
        %905 = vmatprep.subr.mxu0 0.0
        %906 = vmatpush1.msra.mxu0 0.0
        %907 = vmatprep.subr.mxu0 0.0
        %908 = vmatpush1.msra.mxu0 0.0
        %909 = vmatprep.subr.mxu0 0.0
        %910 = vmatpush1.msra.mxu0 0.0
        %911 = vmatprep.subr.mxu0 0.0
        %912 = vmatpush1.msra.mxu0 0.0
        %913 = vmatprep.subr.mxu0 0.0
        %914 = vmatpush1.msra.mxu0 0.0
        %915 = vmatprep.subr.mxu0 0.0
        %916 = vmatpush1.msra.mxu0 0.0
        %917 = vmatprep.subr.mxu0 0.0
        %918 = vmatpush1.msra.mxu0 0.0
        %919 = vmatprep.subr.mxu0 0.0
        %920 = vmatpush1.msra.mxu0 0.0
        %921 = vmatprep.subr.mxu0 0.0
        %922 = vmatpush1.msra.mxu0 0.0
        %923 = vmatprep.subr.mxu0 0.0
        %924 = vmatpush1.msra.mxu0 0.0
        %925 = vmatprep.subr.mxu0 0.0
        %926 = vmatpush1.msra.mxu0 0.0
        %927 = vmatprep.subr.mxu0 0.0
        %928 = vmatpush1.msra.mxu0 0.0
        %929 = vmatprep.subr.mxu0 0.0
        %930 = vmatpush1.msra.mxu0 0.0
        %931 = vmatprep.subr.mxu0 0.0
        %932 = vmatpush1.msra.mxu0 0.0
        %933 = vmatprep.subr.mxu0 0.0
        %934 = vmatpush1.msra.mxu0 0.0
        %935 = vmatprep.subr.mxu0 0.0
        %936 = vmatpush1.msra.mxu0 0.0
        %937 = vmatprep.subr.mxu0 0.0
        %938 = vmatpush1.msra.mxu0 0.0
        %939 = vmatprep.subr.mxu0 0.0
        %940 = vmatpush1.msra.mxu0 0.0
        %941 = vmatprep.subr.mxu0 0.0
        %942 = vmatpush1.msra.mxu0 0.0
        %943 = vmatprep.subr.mxu0 0.0
        %944 = vmatpush1.msra.mxu0 0.0
        %945 = vmatprep.subr.mxu0 0.0
        %946 = vmatpush1.msra.mxu0 0.0
        %947 = vmatprep.subr.mxu0 0.0
        %948 = vmatpush1.msra.mxu0 0.0
        %949 = vmatprep.subr.mxu0 0.0
        %950 = vmatpush1.msra.mxu0 0.0
        %951 = vmatprep.subr.mxu0 0.0
        %952 = vmatpush1.msra.mxu0 0.0
        %953 = vmatprep.subr.mxu0 0.0
        %954 = vmatpush1.msra.mxu0 0.0
        %955 = vmatprep.mubr.f32.mxu0 0.0
        %956 = vmatmul.mubr.f32.gmra.mrb[0].mxu0 %v844
        %v957 = vpop.f32.mrb[0].mxu0
        %v958 = vadd.f32 %v840, %v957
        %v959 = vpop.f32.mrb[0].mxu0
        %960 = vmatprep.mubr.f32.mxu0 0.0
        %961 = vmatmul.mubr.f32.gmra.mrb[0].mxu0 %v847
        %v962 = vpop.f32.mrb[0].mxu0
        %v963 = vadd.f32 %v840, %v962
        %v964 = vpop.f32.mrb[0].mxu0
        %965 = vmatprep.mubr.f32.mxu0 0.0
        %966 = vmatmul.mubr.f32.gmra.mrb[0].mxu0 %v850
        %v967 = vpop.f32.mrb[0].mxu0
        %v968 = vadd.f32 %v840, %v967
        %v969 = vpop.f32.mrb[0].mxu0
        %970 = vmatprep.mubr.f32.mxu0 0.0
        %971 = vmatmul.mubr.f32.gmra.mrb[0].mxu0 %v853
        %v972 = vpop.f32.mrb[0].mxu0
        %v973 = vadd.f32 %v840, %v972
        %v974 = vpop.f32.mrb[0].mxu0
        %975 = vmatprep.mubr.f32.mxu0 0.0
        %976 = vmatmul.mubr.f32.gmra.mrb[0].mxu0 %v856
        %v977 = vpop.f32.mrb[0].mxu0
        %v978 = vadd.f32 %v840, %v977
        %v979 = vpop.f32.mrb[0].mxu0
        %980 = vmatprep.mubr.f32.mxu0 0.0
        %981 = vmatmul.mubr.f32.gmra.mrb[0].mxu0 %v859
        %v982 = vpop.f32.mrb[0].mxu0
        %v983 = vadd.f32 %v840, %v982
        %v984 = vpop.f32.mrb[0].mxu0
        %985 = vmatprep.mubr.f32.mxu0 0.0
        %986 = vmatmul.mubr.f32.gmra.mrb[0].mxu0 %v862
        %v987 = vpop.f32.mrb[0].mxu0
        %v988 = vadd.f32 %v840, %v987
        %v989 = vpop.f32.mrb[0].mxu0
        %990 = vmatprep.mubr.f32.mxu0 0.0
        %991 = vmatmul.mubr.f32.gmra.mrb[0].mxu0 %v865
        %v992 = vpop.f32.mrb[0].mxu0
        %v993 = vadd.f32 %v840, %v992
        %v994 = vpop.f32.mrb[0].mxu0
        %995 = vmatprep.mubr.f32.mxu0 0.0
        %996 = vmatmul.mubr.f32.gmra.mrb[0].mxu0 %v868
        %v997 = vpop.f32.mrb[0].mxu0
        %v998 = vadd.f32 %v840, %v997
        %v999 = vpop.f32.mrb[0].mxu0
        %1000 = vmatprep.mubr.f32.mxu0 0.0
        %1001 = vmatmul.mubr.f32.gmra.mrb[0].mxu0 %v871
        %v1002 = vpop.f32.mrb[0].mxu0
        %v1003 = vadd.f32 %v840, %v1002
        %v1004 = vpop.f32.mrb[0].mxu0
        %1005 = vmatprep.mubr.f32.mxu0 0.0
        %1006 = vmatmul.mubr.f32.gmra.mrb[0].mxu0 %v874
        %v1007 = vpop.f32.mrb[0].mxu0
        %v1008 = vadd.f32 %v840, %v1007
        %v1009 = vpop.f32.mrb[0].mxu0
        %1010 = vmatprep.mubr.f32.mxu0 0.0
        %1011 = vmatmul.mubr.f32.gmra.mrb[0].mxu0 %v877
        %v1012 = vpop.f32.mrb[0].mxu0
        %v1013 = vadd.f32 %v840, %v1012
        %v1014 = vpop.f32.mrb[0].mxu0
        %1015 = vmatprep.mubr.f32.mxu0 0.0
        %1016 = vmatmul.mubr.f32.gmra.mrb[0].mxu0 %v880
        %v1017 = vpop.f32.mrb[0].mxu0
        %v1018 = vadd.f32 %v840, %v1017
        %v1019 = vpop.f32.mrb[0].mxu0
        %1020 = vmatprep.mubr.f32.mxu0 0.0
        %1021 = vmatmul.mubr.f32.gmra.mrb[0].mxu0 %v883
        %v1022 = vpop.f32.mrb[0].mxu0
        %v1023 = vadd.f32 %v840, %v1022
        %v1024 = vpop.f32.mrb[0].mxu0
        %1025 = vmatprep.mubr.f32.mxu0 0.0
        %1026 = vmatmul.mubr.f32.gmra.mrb[0].mxu0 %v886
        %v1027 = vpop.f32.mrb[0].mxu0
        %v1028 = vadd.f32 %v840, %v1027
        %v1029 = vpop.f32.mrb[0].mxu0
        %1030 = vmatprep.mubr.f32.mxu0 0.0
        %1031 = vmatmul.mubr.f32.gmra.mrb[0].mxu0 %v889
        %v1032 = vpop.f32.mrb[0].mxu0
        %v1033 = vadd.f32 %v840, %v1032
        %v1034 = vpop.f32.mrb[0].mxu0
        %1035 = vdwg.mxu0
        %v1036 = vld [vmem:[#allocation13] sm:$0xff]
        %v1037 = vld [vmem:[#allocation13 + $0x8] sm:$0xff]
        %v1038 = vld [vmem:[#allocation13 + $0x10] sm:$0xff]
        %v1039 = vld [vmem:[%s9] sm:$0x1]
        %v1041 = vlaneseq
        %v1042 = vshrl.u32 %v1041, 7
        %v1043 = vsub.s32 0, %v1042
        %v1044 = vrot.slane %v1039, %v1043
        %v1047 = vsel %vm842, %v677, 0
        %v1050 = vsel %vm842, %v678, 0
        %v1053 = vsel %vm842, %v679, 0
        %v1056 = vsel %vm842, %v680, 0
        %v1059 = vsel %vm842, %v681, 0
        %v1062 = vsel %vm842, %v682, 0
        %v1065 = vsel %vm842, %v683, 0
        %v1068 = vsel %vm842, %v684, 0
        %v1071 = vsel %vm842, %v685, 0
        %v1074 = vsel %vm842, %v686, 0
        %v1077 = vsel %vm842, %v687, 0
        %v1080 = vsel %vm842, %v688, 0
        %v1083 = vsel %vm842, %v689, 0
        %v1086 = vsel %vm842, %v690, 0
        %v1089 = vsel %vm842, %v691, 0
        %v1092 = vsel %vm842, %v692, 0
        %1094 = vmatprep.subr.mxu0 0.0
        %1095 = vmatpush1.msra.mxu0 %v1036
        %1096 = vmatprep.subr.mxu0 0.0
        %1097 = vmatpush1.msra.mxu0 %v1037
        %1098 = vmatprep.subr.mxu0 0.0
        %1099 = vmatpush1.msra.mxu0 %v1038
        %1100 = vmatprep.subr.mxu0 0.0
        %1101 = vmatpush1.msra.mxu0 0.0
        %1102 = vmatprep.subr.mxu0 0.0
        %1103 = vmatpush1.msra.mxu0 0.0
        %1104 = vmatprep.subr.mxu0 0.0
        %1105 = vmatpush1.msra.mxu0 0.0
        %1106 = vmatprep.subr.mxu0 0.0
        %1107 = vmatpush1.msra.mxu0 0.0
        %1108 = vmatprep.subr.mxu0 0.0
        %1109 = vmatpush1.msra.mxu0 0.0
        %1110 = vmatprep.subr.mxu0 0.0
        %1111 = vmatpush1.msra.mxu0 0.0
        %1112 = vmatprep.subr.mxu0 0.0
        %1113 = vmatpush1.msra.mxu0 0.0
        %1114 = vmatprep.subr.mxu0 0.0
        %1115 = vmatpush1.msra.mxu0 0.0
        %1116 = vmatprep.subr.mxu0 0.0
        %1117 = vmatpush1.msra.mxu0 0.0
        %1118 = vmatprep.subr.mxu0 0.0
        %1119 = vmatpush1.msra.mxu0 0.0
        %1120 = vmatprep.subr.mxu0 0.0
        %1121 = vmatpush1.msra.mxu0 0.0
        %1122 = vmatprep.subr.mxu0 0.0
        %1123 = vmatpush1.msra.mxu0 0.0
        %1124 = vmatprep.subr.mxu0 0.0
        %1125 = vmatpush1.msra.mxu0 0.0
        %1126 = vmatprep.subr.mxu0 0.0
        %1127 = vmatpush1.msra.mxu0 0.0
        %1128 = vmatprep.subr.mxu0 0.0
        %1129 = vmatpush1.msra.mxu0 0.0
        %1130 = vmatprep.subr.mxu0 0.0
        %1131 = vmatpush1.msra.mxu0 0.0
        %1132 = vmatprep.subr.mxu0 0.0
        %1133 = vmatpush1.msra.mxu0 0.0
        %1134 = vmatprep.subr.mxu0 0.0
        %1135 = vmatpush1.msra.mxu0 0.0
        %1136 = vmatprep.subr.mxu0 0.0
        %1137 = vmatpush1.msra.mxu0 0.0
        %1138 = vmatprep.subr.mxu0 0.0
        %1139 = vmatpush1.msra.mxu0 0.0
        %1140 = vmatprep.subr.mxu0 0.0
        %1141 = vmatpush1.msra.mxu0 0.0
        %1142 = vmatprep.subr.mxu0 0.0
        %1143 = vmatpush1.msra.mxu0 0.0
        %1144 = vmatprep.subr.mxu0 0.0
        %1145 = vmatpush1.msra.mxu0 0.0
        %1146 = vmatprep.subr.mxu0 0.0
        %1147 = vmatpush1.msra.mxu0 0.0
        %1148 = vmatprep.subr.mxu0 0.0
        %1149 = vmatpush1.msra.mxu0 0.0
        %1150 = vmatprep.subr.mxu0 0.0
        %1151 = vmatpush1.msra.mxu0 0.0
        %1152 = vmatprep.subr.mxu0 0.0
        %1153 = vmatpush1.msra.mxu0 0.0
        %1154 = vmatprep.subr.mxu0 0.0
        %1155 = vmatpush1.msra.mxu0 0.0
        %1156 = vmatprep.subr.mxu0 0.0
        %1157 = vmatpush1.msra.mxu0 0.0
        %1158 = vmatprep.mubr.f32.mxu0 0.0
        %1159 = vmatmul.mubr.f32.gmra.mrb[0].mxu0 %v1047
        %v1160 = vpop.f32.mrb[0].mxu0
        %v1161 = vadd.f32 %v1044, %v1160
        %v1162 = vpop.f32.mrb[0].mxu0
        %1163 = vmatprep.mubr.f32.mxu0 0.0
        %1164 = vmatmul.mubr.f32.gmra.mrb[0].mxu0 %v1050
        %v1165 = vpop.f32.mrb[0].mxu0
        %v1166 = vadd.f32 %v1044, %v1165
        %v1167 = vpop.f32.mrb[0].mxu0
        %1168 = vmatprep.mubr.f32.mxu0 0.0
        %1169 = vmatmul.mubr.f32.gmra.mrb[0].mxu0 %v1053
        %v1170 = vpop.f32.mrb[0].mxu0
        %v1171 = vadd.f32 %v1044, %v1170
        %v1172 = vpop.f32.mrb[0].mxu0
        %1173 = vmatprep.mubr.f32.mxu0 0.0
        %1174 = vmatmul.mubr.f32.gmra.mrb[0].mxu0 %v1056
        %v1175 = vpop.f32.mrb[0].mxu0
        %v1176 = vadd.f32 %v1044, %v1175
        %v1177 = vpop.f32.mrb[0].mxu0
        %1178 = vmatprep.mubr.f32.mxu0 0.0
        %1179 = vmatmul.mubr.f32.gmra.mrb[0].mxu0 %v1059
        %v1180 = vpop.f32.mrb[0].mxu0
        %v1181 = vadd.f32 %v1044, %v1180
        %v1182 = vpop.f32.mrb[0].mxu0
        %1183 = vmatprep.mubr.f32.mxu0 0.0
        %1184 = vmatmul.mubr.f32.gmra.mrb[0].mxu0 %v1062
        %v1185 = vpop.f32.mrb[0].mxu0
        %v1186 = vadd.f32 %v1044, %v1185
        %v1187 = vpop.f32.mrb[0].mxu0
        %1188 = vmatprep.mubr.f32.mxu0 0.0
        %1189 = vmatmul.mubr.f32.gmra.mrb[0].mxu0 %v1065
        %v1190 = vpop.f32.mrb[0].mxu0
        %v1191 = vadd.f32 %v1044, %v1190
        %v1192 = vpop.f32.mrb[0].mxu0
        %1193 = vmatprep.mubr.f32.mxu0 0.0
        %1194 = vmatmul.mubr.f32.gmra.mrb[0].mxu0 %v1068
        %v1195 = vpop.f32.mrb[0].mxu0
        %v1196 = vadd.f32 %v1044, %v1195
        %v1197 = vpop.f32.mrb[0].mxu0
        %1198 = vmatprep.mubr.f32.mxu0 0.0
        %1199 = vmatmul.mubr.f32.gmra.mrb[0].mxu0 %v1071
        %v1200 = vpop.f32.mrb[0].mxu0
        %v1201 = vadd.f32 %v1044, %v1200
        %v1202 = vpop.f32.mrb[0].mxu0
        %1203 = vmatprep.mubr.f32.mxu0 0.0
        %1204 = vmatmul.mubr.f32.gmra.mrb[0].mxu0 %v1074
        %v1205 = vpop.f32.mrb[0].mxu0
        %v1206 = vadd.f32 %v1044, %v1205
        %v1207 = vpop.f32.mrb[0].mxu0
        %1208 = vmatprep.mubr.f32.mxu0 0.0
        %1209 = vmatmul.mubr.f32.gmra.mrb[0].mxu0 %v1077
        %v1210 = vpop.f32.mrb[0].mxu0
        %v1211 = vadd.f32 %v1044, %v1210
        %v1212 = vpop.f32.mrb[0].mxu0
        %1213 = vmatprep.mubr.f32.mxu0 0.0
        %1214 = vmatmul.mubr.f32.gmra.mrb[0].mxu0 %v1080
        %v1215 = vpop.f32.mrb[0].mxu0
        %v1216 = vadd.f32 %v1044, %v1215
        %v1217 = vpop.f32.mrb[0].mxu0
        %1218 = vmatprep.mubr.f32.mxu0 0.0
        %1219 = vmatmul.mubr.f32.gmra.mrb[0].mxu0 %v1083
        %v1220 = vpop.f32.mrb[0].mxu0
        %v1221 = vadd.f32 %v1044, %v1220
        %v1222 = vpop.f32.mrb[0].mxu0
        %1223 = vmatprep.mubr.f32.mxu0 0.0
        %1224 = vmatmul.mubr.f32.gmra.mrb[0].mxu0 %v1086
        %v1225 = vpop.f32.mrb[0].mxu0
        %v1226 = vadd.f32 %v1044, %v1225
        %v1227 = vpop.f32.mrb[0].mxu0
        %1228 = vmatprep.mubr.f32.mxu0 0.0
        %1229 = vmatmul.mubr.f32.gmra.mrb[0].mxu0 %v1089
        %v1230 = vpop.f32.mrb[0].mxu0
        %v1231 = vadd.f32 %v1044, %v1230
        %v1232 = vpop.f32.mrb[0].mxu0
        %1233 = vmatprep.mubr.f32.mxu0 0.0
        %1234 = vmatmul.mubr.f32.gmra.mrb[0].mxu0 %v1092
        %v1235 = vpop.f32.mrb[0].mxu0
        %v1236 = vadd.f32 %v1044, %v1235
        %v1237 = vpop.f32.mrb[0].mxu0
        %1238 = vdwg.mxu0
        %v1239 = vld [vmem:[%s576] sm:$0x1]
        %v1240 = vld [vmem:[%s576 + $0x1] sm:$0x1]
        %v1241 = vld [vmem:[%s576 + $0x2] sm:$0x1]
        %v1242 = vld [vmem:[%s576 + $0x3] sm:$0x1]
        %v1243 = vld [vmem:[%s576 + $0x4] sm:$0x1]
        %v1244 = vld [vmem:[%s576 + $0x5] sm:$0x1]
        %v1245 = vld [vmem:[%s576 + $0x6] sm:$0x1]
        %v1246 = vld [vmem:[%s576 + $0x7] sm:$0x1]
        %vm1247 = vcmp.ne.s32.totalorder %v1239, 0
        %vm1248 = vcmp.ne.s32.totalorder %v1240, 0
        %vm1249 = vcmp.ne.s32.totalorder %v1241, 0
        %vm1250 = vcmp.ne.s32.totalorder %v1242, 0
        %vm1251 = vcmp.ne.s32.totalorder %v1243, 0
        %vm1252 = vcmp.ne.s32.totalorder %v1244, 0
        %vm1253 = vcmp.ne.s32.totalorder %v1245, 0
        %vm1254 = vcmp.ne.s32.totalorder %v1246, 0
        %v1255 = vsel %vm1247, 0.0, -1e+30
        %v1256 = vsel %vm1248, 0.0, -1e+30
        %v1257 = vsel %vm1249, 0.0, -1e+30
        %v1258 = vsel %vm1250, 0.0, -1e+30
        %v1259 = vsel %vm1251, 0.0, -1e+30
        %v1260 = vsel %vm1252, 0.0, -1e+30
        %v1261 = vsel %vm1253, 0.0, -1e+30
        %v1262 = vsel %vm1254, 0.0, -1e+30
        %v1271 = vlaneseq
        %v1272 = vshrl.u32 %v1271, 7
        %v1273 = vsub.s32 0, %v1272
        %v1274 = vrot.slane %v1255, %v1273
        %v1275 = vlaneseq
        %v1276 = vshrl.u32 %v1275, 7
        %v1277 = vsub.s32 0, %v1276
        %v1278 = vrot.slane %v1256, %v1277
        %v1279 = vlaneseq
        %v1280 = vshrl.u32 %v1279, 7
        %v1281 = vsub.s32 0, %v1280
        %v1282 = vrot.slane %v1257, %v1281
        %v1283 = vlaneseq
        %v1284 = vshrl.u32 %v1283, 7
        %v1285 = vsub.s32 0, %v1284
        %v1286 = vrot.slane %v1258, %v1285
        %v1287 = vlaneseq
        %v1288 = vshrl.u32 %v1287, 7
        %v1289 = vsub.s32 0, %v1288
        %v1290 = vrot.slane %v1259, %v1289
        %v1291 = vlaneseq
        %v1292 = vshrl.u32 %v1291, 7
        %v1293 = vsub.s32 0, %v1292
        %v1294 = vrot.slane %v1260, %v1293
        %v1295 = vlaneseq
        %v1296 = vshrl.u32 %v1295, 7
        %v1297 = vsub.s32 0, %v1296
        %v1298 = vrot.slane %v1261, %v1297
        %v1299 = vlaneseq
        %v1300 = vshrl.u32 %v1299, 7
        %v1301 = vsub.s32 0, %v1300
        %v1302 = vrot.slane %v1262, %v1301
        %v1311 = vld [vmem:[%s10] sm:$0xff]
        %v1312 = vld [vmem:[%s10 + $0x8] sm:$0xff]
        %v1313 = vld [vmem:[%s10 + $0x10] sm:$0xff]
        %v1314 = vld [vmem:[%s10 + $0x18] sm:$0xff]
        %vm1315 = vcmask 64512
        %v1317 = vsel %vm1315, %v794, 0
        %v1320 = vsel %vm1315, %v958, 0
        %v1323 = vsel %vm1315, %v963, 0
        %1325 = vmatprep.subr.mxu0 0.0
        %1326 = vmatpush1.xpose.msra.mxu0 %v1320
        %1327 = vmatprep.subr.mxu0 0.0
        %1328 = vmatpush1.xpose.msra.mxu0 %v1323
        %1329 = vmatprep.subr.mxu0 0.0
        %1330 = vmatpush1.xpose.msra.mxu0 0.0
        %1331 = vmatprep.subr.mxu0 0.0
        %1332 = vmatpush1.xpose.msra.mxu0 0.0
        %1333 = vmatprep.subr.mxu0 0.0
        %1334 = vmatpush1.xpose.msra.mxu0 0.0
        %1335 = vmatprep.subr.mxu0 0.0
        %1336 = vmatpush1.xpose.msra.mxu0 0.0
        %1337 = vmatprep.subr.mxu0 0.0
        %1338 = vmatpush1.xpose.msra.mxu0 0.0
        %1339 = vmatprep.subr.mxu0 0.0
        %1340 = vmatpush1.xpose.msra.mxu0 0.0
        %1341 = vmatprep.subr.mxu0 0.0
        %1342 = vmatpush1.xpose.msra.mxu0 0.0
        %1343 = vmatprep.subr.mxu0 0.0
        %1344 = vmatpush1.xpose.msra.mxu0 0.0
        %1345 = vmatprep.subr.mxu0 0.0
        %1346 = vmatpush1.xpose.msra.mxu0 0.0
        %1347 = vmatprep.subr.mxu0 0.0
        %1348 = vmatpush1.xpose.msra.mxu0 0.0
        %1349 = vmatprep.subr.mxu0 0.0
        %1350 = vmatpush1.xpose.msra.mxu0 0.0
        %1351 = vmatprep.subr.mxu0 0.0
        %1352 = vmatpush1.xpose.msra.mxu0 0.0
        %1353 = vmatprep.subr.mxu0 0.0
        %1354 = vmatpush1.xpose.msra.mxu0 0.0
        %1355 = vmatprep.subr.mxu0 0.0
        %1356 = vmatpush1.xpose.msra.mxu0 0.0
        %1357 = vmatprep.subr.mxu0 0.0
        %1358 = vmatpush1.xpose.msra.mxu0 0.0
        %1359 = vmatprep.subr.mxu0 0.0
        %1360 = vmatpush1.xpose.msra.mxu0 0.0
        %1361 = vmatprep.subr.mxu0 0.0
        %1362 = vmatpush1.xpose.msra.mxu0 0.0
        %1363 = vmatprep.subr.mxu0 0.0
        %1364 = vmatpush1.xpose.msra.mxu0 0.0
        %1365 = vmatprep.subr.mxu0 0.0
        %1366 = vmatpush1.xpose.msra.mxu0 0.0
        %1367 = vmatprep.subr.mxu0 0.0
        %1368 = vmatpush1.xpose.msra.mxu0 0.0
        %1369 = vmatprep.subr.mxu0 0.0
        %1370 = vmatpush1.xpose.msra.mxu0 0.0
        %1371 = vmatprep.subr.mxu0 0.0
        %1372 = vmatpush1.xpose.msra.mxu0 0.0
        %1373 = vmatprep.subr.mxu0 0.0
        %1374 = vmatpush1.xpose.msra.mxu0 0.0
        %1375 = vmatprep.subr.mxu0 0.0
        %1376 = vmatpush1.xpose.msra.mxu0 0.0
        %1377 = vmatprep.subr.mxu0 0.0
        %1378 = vmatpush1.xpose.msra.mxu0 0.0
        %1379 = vmatprep.subr.mxu0 0.0
        %1380 = vmatpush1.xpose.msra.mxu0 0.0
        %1381 = vmatprep.subr.mxu0 0.0
        %1382 = vmatpush1.xpose.msra.mxu0 0.0
        %1383 = vmatprep.subr.mxu0 0.0
        %1384 = vmatpush1.xpose.msra.mxu0 0.0
        %1385 = vmatprep.subr.mxu0 0.0
        %1386 = vmatpush1.xpose.msra.mxu0 0.0
        %1387 = vmatprep.subr.mxu0 0.0
        %1388 = vmatpush1.xpose.msra.mxu0 0.0
        %1389 = vmatprep.mubr.f32.mxu0 0.0
        %1390 = vmatmul.mubr.f32.gmra.mrb[0].mxu0 %v1317
        %v1391 = vpop.f32.mrb[0].mxu0
        %v1392 = vadd.f32 0.0, %v1391
        %v1393 = vpop.f32.mrb[0].mxu0
        %1394 = vdwg.mxu0
        %v1396 = vsel %vm1315, %v799, 0
        %v1399 = vsel %vm1315, %v968, 0
        %v1402 = vsel %vm1315, %v973, 0
        %1404 = vmatprep.subr.mxu0 0.0
        %1405 = vmatpush1.xpose.msra.mxu0 %v1399
        %1406 = vmatprep.subr.mxu0 0.0
        %1407 = vmatpush1.xpose.msra.mxu0 %v1402
        %1408 = vmatprep.subr.mxu0 0.0
        %1409 = vmatpush1.xpose.msra.mxu0 0.0
        %1410 = vmatprep.subr.mxu0 0.0
        %1411 = vmatpush1.xpose.msra.mxu0 0.0
        %1412 = vmatprep.subr.mxu0 0.0
        %1413 = vmatpush1.xpose.msra.mxu0 0.0
        %1414 = vmatprep.subr.mxu0 0.0
        %1415 = vmatpush1.xpose.msra.mxu0 0.0
        %1416 = vmatprep.subr.mxu0 0.0
        %1417 = vmatpush1.xpose.msra.mxu0 0.0
        %1418 = vmatprep.subr.mxu0 0.0
        %1419 = vmatpush1.xpose.msra.mxu0 0.0
        %1420 = vmatprep.subr.mxu0 0.0
        %1421 = vmatpush1.xpose.msra.mxu0 0.0
        %1422 = vmatprep.subr.mxu0 0.0
        %1423 = vmatpush1.xpose.msra.mxu0 0.0
        %1424 = vmatprep.subr.mxu0 0.0
        %1425 = vmatpush1.xpose.msra.mxu0 0.0
        %1426 = vmatprep.subr.mxu0 0.0
        %1427 = vmatpush1.xpose.msra.mxu0 0.0
        %1428 = vmatprep.subr.mxu0 0.0
        %1429 = vmatpush1.xpose.msra.mxu0 0.0
        %1430 = vmatprep.subr.mxu0 0.0
        %1431 = vmatpush1.xpose.msra.mxu0 0.0
        %1432 = vmatprep.subr.mxu0 0.0
        %1433 = vmatpush1.xpose.msra.mxu0 0.0
        %1434 = vmatprep.subr.mxu0 0.0
        %1435 = vmatpush1.xpose.msra.mxu0 0.0
        %1436 = vmatprep.subr.mxu0 0.0
        %1437 = vmatpush1.xpose.msra.mxu0 0.0
        %1438 = vmatprep.subr.mxu0 0.0
        %1439 = vmatpush1.xpose.msra.mxu0 0.0
        %1440 = vmatprep.subr.mxu0 0.0
        %1441 = vmatpush1.xpose.msra.mxu0 0.0
        %1442 = vmatprep.subr.mxu0 0.0
        %1443 = vmatpush1.xpose.msra.mxu0 0.0
        %1444 = vmatprep.subr.mxu0 0.0
        %1445 = vmatpush1.xpose.msra.mxu0 0.0
        %1446 = vmatprep.subr.mxu0 0.0
        %1447 = vmatpush1.xpose.msra.mxu0 0.0
        %1448 = vmatprep.subr.mxu0 0.0
        %1449 = vmatpush1.xpose.msra.mxu0 0.0
        %1450 = vmatprep.subr.mxu0 0.0
        %1451 = vmatpush1.xpose.msra.mxu0 0.0
        %1452 = vmatprep.subr.mxu0 0.0
        %1453 = vmatpush1.xpose.msra.mxu0 0.0
        %1454 = vmatprep.subr.mxu0 0.0
        %1455 = vmatpush1.xpose.msra.mxu0 0.0
        %1456 = vmatprep.subr.mxu0 0.0
        %1457 = vmatpush1.xpose.msra.mxu0 0.0
        %1458 = vmatprep.subr.mxu0 0.0
        %1459 = vmatpush1.xpose.msra.mxu0 0.0
        %1460 = vmatprep.subr.mxu0 0.0
        %1461 = vmatpush1.xpose.msra.mxu0 0.0
        %1462 = vmatprep.subr.mxu0 0.0
        %1463 = vmatpush1.xpose.msra.mxu0 0.0
        %1464 = vmatprep.subr.mxu0 0.0
        %1465 = vmatpush1.xpose.msra.mxu0 0.0
        %1466 = vmatprep.subr.mxu0 0.0
        %1467 = vmatpush1.xpose.msra.mxu0 0.0
        %1468 = vmatprep.mubr.f32.mxu0 0.0
        %1469 = vmatmul.mubr.f32.gmra.mrb[0].mxu0 %v1396
        %v1470 = vpop.f32.mrb[0].mxu0
        %v1471 = vadd.f32 0.0, %v1470
        %v1472 = vpop.f32.mrb[0].mxu0
        %1473 = vdwg.mxu0
        %v1475 = vsel %vm1315, %v804, 0
        %v1478 = vsel %vm1315, %v978, 0
        %v1481 = vsel %vm1315, %v983, 0
        %1483 = vmatprep.subr.mxu0 0.0
        %1484 = vmatpush1.xpose.msra.mxu0 %v1478
        %1485 = vmatprep.subr.mxu0 0.0
        %1486 = vmatpush1.xpose.msra.mxu0 %v1481
        %1487 = vmatprep.subr.mxu0 0.0
        %1488 = vmatpush1.xpose.msra.mxu0 0.0
        %1489 = vmatprep.subr.mxu0 0.0
        %1490 = vmatpush1.xpose.msra.mxu0 0.0
        %1491 = vmatprep.subr.mxu0 0.0
        %1492 = vmatpush1.xpose.msra.mxu0 0.0
        %1493 = vmatprep.subr.mxu0 0.0
        %1494 = vmatpush1.xpose.msra.mxu0 0.0
        %1495 = vmatprep.subr.mxu0 0.0
        %1496 = vmatpush1.xpose.msra.mxu0 0.0
        %1497 = vmatprep.subr.mxu0 0.0
        %1498 = vmatpush1.xpose.msra.mxu0 0.0
        %1499 = vmatprep.subr.mxu0 0.0
        %1500 = vmatpush1.xpose.msra.mxu0 0.0
        %1501 = vmatprep.subr.mxu0 0.0
        %1502 = vmatpush1.xpose.msra.mxu0 0.0
        %1503 = vmatprep.subr.mxu0 0.0
        %1504 = vmatpush1.xpose.msra.mxu0 0.0
        %1505 = vmatprep.subr.mxu0 0.0
        %1506 = vmatpush1.xpose.msra.mxu0 0.0
        %1507 = vmatprep.subr.mxu0 0.0
        %1508 = vmatpush1.xpose.msra.mxu0 0.0
        %1509 = vmatprep.subr.mxu0 0.0
        %1510 = vmatpush1.xpose.msra.mxu0 0.0
        %1511 = vmatprep.subr.mxu0 0.0
        %1512 = vmatpush1.xpose.msra.mxu0 0.0
        %1513 = vmatprep.subr.mxu0 0.0
        %1514 = vmatpush1.xpose.msra.mxu0 0.0
        %1515 = vmatprep.subr.mxu0 0.0
        %1516 = vmatpush1.xpose.msra.mxu0 0.0
        %1517 = vmatprep.subr.mxu0 0.0
        %1518 = vmatpush1.xpose.msra.mxu0 0.0
        %1519 = vmatprep.subr.mxu0 0.0
        %1520 = vmatpush1.xpose.msra.mxu0 0.0
        %1521 = vmatprep.subr.mxu0 0.0
        %1522 = vmatpush1.xpose.msra.mxu0 0.0
        %1523 = vmatprep.subr.mxu0 0.0
        %1524 = vmatpush1.xpose.msra.mxu0 0.0
        %1525 = vmatprep.subr.mxu0 0.0
        %1526 = vmatpush1.xpose.msra.mxu0 0.0
        %1527 = vmatprep.subr.mxu0 0.0
        %1528 = vmatpush1.xpose.msra.mxu0 0.0
        %1529 = vmatprep.subr.mxu0 0.0
        %1530 = vmatpush1.xpose.msra.mxu0 0.0
        %1531 = vmatprep.subr.mxu0 0.0
        %1532 = vmatpush1.xpose.msra.mxu0 0.0
        %1533 = vmatprep.subr.mxu0 0.0
        %1534 = vmatpush1.xpose.msra.mxu0 0.0
        %1535 = vmatprep.subr.mxu0 0.0
        %1536 = vmatpush1.xpose.msra.mxu0 0.0
        %1537 = vmatprep.subr.mxu0 0.0
        %1538 = vmatpush1.xpose.msra.mxu0 0.0
        %1539 = vmatprep.subr.mxu0 0.0
        %1540 = vmatpush1.xpose.msra.mxu0 0.0
        %1541 = vmatprep.subr.mxu0 0.0
        %1542 = vmatpush1.xpose.msra.mxu0 0.0
        %1543 = vmatprep.subr.mxu0 0.0
        %1544 = vmatpush1.xpose.msra.mxu0 0.0
        %1545 = vmatprep.subr.mxu0 0.0
        %1546 = vmatpush1.xpose.msra.mxu0 0.0
        %1547 = vmatprep.mubr.f32.mxu0 0.0
        %1548 = vmatmul.mubr.f32.gmra.mrb[0].mxu0 %v1475
        %v1549 = vpop.f32.mrb[0].mxu0
        %v1550 = vadd.f32 0.0, %v1549
        %v1551 = vpop.f32.mrb[0].mxu0
        %1552 = vdwg.mxu0
        %v1554 = vsel %vm1315, %v809, 0
        %v1557 = vsel %vm1315, %v988, 0
        %v1560 = vsel %vm1315, %v993, 0
        %1562 = vmatprep.subr.mxu0 0.0
        %1563 = vmatpush1.xpose.msra.mxu0 %v1557
        %1564 = vmatprep.subr.mxu0 0.0
        %1565 = vmatpush1.xpose.msra.mxu0 %v1560
        %1566 = vmatprep.subr.mxu0 0.0
        %1567 = vmatpush1.xpose.msra.mxu0 0.0
        %1568 = vmatprep.subr.mxu0 0.0
        %1569 = vmatpush1.xpose.msra.mxu0 0.0
        %1570 = vmatprep.subr.mxu0 0.0
        %1571 = vmatpush1.xpose.msra.mxu0 0.0
        %1572 = vmatprep.subr.mxu0 0.0
        %1573 = vmatpush1.xpose.msra.mxu0 0.0
        %1574 = vmatprep.subr.mxu0 0.0
        %1575 = vmatpush1.xpose.msra.mxu0 0.0
        %1576 = vmatprep.subr.mxu0 0.0
        %1577 = vmatpush1.xpose.msra.mxu0 0.0
        %1578 = vmatprep.subr.mxu0 0.0
        %1579 = vmatpush1.xpose.msra.mxu0 0.0
        %1580 = vmatprep.subr.mxu0 0.0
        %1581 = vmatpush1.xpose.msra.mxu0 0.0
        %1582 = vmatprep.subr.mxu0 0.0
        %1583 = vmatpush1.xpose.msra.mxu0 0.0
        %1584 = vmatprep.subr.mxu0 0.0
        %1585 = vmatpush1.xpose.msra.mxu0 0.0
        %1586 = vmatprep.subr.mxu0 0.0
        %1587 = vmatpush1.xpose.msra.mxu0 0.0
        %1588 = vmatprep.subr.mxu0 0.0
        %1589 = vmatpush1.xpose.msra.mxu0 0.0
        %1590 = vmatprep.subr.mxu0 0.0
        %1591 = vmatpush1.xpose.msra.mxu0 0.0
        %1592 = vmatprep.subr.mxu0 0.0
        %1593 = vmatpush1.xpose.msra.mxu0 0.0
        %1594 = vmatprep.subr.mxu0 0.0
        %1595 = vmatpush1.xpose.msra.mxu0 0.0
        %1596 = vmatprep.subr.mxu0 0.0
        %1597 = vmatpush1.xpose.msra.mxu0 0.0
        %1598 = vmatprep.subr.mxu0 0.0
        %1599 = vmatpush1.xpose.msra.mxu0 0.0
        %1600 = vmatprep.subr.mxu0 0.0
        %1601 = vmatpush1.xpose.msra.mxu0 0.0
        %1602 = vmatprep.subr.mxu0 0.0
        %1603 = vmatpush1.xpose.msra.mxu0 0.0
        %1604 = vmatprep.subr.mxu0 0.0
        %1605 = vmatpush1.xpose.msra.mxu0 0.0
        %1606 = vmatprep.subr.mxu0 0.0
        %1607 = vmatpush1.xpose.msra.mxu0 0.0
        %1608 = vmatprep.subr.mxu0 0.0
        %1609 = vmatpush1.xpose.msra.mxu0 0.0
        %1610 = vmatprep.subr.mxu0 0.0
        %1611 = vmatpush1.xpose.msra.mxu0 0.0
        %1612 = vmatprep.subr.mxu0 0.0
        %1613 = vmatpush1.xpose.msra.mxu0 0.0
        %1614 = vmatprep.subr.mxu0 0.0
        %1615 = vmatpush1.xpose.msra.mxu0 0.0
        %1616 = vmatprep.subr.mxu0 0.0
        %1617 = vmatpush1.xpose.msra.mxu0 0.0
        %1618 = vmatprep.subr.mxu0 0.0
        %1619 = vmatpush1.xpose.msra.mxu0 0.0
        %1620 = vmatprep.subr.mxu0 0.0
        %1621 = vmatpush1.xpose.msra.mxu0 0.0
        %1622 = vmatprep.subr.mxu0 0.0
        %1623 = vmatpush1.xpose.msra.mxu0 0.0
        %1624 = vmatprep.subr.mxu0 0.0
        %1625 = vmatpush1.xpose.msra.mxu0 0.0
        %1626 = vmatprep.mubr.f32.mxu0 0.0
        %1627 = vmatmul.mubr.f32.gmra.mrb[0].mxu0 %v1554
        %v1628 = vpop.f32.mrb[0].mxu0
        %v1629 = vadd.f32 0.0, %v1628
        %v1630 = vpop.f32.mrb[0].mxu0
        %1631 = vdwg.mxu0
        %v1633 = vsel %vm1315, %v814, 0
        %v1636 = vsel %vm1315, %v998, 0
        %v1639 = vsel %vm1315, %v1003, 0
        %1641 = vmatprep.subr.mxu0 0.0
        %1642 = vmatpush1.xpose.msra.mxu0 %v1636
        %1643 = vmatprep.subr.mxu0 0.0
        %1644 = vmatpush1.xpose.msra.mxu0 %v1639
        %1645 = vmatprep.subr.mxu0 0.0
        %1646 = vmatpush1.xpose.msra.mxu0 0.0
        %1647 = vmatprep.subr.mxu0 0.0
        %1648 = vmatpush1.xpose.msra.mxu0 0.0
        %1649 = vmatprep.subr.mxu0 0.0
        %1650 = vmatpush1.xpose.msra.mxu0 0.0
        %1651 = vmatprep.subr.mxu0 0.0
        %1652 = vmatpush1.xpose.msra.mxu0 0.0
        %1653 = vmatprep.subr.mxu0 0.0
        %1654 = vmatpush1.xpose.msra.mxu0 0.0
        %1655 = vmatprep.subr.mxu0 0.0
        %1656 = vmatpush1.xpose.msra.mxu0 0.0
        %1657 = vmatprep.subr.mxu0 0.0
        %1658 = vmatpush1.xpose.msra.mxu0 0.0
        %1659 = vmatprep.subr.mxu0 0.0
        %1660 = vmatpush1.xpose.msra.mxu0 0.0
        %1661 = vmatprep.subr.mxu0 0.0
        %1662 = vmatpush1.xpose.msra.mxu0 0.0
        %1663 = vmatprep.subr.mxu0 0.0
        %1664 = vmatpush1.xpose.msra.mxu0 0.0
        %1665 = vmatprep.subr.mxu0 0.0
        %1666 = vmatpush1.xpose.msra.mxu0 0.0
        %1667 = vmatprep.subr.mxu0 0.0
        %1668 = vmatpush1.xpose.msra.mxu0 0.0
        %1669 = vmatprep.subr.mxu0 0.0
        %1670 = vmatpush1.xpose.msra.mxu0 0.0
        %1671 = vmatprep.subr.mxu0 0.0
        %1672 = vmatpush1.xpose.msra.mxu0 0.0
        %1673 = vmatprep.subr.mxu0 0.0
        %1674 = vmatpush1.xpose.msra.mxu0 0.0
        %1675 = vmatprep.subr.mxu0 0.0
        %1676 = vmatpush1.xpose.msra.mxu0 0.0
        %1677 = vmatprep.subr.mxu0 0.0
        %1678 = vmatpush1.xpose.msra.mxu0 0.0
        %1679 = vmatprep.subr.mxu0 0.0
        %1680 = vmatpush1.xpose.msra.mxu0 0.0
        %1681 = vmatprep.subr.mxu0 0.0
        %1682 = vmatpush1.xpose.msra.mxu0 0.0
        %1683 = vmatprep.subr.mxu0 0.0
        %1684 = vmatpush1.xpose.msra.mxu0 0.0
        %1685 = vmatprep.subr.mxu0 0.0
        %1686 = vmatpush1.xpose.msra.mxu0 0.0
        %1687 = vmatprep.subr.mxu0 0.0
        %1688 = vmatpush1.xpose.msra.mxu0 0.0
        %1689 = vmatprep.subr.mxu0 0.0
        %1690 = vmatpush1.xpose.msra.mxu0 0.0
        %1691 = vmatprep.subr.mxu0 0.0
        %1692 = vmatpush1.xpose.msra.mxu0 0.0
        %1693 = vmatprep.subr.mxu0 0.0
        %1694 = vmatpush1.xpose.msra.mxu0 0.0
        %1695 = vmatprep.subr.mxu0 0.0
        %1696 = vmatpush1.xpose.msra.mxu0 0.0
        %1697 = vmatprep.subr.mxu0 0.0
        %1698 = vmatpush1.xpose.msra.mxu0 0.0
        %1699 = vmatprep.subr.mxu0 0.0
        %1700 = vmatpush1.xpose.msra.mxu0 0.0
        %1701 = vmatprep.subr.mxu0 0.0
        %1702 = vmatpush1.xpose.msra.mxu0 0.0
        %1703 = vmatprep.subr.mxu0 0.0
        %1704 = vmatpush1.xpose.msra.mxu0 0.0
        %1705 = vmatprep.mubr.f32.mxu0 0.0
        %1706 = vmatmul.mubr.f32.gmra.mrb[0].mxu0 %v1633
        %v1707 = vpop.f32.mrb[0].mxu0
        %v1708 = vadd.f32 0.0, %v1707
        %v1709 = vpop.f32.mrb[0].mxu0
        %1710 = vdwg.mxu0
        %v1712 = vsel %vm1315, %v819, 0
        %v1715 = vsel %vm1315, %v1008, 0
        %v1718 = vsel %vm1315, %v1013, 0
        %1720 = vmatprep.subr.mxu0 0.0
        %1721 = vmatpush1.xpose.msra.mxu0 %v1715
        %1722 = vmatprep.subr.mxu0 0.0
        %1723 = vmatpush1.xpose.msra.mxu0 %v1718
        %1724 = vmatprep.subr.mxu0 0.0
        %1725 = vmatpush1.xpose.msra.mxu0 0.0
        %1726 = vmatprep.subr.mxu0 0.0
        %1727 = vmatpush1.xpose.msra.mxu0 0.0
        %1728 = vmatprep.subr.mxu0 0.0
        %1729 = vmatpush1.xpose.msra.mxu0 0.0
        %1730 = vmatprep.subr.mxu0 0.0
        %1731 = vmatpush1.xpose.msra.mxu0 0.0
        %1732 = vmatprep.subr.mxu0 0.0
        %1733 = vmatpush1.xpose.msra.mxu0 0.0
        %1734 = vmatprep.subr.mxu0 0.0
        %1735 = vmatpush1.xpose.msra.mxu0 0.0
        %1736 = vmatprep.subr.mxu0 0.0
        %1737 = vmatpush1.xpose.msra.mxu0 0.0
        %1738 = vmatprep.subr.mxu0 0.0
        %1739 = vmatpush1.xpose.msra.mxu0 0.0
        %1740 = vmatprep.subr.mxu0 0.0
        %1741 = vmatpush1.xpose.msra.mxu0 0.0
        %1742 = vmatprep.subr.mxu0 0.0
        %1743 = vmatpush1.xpose.msra.mxu0 0.0
        %1744 = vmatprep.subr.mxu0 0.0
        %1745 = vmatpush1.xpose.msra.mxu0 0.0
        %1746 = vmatprep.subr.mxu0 0.0
        %1747 = vmatpush1.xpose.msra.mxu0 0.0
        %1748 = vmatprep.subr.mxu0 0.0
        %1749 = vmatpush1.xpose.msra.mxu0 0.0
        %1750 = vmatprep.subr.mxu0 0.0
        %1751 = vmatpush1.xpose.msra.mxu0 0.0
        %1752 = vmatprep.subr.mxu0 0.0
        %1753 = vmatpush1.xpose.msra.mxu0 0.0
        %1754 = vmatprep.subr.mxu0 0.0
        %1755 = vmatpush1.xpose.msra.mxu0 0.0
        %1756 = vmatprep.subr.mxu0 0.0
        %1757 = vmatpush1.xpose.msra.mxu0 0.0
        %1758 = vmatprep.subr.mxu0 0.0
        %1759 = vmatpush1.xpose.msra.mxu0 0.0
        %1760 = vmatprep.subr.mxu0 0.0
        %1761 = vmatpush1.xpose.msra.mxu0 0.0
        %1762 = vmatprep.subr.mxu0 0.0
        %1763 = vmatpush1.xpose.msra.mxu0 0.0
        %1764 = vmatprep.subr.mxu0 0.0
        %1765 = vmatpush1.xpose.msra.mxu0 0.0
        %1766 = vmatprep.subr.mxu0 0.0
        %1767 = vmatpush1.xpose.msra.mxu0 0.0
        %1768 = vmatprep.subr.mxu0 0.0
        %1769 = vmatpush1.xpose.msra.mxu0 0.0
        %1770 = vmatprep.subr.mxu0 0.0
        %1771 = vmatpush1.xpose.msra.mxu0 0.0
        %1772 = vmatprep.subr.mxu0 0.0
        %1773 = vmatpush1.xpose.msra.mxu0 0.0
        %1774 = vmatprep.subr.mxu0 0.0
        %1775 = vmatpush1.xpose.msra.mxu0 0.0
        %1776 = vmatprep.subr.mxu0 0.0
        %1777 = vmatpush1.xpose.msra.mxu0 0.0
        %1778 = vmatprep.subr.mxu0 0.0
        %1779 = vmatpush1.xpose.msra.mxu0 0.0
        %1780 = vmatprep.subr.mxu0 0.0
        %1781 = vmatpush1.xpose.msra.mxu0 0.0
        %1782 = vmatprep.subr.mxu0 0.0
        %1783 = vmatpush1.xpose.msra.mxu0 0.0
        %1784 = vmatprep.mubr.f32.mxu0 0.0
        %1785 = vmatmul.mubr.f32.gmra.mrb[0].mxu0 %v1712
        %v1786 = vpop.f32.mrb[0].mxu0
        %v1787 = vadd.f32 0.0, %v1786
        %v1788 = vpop.f32.mrb[0].mxu0
        %1789 = vdwg.mxu0
        %v1791 = vsel %vm1315, %v824, 0
        %v1794 = vsel %vm1315, %v1018, 0
        %v1797 = vsel %vm1315, %v1023, 0
        %1799 = vmatprep.subr.mxu0 0.0
        %1800 = vmatpush1.xpose.msra.mxu0 %v1794
        %1801 = vmatprep.subr.mxu0 0.0
        %1802 = vmatpush1.xpose.msra.mxu0 %v1797
        %1803 = vmatprep.subr.mxu0 0.0
        %1804 = vmatpush1.xpose.msra.mxu0 0.0
        %1805 = vmatprep.subr.mxu0 0.0
        %1806 = vmatpush1.xpose.msra.mxu0 0.0
        %1807 = vmatprep.subr.mxu0 0.0
        %1808 = vmatpush1.xpose.msra.mxu0 0.0
        %1809 = vmatprep.subr.mxu0 0.0
        %1810 = vmatpush1.xpose.msra.mxu0 0.0
        %1811 = vmatprep.subr.mxu0 0.0
        %1812 = vmatpush1.xpose.msra.mxu0 0.0
        %1813 = vmatprep.subr.mxu0 0.0
        %1814 = vmatpush1.xpose.msra.mxu0 0.0
        %1815 = vmatprep.subr.mxu0 0.0
        %1816 = vmatpush1.xpose.msra.mxu0 0.0
        %1817 = vmatprep.subr.mxu0 0.0
        %1818 = vmatpush1.xpose.msra.mxu0 0.0
        %1819 = vmatprep.subr.mxu0 0.0
        %1820 = vmatpush1.xpose.msra.mxu0 0.0
        %1821 = vmatprep.subr.mxu0 0.0
        %1822 = vmatpush1.xpose.msra.mxu0 0.0
        %1823 = vmatprep.subr.mxu0 0.0
        %1824 = vmatpush1.xpose.msra.mxu0 0.0
        %1825 = vmatprep.subr.mxu0 0.0
        %1826 = vmatpush1.xpose.msra.mxu0 0.0
        %1827 = vmatprep.subr.mxu0 0.0
        %1828 = vmatpush1.xpose.msra.mxu0 0.0
        %1829 = vmatprep.subr.mxu0 0.0
        %1830 = vmatpush1.xpose.msra.mxu0 0.0
        %1831 = vmatprep.subr.mxu0 0.0
        %1832 = vmatpush1.xpose.msra.mxu0 0.0
        %1833 = vmatprep.subr.mxu0 0.0
        %1834 = vmatpush1.xpose.msra.mxu0 0.0
        %1835 = vmatprep.subr.mxu0 0.0
        %1836 = vmatpush1.xpose.msra.mxu0 0.0
        %1837 = vmatprep.subr.mxu0 0.0
        %1838 = vmatpush1.xpose.msra.mxu0 0.0
        %1839 = vmatprep.subr.mxu0 0.0
        %1840 = vmatpush1.xpose.msra.mxu0 0.0
        %1841 = vmatprep.subr.mxu0 0.0
        %1842 = vmatpush1.xpose.msra.mxu0 0.0
        %1843 = vmatprep.subr.mxu0 0.0
        %1844 = vmatpush1.xpose.msra.mxu0 0.0
        %1845 = vmatprep.subr.mxu0 0.0
        %1846 = vmatpush1.xpose.msra.mxu0 0.0
        %1847 = vmatprep.subr.mxu0 0.0
        %1848 = vmatpush1.xpose.msra.mxu0 0.0
        %1849 = vmatprep.subr.mxu0 0.0
        %1850 = vmatpush1.xpose.msra.mxu0 0.0
        %1851 = vmatprep.subr.mxu0 0.0
        %1852 = vmatpush1.xpose.msra.mxu0 0.0
        %1853 = vmatprep.subr.mxu0 0.0
        %1854 = vmatpush1.xpose.msra.mxu0 0.0
        %1855 = vmatprep.subr.mxu0 0.0
        %1856 = vmatpush1.xpose.msra.mxu0 0.0
        %1857 = vmatprep.subr.mxu0 0.0
        %1858 = vmatpush1.xpose.msra.mxu0 0.0
        %1859 = vmatprep.subr.mxu0 0.0
        %1860 = vmatpush1.xpose.msra.mxu0 0.0
        %1861 = vmatprep.subr.mxu0 0.0
        %1862 = vmatpush1.xpose.msra.mxu0 0.0
        %1863 = vmatprep.mubr.f32.mxu0 0.0
        %1864 = vmatmul.mubr.f32.gmra.mrb[0].mxu0 %v1791
        %v1865 = vpop.f32.mrb[0].mxu0
        %v1866 = vadd.f32 0.0, %v1865
        %v1867 = vpop.f32.mrb[0].mxu0
        %1868 = vdwg.mxu0
        %v1870 = vsel %vm1315, %v829, 0
        %v1873 = vsel %vm1315, %v1028, 0
        %v1876 = vsel %vm1315, %v1033, 0
        %1878 = vmatprep.subr.mxu0 0.0
        %1879 = vmatpush1.xpose.msra.mxu0 %v1873
        %1880 = vmatprep.subr.mxu0 0.0
        %1881 = vmatpush1.xpose.msra.mxu0 %v1876
        %1882 = vmatprep.subr.mxu0 0.0
        %1883 = vmatpush1.xpose.msra.mxu0 0.0
        %1884 = vmatprep.subr.mxu0 0.0
        %1885 = vmatpush1.xpose.msra.mxu0 0.0
        %1886 = vmatprep.subr.mxu0 0.0
        %1887 = vmatpush1.xpose.msra.mxu0 0.0
        %1888 = vmatprep.subr.mxu0 0.0
        %1889 = vmatpush1.xpose.msra.mxu0 0.0
        %1890 = vmatprep.subr.mxu0 0.0
        %1891 = vmatpush1.xpose.msra.mxu0 0.0
        %1892 = vmatprep.subr.mxu0 0.0
        %1893 = vmatpush1.xpose.msra.mxu0 0.0
        %1894 = vmatprep.subr.mxu0 0.0
        %1895 = vmatpush1.xpose.msra.mxu0 0.0
        %1896 = vmatprep.subr.mxu0 0.0
        %1897 = vmatpush1.xpose.msra.mxu0 0.0
        %1898 = vmatprep.subr.mxu0 0.0
        %1899 = vmatpush1.xpose.msra.mxu0 0.0
        %1900 = vmatprep.subr.mxu0 0.0
        %1901 = vmatpush1.xpose.msra.mxu0 0.0
        %1902 = vmatprep.subr.mxu0 0.0
        %1903 = vmatpush1.xpose.msra.mxu0 0.0
        %1904 = vmatprep.subr.mxu0 0.0
        %1905 = vmatpush1.xpose.msra.mxu0 0.0
        %1906 = vmatprep.subr.mxu0 0.0
        %1907 = vmatpush1.xpose.msra.mxu0 0.0
        %1908 = vmatprep.subr.mxu0 0.0
        %1909 = vmatpush1.xpose.msra.mxu0 0.0
        %1910 = vmatprep.subr.mxu0 0.0
        %1911 = vmatpush1.xpose.msra.mxu0 0.0
        %1912 = vmatprep.subr.mxu0 0.0
        %1913 = vmatpush1.xpose.msra.mxu0 0.0
        %1914 = vmatprep.subr.mxu0 0.0
        %1915 = vmatpush1.xpose.msra.mxu0 0.0
        %1916 = vmatprep.subr.mxu0 0.0
        %1917 = vmatpush1.xpose.msra.mxu0 0.0
        %1918 = vmatprep.subr.mxu0 0.0
        %1919 = vmatpush1.xpose.msra.mxu0 0.0
        %1920 = vmatprep.subr.mxu0 0.0
        %1921 = vmatpush1.xpose.msra.mxu0 0.0
        %1922 = vmatprep.subr.mxu0 0.0
        %1923 = vmatpush1.xpose.msra.mxu0 0.0
        %1924 = vmatprep.subr.mxu0 0.0
        %1925 = vmatpush1.xpose.msra.mxu0 0.0
        %1926 = vmatprep.subr.mxu0 0.0
        %1927 = vmatpush1.xpose.msra.mxu0 0.0
        %1928 = vmatprep.subr.mxu0 0.0
        %1929 = vmatpush1.xpose.msra.mxu0 0.0
        %1930 = vmatprep.subr.mxu0 0.0
        %1931 = vmatpush1.xpose.msra.mxu0 0.0
        %1932 = vmatprep.subr.mxu0 0.0
        %1933 = vmatpush1.xpose.msra.mxu0 0.0
        %1934 = vmatprep.subr.mxu0 0.0
        %1935 = vmatpush1.xpose.msra.mxu0 0.0
        %1936 = vmatprep.subr.mxu0 0.0
        %1937 = vmatpush1.xpose.msra.mxu0 0.0
        %1938 = vmatprep.subr.mxu0 0.0
        %1939 = vmatpush1.xpose.msra.mxu0 0.0
        %1940 = vmatprep.subr.mxu0 0.0
        %1941 = vmatpush1.xpose.msra.mxu0 0.0
        %1942 = vmatprep.mubr.f32.mxu0 0.0
        %1943 = vmatmul.mubr.f32.gmra.mrb[0].mxu0 %v1870
        %v1944 = vpop.f32.mrb[0].mxu0
        %v1945 = vadd.f32 0.0, %v1944
        %v1946 = vpop.f32.mrb[0].mxu0
        %1947 = vdwg.mxu0
        %v1948 = vmul.f32 %v1392, 0.2
        %v1949 = vmul.f32 %v1471, 0.2
        %v1950 = vmul.f32 %v1550, 0.2
        %v1951 = vmul.f32 %v1629, 0.2
        %v1952 = vmul.f32 %v1708, 0.2
        %v1953 = vmul.f32 %v1787, 0.2
        %v1954 = vmul.f32 %v1866, 0.2
        %v1955 = vmul.f32 %v1945, 0.2
        %v1956 = vadd.f32 %v1948, %v1274
        %v1957 = vadd.f32 %v1949, %v1278
        %v1958 = vadd.f32 %v1950, %v1282
        %v1959 = vadd.f32 %v1951, %v1286
        %v1960 = vadd.f32 %v1952, %v1290
        %v1961 = vadd.f32 %v1953, %v1294
        %v1962 = vadd.f32 %v1954, %v1298
        %v1963 = vadd.f32 %v1955, %v1302
        %v1964 = vsel %vm702, %v1956, -inf
        %1965 = vmax.xlane.f32.xlu0 %v1964
        %v1966 = vpop.xlane.xlu0 %1965
        %v1967 = vsel %vm702, %v1957, -inf
        %1968 = vmax.xlane.f32.xlu0 %v1967
        %v1969 = vpop.xlane.xlu0 %1968
        %v1970 = vsel %vm702, %v1958, -inf
        %1971 = vmax.xlane.f32.xlu0 %v1970
        %v1972 = vpop.xlane.xlu0 %1971
        %v1973 = vsel %vm702, %v1959, -inf
        %1974 = vmax.xlane.f32.xlu0 %v1973
        %v1975 = vpop.xlane.xlu0 %1974
        %v1976 = vsel %vm702, %v1960, -inf
        %1977 = vmax.xlane.f32.xlu0 %v1976
        %v1978 = vpop.xlane.xlu0 %1977
        %v1979 = vsel %vm702, %v1961, -inf
        %1980 = vmax.xlane.f32.xlu0 %v1979
        %v1981 = vpop.xlane.xlu0 %1980
        %v1982 = vsel %vm702, %v1962, -inf
        %1983 = vmax.xlane.f32.xlu0 %v1982
        %v1984 = vpop.xlane.xlu0 %1983
        %v1985 = vsel %vm702, %v1963, -inf
        %1986 = vmax.xlane.f32.xlu0 %v1985
        %v1987 = vpop.xlane.xlu0 %1986
        %v1988 = vsub.f32 %v1956, %v1966
        %v1989 = vsub.f32 %v1957, %v1969
        %v1990 = vsub.f32 %v1958, %v1972
        %v1991 = vsub.f32 %v1959, %v1975
        %v1992 = vsub.f32 %v1960, %v1978
        %v1993 = vsub.f32 %v1961, %v1981
        %v1994 = vsub.f32 %v1962, %v1984
        %v1995 = vsub.f32 %v1963, %v1987
        %v1996 = vmul.f32 %v1988, 1.442695
        %v1997 = vpow.pop %v1996
        %v1998 = vmul.f32 %v1989, 1.442695
        %v1999 = vpow.pop %v1998
        %v2000 = vmul.f32 %v1990, 1.442695
        %v2001 = vpow.pop %v2000
        %v2002 = vmul.f32 %v1991, 1.442695
        %v2003 = vpow.pop %v2002
        %v2004 = vmul.f32 %v1992, 1.442695
        %v2005 = vpow.pop %v2004
        %v2006 = vmul.f32 %v1993, 1.442695
        %v2007 = vpow.pop %v2006
        %v2008 = vmul.f32 %v1994, 1.442695
        %v2009 = vpow.pop %v2008
        %v2010 = vmul.f32 %v1995, 1.442695
        %v2011 = vpow.pop %v2010
        %v2012 = vsel %vm702, %v1997, 0.0
        %2013 = vadd.xlane.f32.xlu0 %v2012
        %v2014 = vpop.xlane.xlu0 %2013
        %v2015 = vsel %vm702, %v1999, 0.0
        %2016 = vadd.xlane.f32.xlu0 %v2015
        %v2017 = vpop.xlane.xlu0 %2016
        %v2018 = vsel %vm702, %v2001, 0.0
        %2019 = vadd.xlane.f32.xlu0 %v2018
        %v2020 = vpop.xlane.xlu0 %2019
        %v2021 = vsel %vm702, %v2003, 0.0
        %2022 = vadd.xlane.f32.xlu0 %v2021
        %v2023 = vpop.xlane.xlu0 %2022
        %v2024 = vsel %vm702, %v2005, 0.0
        %2025 = vadd.xlane.f32.xlu0 %v2024
        %v2026 = vpop.xlane.xlu0 %2025
        %v2027 = vsel %vm702, %v2007, 0.0
        %2028 = vadd.xlane.f32.xlu0 %v2027
        %v2029 = vpop.xlane.xlu0 %2028
        %v2030 = vsel %vm702, %v2009, 0.0
        %2031 = vadd.xlane.f32.xlu0 %v2030
        %v2032 = vpop.xlane.xlu0 %2031
        %v2033 = vsel %vm702, %v2011, 0.0
        %2034 = vadd.xlane.f32.xlu0 %v2033
        %v2035 = vpop.xlane.xlu0 %2034
        %v2036 = vrcp.pop %v2014
        %v2037 = vrcp.pop %v2017
        %v2038 = vrcp.pop %v2020
        %v2039 = vrcp.pop %v2023
        %v2040 = vrcp.pop %v2026
        %v2041 = vrcp.pop %v2029
        %v2042 = vrcp.pop %v2032
        %v2043 = vrcp.pop %v2035
        %v2044 = vmul.f32 %v1997, %v2036
        %v2045 = vmul.f32 %v1999, %v2037
        %v2046 = vmul.f32 %v2001, %v2038
        %v2047 = vmul.f32 %v2003, %v2039
        %v2048 = vmul.f32 %v2005, %v2040
        %v2049 = vmul.f32 %v2007, %v2041
        %v2050 = vmul.f32 %v2009, %v2042
        %v2051 = vmul.f32 %v2011, %v2043
        %v2053 = vsel %vm702, %v2044, 0
        %2055 = vmatprep.subr.mxu0 0.0
        %2056 = vmatpush1.msra.mxu0 %v1161
        %2057 = vmatprep.subr.mxu0 0.0
        %2058 = vmatpush1.msra.mxu0 %v1166
        %2059 = vmatprep.subr.mxu0 0.0
        %2060 = vmatpush1.msra.mxu0 0.0
        %2061 = vmatprep.subr.mxu0 0.0
        %2062 = vmatpush1.msra.mxu0 0.0
        %2063 = vmatprep.subr.mxu0 0.0
        %2064 = vmatpush1.msra.mxu0 0.0
        %2065 = vmatprep.subr.mxu0 0.0
        %2066 = vmatpush1.msra.mxu0 0.0
        %2067 = vmatprep.subr.mxu0 0.0
        %2068 = vmatpush1.msra.mxu0 0.0
        %2069 = vmatprep.subr.mxu0 0.0
        %2070 = vmatpush1.msra.mxu0 0.0
        %2071 = vmatprep.subr.mxu0 0.0
        %2072 = vmatpush1.msra.mxu0 0.0
        %2073 = vmatprep.subr.mxu0 0.0
        %2074 = vmatpush1.msra.mxu0 0.0
        %2075 = vmatprep.subr.mxu0 0.0
        %2076 = vmatpush1.msra.mxu0 0.0
        %2077 = vmatprep.subr.mxu0 0.0
        %2078 = vmatpush1.msra.mxu0 0.0
        %2079 = vmatprep.subr.mxu0 0.0
        %2080 = vmatpush1.msra.mxu0 0.0
        %2081 = vmatprep.subr.mxu0 0.0
        %2082 = vmatpush1.msra.mxu0 0.0
        %2083 = vmatprep.subr.mxu0 0.0
        %2084 = vmatpush1.msra.mxu0 0.0
        %2085 = vmatprep.subr.mxu0 0.0
        %2086 = vmatpush1.msra.mxu0 0.0
        %2087 = vmatprep.subr.mxu0 0.0
        %2088 = vmatpush1.msra.mxu0 0.0
        %2089 = vmatprep.subr.mxu0 0.0
        %2090 = vmatpush1.msra.mxu0 0.0
        %2091 = vmatprep.subr.mxu0 0.0
        %2092 = vmatpush1.msra.mxu0 0.0
        %2093 = vmatprep.subr.mxu0 0.0
        %2094 = vmatpush1.msra.mxu0 0.0
        %2095 = vmatprep.subr.mxu0 0.0
        %2096 = vmatpush1.msra.mxu0 0.0
        %2097 = vmatprep.subr.mxu0 0.0
        %2098 = vmatpush1.msra.mxu0 0.0
        %2099 = vmatprep.subr.mxu0 0.0
        %2100 = vmatpush1.msra.mxu0 0.0
        %2101 = vmatprep.subr.mxu0 0.0
        %2102 = vmatpush1.msra.mxu0 0.0
        %2103 = vmatprep.subr.mxu0 0.0
        %2104 = vmatpush1.msra.mxu0 0.0
        %2105 = vmatprep.subr.mxu0 0.0
        %2106 = vmatpush1.msra.mxu0 0.0
        %2107 = vmatprep.subr.mxu0 0.0
        %2108 = vmatpush1.msra.mxu0 0.0
        %2109 = vmatprep.subr.mxu0 0.0
        %2110 = vmatpush1.msra.mxu0 0.0
        %2111 = vmatprep.subr.mxu0 0.0
        %2112 = vmatpush1.msra.mxu0 0.0
        %2113 = vmatprep.subr.mxu0 0.0
        %2114 = vmatpush1.msra.mxu0 0.0
        %2115 = vmatprep.subr.mxu0 0.0
        %2116 = vmatpush1.msra.mxu0 0.0
        %2117 = vmatprep.subr.mxu0 0.0
        %2118 = vmatpush1.msra.mxu0 0.0
        %2119 = vmatprep.mubr.f32.mxu0 0.0
        %2120 = vmatmul.mubr.f32.gmra.mrb[0].mxu0 %v2053
        %v2121 = vpop.f32.mrb[0].mxu0
        %v2122 = vadd.f32 0.0, %v2121
        %v2123 = vpop.f32.mrb[0].mxu0
        %2124 = vdwg.mxu0
        %v2126 = vsel %vm702, %v2045, 0
        %2128 = vmatprep.subr.mxu0 0.0
        %2129 = vmatpush1.msra.mxu0 %v1171
        %2130 = vmatprep.subr.mxu0 0.0
        %2131 = vmatpush1.msra.mxu0 %v1176
        %2132 = vmatprep.subr.mxu0 0.0
        %2133 = vmatpush1.msra.mxu0 0.0
        %2134 = vmatprep.subr.mxu0 0.0
        %2135 = vmatpush1.msra.mxu0 0.0
        %2136 = vmatprep.subr.mxu0 0.0
        %2137 = vmatpush1.msra.mxu0 0.0
        %2138 = vmatprep.subr.mxu0 0.0
        %2139 = vmatpush1.msra.mxu0 0.0
        %2140 = vmatprep.subr.mxu0 0.0
        %2141 = vmatpush1.msra.mxu0 0.0
        %2142 = vmatprep.subr.mxu0 0.0
        %2143 = vmatpush1.msra.mxu0 0.0
        %2144 = vmatprep.subr.mxu0 0.0
        %2145 = vmatpush1.msra.mxu0 0.0
        %2146 = vmatprep.subr.mxu0 0.0
        %2147 = vmatpush1.msra.mxu0 0.0
        %2148 = vmatprep.subr.mxu0 0.0
        %2149 = vmatpush1.msra.mxu0 0.0
        %2150 = vmatprep.subr.mxu0 0.0
        %2151 = vmatpush1.msra.mxu0 0.0
        %2152 = vmatprep.subr.mxu0 0.0
        %2153 = vmatpush1.msra.mxu0 0.0
        %2154 = vmatprep.subr.mxu0 0.0
        %2155 = vmatpush1.msra.mxu0 0.0
        %2156 = vmatprep.subr.mxu0 0.0
        %2157 = vmatpush1.msra.mxu0 0.0
        %2158 = vmatprep.subr.mxu0 0.0
        %2159 = vmatpush1.msra.mxu0 0.0
        %2160 = vmatprep.subr.mxu0 0.0
        %2161 = vmatpush1.msra.mxu0 0.0
        %2162 = vmatprep.subr.mxu0 0.0
        %2163 = vmatpush1.msra.mxu0 0.0
        %2164 = vmatprep.subr.mxu0 0.0
        %2165 = vmatpush1.msra.mxu0 0.0
        %2166 = vmatprep.subr.mxu0 0.0
        %2167 = vmatpush1.msra.mxu0 0.0
        %2168 = vmatprep.subr.mxu0 0.0
        %2169 = vmatpush1.msra.mxu0 0.0
        %2170 = vmatprep.subr.mxu0 0.0
        %2171 = vmatpush1.msra.mxu0 0.0
        %2172 = vmatprep.subr.mxu0 0.0
        %2173 = vmatpush1.msra.mxu0 0.0
        %2174 = vmatprep.subr.mxu0 0.0
        %2175 = vmatpush1.msra.mxu0 0.0
        %2176 = vmatprep.subr.mxu0 0.0
        %2177 = vmatpush1.msra.mxu0 0.0
        %2178 = vmatprep.subr.mxu0 0.0
        %2179 = vmatpush1.msra.mxu0 0.0
        %2180 = vmatprep.subr.mxu0 0.0
        %2181 = vmatpush1.msra.mxu0 0.0
        %2182 = vmatprep.subr.mxu0 0.0
        %2183 = vmatpush1.msra.mxu0 0.0
        %2184 = vmatprep.subr.mxu0 0.0
        %2185 = vmatpush1.msra.mxu0 0.0
        %2186 = vmatprep.subr.mxu0 0.0
        %2187 = vmatpush1.msra.mxu0 0.0
        %2188 = vmatprep.subr.mxu0 0.0
        %2189 = vmatpush1.msra.mxu0 0.0
        %2190 = vmatprep.subr.mxu0 0.0
        %2191 = vmatpush1.msra.mxu0 0.0
        %2192 = vmatprep.mubr.f32.mxu0 0.0
        %2193 = vmatmul.mubr.f32.gmra.mrb[0].mxu0 %v2126
        %v2194 = vpop.f32.mrb[0].mxu0
        %v2195 = vadd.f32 0.0, %v2194
        %v2196 = vpop.f32.mrb[0].mxu0
        %2197 = vdwg.mxu0
        %v2199 = vsel %vm702, %v2046, 0
        %2201 = vmatprep.subr.mxu0 0.0
        %2202 = vmatpush1.msra.mxu0 %v1181
        %2203 = vmatprep.subr.mxu0 0.0
        %2204 = vmatpush1.msra.mxu0 %v1186
        %2205 = vmatprep.subr.mxu0 0.0
        %2206 = vmatpush1.msra.mxu0 0.0
        %2207 = vmatprep.subr.mxu0 0.0
        %2208 = vmatpush1.msra.mxu0 0.0
        %2209 = vmatprep.subr.mxu0 0.0
        %2210 = vmatpush1.msra.mxu0 0.0
        %2211 = vmatprep.subr.mxu0 0.0
        %2212 = vmatpush1.msra.mxu0 0.0
        %2213 = vmatprep.subr.mxu0 0.0
        %2214 = vmatpush1.msra.mxu0 0.0
        %2215 = vmatprep.subr.mxu0 0.0
        %2216 = vmatpush1.msra.mxu0 0.0
        %2217 = vmatprep.subr.mxu0 0.0
        %2218 = vmatpush1.msra.mxu0 0.0
        %2219 = vmatprep.subr.mxu0 0.0
        %2220 = vmatpush1.msra.mxu0 0.0
        %2221 = vmatprep.subr.mxu0 0.0
        %2222 = vmatpush1.msra.mxu0 0.0
        %2223 = vmatprep.subr.mxu0 0.0
        %2224 = vmatpush1.msra.mxu0 0.0
        %2225 = vmatprep.subr.mxu0 0.0
        %2226 = vmatpush1.msra.mxu0 0.0
        %2227 = vmatprep.subr.mxu0 0.0
        %2228 = vmatpush1.msra.mxu0 0.0
        %2229 = vmatprep.subr.mxu0 0.0
        %2230 = vmatpush1.msra.mxu0 0.0
        %2231 = vmatprep.subr.mxu0 0.0
        %2232 = vmatpush1.msra.mxu0 0.0
        %2233 = vmatprep.subr.mxu0 0.0
        %2234 = vmatpush1.msra.mxu0 0.0
        %2235 = vmatprep.subr.mxu0 0.0
        %2236 = vmatpush1.msra.mxu0 0.0
        %2237 = vmatprep.subr.mxu0 0.0
        %2238 = vmatpush1.msra.mxu0 0.0
        %2239 = vmatprep.subr.mxu0 0.0
        %2240 = vmatpush1.msra.mxu0 0.0
        %2241 = vmatprep.subr.mxu0 0.0
        %2242 = vmatpush1.msra.mxu0 0.0
        %2243 = vmatprep.subr.mxu0 0.0
        %2244 = vmatpush1.msra.mxu0 0.0
        %2245 = vmatprep.subr.mxu0 0.0
        %2246 = vmatpush1.msra.mxu0 0.0
        %2247 = vmatprep.subr.mxu0 0.0
        %2248 = vmatpush1.msra.mxu0 0.0
        %2249 = vmatprep.subr.mxu0 0.0
        %2250 = vmatpush1.msra.mxu0 0.0
        %2251 = vmatprep.subr.mxu0 0.0
        %2252 = vmatpush1.msra.mxu0 0.0
        %2253 = vmatprep.subr.mxu0 0.0
        %2254 = vmatpush1.msra.mxu0 0.0
        %2255 = vmatprep.subr.mxu0 0.0
        %2256 = vmatpush1.msra.mxu0 0.0
        %2257 = vmatprep.subr.mxu0 0.0
        %2258 = vmatpush1.msra.mxu0 0.0
        %2259 = vmatprep.subr.mxu0 0.0
        %2260 = vmatpush1.msra.mxu0 0.0
        %2261 = vmatprep.subr.mxu0 0.0
        %2262 = vmatpush1.msra.mxu0 0.0
        %2263 = vmatprep.subr.mxu0 0.0
        %2264 = vmatpush1.msra.mxu0 0.0
        %2265 = vmatprep.mubr.f32.mxu0 0.0
        %2266 = vmatmul.mubr.f32.gmra.mrb[0].mxu0 %v2199
        %v2267 = vpop.f32.mrb[0].mxu0
        %v2268 = vadd.f32 0.0, %v2267
        %v2269 = vpop.f32.mrb[0].mxu0
        %2270 = vdwg.mxu0
        %v2272 = vsel %vm702, %v2047, 0
        %2274 = vmatprep.subr.mxu0 0.0
        %2275 = vmatpush1.msra.mxu0 %v1191
        %2276 = vmatprep.subr.mxu0 0.0
        %2277 = vmatpush1.msra.mxu0 %v1196
        %2278 = vmatprep.subr.mxu0 0.0
        %2279 = vmatpush1.msra.mxu0 0.0
        %2280 = vmatprep.subr.mxu0 0.0
        %2281 = vmatpush1.msra.mxu0 0.0
        %2282 = vmatprep.subr.mxu0 0.0
        %2283 = vmatpush1.msra.mxu0 0.0
        %2284 = vmatprep.subr.mxu0 0.0
        %2285 = vmatpush1.msra.mxu0 0.0
        %2286 = vmatprep.subr.mxu0 0.0
        %2287 = vmatpush1.msra.mxu0 0.0
        %2288 = vmatprep.subr.mxu0 0.0
        %2289 = vmatpush1.msra.mxu0 0.0
        %2290 = vmatprep.subr.mxu0 0.0
        %2291 = vmatpush1.msra.mxu0 0.0
        %2292 = vmatprep.subr.mxu0 0.0
        %2293 = vmatpush1.msra.mxu0 0.0
        %2294 = vmatprep.subr.mxu0 0.0
        %2295 = vmatpush1.msra.mxu0 0.0
        %2296 = vmatprep.subr.mxu0 0.0
        %2297 = vmatpush1.msra.mxu0 0.0
        %2298 = vmatprep.subr.mxu0 0.0
        %2299 = vmatpush1.msra.mxu0 0.0
        %2300 = vmatprep.subr.mxu0 0.0
        %2301 = vmatpush1.msra.mxu0 0.0
        %2302 = vmatprep.subr.mxu0 0.0
        %2303 = vmatpush1.msra.mxu0 0.0
        %2304 = vmatprep.subr.mxu0 0.0
        %2305 = vmatpush1.msra.mxu0 0.0
        %2306 = vmatprep.subr.mxu0 0.0
        %2307 = vmatpush1.msra.mxu0 0.0
        %2308 = vmatprep.subr.mxu0 0.0
        %2309 = vmatpush1.msra.mxu0 0.0
        %2310 = vmatprep.subr.mxu0 0.0
        %2311 = vmatpush1.msra.mxu0 0.0
        %2312 = vmatprep.subr.mxu0 0.0
        %2313 = vmatpush1.msra.mxu0 0.0
        %2314 = vmatprep.subr.mxu0 0.0
        %2315 = vmatpush1.msra.mxu0 0.0
        %2316 = vmatprep.subr.mxu0 0.0
        %2317 = vmatpush1.msra.mxu0 0.0
        %2318 = vmatprep.subr.mxu0 0.0
        %2319 = vmatpush1.msra.mxu0 0.0
        %2320 = vmatprep.subr.mxu0 0.0
        %2321 = vmatpush1.msra.mxu0 0.0
        %2322 = vmatprep.subr.mxu0 0.0
        %2323 = vmatpush1.msra.mxu0 0.0
        %2324 = vmatprep.subr.mxu0 0.0
        %2325 = vmatpush1.msra.mxu0 0.0
        %2326 = vmatprep.subr.mxu0 0.0
        %2327 = vmatpush1.msra.mxu0 0.0
        %2328 = vmatprep.subr.mxu0 0.0
        %2329 = vmatpush1.msra.mxu0 0.0
        %2330 = vmatprep.subr.mxu0 0.0
        %2331 = vmatpush1.msra.mxu0 0.0
        %2332 = vmatprep.subr.mxu0 0.0
        %2333 = vmatpush1.msra.mxu0 0.0
        %2334 = vmatprep.subr.mxu0 0.0
        %2335 = vmatpush1.msra.mxu0 0.0
        %2336 = vmatprep.subr.mxu0 0.0
        %2337 = vmatpush1.msra.mxu0 0.0
        %2338 = vmatprep.mubr.f32.mxu0 0.0
        %2339 = vmatmul.mubr.f32.gmra.mrb[0].mxu0 %v2272
        %v2340 = vpop.f32.mrb[0].mxu0
        %v2341 = vadd.f32 0.0, %v2340
        %v2342 = vpop.f32.mrb[0].mxu0
        %2343 = vdwg.mxu0
        %v2345 = vsel %vm702, %v2048, 0
        %2347 = vmatprep.subr.mxu0 0.0
        %2348 = vmatpush1.msra.mxu0 %v1201
        %2349 = vmatprep.subr.mxu0 0.0
        %2350 = vmatpush1.msra.mxu0 %v1206
        %2351 = vmatprep.subr.mxu0 0.0
        %2352 = vmatpush1.msra.mxu0 0.0
        %2353 = vmatprep.subr.mxu0 0.0
        %2354 = vmatpush1.msra.mxu0 0.0
        %2355 = vmatprep.subr.mxu0 0.0
        %2356 = vmatpush1.msra.mxu0 0.0
        %2357 = vmatprep.subr.mxu0 0.0
        %2358 = vmatpush1.msra.mxu0 0.0
        %2359 = vmatprep.subr.mxu0 0.0
        %2360 = vmatpush1.msra.mxu0 0.0
        %2361 = vmatprep.subr.mxu0 0.0
        %2362 = vmatpush1.msra.mxu0 0.0
        %2363 = vmatprep.subr.mxu0 0.0
        %2364 = vmatpush1.msra.mxu0 0.0
        %2365 = vmatprep.subr.mxu0 0.0
        %2366 = vmatpush1.msra.mxu0 0.0
        %2367 = vmatprep.subr.mxu0 0.0
        %2368 = vmatpush1.msra.mxu0 0.0
        %2369 = vmatprep.subr.mxu0 0.0
        %2370 = vmatpush1.msra.mxu0 0.0
        %2371 = vmatprep.subr.mxu0 0.0
        %2372 = vmatpush1.msra.mxu0 0.0
        %2373 = vmatprep.subr.mxu0 0.0
        %2374 = vmatpush1.msra.mxu0 0.0
        %2375 = vmatprep.subr.mxu0 0.0
        %2376 = vmatpush1.msra.mxu0 0.0
        %2377 = vmatprep.subr.mxu0 0.0
        %2378 = vmatpush1.msra.mxu0 0.0
        %2379 = vmatprep.subr.mxu0 0.0
        %2380 = vmatpush1.msra.mxu0 0.0
        %2381 = vmatprep.subr.mxu0 0.0
        %2382 = vmatpush1.msra.mxu0 0.0
        %2383 = vmatprep.subr.mxu0 0.0
        %2384 = vmatpush1.msra.mxu0 0.0
        %2385 = vmatprep.subr.mxu0 0.0
        %2386 = vmatpush1.msra.mxu0 0.0
        %2387 = vmatprep.subr.mxu0 0.0
        %2388 = vmatpush1.msra.mxu0 0.0
        %2389 = vmatprep.subr.mxu0 0.0
        %2390 = vmatpush1.msra.mxu0 0.0
        %2391 = vmatprep.subr.mxu0 0.0
        %2392 = vmatpush1.msra.mxu0 0.0
        %2393 = vmatprep.subr.mxu0 0.0
        %2394 = vmatpush1.msra.mxu0 0.0
        %2395 = vmatprep.subr.mxu0 0.0
        %2396 = vmatpush1.msra.mxu0 0.0
        %2397 = vmatprep.subr.mxu0 0.0
        %2398 = vmatpush1.msra.mxu0 0.0
        %2399 = vmatprep.subr.mxu0 0.0
        %2400 = vmatpush1.msra.mxu0 0.0
        %2401 = vmatprep.subr.mxu0 0.0
        %2402 = vmatpush1.msra.mxu0 0.0
        %2403 = vmatprep.subr.mxu0 0.0
        %2404 = vmatpush1.msra.mxu0 0.0
        %2405 = vmatprep.subr.mxu0 0.0
        %2406 = vmatpush1.msra.mxu0 0.0
        %2407 = vmatprep.subr.mxu0 0.0
        %2408 = vmatpush1.msra.mxu0 0.0
        %2409 = vmatprep.subr.mxu0 0.0
        %2410 = vmatpush1.msra.mxu0 0.0
        %2411 = vmatprep.mubr.f32.mxu0 0.0
        %2412 = vmatmul.mubr.f32.gmra.mrb[0].mxu0 %v2345
        %v2413 = vpop.f32.mrb[0].mxu0
        %v2414 = vadd.f32 0.0, %v2413
        %v2415 = vpop.f32.mrb[0].mxu0
        %2416 = vdwg.mxu0
        %v2418 = vsel %vm702, %v2049, 0
        %2420 = vmatprep.subr.mxu0 0.0
        %2421 = vmatpush1.msra.mxu0 %v1211
        %2422 = vmatprep.subr.mxu0 0.0
        %2423 = vmatpush1.msra.mxu0 %v1216
        %2424 = vmatprep.subr.mxu0 0.0
        %2425 = vmatpush1.msra.mxu0 0.0
        %2426 = vmatprep.subr.mxu0 0.0
        %2427 = vmatpush1.msra.mxu0 0.0
        %2428 = vmatprep.subr.mxu0 0.0
        %2429 = vmatpush1.msra.mxu0 0.0
        %2430 = vmatprep.subr.mxu0 0.0
        %2431 = vmatpush1.msra.mxu0 0.0
        %2432 = vmatprep.subr.mxu0 0.0
        %2433 = vmatpush1.msra.mxu0 0.0
        %2434 = vmatprep.subr.mxu0 0.0
        %2435 = vmatpush1.msra.mxu0 0.0
        %2436 = vmatprep.subr.mxu0 0.0
        %2437 = vmatpush1.msra.mxu0 0.0
        %2438 = vmatprep.subr.mxu0 0.0
        %2439 = vmatpush1.msra.mxu0 0.0
        %2440 = vmatprep.subr.mxu0 0.0
        %2441 = vmatpush1.msra.mxu0 0.0
        %2442 = vmatprep.subr.mxu0 0.0
        %2443 = vmatpush1.msra.mxu0 0.0
        %2444 = vmatprep.subr.mxu0 0.0
        %2445 = vmatpush1.msra.mxu0 0.0
        %2446 = vmatprep.subr.mxu0 0.0
        %2447 = vmatpush1.msra.mxu0 0.0
        %2448 = vmatprep.subr.mxu0 0.0
        %2449 = vmatpush1.msra.mxu0 0.0
        %2450 = vmatprep.subr.mxu0 0.0
        %2451 = vmatpush1.msra.mxu0 0.0
        %2452 = vmatprep.subr.mxu0 0.0
        %2453 = vmatpush1.msra.mxu0 0.0
        %2454 = vmatprep.subr.mxu0 0.0
        %2455 = vmatpush1.msra.mxu0 0.0
        %2456 = vmatprep.subr.mxu0 0.0
        %2457 = vmatpush1.msra.mxu0 0.0
        %2458 = vmatprep.subr.mxu0 0.0
        %2459 = vmatpush1.msra.mxu0 0.0
        %2460 = vmatprep.subr.mxu0 0.0
        %2461 = vmatpush1.msra.mxu0 0.0
        %2462 = vmatprep.subr.mxu0 0.0
        %2463 = vmatpush1.msra.mxu0 0.0
        %2464 = vmatprep.subr.mxu0 0.0
        %2465 = vmatpush1.msra.mxu0 0.0
        %2466 = vmatprep.subr.mxu0 0.0
        %2467 = vmatpush1.msra.mxu0 0.0
        %2468 = vmatprep.subr.mxu0 0.0
        %2469 = vmatpush1.msra.mxu0 0.0
        %2470 = vmatprep.subr.mxu0 0.0
        %2471 = vmatpush1.msra.mxu0 0.0
        %2472 = vmatprep.subr.mxu0 0.0
        %2473 = vmatpush1.msra.mxu0 0.0
        %2474 = vmatprep.subr.mxu0 0.0
        %2475 = vmatpush1.msra.mxu0 0.0
        %2476 = vmatprep.subr.mxu0 0.0
        %2477 = vmatpush1.msra.mxu0 0.0
        %2478 = vmatprep.subr.mxu0 0.0
        %2479 = vmatpush1.msra.mxu0 0.0
        %2480 = vmatprep.subr.mxu0 0.0
        %2481 = vmatpush1.msra.mxu0 0.0
        %2482 = vmatprep.subr.mxu0 0.0
        %2483 = vmatpush1.msra.mxu0 0.0
        %2484 = vmatprep.mubr.f32.mxu0 0.0
        %2485 = vmatmul.mubr.f32.gmra.mrb[0].mxu0 %v2418
        %v2486 = vpop.f32.mrb[0].mxu0
        %v2487 = vadd.f32 0.0, %v2486
        %v2488 = vpop.f32.mrb[0].mxu0
        %2489 = vdwg.mxu0
        %v2491 = vsel %vm702, %v2050, 0
        %2493 = vmatprep.subr.mxu0 0.0
        %2494 = vmatpush1.msra.mxu0 %v1221
        %2495 = vmatprep.subr.mxu0 0.0
        %2496 = vmatpush1.msra.mxu0 %v1226
        %2497 = vmatprep.subr.mxu0 0.0
        %2498 = vmatpush1.msra.mxu0 0.0
        %2499 = vmatprep.subr.mxu0 0.0
        %2500 = vmatpush1.msra.mxu0 0.0
        %2501 = vmatprep.subr.mxu0 0.0
        %2502 = vmatpush1.msra.mxu0 0.0
        %2503 = vmatprep.subr.mxu0 0.0
        %2504 = vmatpush1.msra.mxu0 0.0
        %2505 = vmatprep.subr.mxu0 0.0
        %2506 = vmatpush1.msra.mxu0 0.0
        %2507 = vmatprep.subr.mxu0 0.0
        %2508 = vmatpush1.msra.mxu0 0.0
        %2509 = vmatprep.subr.mxu0 0.0
        %2510 = vmatpush1.msra.mxu0 0.0
        %2511 = vmatprep.subr.mxu0 0.0
        %2512 = vmatpush1.msra.mxu0 0.0
        %2513 = vmatprep.subr.mxu0 0.0
        %2514 = vmatpush1.msra.mxu0 0.0
        %2515 = vmatprep.subr.mxu0 0.0
        %2516 = vmatpush1.msra.mxu0 0.0
        %2517 = vmatprep.subr.mxu0 0.0
        %2518 = vmatpush1.msra.mxu0 0.0
        %2519 = vmatprep.subr.mxu0 0.0
        %2520 = vmatpush1.msra.mxu0 0.0
        %2521 = vmatprep.subr.mxu0 0.0
        %2522 = vmatpush1.msra.mxu0 0.0
        %2523 = vmatprep.subr.mxu0 0.0
        %2524 = vmatpush1.msra.mxu0 0.0
        %2525 = vmatprep.subr.mxu0 0.0
        %2526 = vmatpush1.msra.mxu0 0.0
        %2527 = vmatprep.subr.mxu0 0.0
        %2528 = vmatpush1.msra.mxu0 0.0
        %2529 = vmatprep.subr.mxu0 0.0
        %2530 = vmatpush1.msra.mxu0 0.0
        %2531 = vmatprep.subr.mxu0 0.0
        %2532 = vmatpush1.msra.mxu0 0.0
        %2533 = vmatprep.subr.mxu0 0.0
        %2534 = vmatpush1.msra.mxu0 0.0
        %2535 = vmatprep.subr.mxu0 0.0
        %2536 = vmatpush1.msra.mxu0 0.0
        %2537 = vmatprep.subr.mxu0 0.0
        %2538 = vmatpush1.msra.mxu0 0.0
        %2539 = vmatprep.subr.mxu0 0.0
        %2540 = vmatpush1.msra.mxu0 0.0
        %2541 = vmatprep.subr.mxu0 0.0
        %2542 = vmatpush1.msra.mxu0 0.0
        %2543 = vmatprep.subr.mxu0 0.0
        %2544 = vmatpush1.msra.mxu0 0.0
        %2545 = vmatprep.subr.mxu0 0.0
        %2546 = vmatpush1.msra.mxu0 0.0
        %2547 = vmatprep.subr.mxu0 0.0
        %2548 = vmatpush1.msra.mxu0 0.0
        %2549 = vmatprep.subr.mxu0 0.0
        %2550 = vmatpush1.msra.mxu0 0.0
        %2551 = vmatprep.subr.mxu0 0.0
        %2552 = vmatpush1.msra.mxu0 0.0
        %2553 = vmatprep.subr.mxu0 0.0
        %2554 = vmatpush1.msra.mxu0 0.0
        %2555 = vmatprep.subr.mxu0 0.0
        %2556 = vmatpush1.msra.mxu0 0.0
        %2557 = vmatprep.mubr.f32.mxu0 0.0
        %2558 = vmatmul.mubr.f32.gmra.mrb[0].mxu0 %v2491
        %v2559 = vpop.f32.mrb[0].mxu0
        %v2560 = vadd.f32 0.0, %v2559
        %v2561 = vpop.f32.mrb[0].mxu0
        %2562 = vdwg.mxu0
        %v2564 = vsel %vm702, %v2051, 0
        %2566 = vmatprep.subr.mxu0 0.0
        %2567 = vmatpush1.msra.mxu0 %v1231
        %2568 = vmatprep.subr.mxu0 0.0
        %2569 = vmatpush1.msra.mxu0 %v1236
        %2570 = vmatprep.subr.mxu0 0.0
        %2571 = vmatpush1.msra.mxu0 0.0
        %2572 = vmatprep.subr.mxu0 0.0
        %2573 = vmatpush1.msra.mxu0 0.0
        %2574 = vmatprep.subr.mxu0 0.0
        %2575 = vmatpush1.msra.mxu0 0.0
        %2576 = vmatprep.subr.mxu0 0.0
        %2577 = vmatpush1.msra.mxu0 0.0
        %2578 = vmatprep.subr.mxu0 0.0
        %2579 = vmatpush1.msra.mxu0 0.0
        %2580 = vmatprep.subr.mxu0 0.0
        %2581 = vmatpush1.msra.mxu0 0.0
        %2582 = vmatprep.subr.mxu0 0.0
        %2583 = vmatpush1.msra.mxu0 0.0
        %2584 = vmatprep.subr.mxu0 0.0
        %2585 = vmatpush1.msra.mxu0 0.0
        %2586 = vmatprep.subr.mxu0 0.0
        %2587 = vmatpush1.msra.mxu0 0.0
        %2588 = vmatprep.subr.mxu0 0.0
        %2589 = vmatpush1.msra.mxu0 0.0
        %2590 = vmatprep.subr.mxu0 0.0
        %2591 = vmatpush1.msra.mxu0 0.0
        %2592 = vmatprep.subr.mxu0 0.0
        %2593 = vmatpush1.msra.mxu0 0.0
        %2594 = vmatprep.subr.mxu0 0.0
        %2595 = vmatpush1.msra.mxu0 0.0
        %2596 = vmatprep.subr.mxu0 0.0
        %2597 = vmatpush1.msra.mxu0 0.0
        %2598 = vmatprep.subr.mxu0 0.0
        %2599 = vmatpush1.msra.mxu0 0.0
        %2600 = vmatprep.subr.mxu0 0.0
        %2601 = vmatpush1.msra.mxu0 0.0
        %2602 = vmatprep.subr.mxu0 0.0
        %2603 = vmatpush1.msra.mxu0 0.0
        %2604 = vmatprep.subr.mxu0 0.0
        %2605 = vmatpush1.msra.mxu0 0.0
        %2606 = vmatprep.subr.mxu0 0.0
        %2607 = vmatpush1.msra.mxu0 0.0
        %2608 = vmatprep.subr.mxu0 0.0
        %2609 = vmatpush1.msra.mxu0 0.0
        %2610 = vmatprep.subr.mxu0 0.0
        %2611 = vmatpush1.msra.mxu0 0.0
        %2612 = vmatprep.subr.mxu0 0.0
        %2613 = vmatpush1.msra.mxu0 0.0
        %2614 = vmatprep.subr.mxu0 0.0
        %2615 = vmatpush1.msra.mxu0 0.0
        %2616 = vmatprep.subr.mxu0 0.0
        %2617 = vmatpush1.msra.mxu0 0.0
        %2618 = vmatprep.subr.mxu0 0.0
        %2619 = vmatpush1.msra.mxu0 0.0
        %2620 = vmatprep.subr.mxu0 0.0
        %2621 = vmatpush1.msra.mxu0 0.0
        %2622 = vmatprep.subr.mxu0 0.0
        %2623 = vmatpush1.msra.mxu0 0.0
        %2624 = vmatprep.subr.mxu0 0.0
        %2625 = vmatpush1.msra.mxu0 0.0
        %2626 = vmatprep.subr.mxu0 0.0
        %2627 = vmatpush1.msra.mxu0 0.0
        %2628 = vmatprep.subr.mxu0 0.0
        %2629 = vmatpush1.msra.mxu0 0.0
        %2630 = vmatprep.mubr.f32.mxu0 0.0
        %2631 = vmatmul.mubr.f32.gmra.mrb[0].mxu0 %v2564
        %v2632 = vpop.f32.mrb[0].mxu0
        %v2633 = vadd.f32 0.0, %v2632
        %v2634 = vpop.f32.mrb[0].mxu0
        %2635 = vdwg.mxu0
        %2636 = vrot.lane.b32.xlu0 %v794, 120
        %v2637 = vpop.permute.xlu0 %2636
        %2638 = vrot.lane.b32.xlu0 %v958, 120
        %v2639 = vpop.permute.xlu0 %2638
        %2640 = vrot.lane.b32.xlu0 %v963, 120
        %v2641 = vpop.permute.xlu0 %2640
        %v2642 = vsel %vm1315, %v2637, 0
        %v2644 = vsel %vm1315, %v2639, 0
        %v2646 = vsel %vm1315, %v2641, 0
        %2648 = vmatprep.subr.mxu0 0.0
        %2649 = vmatpush1.xpose.msra.mxu0 %v2644
        %2650 = vmatprep.subr.mxu0 0.0
        %2651 = vmatpush1.xpose.msra.mxu0 %v2646
        %2652 = vmatprep.subr.mxu0 0.0
        %2653 = vmatpush1.xpose.msra.mxu0 0.0
        %2654 = vmatprep.subr.mxu0 0.0
        %2655 = vmatpush1.xpose.msra.mxu0 0.0
        %2656 = vmatprep.subr.mxu0 0.0
        %2657 = vmatpush1.xpose.msra.mxu0 0.0
        %2658 = vmatprep.subr.mxu0 0.0
        %2659 = vmatpush1.xpose.msra.mxu0 0.0
        %2660 = vmatprep.subr.mxu0 0.0
        %2661 = vmatpush1.xpose.msra.mxu0 0.0
        %2662 = vmatprep.subr.mxu0 0.0
        %2663 = vmatpush1.xpose.msra.mxu0 0.0
        %2664 = vmatprep.subr.mxu0 0.0
        %2665 = vmatpush1.xpose.msra.mxu0 0.0
        %2666 = vmatprep.subr.mxu0 0.0
        %2667 = vmatpush1.xpose.msra.mxu0 0.0
        %2668 = vmatprep.subr.mxu0 0.0
        %2669 = vmatpush1.xpose.msra.mxu0 0.0
        %2670 = vmatprep.subr.mxu0 0.0
        %2671 = vmatpush1.xpose.msra.mxu0 0.0
        %2672 = vmatprep.subr.mxu0 0.0
        %2673 = vmatpush1.xpose.msra.mxu0 0.0
        %2674 = vmatprep.subr.mxu0 0.0
        %2675 = vmatpush1.xpose.msra.mxu0 0.0
        %2676 = vmatprep.subr.mxu0 0.0
        %2677 = vmatpush1.xpose.msra.mxu0 0.0
        %2678 = vmatprep.subr.mxu0 0.0
        %2679 = vmatpush1.xpose.msra.mxu0 0.0
        %2680 = vmatprep.subr.mxu0 0.0
        %2681 = vmatpush1.xpose.msra.mxu0 0.0
        %2682 = vmatprep.subr.mxu0 0.0
        %2683 = vmatpush1.xpose.msra.mxu0 0.0
        %2684 = vmatprep.subr.mxu0 0.0
        %2685 = vmatpush1.xpose.msra.mxu0 0.0
        %2686 = vmatprep.subr.mxu0 0.0
        %2687 = vmatpush1.xpose.msra.mxu0 0.0
        %2688 = vmatprep.subr.mxu0 0.0
        %2689 = vmatpush1.xpose.msra.mxu0 0.0
        %2690 = vmatprep.subr.mxu0 0.0
        %2691 = vmatpush1.xpose.msra.mxu0 0.0
        %2692 = vmatprep.subr.mxu0 0.0
        %2693 = vmatpush1.xpose.msra.mxu0 0.0
        %2694 = vmatprep.subr.mxu0 0.0
        %2695 = vmatpush1.xpose.msra.mxu0 0.0
        %2696 = vmatprep.subr.mxu0 0.0
        %2697 = vmatpush1.xpose.msra.mxu0 0.0
        %2698 = vmatprep.subr.mxu0 0.0
        %2699 = vmatpush1.xpose.msra.mxu0 0.0
        %2700 = vmatprep.subr.mxu0 0.0
        %2701 = vmatpush1.xpose.msra.mxu0 0.0
        %2702 = vmatprep.subr.mxu0 0.0
        %2703 = vmatpush1.xpose.msra.mxu0 0.0
        %2704 = vmatprep.subr.mxu0 0.0
        %2705 = vmatpush1.xpose.msra.mxu0 0.0
        %2706 = vmatprep.subr.mxu0 0.0
        %2707 = vmatpush1.xpose.msra.mxu0 0.0
        %2708 = vmatprep.subr.mxu0 0.0
        %2709 = vmatpush1.xpose.msra.mxu0 0.0
        %2710 = vmatprep.subr.mxu0 0.0
        %2711 = vmatpush1.xpose.msra.mxu0 0.0
        %2712 = vmatprep.mubr.f32.mxu0 0.0
        %2713 = vmatmul.mubr.f32.gmra.mrb[0].mxu0 %v2642
        %v2714 = vpop.f32.mrb[0].mxu0
        %v2715 = vadd.f32 0.0, %v2714
        %v2716 = vpop.f32.mrb[0].mxu0
        %2717 = vdwg.mxu0
        %2718 = vrot.lane.b32.xlu0 %v799, 120
        %v2719 = vpop.permute.xlu0 %2718
        %2720 = vrot.lane.b32.xlu0 %v968, 120
        %v2721 = vpop.permute.xlu0 %2720
        %2722 = vrot.lane.b32.xlu0 %v973, 120
        %v2723 = vpop.permute.xlu0 %2722
        %v2724 = vsel %vm1315, %v2719, 0
        %v2726 = vsel %vm1315, %v2721, 0
        %v2728 = vsel %vm1315, %v2723, 0
        %2730 = vmatprep.subr.mxu0 0.0
        %2731 = vmatpush1.xpose.msra.mxu0 %v2726
        %2732 = vmatprep.subr.mxu0 0.0
        %2733 = vmatpush1.xpose.msra.mxu0 %v2728
        %2734 = vmatprep.subr.mxu0 0.0
        %2735 = vmatpush1.xpose.msra.mxu0 0.0
        %2736 = vmatprep.subr.mxu0 0.0
        %2737 = vmatpush1.xpose.msra.mxu0 0.0
        %2738 = vmatprep.subr.mxu0 0.0
        %2739 = vmatpush1.xpose.msra.mxu0 0.0
        %2740 = vmatprep.subr.mxu0 0.0
        %2741 = vmatpush1.xpose.msra.mxu0 0.0
        %2742 = vmatprep.subr.mxu0 0.0
        %2743 = vmatpush1.xpose.msra.mxu0 0.0
        %2744 = vmatprep.subr.mxu0 0.0
        %2745 = vmatpush1.xpose.msra.mxu0 0.0
        %2746 = vmatprep.subr.mxu0 0.0
        %2747 = vmatpush1.xpose.msra.mxu0 0.0
        %2748 = vmatprep.subr.mxu0 0.0
        %2749 = vmatpush1.xpose.msra.mxu0 0.0
        %2750 = vmatprep.subr.mxu0 0.0
        %2751 = vmatpush1.xpose.msra.mxu0 0.0
        %2752 = vmatprep.subr.mxu0 0.0
        %2753 = vmatpush1.xpose.msra.mxu0 0.0
        %2754 = vmatprep.subr.mxu0 0.0
        %2755 = vmatpush1.xpose.msra.mxu0 0.0
        %2756 = vmatprep.subr.mxu0 0.0
        %2757 = vmatpush1.xpose.msra.mxu0 0.0
        %2758 = vmatprep.subr.mxu0 0.0
        %2759 = vmatpush1.xpose.msra.mxu0 0.0
        %2760 = vmatprep.subr.mxu0 0.0
        %2761 = vmatpush1.xpose.msra.mxu0 0.0
        %2762 = vmatprep.subr.mxu0 0.0
        %2763 = vmatpush1.xpose.msra.mxu0 0.0
        %2764 = vmatprep.subr.mxu0 0.0
        %2765 = vmatpush1.xpose.msra.mxu0 0.0
        %2766 = vmatprep.subr.mxu0 0.0
        %2767 = vmatpush1.xpose.msra.mxu0 0.0
        %2768 = vmatprep.subr.mxu0 0.0
        %2769 = vmatpush1.xpose.msra.mxu0 0.0
        %2770 = vmatprep.subr.mxu0 0.0
        %2771 = vmatpush1.xpose.msra.mxu0 0.0
        %2772 = vmatprep.subr.mxu0 0.0
        %2773 = vmatpush1.xpose.msra.mxu0 0.0
        %2774 = vmatprep.subr.mxu0 0.0
        %2775 = vmatpush1.xpose.msra.mxu0 0.0
        %2776 = vmatprep.subr.mxu0 0.0
        %2777 = vmatpush1.xpose.msra.mxu0 0.0
        %2778 = vmatprep.subr.mxu0 0.0
        %2779 = vmatpush1.xpose.msra.mxu0 0.0
        %2780 = vmatprep.subr.mxu0 0.0
        %2781 = vmatpush1.xpose.msra.mxu0 0.0
        %2782 = vmatprep.subr.mxu0 0.0
        %2783 = vmatpush1.xpose.msra.mxu0 0.0
        %2784 = vmatprep.subr.mxu0 0.0
        %2785 = vmatpush1.xpose.msra.mxu0 0.0
        %2786 = vmatprep.subr.mxu0 0.0
        %2787 = vmatpush1.xpose.msra.mxu0 0.0
        %2788 = vmatprep.subr.mxu0 0.0
        %2789 = vmatpush1.xpose.msra.mxu0 0.0
        %2790 = vmatprep.subr.mxu0 0.0
        %2791 = vmatpush1.xpose.msra.mxu0 0.0
        %2792 = vmatprep.subr.mxu0 0.0
        %2793 = vmatpush1.xpose.msra.mxu0 0.0
        %2794 = vmatprep.mubr.f32.mxu0 0.0
        %2795 = vmatmul.mubr.f32.gmra.mrb[0].mxu0 %v2724
        %v2796 = vpop.f32.mrb[0].mxu0
        %v2797 = vadd.f32 0.0, %v2796
        %v2798 = vpop.f32.mrb[0].mxu0
        %2799 = vdwg.mxu0
        %2800 = vrot.lane.b32.xlu0 %v804, 120
        %v2801 = vpop.permute.xlu0 %2800
        %2802 = vrot.lane.b32.xlu0 %v978, 120
        %v2803 = vpop.permute.xlu0 %2802
        %2804 = vrot.lane.b32.xlu0 %v983, 120
        %v2805 = vpop.permute.xlu0 %2804
        %v2806 = vsel %vm1315, %v2801, 0
        %v2808 = vsel %vm1315, %v2803, 0
        %v2810 = vsel %vm1315, %v2805, 0
        %2812 = vmatprep.subr.mxu0 0.0
        %2813 = vmatpush1.xpose.msra.mxu0 %v2808
        %2814 = vmatprep.subr.mxu0 0.0
        %2815 = vmatpush1.xpose.msra.mxu0 %v2810
        %2816 = vmatprep.subr.mxu0 0.0
        %2817 = vmatpush1.xpose.msra.mxu0 0.0
        %2818 = vmatprep.subr.mxu0 0.0
        %2819 = vmatpush1.xpose.msra.mxu0 0.0
        %2820 = vmatprep.subr.mxu0 0.0
        %2821 = vmatpush1.xpose.msra.mxu0 0.0
        %2822 = vmatprep.subr.mxu0 0.0
        %2823 = vmatpush1.xpose.msra.mxu0 0.0
        %2824 = vmatprep.subr.mxu0 0.0
        %2825 = vmatpush1.xpose.msra.mxu0 0.0
        %2826 = vmatprep.subr.mxu0 0.0
        %2827 = vmatpush1.xpose.msra.mxu0 0.0
        %2828 = vmatprep.subr.mxu0 0.0
        %2829 = vmatpush1.xpose.msra.mxu0 0.0
        %2830 = vmatprep.subr.mxu0 0.0
        %2831 = vmatpush1.xpose.msra.mxu0 0.0
        %2832 = vmatprep.subr.mxu0 0.0
        %2833 = vmatpush1.xpose.msra.mxu0 0.0
        %2834 = vmatprep.subr.mxu0 0.0
        %2835 = vmatpush1.xpose.msra.mxu0 0.0
        %2836 = vmatprep.subr.mxu0 0.0
        %2837 = vmatpush1.xpose.msra.mxu0 0.0
        %2838 = vmatprep.subr.mxu0 0.0
        %2839 = vmatpush1.xpose.msra.mxu0 0.0
        %2840 = vmatprep.subr.mxu0 0.0
        %2841 = vmatpush1.xpose.msra.mxu0 0.0
        %2842 = vmatprep.subr.mxu0 0.0
        %2843 = vmatpush1.xpose.msra.mxu0 0.0
        %2844 = vmatprep.subr.mxu0 0.0
        %2845 = vmatpush1.xpose.msra.mxu0 0.0
        %2846 = vmatprep.subr.mxu0 0.0
        %2847 = vmatpush1.xpose.msra.mxu0 0.0
        %2848 = vmatprep.subr.mxu0 0.0
        %2849 = vmatpush1.xpose.msra.mxu0 0.0
        %2850 = vmatprep.subr.mxu0 0.0
        %2851 = vmatpush1.xpose.msra.mxu0 0.0
        %2852 = vmatprep.subr.mxu0 0.0
        %2853 = vmatpush1.xpose.msra.mxu0 0.0
        %2854 = vmatprep.subr.mxu0 0.0
        %2855 = vmatpush1.xpose.msra.mxu0 0.0
        %2856 = vmatprep.subr.mxu0 0.0
        %2857 = vmatpush1.xpose.msra.mxu0 0.0
        %2858 = vmatprep.subr.mxu0 0.0
        %2859 = vmatpush1.xpose.msra.mxu0 0.0
        %2860 = vmatprep.subr.mxu0 0.0
        %2861 = vmatpush1.xpose.msra.mxu0 0.0
        %2862 = vmatprep.subr.mxu0 0.0
        %2863 = vmatpush1.xpose.msra.mxu0 0.0
        %2864 = vmatprep.subr.mxu0 0.0
        %2865 = vmatpush1.xpose.msra.mxu0 0.0
        %2866 = vmatprep.subr.mxu0 0.0
        %2867 = vmatpush1.xpose.msra.mxu0 0.0
        %2868 = vmatprep.subr.mxu0 0.0
        %2869 = vmatpush1.xpose.msra.mxu0 0.0
        %2870 = vmatprep.subr.mxu0 0.0
        %2871 = vmatpush1.xpose.msra.mxu0 0.0
        %2872 = vmatprep.subr.mxu0 0.0
        %2873 = vmatpush1.xpose.msra.mxu0 0.0
        %2874 = vmatprep.subr.mxu0 0.0
        %2875 = vmatpush1.xpose.msra.mxu0 0.0
        %2876 = vmatprep.mubr.f32.mxu0 0.0
        %2877 = vmatmul.mubr.f32.gmra.mrb[0].mxu0 %v2806
        %v2878 = vpop.f32.mrb[0].mxu0
        %v2879 = vadd.f32 0.0, %v2878
        %v2880 = vpop.f32.mrb[0].mxu0
        %2881 = vdwg.mxu0
        %2882 = vrot.lane.b32.xlu0 %v809, 120
        %v2883 = vpop.permute.xlu0 %2882
        %2884 = vrot.lane.b32.xlu0 %v988, 120
        %v2885 = vpop.permute.xlu0 %2884
        %2886 = vrot.lane.b32.xlu0 %v993, 120
        %v2887 = vpop.permute.xlu0 %2886
        %v2888 = vsel %vm1315, %v2883, 0
        %v2890 = vsel %vm1315, %v2885, 0
        %v2892 = vsel %vm1315, %v2887, 0
        %2894 = vmatprep.subr.mxu0 0.0
        %2895 = vmatpush1.xpose.msra.mxu0 %v2890
        %2896 = vmatprep.subr.mxu0 0.0
        %2897 = vmatpush1.xpose.msra.mxu0 %v2892
        %2898 = vmatprep.subr.mxu0 0.0
        %2899 = vmatpush1.xpose.msra.mxu0 0.0
        %2900 = vmatprep.subr.mxu0 0.0
        %2901 = vmatpush1.xpose.msra.mxu0 0.0
        %2902 = vmatprep.subr.mxu0 0.0
        %2903 = vmatpush1.xpose.msra.mxu0 0.0
        %2904 = vmatprep.subr.mxu0 0.0
        %2905 = vmatpush1.xpose.msra.mxu0 0.0
        %2906 = vmatprep.subr.mxu0 0.0
        %2907 = vmatpush1.xpose.msra.mxu0 0.0
        %2908 = vmatprep.subr.mxu0 0.0
        %2909 = vmatpush1.xpose.msra.mxu0 0.0
        %2910 = vmatprep.subr.mxu0 0.0
        %2911 = vmatpush1.xpose.msra.mxu0 0.0
        %2912 = vmatprep.subr.mxu0 0.0
        %2913 = vmatpush1.xpose.msra.mxu0 0.0
        %2914 = vmatprep.subr.mxu0 0.0
        %2915 = vmatpush1.xpose.msra.mxu0 0.0
        %2916 = vmatprep.subr.mxu0 0.0
        %2917 = vmatpush1.xpose.msra.mxu0 0.0
        %2918 = vmatprep.subr.mxu0 0.0
        %2919 = vmatpush1.xpose.msra.mxu0 0.0
        %2920 = vmatprep.subr.mxu0 0.0
        %2921 = vmatpush1.xpose.msra.mxu0 0.0
        %2922 = vmatprep.subr.mxu0 0.0
        %2923 = vmatpush1.xpose.msra.mxu0 0.0
        %2924 = vmatprep.subr.mxu0 0.0
        %2925 = vmatpush1.xpose.msra.mxu0 0.0
        %2926 = vmatprep.subr.mxu0 0.0
        %2927 = vmatpush1.xpose.msra.mxu0 0.0
        %2928 = vmatprep.subr.mxu0 0.0
        %2929 = vmatpush1.xpose.msra.mxu0 0.0
        %2930 = vmatprep.subr.mxu0 0.0
        %2931 = vmatpush1.xpose.msra.mxu0 0.0
        %2932 = vmatprep.subr.mxu0 0.0
        %2933 = vmatpush1.xpose.msra.mxu0 0.0
        %2934 = vmatprep.subr.mxu0 0.0
        %2935 = vmatpush1.xpose.msra.mxu0 0.0
        %2936 = vmatprep.subr.mxu0 0.0
        %2937 = vmatpush1.xpose.msra.mxu0 0.0
        %2938 = vmatprep.subr.mxu0 0.0
        %2939 = vmatpush1.xpose.msra.mxu0 0.0
        %2940 = vmatprep.subr.mxu0 0.0
        %2941 = vmatpush1.xpose.msra.mxu0 0.0
        %2942 = vmatprep.subr.mxu0 0.0
        %2943 = vmatpush1.xpose.msra.mxu0 0.0
        %2944 = vmatprep.subr.mxu0 0.0
        %2945 = vmatpush1.xpose.msra.mxu0 0.0
        %2946 = vmatprep.subr.mxu0 0.0
        %2947 = vmatpush1.xpose.msra.mxu0 0.0
        %2948 = vmatprep.subr.mxu0 0.0
        %2949 = vmatpush1.xpose.msra.mxu0 0.0
        %2950 = vmatprep.subr.mxu0 0.0
        %2951 = vmatpush1.xpose.msra.mxu0 0.0
        %2952 = vmatprep.subr.mxu0 0.0
        %2953 = vmatpush1.xpose.msra.mxu0 0.0
        %2954 = vmatprep.subr.mxu0 0.0
        %2955 = vmatpush1.xpose.msra.mxu0 0.0
        %2956 = vmatprep.subr.mxu0 0.0
        %2957 = vmatpush1.xpose.msra.mxu0 0.0
        %2958 = vmatprep.mubr.f32.mxu0 0.0
        %2959 = vmatmul.mubr.f32.gmra.mrb[0].mxu0 %v2888
        %v2960 = vpop.f32.mrb[0].mxu0
        %v2961 = vadd.f32 0.0, %v2960
        %v2962 = vpop.f32.mrb[0].mxu0
        %2963 = vdwg.mxu0
        %2964 = vrot.lane.b32.xlu0 %v814, 120
        %v2965 = vpop.permute.xlu0 %2964
        %2966 = vrot.lane.b32.xlu0 %v998, 120
        %v2967 = vpop.permute.xlu0 %2966
        %2968 = vrot.lane.b32.xlu0 %v1003, 120
        %v2969 = vpop.permute.xlu0 %2968
        %v2970 = vsel %vm1315, %v2965, 0
        %v2972 = vsel %vm1315, %v2967, 0
        %v2974 = vsel %vm1315, %v2969, 0
        %2976 = vmatprep.subr.mxu0 0.0
        %2977 = vmatpush1.xpose.msra.mxu0 %v2972
        %2978 = vmatprep.subr.mxu0 0.0
        %2979 = vmatpush1.xpose.msra.mxu0 %v2974
        %2980 = vmatprep.subr.mxu0 0.0
        %2981 = vmatpush1.xpose.msra.mxu0 0.0
        %2982 = vmatprep.subr.mxu0 0.0
        %2983 = vmatpush1.xpose.msra.mxu0 0.0
        %2984 = vmatprep.subr.mxu0 0.0
        %2985 = vmatpush1.xpose.msra.mxu0 0.0
        %2986 = vmatprep.subr.mxu0 0.0
        %2987 = vmatpush1.xpose.msra.mxu0 0.0
        %2988 = vmatprep.subr.mxu0 0.0
        %2989 = vmatpush1.xpose.msra.mxu0 0.0
        %2990 = vmatprep.subr.mxu0 0.0
        %2991 = vmatpush1.xpose.msra.mxu0 0.0
        %2992 = vmatprep.subr.mxu0 0.0
        %2993 = vmatpush1.xpose.msra.mxu0 0.0
        %2994 = vmatprep.subr.mxu0 0.0
        %2995 = vmatpush1.xpose.msra.mxu0 0.0
        %2996 = vmatprep.subr.mxu0 0.0
        %2997 = vmatpush1.xpose.msra.mxu0 0.0
        %2998 = vmatprep.subr.mxu0 0.0
        %2999 = vmatpush1.xpose.msra.mxu0 0.0
        %3000 = vmatprep.subr.mxu0 0.0
        %3001 = vmatpush1.xpose.msra.mxu0 0.0
        %3002 = vmatprep.subr.mxu0 0.0
        %3003 = vmatpush1.xpose.msra.mxu0 0.0
        %3004 = vmatprep.subr.mxu0 0.0
        %3005 = vmatpush1.xpose.msra.mxu0 0.0
        %3006 = vmatprep.subr.mxu0 0.0
        %3007 = vmatpush1.xpose.msra.mxu0 0.0
        %3008 = vmatprep.subr.mxu0 0.0
        %3009 = vmatpush1.xpose.msra.mxu0 0.0
        %3010 = vmatprep.subr.mxu0 0.0
        %3011 = vmatpush1.xpose.msra.mxu0 0.0
        %3012 = vmatprep.subr.mxu0 0.0
        %3013 = vmatpush1.xpose.msra.mxu0 0.0
        %3014 = vmatprep.subr.mxu0 0.0
        %3015 = vmatpush1.xpose.msra.mxu0 0.0
        %3016 = vmatprep.subr.mxu0 0.0
        %3017 = vmatpush1.xpose.msra.mxu0 0.0
        %3018 = vmatprep.subr.mxu0 0.0
        %3019 = vmatpush1.xpose.msra.mxu0 0.0
        %3020 = vmatprep.subr.mxu0 0.0
        %3021 = vmatpush1.xpose.msra.mxu0 0.0
        %3022 = vmatprep.subr.mxu0 0.0
        %3023 = vmatpush1.xpose.msra.mxu0 0.0
        %3024 = vmatprep.subr.mxu0 0.0
        %3025 = vmatpush1.xpose.msra.mxu0 0.0
        %3026 = vmatprep.subr.mxu0 0.0
        %3027 = vmatpush1.xpose.msra.mxu0 0.0
        %3028 = vmatprep.subr.mxu0 0.0
        %3029 = vmatpush1.xpose.msra.mxu0 0.0
        %3030 = vmatprep.subr.mxu0 0.0
        %3031 = vmatpush1.xpose.msra.mxu0 0.0
        %3032 = vmatprep.subr.mxu0 0.0
        %3033 = vmatpush1.xpose.msra.mxu0 0.0
        %3034 = vmatprep.subr.mxu0 0.0
        %3035 = vmatpush1.xpose.msra.mxu0 0.0
        %3036 = vmatprep.subr.mxu0 0.0
        %3037 = vmatpush1.xpose.msra.mxu0 0.0
        %3038 = vmatprep.subr.mxu0 0.0
        %3039 = vmatpush1.xpose.msra.mxu0 0.0
        %3040 = vmatprep.mubr.f32.mxu0 0.0
        %3041 = vmatmul.mubr.f32.gmra.mrb[0].mxu0 %v2970
        %v3042 = vpop.f32.mrb[0].mxu0
        %v3043 = vadd.f32 0.0, %v3042
        %v3044 = vpop.f32.mrb[0].mxu0
        %3045 = vdwg.mxu0
        %3046 = vrot.lane.b32.xlu0 %v819, 120
        %v3047 = vpop.permute.xlu0 %3046
        %3048 = vrot.lane.b32.xlu0 %v1008, 120
        %v3049 = vpop.permute.xlu0 %3048
        %3050 = vrot.lane.b32.xlu0 %v1013, 120
        %v3051 = vpop.permute.xlu0 %3050
        %v3052 = vsel %vm1315, %v3047, 0
        %v3054 = vsel %vm1315, %v3049, 0
        %v3056 = vsel %vm1315, %v3051, 0
        %3058 = vmatprep.subr.mxu0 0.0
        %3059 = vmatpush1.xpose.msra.mxu0 %v3054
        %3060 = vmatprep.subr.mxu0 0.0
        %3061 = vmatpush1.xpose.msra.mxu0 %v3056
        %3062 = vmatprep.subr.mxu0 0.0
        %3063 = vmatpush1.xpose.msra.mxu0 0.0
        %3064 = vmatprep.subr.mxu0 0.0
        %3065 = vmatpush1.xpose.msra.mxu0 0.0
        %3066 = vmatprep.subr.mxu0 0.0
        %3067 = vmatpush1.xpose.msra.mxu0 0.0
        %3068 = vmatprep.subr.mxu0 0.0
        %3069 = vmatpush1.xpose.msra.mxu0 0.0
        %3070 = vmatprep.subr.mxu0 0.0
        %3071 = vmatpush1.xpose.msra.mxu0 0.0
        %3072 = vmatprep.subr.mxu0 0.0
        %3073 = vmatpush1.xpose.msra.mxu0 0.0
        %3074 = vmatprep.subr.mxu0 0.0
        %3075 = vmatpush1.xpose.msra.mxu0 0.0
        %3076 = vmatprep.subr.mxu0 0.0
        %3077 = vmatpush1.xpose.msra.mxu0 0.0
        %3078 = vmatprep.subr.mxu0 0.0
        %3079 = vmatpush1.xpose.msra.mxu0 0.0
        %3080 = vmatprep.subr.mxu0 0.0
        %3081 = vmatpush1.xpose.msra.mxu0 0.0
        %3082 = vmatprep.subr.mxu0 0.0
        %3083 = vmatpush1.xpose.msra.mxu0 0.0
        %3084 = vmatprep.subr.mxu0 0.0
        %3085 = vmatpush1.xpose.msra.mxu0 0.0
        %3086 = vmatprep.subr.mxu0 0.0
        %3087 = vmatpush1.xpose.msra.mxu0 0.0
        %3088 = vmatprep.subr.mxu0 0.0
        %3089 = vmatpush1.xpose.msra.mxu0 0.0
        %3090 = vmatprep.subr.mxu0 0.0
        %3091 = vmatpush1.xpose.msra.mxu0 0.0
        %3092 = vmatprep.subr.mxu0 0.0
        %3093 = vmatpush1.xpose.msra.mxu0 0.0
        %3094 = vmatprep.subr.mxu0 0.0
        %3095 = vmatpush1.xpose.msra.mxu0 0.0
        %3096 = vmatprep.subr.mxu0 0.0
        %3097 = vmatpush1.xpose.msra.mxu0 0.0
        %3098 = vmatprep.subr.mxu0 0.0
        %3099 = vmatpush1.xpose.msra.mxu0 0.0
        %3100 = vmatprep.subr.mxu0 0.0
        %3101 = vmatpush1.xpose.msra.mxu0 0.0
        %3102 = vmatprep.subr.mxu0 0.0
        %3103 = vmatpush1.xpose.msra.mxu0 0.0
        %3104 = vmatprep.subr.mxu0 0.0
        %3105 = vmatpush1.xpose.msra.mxu0 0.0
        %3106 = vmatprep.subr.mxu0 0.0
        %3107 = vmatpush1.xpose.msra.mxu0 0.0
        %3108 = vmatprep.subr.mxu0 0.0
        %3109 = vmatpush1.xpose.msra.mxu0 0.0
        %3110 = vmatprep.subr.mxu0 0.0
        %3111 = vmatpush1.xpose.msra.mxu0 0.0
        %3112 = vmatprep.subr.mxu0 0.0
        %3113 = vmatpush1.xpose.msra.mxu0 0.0
        %3114 = vmatprep.subr.mxu0 0.0
        %3115 = vmatpush1.xpose.msra.mxu0 0.0
        %3116 = vmatprep.subr.mxu0 0.0
        %3117 = vmatpush1.xpose.msra.mxu0 0.0
        %3118 = vmatprep.subr.mxu0 0.0
        %3119 = vmatpush1.xpose.msra.mxu0 0.0
        %3120 = vmatprep.subr.mxu0 0.0
        %3121 = vmatpush1.xpose.msra.mxu0 0.0
        %3122 = vmatprep.mubr.f32.mxu0 0.0
        %3123 = vmatmul.mubr.f32.gmra.mrb[0].mxu0 %v3052
        %v3124 = vpop.f32.mrb[0].mxu0
        %v3125 = vadd.f32 0.0, %v3124
        %v3126 = vpop.f32.mrb[0].mxu0
        %3127 = vdwg.mxu0
        %3128 = vrot.lane.b32.xlu0 %v824, 120
        %v3129 = vpop.permute.xlu0 %3128
        %3130 = vrot.lane.b32.xlu0 %v1018, 120
        %v3131 = vpop.permute.xlu0 %3130
        %3132 = vrot.lane.b32.xlu0 %v1023, 120
        %v3133 = vpop.permute.xlu0 %3132
        %v3134 = vsel %vm1315, %v3129, 0
        %v3136 = vsel %vm1315, %v3131, 0
        %v3138 = vsel %vm1315, %v3133, 0
        %3140 = vmatprep.subr.mxu0 0.0
        %3141 = vmatpush1.xpose.msra.mxu0 %v3136
        %3142 = vmatprep.subr.mxu0 0.0
        %3143 = vmatpush1.xpose.msra.mxu0 %v3138
        %3144 = vmatprep.subr.mxu0 0.0
        %3145 = vmatpush1.xpose.msra.mxu0 0.0
        %3146 = vmatprep.subr.mxu0 0.0
        %3147 = vmatpush1.xpose.msra.mxu0 0.0
        %3148 = vmatprep.subr.mxu0 0.0
        %3149 = vmatpush1.xpose.msra.mxu0 0.0
        %3150 = vmatprep.subr.mxu0 0.0
        %3151 = vmatpush1.xpose.msra.mxu0 0.0
        %3152 = vmatprep.subr.mxu0 0.0
        %3153 = vmatpush1.xpose.msra.mxu0 0.0
        %3154 = vmatprep.subr.mxu0 0.0
        %3155 = vmatpush1.xpose.msra.mxu0 0.0
        %3156 = vmatprep.subr.mxu0 0.0
        %3157 = vmatpush1.xpose.msra.mxu0 0.0
        %3158 = vmatprep.subr.mxu0 0.0
        %3159 = vmatpush1.xpose.msra.mxu0 0.0
        %3160 = vmatprep.subr.mxu0 0.0
        %3161 = vmatpush1.xpose.msra.mxu0 0.0
        %3162 = vmatprep.subr.mxu0 0.0
        %3163 = vmatpush1.xpose.msra.mxu0 0.0
        %3164 = vmatprep.subr.mxu0 0.0
        %3165 = vmatpush1.xpose.msra.mxu0 0.0
        %3166 = vmatprep.subr.mxu0 0.0
        %3167 = vmatpush1.xpose.msra.mxu0 0.0
        %3168 = vmatprep.subr.mxu0 0.0
        %3169 = vmatpush1.xpose.msra.mxu0 0.0
        %3170 = vmatprep.subr.mxu0 0.0
        %3171 = vmatpush1.xpose.msra.mxu0 0.0
        %3172 = vmatprep.subr.mxu0 0.0
        %3173 = vmatpush1.xpose.msra.mxu0 0.0
        %3174 = vmatprep.subr.mxu0 0.0
        %3175 = vmatpush1.xpose.msra.mxu0 0.0
        %3176 = vmatprep.subr.mxu0 0.0
        %3177 = vmatpush1.xpose.msra.mxu0 0.0
        %3178 = vmatprep.subr.mxu0 0.0
        %3179 = vmatpush1.xpose.msra.mxu0 0.0
        %3180 = vmatprep.subr.mxu0 0.0
        %3181 = vmatpush1.xpose.msra.mxu0 0.0
        %3182 = vmatprep.subr.mxu0 0.0
        %3183 = vmatpush1.xpose.msra.mxu0 0.0
        %3184 = vmatprep.subr.mxu0 0.0
        %3185 = vmatpush1.xpose.msra.mxu0 0.0
        %3186 = vmatprep.subr.mxu0 0.0
        %3187 = vmatpush1.xpose.msra.mxu0 0.0
        %3188 = vmatprep.subr.mxu0 0.0
        %3189 = vmatpush1.xpose.msra.mxu0 0.0
        %3190 = vmatprep.subr.mxu0 0.0
        %3191 = vmatpush1.xpose.msra.mxu0 0.0
        %3192 = vmatprep.subr.mxu0 0.0
        %3193 = vmatpush1.xpose.msra.mxu0 0.0
        %3194 = vmatprep.subr.mxu0 0.0
        %3195 = vmatpush1.xpose.msra.mxu0 0.0
        %3196 = vmatprep.subr.mxu0 0.0
        %3197 = vmatpush1.xpose.msra.mxu0 0.0
        %3198 = vmatprep.subr.mxu0 0.0
        %3199 = vmatpush1.xpose.msra.mxu0 0.0
        %3200 = vmatprep.subr.mxu0 0.0
        %3201 = vmatpush1.xpose.msra.mxu0 0.0
        %3202 = vmatprep.subr.mxu0 0.0
        %3203 = vmatpush1.xpose.msra.mxu0 0.0
        %3204 = vmatprep.mubr.f32.mxu0 0.0
        %3205 = vmatmul.mubr.f32.gmra.mrb[0].mxu0 %v3134
        %v3206 = vpop.f32.mrb[0].mxu0
        %v3207 = vadd.f32 0.0, %v3206
        %v3208 = vpop.f32.mrb[0].mxu0
        %3209 = vdwg.mxu0
        %3210 = vrot.lane.b32.xlu0 %v829, 120
        %v3211 = vpop.permute.xlu0 %3210
        %3212 = vrot.lane.b32.xlu0 %v1028, 120
        %v3213 = vpop.permute.xlu0 %3212
        %3214 = vrot.lane.b32.xlu0 %v1033, 120
        %v3215 = vpop.permute.xlu0 %3214
        %v3216 = vsel %vm1315, %v3211, 0
        %v3218 = vsel %vm1315, %v3213, 0
        %v3220 = vsel %vm1315, %v3215, 0
        %3222 = vmatprep.subr.mxu0 0.0
        %3223 = vmatpush1.xpose.msra.mxu0 %v3218
        %3224 = vmatprep.subr.mxu0 0.0
        %3225 = vmatpush1.xpose.msra.mxu0 %v3220
        %3226 = vmatprep.subr.mxu0 0.0
        %3227 = vmatpush1.xpose.msra.mxu0 0.0
        %3228 = vmatprep.subr.mxu0 0.0
        %3229 = vmatpush1.xpose.msra.mxu0 0.0
        %3230 = vmatprep.subr.mxu0 0.0
        %3231 = vmatpush1.xpose.msra.mxu0 0.0
        %3232 = vmatprep.subr.mxu0 0.0
        %3233 = vmatpush1.xpose.msra.mxu0 0.0
        %3234 = vmatprep.subr.mxu0 0.0
        %3235 = vmatpush1.xpose.msra.mxu0 0.0
        %3236 = vmatprep.subr.mxu0 0.0
        %3237 = vmatpush1.xpose.msra.mxu0 0.0
        %3238 = vmatprep.subr.mxu0 0.0
        %3239 = vmatpush1.xpose.msra.mxu0 0.0
        %3240 = vmatprep.subr.mxu0 0.0
        %3241 = vmatpush1.xpose.msra.mxu0 0.0
        %3242 = vmatprep.subr.mxu0 0.0
        %3243 = vmatpush1.xpose.msra.mxu0 0.0
        %3244 = vmatprep.subr.mxu0 0.0
        %3245 = vmatpush1.xpose.msra.mxu0 0.0
        %3246 = vmatprep.subr.mxu0 0.0
        %3247 = vmatpush1.xpose.msra.mxu0 0.0
        %3248 = vmatprep.subr.mxu0 0.0
        %3249 = vmatpush1.xpose.msra.mxu0 0.0
        %3250 = vmatprep.subr.mxu0 0.0
        %3251 = vmatpush1.xpose.msra.mxu0 0.0
        %3252 = vmatprep.subr.mxu0 0.0
        %3253 = vmatpush1.xpose.msra.mxu0 0.0
        %3254 = vmatprep.subr.mxu0 0.0
        %3255 = vmatpush1.xpose.msra.mxu0 0.0
        %3256 = vmatprep.subr.mxu0 0.0
        %3257 = vmatpush1.xpose.msra.mxu0 0.0
        %3258 = vmatprep.subr.mxu0 0.0
        %3259 = vmatpush1.xpose.msra.mxu0 0.0
        %3260 = vmatprep.subr.mxu0 0.0
        %3261 = vmatpush1.xpose.msra.mxu0 0.0
        %3262 = vmatprep.subr.mxu0 0.0
        %3263 = vmatpush1.xpose.msra.mxu0 0.0
        %3264 = vmatprep.subr.mxu0 0.0
        %3265 = vmatpush1.xpose.msra.mxu0 0.0
        %3266 = vmatprep.subr.mxu0 0.0
        %3267 = vmatpush1.xpose.msra.mxu0 0.0
        %3268 = vmatprep.subr.mxu0 0.0
        %3269 = vmatpush1.xpose.msra.mxu0 0.0
        %3270 = vmatprep.subr.mxu0 0.0
        %3271 = vmatpush1.xpose.msra.mxu0 0.0
        %3272 = vmatprep.subr.mxu0 0.0
        %3273 = vmatpush1.xpose.msra.mxu0 0.0
        %3274 = vmatprep.subr.mxu0 0.0
        %3275 = vmatpush1.xpose.msra.mxu0 0.0
        %3276 = vmatprep.subr.mxu0 0.0
        %3277 = vmatpush1.xpose.msra.mxu0 0.0
        %3278 = vmatprep.subr.mxu0 0.0
        %3279 = vmatpush1.xpose.msra.mxu0 0.0
        %3280 = vmatprep.subr.mxu0 0.0
        %3281 = vmatpush1.xpose.msra.mxu0 0.0
        %3282 = vmatprep.subr.mxu0 0.0
        %3283 = vmatpush1.xpose.msra.mxu0 0.0
        %3284 = vmatprep.subr.mxu0 0.0
        %3285 = vmatpush1.xpose.msra.mxu0 0.0
        %3286 = vmatprep.mubr.f32.mxu0 0.0
        %3287 = vmatmul.mubr.f32.gmra.mrb[0].mxu0 %v3216
        %v3288 = vpop.f32.mrb[0].mxu0
        %v3289 = vadd.f32 0.0, %v3288
        %v3290 = vpop.f32.mrb[0].mxu0
        %3291 = vdwg.mxu0
        %v3292 = vmul.f32 %v2715, 0.2
        %v3293 = vmul.f32 %v2797, 0.2
        %v3294 = vmul.f32 %v2879, 0.2
        %v3295 = vmul.f32 %v2961, 0.2
        %v3296 = vmul.f32 %v3043, 0.2
        %v3297 = vmul.f32 %v3125, 0.2
        %v3298 = vmul.f32 %v3207, 0.2
        %v3299 = vmul.f32 %v3289, 0.2
        %v3300 = vadd.f32 %v3292, %v1274
        %v3301 = vadd.f32 %v3293, %v1278
        %v3302 = vadd.f32 %v3294, %v1282
        %v3303 = vadd.f32 %v3295, %v1286
        %v3304 = vadd.f32 %v3296, %v1290
        %v3305 = vadd.f32 %v3297, %v1294
        %v3306 = vadd.f32 %v3298, %v1298
        %v3307 = vadd.f32 %v3299, %v1302
        %v3308 = vsel %vm702, %v3300, -inf
        %3309 = vmax.xlane.f32.xlu0 %v3308
        %v3310 = vpop.xlane.xlu0 %3309
        %v3311 = vsel %vm702, %v3301, -inf
        %3312 = vmax.xlane.f32.xlu0 %v3311
        %v3313 = vpop.xlane.xlu0 %3312
        %v3314 = vsel %vm702, %v3302, -inf
        %3315 = vmax.xlane.f32.xlu0 %v3314
        %v3316 = vpop.xlane.xlu0 %3315
        %v3317 = vsel %vm702, %v3303, -inf
        %3318 = vmax.xlane.f32.xlu0 %v3317
        %v3319 = vpop.xlane.xlu0 %3318
        %v3320 = vsel %vm702, %v3304, -inf
        %3321 = vmax.xlane.f32.xlu0 %v3320
        %v3322 = vpop.xlane.xlu0 %3321
        %v3323 = vsel %vm702, %v3305, -inf
        %3324 = vmax.xlane.f32.xlu0 %v3323
        %v3325 = vpop.xlane.xlu0 %3324
        %v3326 = vsel %vm702, %v3306, -inf
        %3327 = vmax.xlane.f32.xlu0 %v3326
        %v3328 = vpop.xlane.xlu0 %3327
        %v3329 = vsel %vm702, %v3307, -inf
        %3330 = vmax.xlane.f32.xlu0 %v3329
        %v3331 = vpop.xlane.xlu0 %3330
        %v3332 = vsub.f32 %v3300, %v3310
        %v3333 = vsub.f32 %v3301, %v3313
        %v3334 = vsub.f32 %v3302, %v3316
        %v3335 = vsub.f32 %v3303, %v3319
        %v3336 = vsub.f32 %v3304, %v3322
        %v3337 = vsub.f32 %v3305, %v3325
        %v3338 = vsub.f32 %v3306, %v3328
        %v3339 = vsub.f32 %v3307, %v3331
        %v3340 = vmul.f32 %v3332, 1.442695
        %v3341 = vpow.pop %v3340
        %v3342 = vmul.f32 %v3333, 1.442695
        %v3343 = vpow.pop %v3342
        %v3344 = vmul.f32 %v3334, 1.442695
        %v3345 = vpow.pop %v3344
        %v3346 = vmul.f32 %v3335, 1.442695
        %v3347 = vpow.pop %v3346
        %v3348 = vmul.f32 %v3336, 1.442695
        %v3349 = vpow.pop %v3348
        %v3350 = vmul.f32 %v3337, 1.442695
        %v3351 = vpow.pop %v3350
        %v3352 = vmul.f32 %v3338, 1.442695
        %v3353 = vpow.pop %v3352
        %v3354 = vmul.f32 %v3339, 1.442695
        %v3355 = vpow.pop %v3354
        %v3356 = vsel %vm702, %v3341, 0.0
        %3357 = vadd.xlane.f32.xlu0 %v3356
        %v3358 = vpop.xlane.xlu0 %3357
        %v3359 = vsel %vm702, %v3343, 0.0
        %3360 = vadd.xlane.f32.xlu0 %v3359
        %v3361 = vpop.xlane.xlu0 %3360
        %v3362 = vsel %vm702, %v3345, 0.0
        %3363 = vadd.xlane.f32.xlu0 %v3362
        %v3364 = vpop.xlane.xlu0 %3363
        %v3365 = vsel %vm702, %v3347, 0.0
        %3366 = vadd.xlane.f32.xlu0 %v3365
        %v3367 = vpop.xlane.xlu0 %3366
        %v3368 = vsel %vm702, %v3349, 0.0
        %3369 = vadd.xlane.f32.xlu0 %v3368
        %v3370 = vpop.xlane.xlu0 %3369
        %v3371 = vsel %vm702, %v3351, 0.0
        %3372 = vadd.xlane.f32.xlu0 %v3371
        %v3373 = vpop.xlane.xlu0 %3372
        %v3374 = vsel %vm702, %v3353, 0.0
        %3375 = vadd.xlane.f32.xlu0 %v3374
        %v3376 = vpop.xlane.xlu0 %3375
        %v3377 = vsel %vm702, %v3355, 0.0
        %3378 = vadd.xlane.f32.xlu0 %v3377
        %v3379 = vpop.xlane.xlu0 %3378
        %v3380 = vrcp.pop %v3358
        %v3381 = vrcp.pop %v3361
        %v3382 = vrcp.pop %v3364
        %v3383 = vrcp.pop %v3367
        %v3384 = vrcp.pop %v3370
        %v3385 = vrcp.pop %v3373
        %v3386 = vrcp.pop %v3376
        %v3387 = vrcp.pop %v3379
        %v3388 = vmul.f32 %v3341, %v3380
        %v3389 = vmul.f32 %v3343, %v3381
        %v3390 = vmul.f32 %v3345, %v3382
        %v3391 = vmul.f32 %v3347, %v3383
        %v3392 = vmul.f32 %v3349, %v3384
        %v3393 = vmul.f32 %v3351, %v3385
        %v3394 = vmul.f32 %v3353, %v3386
        %v3395 = vmul.f32 %v3355, %v3387
        %3398 = vrot.lane.b32.xlu0 %v1161, 120
        %v3399 = vpop.permute.xlu0 %3398
        %3400 = vrot.lane.b32.xlu0 %v1166, 120
        %v3401 = vpop.permute.xlu0 %3400
        %v3405 = vsel %vm702, %v3388, 0
        %3407 = vmatprep.subr.mxu0 0.0
        %3408 = vmatpush1.msra.mxu0 %v3399
        %3409 = vmatprep.subr.mxu0 0.0
        %3410 = vmatpush1.msra.mxu0 %v3401
        %3411 = vmatprep.subr.mxu0 0.0
        %3412 = vmatpush1.msra.mxu0 0.0
        %3413 = vmatprep.subr.mxu0 0.0
        %3414 = vmatpush1.msra.mxu0 0.0
        %3415 = vmatprep.subr.mxu0 0.0
        %3416 = vmatpush1.msra.mxu0 0.0
        %3417 = vmatprep.subr.mxu0 0.0
        %3418 = vmatpush1.msra.mxu0 0.0
        %3419 = vmatprep.subr.mxu0 0.0
        %3420 = vmatpush1.msra.mxu0 0.0
        %3421 = vmatprep.subr.mxu0 0.0
        %3422 = vmatpush1.msra.mxu0 0.0
        %3423 = vmatprep.subr.mxu0 0.0
        %3424 = vmatpush1.msra.mxu0 0.0
        %3425 = vmatprep.subr.mxu0 0.0
        %3426 = vmatpush1.msra.mxu0 0.0
        %3427 = vmatprep.subr.mxu0 0.0
        %3428 = vmatpush1.msra.mxu0 0.0
        %3429 = vmatprep.subr.mxu0 0.0
        %3430 = vmatpush1.msra.mxu0 0.0
        %3431 = vmatprep.subr.mxu0 0.0
        %3432 = vmatpush1.msra.mxu0 0.0
        %3433 = vmatprep.subr.mxu0 0.0
        %3434 = vmatpush1.msra.mxu0 0.0
        %3435 = vmatprep.subr.mxu0 0.0
        %3436 = vmatpush1.msra.mxu0 0.0
        %3437 = vmatprep.subr.mxu0 0.0
        %3438 = vmatpush1.msra.mxu0 0.0
        %3439 = vmatprep.subr.mxu0 0.0
        %3440 = vmatpush1.msra.mxu0 0.0
        %3441 = vmatprep.subr.mxu0 0.0
        %3442 = vmatpush1.msra.mxu0 0.0
        %3443 = vmatprep.subr.mxu0 0.0
        %3444 = vmatpush1.msra.mxu0 0.0
        %3445 = vmatprep.subr.mxu0 0.0
        %3446 = vmatpush1.msra.mxu0 0.0
        %3447 = vmatprep.subr.mxu0 0.0
        %3448 = vmatpush1.msra.mxu0 0.0
        %3449 = vmatprep.subr.mxu0 0.0
        %3450 = vmatpush1.msra.mxu0 0.0
        %3451 = vmatprep.subr.mxu0 0.0
        %3452 = vmatpush1.msra.mxu0 0.0
        %3453 = vmatprep.subr.mxu0 0.0
        %3454 = vmatpush1.msra.mxu0 0.0
        %3455 = vmatprep.subr.mxu0 0.0
        %3456 = vmatpush1.msra.mxu0 0.0
        %3457 = vmatprep.subr.mxu0 0.0
        %3458 = vmatpush1.msra.mxu0 0.0
        %3459 = vmatprep.subr.mxu0 0.0
        %3460 = vmatpush1.msra.mxu0 0.0
        %3461 = vmatprep.subr.mxu0 0.0
        %3462 = vmatpush1.msra.mxu0 0.0
        %3463 = vmatprep.subr.mxu0 0.0
        %3464 = vmatpush1.msra.mxu0 0.0
        %3465 = vmatprep.subr.mxu0 0.0
        %3466 = vmatpush1.msra.mxu0 0.0
        %3467 = vmatprep.subr.mxu0 0.0
        %3468 = vmatpush1.msra.mxu0 0.0
        %3469 = vmatprep.subr.mxu0 0.0
        %3470 = vmatpush1.msra.mxu0 0.0
        %3471 = vmatprep.mubr.f32.mxu0 0.0
        %3472 = vmatmul.mubr.f32.gmra.mrb[0].mxu0 %v3405
        %v3473 = vpop.f32.mrb[0].mxu0
        %v3474 = vadd.f32 0.0, %v3473
        %v3475 = vpop.f32.mrb[0].mxu0
        %3476 = vdwg.mxu0
        %3479 = vrot.lane.b32.xlu0 %v1171, 120
        %v3480 = vpop.permute.xlu0 %3479
        %3481 = vrot.lane.b32.xlu0 %v1176, 120
        %v3482 = vpop.permute.xlu0 %3481
        %v3486 = vsel %vm702, %v3389, 0
        %3488 = vmatprep.subr.mxu0 0.0
        %3489 = vmatpush1.msra.mxu0 %v3480
        %3490 = vmatprep.subr.mxu0 0.0
        %3491 = vmatpush1.msra.mxu0 %v3482
        %3492 = vmatprep.subr.mxu0 0.0
        %3493 = vmatpush1.msra.mxu0 0.0
        %3494 = vmatprep.subr.mxu0 0.0
        %3495 = vmatpush1.msra.mxu0 0.0
        %3496 = vmatprep.subr.mxu0 0.0
        %3497 = vmatpush1.msra.mxu0 0.0
        %3498 = vmatprep.subr.mxu0 0.0
        %3499 = vmatpush1.msra.mxu0 0.0
        %3500 = vmatprep.subr.mxu0 0.0
        %3501 = vmatpush1.msra.mxu0 0.0
        %3502 = vmatprep.subr.mxu0 0.0
        %3503 = vmatpush1.msra.mxu0 0.0
        %3504 = vmatprep.subr.mxu0 0.0
        %3505 = vmatpush1.msra.mxu0 0.0
        %3506 = vmatprep.subr.mxu0 0.0
        %3507 = vmatpush1.msra.mxu0 0.0
        %3508 = vmatprep.subr.mxu0 0.0
        %3509 = vmatpush1.msra.mxu0 0.0
        %3510 = vmatprep.subr.mxu0 0.0
        %3511 = vmatpush1.msra.mxu0 0.0
        %3512 = vmatprep.subr.mxu0 0.0
        %3513 = vmatpush1.msra.mxu0 0.0
        %3514 = vmatprep.subr.mxu0 0.0
        %3515 = vmatpush1.msra.mxu0 0.0
        %3516 = vmatprep.subr.mxu0 0.0
        %3517 = vmatpush1.msra.mxu0 0.0
        %3518 = vmatprep.subr.mxu0 0.0
        %3519 = vmatpush1.msra.mxu0 0.0
        %3520 = vmatprep.subr.mxu0 0.0
        %3521 = vmatpush1.msra.mxu0 0.0
        %3522 = vmatprep.subr.mxu0 0.0
        %3523 = vmatpush1.msra.mxu0 0.0
        %3524 = vmatprep.subr.mxu0 0.0
        %3525 = vmatpush1.msra.mxu0 0.0
        %3526 = vmatprep.subr.mxu0 0.0
        %3527 = vmatpush1.msra.mxu0 0.0
        %3528 = vmatprep.subr.mxu0 0.0
        %3529 = vmatpush1.msra.mxu0 0.0
        %3530 = vmatprep.subr.mxu0 0.0
        %3531 = vmatpush1.msra.mxu0 0.0
        %3532 = vmatprep.subr.mxu0 0.0
        %3533 = vmatpush1.msra.mxu0 0.0
        %3534 = vmatprep.subr.mxu0 0.0
        %3535 = vmatpush1.msra.mxu0 0.0
        %3536 = vmatprep.subr.mxu0 0.0
        %3537 = vmatpush1.msra.mxu0 0.0
        %3538 = vmatprep.subr.mxu0 0.0
        %3539 = vmatpush1.msra.mxu0 0.0
        %3540 = vmatprep.subr.mxu0 0.0
        %3541 = vmatpush1.msra.mxu0 0.0
        %3542 = vmatprep.subr.mxu0 0.0
        %3543 = vmatpush1.msra.mxu0 0.0
        %3544 = vmatprep.subr.mxu0 0.0
        %3545 = vmatpush1.msra.mxu0 0.0
        %3546 = vmatprep.subr.mxu0 0.0
        %3547 = vmatpush1.msra.mxu0 0.0
        %3548 = vmatprep.subr.mxu0 0.0
        %3549 = vmatpush1.msra.mxu0 0.0
        %3550 = vmatprep.subr.mxu0 0.0
        %3551 = vmatpush1.msra.mxu0 0.0
        %3552 = vmatprep.mubr.f32.mxu0 0.0
        %3553 = vmatmul.mubr.f32.gmra.mrb[0].mxu0 %v3486
        %v3554 = vpop.f32.mrb[0].mxu0
        %v3555 = vadd.f32 0.0, %v3554
        %v3556 = vpop.f32.mrb[0].mxu0
        %3557 = vdwg.mxu0
        %3560 = vrot.lane.b32.xlu0 %v1181, 120
        %v3561 = vpop.permute.xlu0 %3560
        %3562 = vrot.lane.b32.xlu0 %v1186, 120
        %v3563 = vpop.permute.xlu0 %3562
        %v3567 = vsel %vm702, %v3390, 0
        %3569 = vmatprep.subr.mxu0 0.0
        %3570 = vmatpush1.msra.mxu0 %v3561
        %3571 = vmatprep.subr.mxu0 0.0
        %3572 = vmatpush1.msra.mxu0 %v3563
        %3573 = vmatprep.subr.mxu0 0.0
        %3574 = vmatpush1.msra.mxu0 0.0
        %3575 = vmatprep.subr.mxu0 0.0
        %3576 = vmatpush1.msra.mxu0 0.0
        %3577 = vmatprep.subr.mxu0 0.0
        %3578 = vmatpush1.msra.mxu0 0.0
        %3579 = vmatprep.subr.mxu0 0.0
        %3580 = vmatpush1.msra.mxu0 0.0
        %3581 = vmatprep.subr.mxu0 0.0
        %3582 = vmatpush1.msra.mxu0 0.0
        %3583 = vmatprep.subr.mxu0 0.0
        %3584 = vmatpush1.msra.mxu0 0.0
        %3585 = vmatprep.subr.mxu0 0.0
        %3586 = vmatpush1.msra.mxu0 0.0
        %3587 = vmatprep.subr.mxu0 0.0
        %3588 = vmatpush1.msra.mxu0 0.0
        %3589 = vmatprep.subr.mxu0 0.0
        %3590 = vmatpush1.msra.mxu0 0.0
        %3591 = vmatprep.subr.mxu0 0.0
        %3592 = vmatpush1.msra.mxu0 0.0
        %3593 = vmatprep.subr.mxu0 0.0
        %3594 = vmatpush1.msra.mxu0 0.0
        %3595 = vmatprep.subr.mxu0 0.0
        %3596 = vmatpush1.msra.mxu0 0.0
        %3597 = vmatprep.subr.mxu0 0.0
        %3598 = vmatpush1.msra.mxu0 0.0
        %3599 = vmatprep.subr.mxu0 0.0
        %3600 = vmatpush1.msra.mxu0 0.0
        %3601 = vmatprep.subr.mxu0 0.0
        %3602 = vmatpush1.msra.mxu0 0.0
        %3603 = vmatprep.subr.mxu0 0.0
        %3604 = vmatpush1.msra.mxu0 0.0
        %3605 = vmatprep.subr.mxu0 0.0
        %3606 = vmatpush1.msra.mxu0 0.0
        %3607 = vmatprep.subr.mxu0 0.0
        %3608 = vmatpush1.msra.mxu0 0.0
        %3609 = vmatprep.subr.mxu0 0.0
        %3610 = vmatpush1.msra.mxu0 0.0
        %3611 = vmatprep.subr.mxu0 0.0
        %3612 = vmatpush1.msra.mxu0 0.0
        %3613 = vmatprep.subr.mxu0 0.0
        %3614 = vmatpush1.msra.mxu0 0.0
        %3615 = vmatprep.subr.mxu0 0.0
        %3616 = vmatpush1.msra.mxu0 0.0
        %3617 = vmatprep.subr.mxu0 0.0
        %3618 = vmatpush1.msra.mxu0 0.0
        %3619 = vmatprep.subr.mxu0 0.0
        %3620 = vmatpush1.msra.mxu0 0.0
        %3621 = vmatprep.subr.mxu0 0.0
        %3622 = vmatpush1.msra.mxu0 0.0
        %3623 = vmatprep.subr.mxu0 0.0
        %3624 = vmatpush1.msra.mxu0 0.0
        %3625 = vmatprep.subr.mxu0 0.0
        %3626 = vmatpush1.msra.mxu0 0.0
        %3627 = vmatprep.subr.mxu0 0.0
        %3628 = vmatpush1.msra.mxu0 0.0
        %3629 = vmatprep.subr.mxu0 0.0
        %3630 = vmatpush1.msra.mxu0 0.0
        %3631 = vmatprep.subr.mxu0 0.0
        %3632 = vmatpush1.msra.mxu0 0.0
        %3633 = vmatprep.mubr.f32.mxu0 0.0
        %3634 = vmatmul.mubr.f32.gmra.mrb[0].mxu0 %v3567
        %v3635 = vpop.f32.mrb[0].mxu0
        %v3636 = vadd.f32 0.0, %v3635
        %v3637 = vpop.f32.mrb[0].mxu0
        %3638 = vdwg.mxu0
        %3641 = vrot.lane.b32.xlu0 %v1191, 120
        %v3642 = vpop.permute.xlu0 %3641
        %3643 = vrot.lane.b32.xlu0 %v1196, 120
        %v3644 = vpop.permute.xlu0 %3643
        %v3648 = vsel %vm702, %v3391, 0
        %3650 = vmatprep.subr.mxu0 0.0
        %3651 = vmatpush1.msra.mxu0 %v3642
        %3652 = vmatprep.subr.mxu0 0.0
        %3653 = vmatpush1.msra.mxu0 %v3644
        %3654 = vmatprep.subr.mxu0 0.0
        %3655 = vmatpush1.msra.mxu0 0.0
        %3656 = vmatprep.subr.mxu0 0.0
        %3657 = vmatpush1.msra.mxu0 0.0
        %3658 = vmatprep.subr.mxu0 0.0
        %3659 = vmatpush1.msra.mxu0 0.0
        %3660 = vmatprep.subr.mxu0 0.0
        %3661 = vmatpush1.msra.mxu0 0.0
        %3662 = vmatprep.subr.mxu0 0.0
        %3663 = vmatpush1.msra.mxu0 0.0
        %3664 = vmatprep.subr.mxu0 0.0
        %3665 = vmatpush1.msra.mxu0 0.0
        %3666 = vmatprep.subr.mxu0 0.0
        %3667 = vmatpush1.msra.mxu0 0.0
        %3668 = vmatprep.subr.mxu0 0.0
        %3669 = vmatpush1.msra.mxu0 0.0
        %3670 = vmatprep.subr.mxu0 0.0
        %3671 = vmatpush1.msra.mxu0 0.0
        %3672 = vmatprep.subr.mxu0 0.0
        %3673 = vmatpush1.msra.mxu0 0.0
        %3674 = vmatprep.subr.mxu0 0.0
        %3675 = vmatpush1.msra.mxu0 0.0
        %3676 = vmatprep.subr.mxu0 0.0
        %3677 = vmatpush1.msra.mxu0 0.0
        %3678 = vmatprep.subr.mxu0 0.0
        %3679 = vmatpush1.msra.mxu0 0.0
        %3680 = vmatprep.subr.mxu0 0.0
        %3681 = vmatpush1.msra.mxu0 0.0
        %3682 = vmatprep.subr.mxu0 0.0
        %3683 = vmatpush1.msra.mxu0 0.0
        %3684 = vmatprep.subr.mxu0 0.0
        %3685 = vmatpush1.msra.mxu0 0.0
        %3686 = vmatprep.subr.mxu0 0.0
        %3687 = vmatpush1.msra.mxu0 0.0
        %3688 = vmatprep.subr.mxu0 0.0
        %3689 = vmatpush1.msra.mxu0 0.0
        %3690 = vmatprep.subr.mxu0 0.0
        %3691 = vmatpush1.msra.mxu0 0.0
        %3692 = vmatprep.subr.mxu0 0.0
        %3693 = vmatpush1.msra.mxu0 0.0
        %3694 = vmatprep.subr.mxu0 0.0
        %3695 = vmatpush1.msra.mxu0 0.0
        %3696 = vmatprep.subr.mxu0 0.0
        %3697 = vmatpush1.msra.mxu0 0.0
        %3698 = vmatprep.subr.mxu0 0.0
        %3699 = vmatpush1.msra.mxu0 0.0
        %3700 = vmatprep.subr.mxu0 0.0
        %3701 = vmatpush1.msra.mxu0 0.0
        %3702 = vmatprep.subr.mxu0 0.0
        %3703 = vmatpush1.msra.mxu0 0.0
        %3704 = vmatprep.subr.mxu0 0.0
        %3705 = vmatpush1.msra.mxu0 0.0
        %3706 = vmatprep.subr.mxu0 0.0
        %3707 = vmatpush1.msra.mxu0 0.0
        %3708 = vmatprep.subr.mxu0 0.0
        %3709 = vmatpush1.msra.mxu0 0.0
        %3710 = vmatprep.subr.mxu0 0.0
        %3711 = vmatpush1.msra.mxu0 0.0
        %3712 = vmatprep.subr.mxu0 0.0
        %3713 = vmatpush1.msra.mxu0 0.0
        %3714 = vmatprep.mubr.f32.mxu0 0.0
        %3715 = vmatmul.mubr.f32.gmra.mrb[0].mxu0 %v3648
        %v3716 = vpop.f32.mrb[0].mxu0
        %v3717 = vadd.f32 0.0, %v3716
        %v3718 = vpop.f32.mrb[0].mxu0
        %3719 = vdwg.mxu0
        %3722 = vrot.lane.b32.xlu0 %v1201, 120
        %v3723 = vpop.permute.xlu0 %3722
        %3724 = vrot.lane.b32.xlu0 %v1206, 120
        %v3725 = vpop.permute.xlu0 %3724
        %v3729 = vsel %vm702, %v3392, 0
        %3731 = vmatprep.subr.mxu0 0.0
        %3732 = vmatpush1.msra.mxu0 %v3723
        %3733 = vmatprep.subr.mxu0 0.0
        %3734 = vmatpush1.msra.mxu0 %v3725
        %3735 = vmatprep.subr.mxu0 0.0
        %3736 = vmatpush1.msra.mxu0 0.0
        %3737 = vmatprep.subr.mxu0 0.0
        %3738 = vmatpush1.msra.mxu0 0.0
        %3739 = vmatprep.subr.mxu0 0.0
        %3740 = vmatpush1.msra.mxu0 0.0
        %3741 = vmatprep.subr.mxu0 0.0
        %3742 = vmatpush1.msra.mxu0 0.0
        %3743 = vmatprep.subr.mxu0 0.0
        %3744 = vmatpush1.msra.mxu0 0.0
        %3745 = vmatprep.subr.mxu0 0.0
        %3746 = vmatpush1.msra.mxu0 0.0
        %3747 = vmatprep.subr.mxu0 0.0
        %3748 = vmatpush1.msra.mxu0 0.0
        %3749 = vmatprep.subr.mxu0 0.0
        %3750 = vmatpush1.msra.mxu0 0.0
        %3751 = vmatprep.subr.mxu0 0.0
        %3752 = vmatpush1.msra.mxu0 0.0
        %3753 = vmatprep.subr.mxu0 0.0
        %3754 = vmatpush1.msra.mxu0 0.0
        %3755 = vmatprep.subr.mxu0 0.0
        %3756 = vmatpush1.msra.mxu0 0.0
        %3757 = vmatprep.subr.mxu0 0.0
        %3758 = vmatpush1.msra.mxu0 0.0
        %3759 = vmatprep.subr.mxu0 0.0
        %3760 = vmatpush1.msra.mxu0 0.0
        %3761 = vmatprep.subr.mxu0 0.0
        %3762 = vmatpush1.msra.mxu0 0.0
        %3763 = vmatprep.subr.mxu0 0.0
        %3764 = vmatpush1.msra.mxu0 0.0
        %3765 = vmatprep.subr.mxu0 0.0
        %3766 = vmatpush1.msra.mxu0 0.0
        %3767 = vmatprep.subr.mxu0 0.0
        %3768 = vmatpush1.msra.mxu0 0.0
        %3769 = vmatprep.subr.mxu0 0.0
        %3770 = vmatpush1.msra.mxu0 0.0
        %3771 = vmatprep.subr.mxu0 0.0
        %3772 = vmatpush1.msra.mxu0 0.0
        %3773 = vmatprep.subr.mxu0 0.0
        %3774 = vmatpush1.msra.mxu0 0.0
        %3775 = vmatprep.subr.mxu0 0.0
        %3776 = vmatpush1.msra.mxu0 0.0
        %3777 = vmatprep.subr.mxu0 0.0
        %3778 = vmatpush1.msra.mxu0 0.0
        %3779 = vmatprep.subr.mxu0 0.0
        %3780 = vmatpush1.msra.mxu0 0.0
        %3781 = vmatprep.subr.mxu0 0.0
        %3782 = vmatpush1.msra.mxu0 0.0
        %3783 = vmatprep.subr.mxu0 0.0
        %3784 = vmatpush1.msra.mxu0 0.0
        %3785 = vmatprep.subr.mxu0 0.0
        %3786 = vmatpush1.msra.mxu0 0.0
        %3787 = vmatprep.subr.mxu0 0.0
        %3788 = vmatpush1.msra.mxu0 0.0
        %3789 = vmatprep.subr.mxu0 0.0
        %3790 = vmatpush1.msra.mxu0 0.0
        %3791 = vmatprep.subr.mxu0 0.0
        %3792 = vmatpush1.msra.mxu0 0.0
        %3793 = vmatprep.subr.mxu0 0.0
        %3794 = vmatpush1.msra.mxu0 0.0
        %3795 = vmatprep.mubr.f32.mxu0 0.0
        %3796 = vmatmul.mubr.f32.gmra.mrb[0].mxu0 %v3729
        %v3797 = vpop.f32.mrb[0].mxu0
        %v3798 = vadd.f32 0.0, %v3797
        %v3799 = vpop.f32.mrb[0].mxu0
        %3800 = vdwg.mxu0
        %3803 = vrot.lane.b32.xlu0 %v1211, 120
        %v3804 = vpop.permute.xlu0 %3803
        %3805 = vrot.lane.b32.xlu0 %v1216, 120
        %v3806 = vpop.permute.xlu0 %3805
        %v3810 = vsel %vm702, %v3393, 0
        %3812 = vmatprep.subr.mxu0 0.0
        %3813 = vmatpush1.msra.mxu0 %v3804
        %3814 = vmatprep.subr.mxu0 0.0
        %3815 = vmatpush1.msra.mxu0 %v3806
        %3816 = vmatprep.subr.mxu0 0.0
        %3817 = vmatpush1.msra.mxu0 0.0
        %3818 = vmatprep.subr.mxu0 0.0
        %3819 = vmatpush1.msra.mxu0 0.0
        %3820 = vmatprep.subr.mxu0 0.0
        %3821 = vmatpush1.msra.mxu0 0.0
        %3822 = vmatprep.subr.mxu0 0.0
        %3823 = vmatpush1.msra.mxu0 0.0
        %3824 = vmatprep.subr.mxu0 0.0
        %3825 = vmatpush1.msra.mxu0 0.0
        %3826 = vmatprep.subr.mxu0 0.0
        %3827 = vmatpush1.msra.mxu0 0.0
        %3828 = vmatprep.subr.mxu0 0.0
        %3829 = vmatpush1.msra.mxu0 0.0
        %3830 = vmatprep.subr.mxu0 0.0
        %3831 = vmatpush1.msra.mxu0 0.0
        %3832 = vmatprep.subr.mxu0 0.0
        %3833 = vmatpush1.msra.mxu0 0.0
        %3834 = vmatprep.subr.mxu0 0.0
        %3835 = vmatpush1.msra.mxu0 0.0
        %3836 = vmatprep.subr.mxu0 0.0
        %3837 = vmatpush1.msra.mxu0 0.0
        %3838 = vmatprep.subr.mxu0 0.0
        %3839 = vmatpush1.msra.mxu0 0.0
        %3840 = vmatprep.subr.mxu0 0.0
        %3841 = vmatpush1.msra.mxu0 0.0
        %3842 = vmatprep.subr.mxu0 0.0
        %3843 = vmatpush1.msra.mxu0 0.0
        %3844 = vmatprep.subr.mxu0 0.0
        %3845 = vmatpush1.msra.mxu0 0.0
        %3846 = vmatprep.subr.mxu0 0.0
        %3847 = vmatpush1.msra.mxu0 0.0
        %3848 = vmatprep.subr.mxu0 0.0
        %3849 = vmatpush1.msra.mxu0 0.0
        %3850 = vmatprep.subr.mxu0 0.0
        %3851 = vmatpush1.msra.mxu0 0.0
        %3852 = vmatprep.subr.mxu0 0.0
        %3853 = vmatpush1.msra.mxu0 0.0
        %3854 = vmatprep.subr.mxu0 0.0
        %3855 = vmatpush1.msra.mxu0 0.0
        %3856 = vmatprep.subr.mxu0 0.0
        %3857 = vmatpush1.msra.mxu0 0.0
        %3858 = vmatprep.subr.mxu0 0.0
        %3859 = vmatpush1.msra.mxu0 0.0
        %3860 = vmatprep.subr.mxu0 0.0
        %3861 = vmatpush1.msra.mxu0 0.0
        %3862 = vmatprep.subr.mxu0 0.0
        %3863 = vmatpush1.msra.mxu0 0.0
        %3864 = vmatprep.subr.mxu0 0.0
        %3865 = vmatpush1.msra.mxu0 0.0
        %3866 = vmatprep.subr.mxu0 0.0
        %3867 = vmatpush1.msra.mxu0 0.0
        %3868 = vmatprep.subr.mxu0 0.0
        %3869 = vmatpush1.msra.mxu0 0.0
        %3870 = vmatprep.subr.mxu0 0.0
        %3871 = vmatpush1.msra.mxu0 0.0
        %3872 = vmatprep.subr.mxu0 0.0
        %3873 = vmatpush1.msra.mxu0 0.0
        %3874 = vmatprep.subr.mxu0 0.0
        %3875 = vmatpush1.msra.mxu0 0.0
        %3876 = vmatprep.mubr.f32.mxu0 0.0
        %3877 = vmatmul.mubr.f32.gmra.mrb[0].mxu0 %v3810
        %v3878 = vpop.f32.mrb[0].mxu0
        %v3879 = vadd.f32 0.0, %v3878
        %v3880 = vpop.f32.mrb[0].mxu0
        %3881 = vdwg.mxu0
        %3884 = vrot.lane.b32.xlu0 %v1221, 120
        %v3885 = vpop.permute.xlu0 %3884
        %3886 = vrot.lane.b32.xlu0 %v1226, 120
        %v3887 = vpop.permute.xlu0 %3886
        %v3891 = vsel %vm702, %v3394, 0
        %3893 = vmatprep.subr.mxu0 0.0
        %3894 = vmatpush1.msra.mxu0 %v3885
        %3895 = vmatprep.subr.mxu0 0.0
        %3896 = vmatpush1.msra.mxu0 %v3887
        %3897 = vmatprep.subr.mxu0 0.0
        %3898 = vmatpush1.msra.mxu0 0.0
        %3899 = vmatprep.subr.mxu0 0.0
        %3900 = vmatpush1.msra.mxu0 0.0
        %3901 = vmatprep.subr.mxu0 0.0
        %3902 = vmatpush1.msra.mxu0 0.0
        %3903 = vmatprep.subr.mxu0 0.0
        %3904 = vmatpush1.msra.mxu0 0.0
        %3905 = vmatprep.subr.mxu0 0.0
        %3906 = vmatpush1.msra.mxu0 0.0
        %3907 = vmatprep.subr.mxu0 0.0
        %3908 = vmatpush1.msra.mxu0 0.0
        %3909 = vmatprep.subr.mxu0 0.0
        %3910 = vmatpush1.msra.mxu0 0.0
        %3911 = vmatprep.subr.mxu0 0.0
        %3912 = vmatpush1.msra.mxu0 0.0
        %3913 = vmatprep.subr.mxu0 0.0
        %3914 = vmatpush1.msra.mxu0 0.0
        %3915 = vmatprep.subr.mxu0 0.0
        %3916 = vmatpush1.msra.mxu0 0.0
        %3917 = vmatprep.subr.mxu0 0.0
        %3918 = vmatpush1.msra.mxu0 0.0
        %3919 = vmatprep.subr.mxu0 0.0
        %3920 = vmatpush1.msra.mxu0 0.0
        %3921 = vmatprep.subr.mxu0 0.0
        %3922 = vmatpush1.msra.mxu0 0.0
        %3923 = vmatprep.subr.mxu0 0.0
        %3924 = vmatpush1.msra.mxu0 0.0
        %3925 = vmatprep.subr.mxu0 0.0
        %3926 = vmatpush1.msra.mxu0 0.0
        %3927 = vmatprep.subr.mxu0 0.0
        %3928 = vmatpush1.msra.mxu0 0.0
        %3929 = vmatprep.subr.mxu0 0.0
        %3930 = vmatpush1.msra.mxu0 0.0
        %3931 = vmatprep.subr.mxu0 0.0
        %3932 = vmatpush1.msra.mxu0 0.0
        %3933 = vmatprep.subr.mxu0 0.0
        %3934 = vmatpush1.msra.mxu0 0.0
        %3935 = vmatprep.subr.mxu0 0.0
        %3936 = vmatpush1.msra.mxu0 0.0
        %3937 = vmatprep.subr.mxu0 0.0
        %3938 = vmatpush1.msra.mxu0 0.0
        %3939 = vmatprep.subr.mxu0 0.0
        %3940 = vmatpush1.msra.mxu0 0.0
        %3941 = vmatprep.subr.mxu0 0.0
        %3942 = vmatpush1.msra.mxu0 0.0
        %3943 = vmatprep.subr.mxu0 0.0
        %3944 = vmatpush1.msra.mxu0 0.0
        %3945 = vmatprep.subr.mxu0 0.0
        %3946 = vmatpush1.msra.mxu0 0.0
        %3947 = vmatprep.subr.mxu0 0.0
        %3948 = vmatpush1.msra.mxu0 0.0
        %3949 = vmatprep.subr.mxu0 0.0
        %3950 = vmatpush1.msra.mxu0 0.0
        %3951 = vmatprep.subr.mxu0 0.0
        %3952 = vmatpush1.msra.mxu0 0.0
        %3953 = vmatprep.subr.mxu0 0.0
        %3954 = vmatpush1.msra.mxu0 0.0
        %3955 = vmatprep.subr.mxu0 0.0
        %3956 = vmatpush1.msra.mxu0 0.0
        %3957 = vmatprep.mubr.f32.mxu0 0.0
        %3958 = vmatmul.mubr.f32.gmra.mrb[0].mxu0 %v3891
        %v3959 = vpop.f32.mrb[0].mxu0
        %v3960 = vadd.f32 0.0, %v3959
        %v3961 = vpop.f32.mrb[0].mxu0
        %3962 = vdwg.mxu0
        %3965 = vrot.lane.b32.xlu0 %v1231, 120
        %v3966 = vpop.permute.xlu0 %3965
        %3967 = vrot.lane.b32.xlu0 %v1236, 120
        %v3968 = vpop.permute.xlu0 %3967
        %v3972 = vsel %vm702, %v3395, 0
        %3974 = vmatprep.subr.mxu0 0.0
        %3975 = vmatpush1.msra.mxu0 %v3966
        %3976 = vmatprep.subr.mxu0 0.0
        %3977 = vmatpush1.msra.mxu0 %v3968
        %3978 = vmatprep.subr.mxu0 0.0
        %3979 = vmatpush1.msra.mxu0 0.0
        %3980 = vmatprep.subr.mxu0 0.0
        %3981 = vmatpush1.msra.mxu0 0.0
        %3982 = vmatprep.subr.mxu0 0.0
        %3983 = vmatpush1.msra.mxu0 0.0
        %3984 = vmatprep.subr.mxu0 0.0
        %3985 = vmatpush1.msra.mxu0 0.0
        %3986 = vmatprep.subr.mxu0 0.0
        %3987 = vmatpush1.msra.mxu0 0.0
        %3988 = vmatprep.subr.mxu0 0.0
        %3989 = vmatpush1.msra.mxu0 0.0
        %3990 = vmatprep.subr.mxu0 0.0
        %3991 = vmatpush1.msra.mxu0 0.0
        %3992 = vmatprep.subr.mxu0 0.0
        %3993 = vmatpush1.msra.mxu0 0.0
        %3994 = vmatprep.subr.mxu0 0.0
        %3995 = vmatpush1.msra.mxu0 0.0
        %3996 = vmatprep.subr.mxu0 0.0
        %3997 = vmatpush1.msra.mxu0 0.0
        %3998 = vmatprep.subr.mxu0 0.0
        %3999 = vmatpush1.msra.mxu0 0.0
        %4000 = vmatprep.subr.mxu0 0.0
        %4001 = vmatpush1.msra.mxu0 0.0
        %4002 = vmatprep.subr.mxu0 0.0
        %4003 = vmatpush1.msra.mxu0 0.0
        %4004 = vmatprep.subr.mxu0 0.0
        %4005 = vmatpush1.msra.mxu0 0.0
        %4006 = vmatprep.subr.mxu0 0.0
        %4007 = vmatpush1.msra.mxu0 0.0
        %4008 = vmatprep.subr.mxu0 0.0
        %4009 = vmatpush1.msra.mxu0 0.0
        %4010 = vmatprep.subr.mxu0 0.0
        %4011 = vmatpush1.msra.mxu0 0.0
        %4012 = vmatprep.subr.mxu0 0.0
        %4013 = vmatpush1.msra.mxu0 0.0
        %4014 = vmatprep.subr.mxu0 0.0
        %4015 = vmatpush1.msra.mxu0 0.0
        %4016 = vmatprep.subr.mxu0 0.0
        %4017 = vmatpush1.msra.mxu0 0.0
        %4018 = vmatprep.subr.mxu0 0.0
        %4019 = vmatpush1.msra.mxu0 0.0
        %4020 = vmatprep.subr.mxu0 0.0
        %4021 = vmatpush1.msra.mxu0 0.0
        %4022 = vmatprep.subr.mxu0 0.0
        %4023 = vmatpush1.msra.mxu0 0.0
        %4024 = vmatprep.subr.mxu0 0.0
        %4025 = vmatpush1.msra.mxu0 0.0
        %4026 = vmatprep.subr.mxu0 0.0
        %4027 = vmatpush1.msra.mxu0 0.0
        %4028 = vmatprep.subr.mxu0 0.0
        %4029 = vmatpush1.msra.mxu0 0.0
        %4030 = vmatprep.subr.mxu0 0.0
        %4031 = vmatpush1.msra.mxu0 0.0
        %4032 = vmatprep.subr.mxu0 0.0
        %4033 = vmatpush1.msra.mxu0 0.0
        %4034 = vmatprep.subr.mxu0 0.0
        %4035 = vmatpush1.msra.mxu0 0.0
        %4036 = vmatprep.subr.mxu0 0.0
        %4037 = vmatpush1.msra.mxu0 0.0
        %4038 = vmatprep.mubr.f32.mxu0 0.0
        %4039 = vmatmul.mubr.f32.gmra.mrb[0].mxu0 %v3972
        %v4040 = vpop.f32.mrb[0].mxu0
        %v4041 = vadd.f32 0.0, %v4040
        %v4042 = vpop.f32.mrb[0].mxu0
        %4043 = vdwg.mxu0
        %v4045 = vsel %vm1315, %v3474, 0
        %v4048 = vsel %vm1315, %v3555, 0
        %v4051 = vsel %vm1315, %v3636, 0
        %v4054 = vsel %vm1315, %v3717, 0
        %v4057 = vsel %vm1315, %v3798, 0
        %v4060 = vsel %vm1315, %v3879, 0
        %v4063 = vsel %vm1315, %v3960, 0
        %v4066 = vsel %vm1315, %v4041, 0
        %4068 = vmatprep.subr.mxu0 0.0
        %4069 = vmatpush1.msra.mxu0 %v1312
        %4070 = vmatprep.subr.mxu0 0.0
        %4071 = vmatpush1.msra.mxu0 0.0
        %4072 = vmatprep.subr.mxu0 0.0
        %4073 = vmatpush1.msra.mxu0 0.0
        %4074 = vmatprep.subr.mxu0 0.0
        %4075 = vmatpush1.msra.mxu0 0.0
        %4076 = vmatprep.subr.mxu0 0.0
        %4077 = vmatpush1.msra.mxu0 0.0
        %4078 = vmatprep.subr.mxu0 0.0
        %4079 = vmatpush1.msra.mxu0 0.0
        %4080 = vmatprep.subr.mxu0 0.0
        %4081 = vmatpush1.msra.mxu0 0.0
        %4082 = vmatprep.subr.mxu0 0.0
        %4083 = vmatpush1.msra.mxu0 0.0
        %4084 = vmatprep.subr.mxu0 0.0
        %4085 = vmatpush1.msra.mxu0 0.0
        %4086 = vmatprep.subr.mxu0 0.0
        %4087 = vmatpush1.msra.mxu0 0.0
        %4088 = vmatprep.subr.mxu0 0.0
        %4089 = vmatpush1.msra.mxu0 0.0
        %4090 = vmatprep.subr.mxu0 0.0
        %4091 = vmatpush1.msra.mxu0 0.0
        %4092 = vmatprep.subr.mxu0 0.0
        %4093 = vmatpush1.msra.mxu0 0.0
        %4094 = vmatprep.subr.mxu0 0.0
        %4095 = vmatpush1.msra.mxu0 0.0
        %4096 = vmatprep.subr.mxu0 0.0
        %4097 = vmatpush1.msra.mxu0 0.0
        %4098 = vmatprep.subr.mxu0 0.0
        %4099 = vmatpush1.msra.mxu0 0.0
        %4100 = vmatprep.subr.mxu0 0.0
        %4101 = vmatpush1.msra.mxu0 0.0
        %4102 = vmatprep.subr.mxu0 0.0
        %4103 = vmatpush1.msra.mxu0 0.0
        %4104 = vmatprep.subr.mxu0 0.0
        %4105 = vmatpush1.msra.mxu0 0.0
        %4106 = vmatprep.subr.mxu0 0.0
        %4107 = vmatpush1.msra.mxu0 0.0
        %4108 = vmatprep.subr.mxu0 0.0
        %4109 = vmatpush1.msra.mxu0 0.0
        %4110 = vmatprep.subr.mxu0 0.0
        %4111 = vmatpush1.msra.mxu0 0.0
        %4112 = vmatprep.subr.mxu0 0.0
        %4113 = vmatpush1.msra.mxu0 0.0
        %4114 = vmatprep.subr.mxu0 0.0
        %4115 = vmatpush1.msra.mxu0 0.0
        %4116 = vmatprep.subr.mxu0 0.0
        %4117 = vmatpush1.msra.mxu0 0.0
        %4118 = vmatprep.subr.mxu0 0.0
        %4119 = vmatpush1.msra.mxu0 0.0
        %4120 = vmatprep.subr.mxu0 0.0
        %4121 = vmatpush1.msra.mxu0 0.0
        %4122 = vmatprep.subr.mxu0 0.0
        %4123 = vmatpush1.msra.mxu0 0.0
        %4124 = vmatprep.subr.mxu0 0.0
        %4125 = vmatpush1.msra.mxu0 0.0
        %4126 = vmatprep.subr.mxu0 0.0
        %4127 = vmatpush1.msra.mxu0 0.0
        %4128 = vmatprep.subr.mxu0 0.0
        %4129 = vmatpush1.msra.mxu0 0.0
        %4130 = vmatprep.subr.mxu0 0.0
        %4131 = vmatpush1.msra.mxu0 0.0
        %4132 = vmatprep.mubr.f32.mxu0 0.0
        %4133 = vmatmul.mubr.f32.gmra.mrb[0].mxu0 %v4045
        %v4134 = vpop.f32.mrb[0].mxu0
        %v4135 = vadd.f32 0.0, %v4134
        %v4136 = vpop.f32.mrb[0].mxu0
        %4137 = vmatprep.mubr.f32.mxu0 0.0
        %4138 = vmatmul.mubr.f32.gmra.mrb[0].mxu0 %v4048
        %v4139 = vpop.f32.mrb[0].mxu0
        %v4140 = vadd.f32 0.0, %v4139
        %v4141 = vpop.f32.mrb[0].mxu0
        %4142 = vmatprep.mubr.f32.mxu0 0.0
        %4143 = vmatmul.mubr.f32.gmra.mrb[0].mxu0 %v4051
        %v4144 = vpop.f32.mrb[0].mxu0
        %v4145 = vadd.f32 0.0, %v4144
        %v4146 = vpop.f32.mrb[0].mxu0
        %4147 = vmatprep.mubr.f32.mxu0 0.0
        %4148 = vmatmul.mubr.f32.gmra.mrb[0].mxu0 %v4054
        %v4149 = vpop.f32.mrb[0].mxu0
        %v4150 = vadd.f32 0.0, %v4149
        %v4151 = vpop.f32.mrb[0].mxu0
        %4152 = vmatprep.mubr.f32.mxu0 0.0
        %4153 = vmatmul.mubr.f32.gmra.mrb[0].mxu0 %v4057
        %v4154 = vpop.f32.mrb[0].mxu0
        %v4155 = vadd.f32 0.0, %v4154
        %v4156 = vpop.f32.mrb[0].mxu0
        %4157 = vmatprep.mubr.f32.mxu0 0.0
        %4158 = vmatmul.mubr.f32.gmra.mrb[0].mxu0 %v4060
        %v4159 = vpop.f32.mrb[0].mxu0
        %v4160 = vadd.f32 0.0, %v4159
        %v4161 = vpop.f32.mrb[0].mxu0
        %4162 = vmatprep.mubr.f32.mxu0 0.0
        %4163 = vmatmul.mubr.f32.gmra.mrb[0].mxu0 %v4063
        %v4164 = vpop.f32.mrb[0].mxu0
        %v4165 = vadd.f32 0.0, %v4164
        %v4166 = vpop.f32.mrb[0].mxu0
        %4167 = vmatprep.mubr.f32.mxu0 0.0
        %4168 = vmatmul.mubr.f32.gmra.mrb[0].mxu0 %v4066
        %v4169 = vpop.f32.mrb[0].mxu0
        %v4170 = vadd.f32 0.0, %v4169
        %v4171 = vpop.f32.mrb[0].mxu0
        %4172 = vdwg.mxu0
        %v4174 = vsel %vm1315, %v2122, 0
        %v4177 = vsel %vm1315, %v2195, 0
        %v4180 = vsel %vm1315, %v2268, 0
        %v4183 = vsel %vm1315, %v2341, 0
        %v4186 = vsel %vm1315, %v2414, 0
        %v4189 = vsel %vm1315, %v2487, 0
        %v4192 = vsel %vm1315, %v2560, 0
        %v4195 = vsel %vm1315, %v2633, 0
        %4197 = vmatprep.subr.mxu0 0.0
        %4198 = vmatpush1.msra.mxu0 %v1311
        %4199 = vmatprep.subr.mxu0 0.0
        %4200 = vmatpush1.msra.mxu0 0.0
        %4201 = vmatprep.subr.mxu0 0.0
        %4202 = vmatpush1.msra.mxu0 0.0
        %4203 = vmatprep.subr.mxu0 0.0
        %4204 = vmatpush1.msra.mxu0 0.0
        %4205 = vmatprep.subr.mxu0 0.0
        %4206 = vmatpush1.msra.mxu0 0.0
        %4207 = vmatprep.subr.mxu0 0.0
        %4208 = vmatpush1.msra.mxu0 0.0
        %4209 = vmatprep.subr.mxu0 0.0
        %4210 = vmatpush1.msra.mxu0 0.0
        %4211 = vmatprep.subr.mxu0 0.0
        %4212 = vmatpush1.msra.mxu0 0.0
        %4213 = vmatprep.subr.mxu0 0.0
        %4214 = vmatpush1.msra.mxu0 0.0
        %4215 = vmatprep.subr.mxu0 0.0
        %4216 = vmatpush1.msra.mxu0 0.0
        %4217 = vmatprep.subr.mxu0 0.0
        %4218 = vmatpush1.msra.mxu0 0.0
        %4219 = vmatprep.subr.mxu0 0.0
        %4220 = vmatpush1.msra.mxu0 0.0
        %4221 = vmatprep.subr.mxu0 0.0
        %4222 = vmatpush1.msra.mxu0 0.0
        %4223 = vmatprep.subr.mxu0 0.0
        %4224 = vmatpush1.msra.mxu0 0.0
        %4225 = vmatprep.subr.mxu0 0.0
        %4226 = vmatpush1.msra.mxu0 0.0
        %4227 = vmatprep.subr.mxu0 0.0
        %4228 = vmatpush1.msra.mxu0 0.0
        %4229 = vmatprep.subr.mxu0 0.0
        %4230 = vmatpush1.msra.mxu0 0.0
        %4231 = vmatprep.subr.mxu0 0.0
        %4232 = vmatpush1.msra.mxu0 0.0
        %4233 = vmatprep.subr.mxu0 0.0
        %4234 = vmatpush1.msra.mxu0 0.0
        %4235 = vmatprep.subr.mxu0 0.0
        %4236 = vmatpush1.msra.mxu0 0.0
        %4237 = vmatprep.subr.mxu0 0.0
        %4238 = vmatpush1.msra.mxu0 0.0
        %4239 = vmatprep.subr.mxu0 0.0
        %4240 = vmatpush1.msra.mxu0 0.0
        %4241 = vmatprep.subr.mxu0 0.0
        %4242 = vmatpush1.msra.mxu0 0.0
        %4243 = vmatprep.subr.mxu0 0.0
        %4244 = vmatpush1.msra.mxu0 0.0
        %4245 = vmatprep.subr.mxu0 0.0
        %4246 = vmatpush1.msra.mxu0 0.0
        %4247 = vmatprep.subr.mxu0 0.0
        %4248 = vmatpush1.msra.mxu0 0.0
        %4249 = vmatprep.subr.mxu0 0.0
        %4250 = vmatpush1.msra.mxu0 0.0
        %4251 = vmatprep.subr.mxu0 0.0
        %4252 = vmatpush1.msra.mxu0 0.0
        %4253 = vmatprep.subr.mxu0 0.0
        %4254 = vmatpush1.msra.mxu0 0.0
        %4255 = vmatprep.subr.mxu0 0.0
        %4256 = vmatpush1.msra.mxu0 0.0
        %4257 = vmatprep.subr.mxu0 0.0
        %4258 = vmatpush1.msra.mxu0 0.0
        %4259 = vmatprep.subr.mxu0 0.0
        %4260 = vmatpush1.msra.mxu0 0.0
        %4261 = vmatprep.mubr.f32.mxu0 0.0
        %4262 = vmatmul.mubr.f32.gmra.mrb[0].mxu0 %v4174
        %v4263 = vpop.f32.mrb[0].mxu0
        %v4264 = vadd.f32 %v4135, %v4263
        %v4265 = vpop.f32.mrb[0].mxu0
        %4266 = vmatprep.mubr.f32.mxu0 0.0
        %4267 = vmatmul.mubr.f32.gmra.mrb[0].mxu0 %v4177
        %v4268 = vpop.f32.mrb[0].mxu0
        %v4269 = vadd.f32 %v4140, %v4268
        %v4270 = vpop.f32.mrb[0].mxu0
        %4271 = vmatprep.mubr.f32.mxu0 0.0
        %4272 = vmatmul.mubr.f32.gmra.mrb[0].mxu0 %v4180
        %v4273 = vpop.f32.mrb[0].mxu0
        %v4274 = vadd.f32 %v4145, %v4273
        %v4275 = vpop.f32.mrb[0].mxu0
        %4276 = vmatprep.mubr.f32.mxu0 0.0
        %4277 = vmatmul.mubr.f32.gmra.mrb[0].mxu0 %v4183
        %v4278 = vpop.f32.mrb[0].mxu0
        %v4279 = vadd.f32 %v4150, %v4278
        %v4280 = vpop.f32.mrb[0].mxu0
        %4281 = vmatprep.mubr.f32.mxu0 0.0
        %4282 = vmatmul.mubr.f32.gmra.mrb[0].mxu0 %v4186
        %v4283 = vpop.f32.mrb[0].mxu0
        %v4284 = vadd.f32 %v4155, %v4283
        %v4285 = vpop.f32.mrb[0].mxu0
        %4286 = vmatprep.mubr.f32.mxu0 0.0
        %4287 = vmatmul.mubr.f32.gmra.mrb[0].mxu0 %v4189
        %v4288 = vpop.f32.mrb[0].mxu0
        %v4289 = vadd.f32 %v4160, %v4288
        %v4290 = vpop.f32.mrb[0].mxu0
        %4291 = vmatprep.mubr.f32.mxu0 0.0
        %4292 = vmatmul.mubr.f32.gmra.mrb[0].mxu0 %v4192
        %v4293 = vpop.f32.mrb[0].mxu0
        %v4294 = vadd.f32 %v4165, %v4293
        %v4295 = vpop.f32.mrb[0].mxu0
        %4296 = vmatprep.mubr.f32.mxu0 0.0
        %4297 = vmatmul.mubr.f32.gmra.mrb[0].mxu0 %v4195
        %v4298 = vpop.f32.mrb[0].mxu0
        %v4299 = vadd.f32 %v4170, %v4298
        %v4300 = vpop.f32.mrb[0].mxu0
        %4301 = vdwg.mxu0
        %4302 = vrot.lane.b32.xlu0 %v794, 112
        %v4303 = vpop.permute.xlu0 %4302
        %4304 = vrot.lane.b32.xlu0 %v958, 112
        %v4305 = vpop.permute.xlu0 %4304
        %4306 = vrot.lane.b32.xlu0 %v963, 112
        %v4307 = vpop.permute.xlu0 %4306
        %v4308 = vsel %vm1315, %v4303, 0
        %v4310 = vsel %vm1315, %v4305, 0
        %v4312 = vsel %vm1315, %v4307, 0
        %4314 = vmatprep.subr.mxu0 0.0
        %4315 = vmatpush1.xpose.msra.mxu0 %v4310
        %4316 = vmatprep.subr.mxu0 0.0
        %4317 = vmatpush1.xpose.msra.mxu0 %v4312
        %4318 = vmatprep.subr.mxu0 0.0
        %4319 = vmatpush1.xpose.msra.mxu0 0.0
        %4320 = vmatprep.subr.mxu0 0.0
        %4321 = vmatpush1.xpose.msra.mxu0 0.0
        %4322 = vmatprep.subr.mxu0 0.0
        %4323 = vmatpush1.xpose.msra.mxu0 0.0
        %4324 = vmatprep.subr.mxu0 0.0
        %4325 = vmatpush1.xpose.msra.mxu0 0.0
        %4326 = vmatprep.subr.mxu0 0.0
        %4327 = vmatpush1.xpose.msra.mxu0 0.0
        %4328 = vmatprep.subr.mxu0 0.0
        %4329 = vmatpush1.xpose.msra.mxu0 0.0
        %4330 = vmatprep.subr.mxu0 0.0
        %4331 = vmatpush1.xpose.msra.mxu0 0.0
        %4332 = vmatprep.subr.mxu0 0.0
        %4333 = vmatpush1.xpose.msra.mxu0 0.0
        %4334 = vmatprep.subr.mxu0 0.0
        %4335 = vmatpush1.xpose.msra.mxu0 0.0
        %4336 = vmatprep.subr.mxu0 0.0
        %4337 = vmatpush1.xpose.msra.mxu0 0.0
        %4338 = vmatprep.subr.mxu0 0.0
        %4339 = vmatpush1.xpose.msra.mxu0 0.0
        %4340 = vmatprep.subr.mxu0 0.0
        %4341 = vmatpush1.xpose.msra.mxu0 0.0
        %4342 = vmatprep.subr.mxu0 0.0
        %4343 = vmatpush1.xpose.msra.mxu0 0.0
        %4344 = vmatprep.subr.mxu0 0.0
        %4345 = vmatpush1.xpose.msra.mxu0 0.0
        %4346 = vmatprep.subr.mxu0 0.0
        %4347 = vmatpush1.xpose.msra.mxu0 0.0
        %4348 = vmatprep.subr.mxu0 0.0
        %4349 = vmatpush1.xpose.msra.mxu0 0.0
        %4350 = vmatprep.subr.mxu0 0.0
        %4351 = vmatpush1.xpose.msra.mxu0 0.0
        %4352 = vmatprep.subr.mxu0 0.0
        %4353 = vmatpush1.xpose.msra.mxu0 0.0
        %4354 = vmatprep.subr.mxu0 0.0
        %4355 = vmatpush1.xpose.msra.mxu0 0.0
        %4356 = vmatprep.subr.mxu0 0.0
        %4357 = vmatpush1.xpose.msra.mxu0 0.0
        %4358 = vmatprep.subr.mxu0 0.0
        %4359 = vmatpush1.xpose.msra.mxu0 0.0
        %4360 = vmatprep.subr.mxu0 0.0
        %4361 = vmatpush1.xpose.msra.mxu0 0.0
        %4362 = vmatprep.subr.mxu0 0.0
        %4363 = vmatpush1.xpose.msra.mxu0 0.0
        %4364 = vmatprep.subr.mxu0 0.0
        %4365 = vmatpush1.xpose.msra.mxu0 0.0
        %4366 = vmatprep.subr.mxu0 0.0
        %4367 = vmatpush1.xpose.msra.mxu0 0.0
        %4368 = vmatprep.subr.mxu0 0.0
        %4369 = vmatpush1.xpose.msra.mxu0 0.0
        %4370 = vmatprep.subr.mxu0 0.0
        %4371 = vmatpush1.xpose.msra.mxu0 0.0
        %4372 = vmatprep.subr.mxu0 0.0
        %4373 = vmatpush1.xpose.msra.mxu0 0.0
        %4374 = vmatprep.subr.mxu0 0.0
        %4375 = vmatpush1.xpose.msra.mxu0 0.0
        %4376 = vmatprep.subr.mxu0 0.0
        %4377 = vmatpush1.xpose.msra.mxu0 0.0
        %4378 = vmatprep.mubr.f32.mxu0 0.0
        %4379 = vmatmul.mubr.f32.gmra.mrb[0].mxu0 %v4308
        %v4380 = vpop.f32.mrb[0].mxu0
        %v4381 = vadd.f32 0.0, %v4380
        %v4382 = vpop.f32.mrb[0].mxu0
        %4383 = vdwg.mxu0
        %4384 = vrot.lane.b32.xlu0 %v799, 112
        %v4385 = vpop.permute.xlu0 %4384
        %4386 = vrot.lane.b32.xlu0 %v968, 112
        %v4387 = vpop.permute.xlu0 %4386
        %4388 = vrot.lane.b32.xlu0 %v973, 112
        %v4389 = vpop.permute.xlu0 %4388
        %v4390 = vsel %vm1315, %v4385, 0
        %v4392 = vsel %vm1315, %v4387, 0
        %v4394 = vsel %vm1315, %v4389, 0
        %4396 = vmatprep.subr.mxu0 0.0
        %4397 = vmatpush1.xpose.msra.mxu0 %v4392
        %4398 = vmatprep.subr.mxu0 0.0
        %4399 = vmatpush1.xpose.msra.mxu0 %v4394
        %4400 = vmatprep.subr.mxu0 0.0
        %4401 = vmatpush1.xpose.msra.mxu0 0.0
        %4402 = vmatprep.subr.mxu0 0.0
        %4403 = vmatpush1.xpose.msra.mxu0 0.0
        %4404 = vmatprep.subr.mxu0 0.0
        %4405 = vmatpush1.xpose.msra.mxu0 0.0
        %4406 = vmatprep.subr.mxu0 0.0
        %4407 = vmatpush1.xpose.msra.mxu0 0.0
        %4408 = vmatprep.subr.mxu0 0.0
        %4409 = vmatpush1.xpose.msra.mxu0 0.0
        %4410 = vmatprep.subr.mxu0 0.0
        %4411 = vmatpush1.xpose.msra.mxu0 0.0
        %4412 = vmatprep.subr.mxu0 0.0
        %4413 = vmatpush1.xpose.msra.mxu0 0.0
        %4414 = vmatprep.subr.mxu0 0.0
        %4415 = vmatpush1.xpose.msra.mxu0 0.0
        %4416 = vmatprep.subr.mxu0 0.0
        %4417 = vmatpush1.xpose.msra.mxu0 0.0
        %4418 = vmatprep.subr.mxu0 0.0
        %4419 = vmatpush1.xpose.msra.mxu0 0.0
        %4420 = vmatprep.subr.mxu0 0.0
        %4421 = vmatpush1.xpose.msra.mxu0 0.0
        %4422 = vmatprep.subr.mxu0 0.0
        %4423 = vmatpush1.xpose.msra.mxu0 0.0
        %4424 = vmatprep.subr.mxu0 0.0
        %4425 = vmatpush1.xpose.msra.mxu0 0.0
        %4426 = vmatprep.subr.mxu0 0.0
        %4427 = vmatpush1.xpose.msra.mxu0 0.0
        %4428 = vmatprep.subr.mxu0 0.0
        %4429 = vmatpush1.xpose.msra.mxu0 0.0
        %4430 = vmatprep.subr.mxu0 0.0
        %4431 = vmatpush1.xpose.msra.mxu0 0.0
        %4432 = vmatprep.subr.mxu0 0.0
        %4433 = vmatpush1.xpose.msra.mxu0 0.0
        %4434 = vmatprep.subr.mxu0 0.0
        %4435 = vmatpush1.xpose.msra.mxu0 0.0
        %4436 = vmatprep.subr.mxu0 0.0
        %4437 = vmatpush1.xpose.msra.mxu0 0.0
        %4438 = vmatprep.subr.mxu0 0.0
        %4439 = vmatpush1.xpose.msra.mxu0 0.0
        %4440 = vmatprep.subr.mxu0 0.0
        %4441 = vmatpush1.xpose.msra.mxu0 0.0
        %4442 = vmatprep.subr.mxu0 0.0
        %4443 = vmatpush1.xpose.msra.mxu0 0.0
        %4444 = vmatprep.subr.mxu0 0.0
        %4445 = vmatpush1.xpose.msra.mxu0 0.0
        %4446 = vmatprep.subr.mxu0 0.0
        %4447 = vmatpush1.xpose.msra.mxu0 0.0
        %4448 = vmatprep.subr.mxu0 0.0
        %4449 = vmatpush1.xpose.msra.mxu0 0.0
        %4450 = vmatprep.subr.mxu0 0.0
        %4451 = vmatpush1.xpose.msra.mxu0 0.0
        %4452 = vmatprep.subr.mxu0 0.0
        %4453 = vmatpush1.xpose.msra.mxu0 0.0
        %4454 = vmatprep.subr.mxu0 0.0
        %4455 = vmatpush1.xpose.msra.mxu0 0.0
        %4456 = vmatprep.subr.mxu0 0.0
        %4457 = vmatpush1.xpose.msra.mxu0 0.0
        %4458 = vmatprep.subr.mxu0 0.0
        %4459 = vmatpush1.xpose.msra.mxu0 0.0
        %4460 = vmatprep.mubr.f32.mxu0 0.0
        %4461 = vmatmul.mubr.f32.gmra.mrb[0].mxu0 %v4390
        %v4462 = vpop.f32.mrb[0].mxu0
        %v4463 = vadd.f32 0.0, %v4462
        %v4464 = vpop.f32.mrb[0].mxu0
        %4465 = vdwg.mxu0
        %4466 = vrot.lane.b32.xlu0 %v804, 112
        %v4467 = vpop.permute.xlu0 %4466
        %4468 = vrot.lane.b32.xlu0 %v978, 112
        %v4469 = vpop.permute.xlu0 %4468
        %4470 = vrot.lane.b32.xlu0 %v983, 112
        %v4471 = vpop.permute.xlu0 %4470
        %v4472 = vsel %vm1315, %v4467, 0
        %v4474 = vsel %vm1315, %v4469, 0
        %v4476 = vsel %vm1315, %v4471, 0
        %4478 = vmatprep.subr.mxu0 0.0
        %4479 = vmatpush1.xpose.msra.mxu0 %v4474
        %4480 = vmatprep.subr.mxu0 0.0
        %4481 = vmatpush1.xpose.msra.mxu0 %v4476
        %4482 = vmatprep.subr.mxu0 0.0
        %4483 = vmatpush1.xpose.msra.mxu0 0.0
        %4484 = vmatprep.subr.mxu0 0.0
        %4485 = vmatpush1.xpose.msra.mxu0 0.0
        %4486 = vmatprep.subr.mxu0 0.0
        %4487 = vmatpush1.xpose.msra.mxu0 0.0
        %4488 = vmatprep.subr.mxu0 0.0
        %4489 = vmatpush1.xpose.msra.mxu0 0.0
        %4490 = vmatprep.subr.mxu0 0.0
        %4491 = vmatpush1.xpose.msra.mxu0 0.0
        %4492 = vmatprep.subr.mxu0 0.0
        %4493 = vmatpush1.xpose.msra.mxu0 0.0
        %4494 = vmatprep.subr.mxu0 0.0
        %4495 = vmatpush1.xpose.msra.mxu0 0.0
        %4496 = vmatprep.subr.mxu0 0.0
        %4497 = vmatpush1.xpose.msra.mxu0 0.0
        %4498 = vmatprep.subr.mxu0 0.0
        %4499 = vmatpush1.xpose.msra.mxu0 0.0
        %4500 = vmatprep.subr.mxu0 0.0
        %4501 = vmatpush1.xpose.msra.mxu0 0.0
        %4502 = vmatprep.subr.mxu0 0.0
        %4503 = vmatpush1.xpose.msra.mxu0 0.0
        %4504 = vmatprep.subr.mxu0 0.0
        %4505 = vmatpush1.xpose.msra.mxu0 0.0
        %4506 = vmatprep.subr.mxu0 0.0
        %4507 = vmatpush1.xpose.msra.mxu0 0.0
        %4508 = vmatprep.subr.mxu0 0.0
        %4509 = vmatpush1.xpose.msra.mxu0 0.0
        %4510 = vmatprep.subr.mxu0 0.0
        %4511 = vmatpush1.xpose.msra.mxu0 0.0
        %4512 = vmatprep.subr.mxu0 0.0
        %4513 = vmatpush1.xpose.msra.mxu0 0.0
        %4514 = vmatprep.subr.mxu0 0.0
        %4515 = vmatpush1.xpose.msra.mxu0 0.0
        %4516 = vmatprep.subr.mxu0 0.0
        %4517 = vmatpush1.xpose.msra.mxu0 0.0
        %4518 = vmatprep.subr.mxu0 0.0
        %4519 = vmatpush1.xpose.msra.mxu0 0.0
        %4520 = vmatprep.subr.mxu0 0.0
        %4521 = vmatpush1.xpose.msra.mxu0 0.0
        %4522 = vmatprep.subr.mxu0 0.0
        %4523 = vmatpush1.xpose.msra.mxu0 0.0
        %4524 = vmatprep.subr.mxu0 0.0
        %4525 = vmatpush1.xpose.msra.mxu0 0.0
        %4526 = vmatprep.subr.mxu0 0.0
        %4527 = vmatpush1.xpose.msra.mxu0 0.0
        %4528 = vmatprep.subr.mxu0 0.0
        %4529 = vmatpush1.xpose.msra.mxu0 0.0
        %4530 = vmatprep.subr.mxu0 0.0
        %4531 = vmatpush1.xpose.msra.mxu0 0.0
        %4532 = vmatprep.subr.mxu0 0.0
        %4533 = vmatpush1.xpose.msra.mxu0 0.0
        %4534 = vmatprep.subr.mxu0 0.0
        %4535 = vmatpush1.xpose.msra.mxu0 0.0
        %4536 = vmatprep.subr.mxu0 0.0
        %4537 = vmatpush1.xpose.msra.mxu0 0.0
        %4538 = vmatprep.subr.mxu0 0.0
        %4539 = vmatpush1.xpose.msra.mxu0 0.0
        %4540 = vmatprep.subr.mxu0 0.0
        %4541 = vmatpush1.xpose.msra.mxu0 0.0
        %4542 = vmatprep.mubr.f32.mxu0 0.0
        %4543 = vmatmul.mubr.f32.gmra.mrb[0].mxu0 %v4472
        %v4544 = vpop.f32.mrb[0].mxu0
        %v4545 = vadd.f32 0.0, %v4544
        %v4546 = vpop.f32.mrb[0].mxu0
        %4547 = vdwg.mxu0
        %4548 = vrot.lane.b32.xlu0 %v809, 112
        %v4549 = vpop.permute.xlu0 %4548
        %4550 = vrot.lane.b32.xlu0 %v988, 112
        %v4551 = vpop.permute.xlu0 %4550
        %4552 = vrot.lane.b32.xlu0 %v993, 112
        %v4553 = vpop.permute.xlu0 %4552
        %v4554 = vsel %vm1315, %v4549, 0
        %v4556 = vsel %vm1315, %v4551, 0
        %v4558 = vsel %vm1315, %v4553, 0
        %4560 = vmatprep.subr.mxu0 0.0
        %4561 = vmatpush1.xpose.msra.mxu0 %v4556
        %4562 = vmatprep.subr.mxu0 0.0
        %4563 = vmatpush1.xpose.msra.mxu0 %v4558
        %4564 = vmatprep.subr.mxu0 0.0
        %4565 = vmatpush1.xpose.msra.mxu0 0.0
        %4566 = vmatprep.subr.mxu0 0.0
        %4567 = vmatpush1.xpose.msra.mxu0 0.0
        %4568 = vmatprep.subr.mxu0 0.0
        %4569 = vmatpush1.xpose.msra.mxu0 0.0
        %4570 = vmatprep.subr.mxu0 0.0
        %4571 = vmatpush1.xpose.msra.mxu0 0.0
        %4572 = vmatprep.subr.mxu0 0.0
        %4573 = vmatpush1.xpose.msra.mxu0 0.0
        %4574 = vmatprep.subr.mxu0 0.0
        %4575 = vmatpush1.xpose.msra.mxu0 0.0
        %4576 = vmatprep.subr.mxu0 0.0
        %4577 = vmatpush1.xpose.msra.mxu0 0.0
        %4578 = vmatprep.subr.mxu0 0.0
        %4579 = vmatpush1.xpose.msra.mxu0 0.0
        %4580 = vmatprep.subr.mxu0 0.0
        %4581 = vmatpush1.xpose.msra.mxu0 0.0
        %4582 = vmatprep.subr.mxu0 0.0
        %4583 = vmatpush1.xpose.msra.mxu0 0.0
        %4584 = vmatprep.subr.mxu0 0.0
        %4585 = vmatpush1.xpose.msra.mxu0 0.0
        %4586 = vmatprep.subr.mxu0 0.0
        %4587 = vmatpush1.xpose.msra.mxu0 0.0
        %4588 = vmatprep.subr.mxu0 0.0
        %4589 = vmatpush1.xpose.msra.mxu0 0.0
        %4590 = vmatprep.subr.mxu0 0.0
        %4591 = vmatpush1.xpose.msra.mxu0 0.0
        %4592 = vmatprep.subr.mxu0 0.0
        %4593 = vmatpush1.xpose.msra.mxu0 0.0
        %4594 = vmatprep.subr.mxu0 0.0
        %4595 = vmatpush1.xpose.msra.mxu0 0.0
        %4596 = vmatprep.subr.mxu0 0.0
        %4597 = vmatpush1.xpose.msra.mxu0 0.0
        %4598 = vmatprep.subr.mxu0 0.0
        %4599 = vmatpush1.xpose.msra.mxu0 0.0
        %4600 = vmatprep.subr.mxu0 0.0
        %4601 = vmatpush1.xpose.msra.mxu0 0.0
        %4602 = vmatprep.subr.mxu0 0.0
        %4603 = vmatpush1.xpose.msra.mxu0 0.0
        %4604 = vmatprep.subr.mxu0 0.0
        %4605 = vmatpush1.xpose.msra.mxu0 0.0
        %4606 = vmatprep.subr.mxu0 0.0
        %4607 = vmatpush1.xpose.msra.mxu0 0.0
        %4608 = vmatprep.subr.mxu0 0.0
        %4609 = vmatpush1.xpose.msra.mxu0 0.0
        %4610 = vmatprep.subr.mxu0 0.0
        %4611 = vmatpush1.xpose.msra.mxu0 0.0
        %4612 = vmatprep.subr.mxu0 0.0
        %4613 = vmatpush1.xpose.msra.mxu0 0.0
        %4614 = vmatprep.subr.mxu0 0.0
        %4615 = vmatpush1.xpose.msra.mxu0 0.0
        %4616 = vmatprep.subr.mxu0 0.0
        %4617 = vmatpush1.xpose.msra.mxu0 0.0
        %4618 = vmatprep.subr.mxu0 0.0
        %4619 = vmatpush1.xpose.msra.mxu0 0.0
        %4620 = vmatprep.subr.mxu0 0.0
        %4621 = vmatpush1.xpose.msra.mxu0 0.0
        %4622 = vmatprep.subr.mxu0 0.0
        %4623 = vmatpush1.xpose.msra.mxu0 0.0
        %4624 = vmatprep.mubr.f32.mxu0 0.0
        %4625 = vmatmul.mubr.f32.gmra.mrb[0].mxu0 %v4554
        %v4626 = vpop.f32.mrb[0].mxu0
        %v4627 = vadd.f32 0.0, %v4626
        %v4628 = vpop.f32.mrb[0].mxu0
        %4629 = vdwg.mxu0
        %4630 = vrot.lane.b32.xlu0 %v814, 112
        %v4631 = vpop.permute.xlu0 %4630
        %4632 = vrot.lane.b32.xlu0 %v998, 112
        %v4633 = vpop.permute.xlu0 %4632
        %4634 = vrot.lane.b32.xlu0 %v1003, 112
        %v4635 = vpop.permute.xlu0 %4634
        %v4636 = vsel %vm1315, %v4631, 0
        %v4638 = vsel %vm1315, %v4633, 0
        %v4640 = vsel %vm1315, %v4635, 0
        %4642 = vmatprep.subr.mxu0 0.0
        %4643 = vmatpush1.xpose.msra.mxu0 %v4638
        %4644 = vmatprep.subr.mxu0 0.0
        %4645 = vmatpush1.xpose.msra.mxu0 %v4640
        %4646 = vmatprep.subr.mxu0 0.0
        %4647 = vmatpush1.xpose.msra.mxu0 0.0
        %4648 = vmatprep.subr.mxu0 0.0
        %4649 = vmatpush1.xpose.msra.mxu0 0.0
        %4650 = vmatprep.subr.mxu0 0.0
        %4651 = vmatpush1.xpose.msra.mxu0 0.0
        %4652 = vmatprep.subr.mxu0 0.0
        %4653 = vmatpush1.xpose.msra.mxu0 0.0
        %4654 = vmatprep.subr.mxu0 0.0
        %4655 = vmatpush1.xpose.msra.mxu0 0.0
        %4656 = vmatprep.subr.mxu0 0.0
        %4657 = vmatpush1.xpose.msra.mxu0 0.0
        %4658 = vmatprep.subr.mxu0 0.0
        %4659 = vmatpush1.xpose.msra.mxu0 0.0
        %4660 = vmatprep.subr.mxu0 0.0
        %4661 = vmatpush1.xpose.msra.mxu0 0.0
        %4662 = vmatprep.subr.mxu0 0.0
        %4663 = vmatpush1.xpose.msra.mxu0 0.0
        %4664 = vmatprep.subr.mxu0 0.0
        %4665 = vmatpush1.xpose.msra.mxu0 0.0
        %4666 = vmatprep.subr.mxu0 0.0
        %4667 = vmatpush1.xpose.msra.mxu0 0.0
        %4668 = vmatprep.subr.mxu0 0.0
        %4669 = vmatpush1.xpose.msra.mxu0 0.0
        %4670 = vmatprep.subr.mxu0 0.0
        %4671 = vmatpush1.xpose.msra.mxu0 0.0
        %4672 = vmatprep.subr.mxu0 0.0
        %4673 = vmatpush1.xpose.msra.mxu0 0.0
        %4674 = vmatprep.subr.mxu0 0.0
        %4675 = vmatpush1.xpose.msra.mxu0 0.0
        %4676 = vmatprep.subr.mxu0 0.0
        %4677 = vmatpush1.xpose.msra.mxu0 0.0
        %4678 = vmatprep.subr.mxu0 0.0
        %4679 = vmatpush1.xpose.msra.mxu0 0.0
        %4680 = vmatprep.subr.mxu0 0.0
        %4681 = vmatpush1.xpose.msra.mxu0 0.0
        %4682 = vmatprep.subr.mxu0 0.0
        %4683 = vmatpush1.xpose.msra.mxu0 0.0
        %4684 = vmatprep.subr.mxu0 0.0
        %4685 = vmatpush1.xpose.msra.mxu0 0.0
        %4686 = vmatprep.subr.mxu0 0.0
        %4687 = vmatpush1.xpose.msra.mxu0 0.0
        %4688 = vmatprep.subr.mxu0 0.0
        %4689 = vmatpush1.xpose.msra.mxu0 0.0
        %4690 = vmatprep.subr.mxu0 0.0
        %4691 = vmatpush1.xpose.msra.mxu0 0.0
        %4692 = vmatprep.subr.mxu0 0.0
        %4693 = vmatpush1.xpose.msra.mxu0 0.0
        %4694 = vmatprep.subr.mxu0 0.0
        %4695 = vmatpush1.xpose.msra.mxu0 0.0
        %4696 = vmatprep.subr.mxu0 0.0
        %4697 = vmatpush1.xpose.msra.mxu0 0.0
        %4698 = vmatprep.subr.mxu0 0.0
        %4699 = vmatpush1.xpose.msra.mxu0 0.0
        %4700 = vmatprep.subr.mxu0 0.0
        %4701 = vmatpush1.xpose.msra.mxu0 0.0
        %4702 = vmatprep.subr.mxu0 0.0
        %4703 = vmatpush1.xpose.msra.mxu0 0.0
        %4704 = vmatprep.subr.mxu0 0.0
        %4705 = vmatpush1.xpose.msra.mxu0 0.0
        %4706 = vmatprep.mubr.f32.mxu0 0.0
        %4707 = vmatmul.mubr.f32.gmra.mrb[0].mxu0 %v4636
        %v4708 = vpop.f32.mrb[0].mxu0
        %v4709 = vadd.f32 0.0, %v4708
        %v4710 = vpop.f32.mrb[0].mxu0
        %4711 = vdwg.mxu0
        %4712 = vrot.lane.b32.xlu0 %v819, 112
        %v4713 = vpop.permute.xlu0 %4712
        %4714 = vrot.lane.b32.xlu0 %v1008, 112
        %v4715 = vpop.permute.xlu0 %4714
        %4716 = vrot.lane.b32.xlu0 %v1013, 112
        %v4717 = vpop.permute.xlu0 %4716
        %v4718 = vsel %vm1315, %v4713, 0
        %v4720 = vsel %vm1315, %v4715, 0
        %v4722 = vsel %vm1315, %v4717, 0
        %4724 = vmatprep.subr.mxu0 0.0
        %4725 = vmatpush1.xpose.msra.mxu0 %v4720
        %4726 = vmatprep.subr.mxu0 0.0
        %4727 = vmatpush1.xpose.msra.mxu0 %v4722
        %4728 = vmatprep.subr.mxu0 0.0
        %4729 = vmatpush1.xpose.msra.mxu0 0.0
        %4730 = vmatprep.subr.mxu0 0.0
        %4731 = vmatpush1.xpose.msra.mxu0 0.0
        %4732 = vmatprep.subr.mxu0 0.0
        %4733 = vmatpush1.xpose.msra.mxu0 0.0
        %4734 = vmatprep.subr.mxu0 0.0
        %4735 = vmatpush1.xpose.msra.mxu0 0.0
        %4736 = vmatprep.subr.mxu0 0.0
        %4737 = vmatpush1.xpose.msra.mxu0 0.0
        %4738 = vmatprep.subr.mxu0 0.0
        %4739 = vmatpush1.xpose.msra.mxu0 0.0
        %4740 = vmatprep.subr.mxu0 0.0
        %4741 = vmatpush1.xpose.msra.mxu0 0.0
        %4742 = vmatprep.subr.mxu0 0.0
        %4743 = vmatpush1.xpose.msra.mxu0 0.0
        %4744 = vmatprep.subr.mxu0 0.0
        %4745 = vmatpush1.xpose.msra.mxu0 0.0
        %4746 = vmatprep.subr.mxu0 0.0
        %4747 = vmatpush1.xpose.msra.mxu0 0.0
        %4748 = vmatprep.subr.mxu0 0.0
        %4749 = vmatpush1.xpose.msra.mxu0 0.0
        %4750 = vmatprep.subr.mxu0 0.0
        %4751 = vmatpush1.xpose.msra.mxu0 0.0
        %4752 = vmatprep.subr.mxu0 0.0
        %4753 = vmatpush1.xpose.msra.mxu0 0.0
        %4754 = vmatprep.subr.mxu0 0.0
        %4755 = vmatpush1.xpose.msra.mxu0 0.0
        %4756 = vmatprep.subr.mxu0 0.0
        %4757 = vmatpush1.xpose.msra.mxu0 0.0
        %4758 = vmatprep.subr.mxu0 0.0
        %4759 = vmatpush1.xpose.msra.mxu0 0.0
        %4760 = vmatprep.subr.mxu0 0.0
        %4761 = vmatpush1.xpose.msra.mxu0 0.0
        %4762 = vmatprep.subr.mxu0 0.0
        %4763 = vmatpush1.xpose.msra.mxu0 0.0
        %4764 = vmatprep.subr.mxu0 0.0
        %4765 = vmatpush1.xpose.msra.mxu0 0.0
        %4766 = vmatprep.subr.mxu0 0.0
        %4767 = vmatpush1.xpose.msra.mxu0 0.0
        %4768 = vmatprep.subr.mxu0 0.0
        %4769 = vmatpush1.xpose.msra.mxu0 0.0
        %4770 = vmatprep.subr.mxu0 0.0
        %4771 = vmatpush1.xpose.msra.mxu0 0.0
        %4772 = vmatprep.subr.mxu0 0.0
        %4773 = vmatpush1.xpose.msra.mxu0 0.0
        %4774 = vmatprep.subr.mxu0 0.0
        %4775 = vmatpush1.xpose.msra.mxu0 0.0
        %4776 = vmatprep.subr.mxu0 0.0
        %4777 = vmatpush1.xpose.msra.mxu0 0.0
        %4778 = vmatprep.subr.mxu0 0.0
        %4779 = vmatpush1.xpose.msra.mxu0 0.0
        %4780 = vmatprep.subr.mxu0 0.0
        %4781 = vmatpush1.xpose.msra.mxu0 0.0
        %4782 = vmatprep.subr.mxu0 0.0
        %4783 = vmatpush1.xpose.msra.mxu0 0.0
        %4784 = vmatprep.subr.mxu0 0.0
        %4785 = vmatpush1.xpose.msra.mxu0 0.0
        %4786 = vmatprep.subr.mxu0 0.0
        %4787 = vmatpush1.xpose.msra.mxu0 0.0
        %4788 = vmatprep.mubr.f32.mxu0 0.0
        %4789 = vmatmul.mubr.f32.gmra.mrb[0].mxu0 %v4718
        %v4790 = vpop.f32.mrb[0].mxu0
        %v4791 = vadd.f32 0.0, %v4790
        %v4792 = vpop.f32.mrb[0].mxu0
        %4793 = vdwg.mxu0
        %4794 = vrot.lane.b32.xlu0 %v824, 112
        %v4795 = vpop.permute.xlu0 %4794
        %4796 = vrot.lane.b32.xlu0 %v1018, 112
        %v4797 = vpop.permute.xlu0 %4796
        %4798 = vrot.lane.b32.xlu0 %v1023, 112
        %v4799 = vpop.permute.xlu0 %4798
        %v4800 = vsel %vm1315, %v4795, 0
        %v4802 = vsel %vm1315, %v4797, 0
        %v4804 = vsel %vm1315, %v4799, 0
        %4806 = vmatprep.subr.mxu0 0.0
        %4807 = vmatpush1.xpose.msra.mxu0 %v4802
        %4808 = vmatprep.subr.mxu0 0.0
        %4809 = vmatpush1.xpose.msra.mxu0 %v4804
        %4810 = vmatprep.subr.mxu0 0.0
        %4811 = vmatpush1.xpose.msra.mxu0 0.0
        %4812 = vmatprep.subr.mxu0 0.0
        %4813 = vmatpush1.xpose.msra.mxu0 0.0
        %4814 = vmatprep.subr.mxu0 0.0
        %4815 = vmatpush1.xpose.msra.mxu0 0.0
        %4816 = vmatprep.subr.mxu0 0.0
        %4817 = vmatpush1.xpose.msra.mxu0 0.0
        %4818 = vmatprep.subr.mxu0 0.0
        %4819 = vmatpush1.xpose.msra.mxu0 0.0
        %4820 = vmatprep.subr.mxu0 0.0
        %4821 = vmatpush1.xpose.msra.mxu0 0.0
        %4822 = vmatprep.subr.mxu0 0.0
        %4823 = vmatpush1.xpose.msra.mxu0 0.0
        %4824 = vmatprep.subr.mxu0 0.0
        %4825 = vmatpush1.xpose.msra.mxu0 0.0
        %4826 = vmatprep.subr.mxu0 0.0
        %4827 = vmatpush1.xpose.msra.mxu0 0.0
        %4828 = vmatprep.subr.mxu0 0.0
        %4829 = vmatpush1.xpose.msra.mxu0 0.0
        %4830 = vmatprep.subr.mxu0 0.0
        %4831 = vmatpush1.xpose.msra.mxu0 0.0
        %4832 = vmatprep.subr.mxu0 0.0
        %4833 = vmatpush1.xpose.msra.mxu0 0.0
        %4834 = vmatprep.subr.mxu0 0.0
        %4835 = vmatpush1.xpose.msra.mxu0 0.0
        %4836 = vmatprep.subr.mxu0 0.0
        %4837 = vmatpush1.xpose.msra.mxu0 0.0
        %4838 = vmatprep.subr.mxu0 0.0
        %4839 = vmatpush1.xpose.msra.mxu0 0.0
        %4840 = vmatprep.subr.mxu0 0.0
        %4841 = vmatpush1.xpose.msra.mxu0 0.0
        %4842 = vmatprep.subr.mxu0 0.0
        %4843 = vmatpush1.xpose.msra.mxu0 0.0
        %4844 = vmatprep.subr.mxu0 0.0
        %4845 = vmatpush1.xpose.msra.mxu0 0.0
        %4846 = vmatprep.subr.mxu0 0.0
        %4847 = vmatpush1.xpose.msra.mxu0 0.0
        %4848 = vmatprep.subr.mxu0 0.0
        %4849 = vmatpush1.xpose.msra.mxu0 0.0
        %4850 = vmatprep.subr.mxu0 0.0
        %4851 = vmatpush1.xpose.msra.mxu0 0.0
        %4852 = vmatprep.subr.mxu0 0.0
        %4853 = vmatpush1.xpose.msra.mxu0 0.0
        %4854 = vmatprep.subr.mxu0 0.0
        %4855 = vmatpush1.xpose.msra.mxu0 0.0
        %4856 = vmatprep.subr.mxu0 0.0
        %4857 = vmatpush1.xpose.msra.mxu0 0.0
        %4858 = vmatprep.subr.mxu0 0.0
        %4859 = vmatpush1.xpose.msra.mxu0 0.0
        %4860 = vmatprep.subr.mxu0 0.0
        %4861 = vmatpush1.xpose.msra.mxu0 0.0
        %4862 = vmatprep.subr.mxu0 0.0
        %4863 = vmatpush1.xpose.msra.mxu0 0.0
        %4864 = vmatprep.subr.mxu0 0.0
        %4865 = vmatpush1.xpose.msra.mxu0 0.0
        %4866 = vmatprep.subr.mxu0 0.0
        %4867 = vmatpush1.xpose.msra.mxu0 0.0
        %4868 = vmatprep.subr.mxu0 0.0
        %4869 = vmatpush1.xpose.msra.mxu0 0.0
        %4870 = vmatprep.mubr.f32.mxu0 0.0
        %4871 = vmatmul.mubr.f32.gmra.mrb[0].mxu0 %v4800
        %v4872 = vpop.f32.mrb[0].mxu0
        %v4873 = vadd.f32 0.0, %v4872
        %v4874 = vpop.f32.mrb[0].mxu0
        %4875 = vdwg.mxu0
        %4876 = vrot.lane.b32.xlu0 %v829, 112
        %v4877 = vpop.permute.xlu0 %4876
        %4878 = vrot.lane.b32.xlu0 %v1028, 112
        %v4879 = vpop.permute.xlu0 %4878
        %4880 = vrot.lane.b32.xlu0 %v1033, 112
        %v4881 = vpop.permute.xlu0 %4880
        %v4882 = vsel %vm1315, %v4877, 0
        %v4884 = vsel %vm1315, %v4879, 0
        %v4886 = vsel %vm1315, %v4881, 0
        %4888 = vmatprep.subr.mxu0 0.0
        %4889 = vmatpush1.xpose.msra.mxu0 %v4884
        %4890 = vmatprep.subr.mxu0 0.0
        %4891 = vmatpush1.xpose.msra.mxu0 %v4886
        %4892 = vmatprep.subr.mxu0 0.0
        %4893 = vmatpush1.xpose.msra.mxu0 0.0
        %4894 = vmatprep.subr.mxu0 0.0
        %4895 = vmatpush1.xpose.msra.mxu0 0.0
        %4896 = vmatprep.subr.mxu0 0.0
        %4897 = vmatpush1.xpose.msra.mxu0 0.0
        %4898 = vmatprep.subr.mxu0 0.0
        %4899 = vmatpush1.xpose.msra.mxu0 0.0
        %4900 = vmatprep.subr.mxu0 0.0
        %4901 = vmatpush1.xpose.msra.mxu0 0.0
        %4902 = vmatprep.subr.mxu0 0.0
        %4903 = vmatpush1.xpose.msra.mxu0 0.0
        %4904 = vmatprep.subr.mxu0 0.0
        %4905 = vmatpush1.xpose.msra.mxu0 0.0
        %4906 = vmatprep.subr.mxu0 0.0
        %4907 = vmatpush1.xpose.msra.mxu0 0.0
        %4908 = vmatprep.subr.mxu0 0.0
        %4909 = vmatpush1.xpose.msra.mxu0 0.0
        %4910 = vmatprep.subr.mxu0 0.0
        %4911 = vmatpush1.xpose.msra.mxu0 0.0
        %4912 = vmatprep.subr.mxu0 0.0
        %4913 = vmatpush1.xpose.msra.mxu0 0.0
        %4914 = vmatprep.subr.mxu0 0.0
        %4915 = vmatpush1.xpose.msra.mxu0 0.0
        %4916 = vmatprep.subr.mxu0 0.0
        %4917 = vmatpush1.xpose.msra.mxu0 0.0
        %4918 = vmatprep.subr.mxu0 0.0
        %4919 = vmatpush1.xpose.msra.mxu0 0.0
        %4920 = vmatprep.subr.mxu0 0.0
        %4921 = vmatpush1.xpose.msra.mxu0 0.0
        %4922 = vmatprep.subr.mxu0 0.0
        %4923 = vmatpush1.xpose.msra.mxu0 0.0
        %4924 = vmatprep.subr.mxu0 0.0
        %4925 = vmatpush1.xpose.msra.mxu0 0.0
        %4926 = vmatprep.subr.mxu0 0.0
        %4927 = vmatpush1.xpose.msra.mxu0 0.0
        %4928 = vmatprep.subr.mxu0 0.0
        %4929 = vmatpush1.xpose.msra.mxu0 0.0
        %4930 = vmatprep.subr.mxu0 0.0
        %4931 = vmatpush1.xpose.msra.mxu0 0.0
        %4932 = vmatprep.subr.mxu0 0.0
        %4933 = vmatpush1.xpose.msra.mxu0 0.0
        %4934 = vmatprep.subr.mxu0 0.0
        %4935 = vmatpush1.xpose.msra.mxu0 0.0
        %4936 = vmatprep.subr.mxu0 0.0
        %4937 = vmatpush1.xpose.msra.mxu0 0.0
        %4938 = vmatprep.subr.mxu0 0.0
        %4939 = vmatpush1.xpose.msra.mxu0 0.0
        %4940 = vmatprep.subr.mxu0 0.0
        %4941 = vmatpush1.xpose.msra.mxu0 0.0
        %4942 = vmatprep.subr.mxu0 0.0
        %4943 = vmatpush1.xpose.msra.mxu0 0.0
        %4944 = vmatprep.subr.mxu0 0.0
        %4945 = vmatpush1.xpose.msra.mxu0 0.0
        %4946 = vmatprep.subr.mxu0 0.0
        %4947 = vmatpush1.xpose.msra.mxu0 0.0
        %4948 = vmatprep.subr.mxu0 0.0
        %4949 = vmatpush1.xpose.msra.mxu0 0.0
        %4950 = vmatprep.subr.mxu0 0.0
        %4951 = vmatpush1.xpose.msra.mxu0 0.0
        %4952 = vmatprep.mubr.f32.mxu0 0.0
        %4953 = vmatmul.mubr.f32.gmra.mrb[0].mxu0 %v4882
        %v4954 = vpop.f32.mrb[0].mxu0
        %v4955 = vadd.f32 0.0, %v4954
        %v4956 = vpop.f32.mrb[0].mxu0
        %4957 = vdwg.mxu0
        %v4958 = vmul.f32 %v4381, 0.2
        %v4959 = vmul.f32 %v4463, 0.2
        %v4960 = vmul.f32 %v4545, 0.2
        %v4961 = vmul.f32 %v4627, 0.2
        %v4962 = vmul.f32 %v4709, 0.2
        %v4963 = vmul.f32 %v4791, 0.2
        %v4964 = vmul.f32 %v4873, 0.2
        %v4965 = vmul.f32 %v4955, 0.2
        %v4966 = vadd.f32 %v4958, %v1274
        %v4967 = vadd.f32 %v4959, %v1278
        %v4968 = vadd.f32 %v4960, %v1282
        %v4969 = vadd.f32 %v4961, %v1286
        %v4970 = vadd.f32 %v4962, %v1290
        %v4971 = vadd.f32 %v4963, %v1294
        %v4972 = vadd.f32 %v4964, %v1298
        %v4973 = vadd.f32 %v4965, %v1302
        %v4974 = vsel %vm702, %v4966, -inf
        %4975 = vmax.xlane.f32.xlu0 %v4974
        %v4976 = vpop.xlane.xlu0 %4975
        %v4977 = vsel %vm702, %v4967, -inf
        %4978 = vmax.xlane.f32.xlu0 %v4977
        %v4979 = vpop.xlane.xlu0 %4978
        %v4980 = vsel %vm702, %v4968, -inf
        %4981 = vmax.xlane.f32.xlu0 %v4980
        %v4982 = vpop.xlane.xlu0 %4981
        %v4983 = vsel %vm702, %v4969, -inf
        %4984 = vmax.xlane.f32.xlu0 %v4983
        %v4985 = vpop.xlane.xlu0 %4984
        %v4986 = vsel %vm702, %v4970, -inf
        %4987 = vmax.xlane.f32.xlu0 %v4986
        %v4988 = vpop.xlane.xlu0 %4987
        %v4989 = vsel %vm702, %v4971, -inf
        %4990 = vmax.xlane.f32.xlu0 %v4989
        %v4991 = vpop.xlane.xlu0 %4990
        %v4992 = vsel %vm702, %v4972, -inf
        %4993 = vmax.xlane.f32.xlu0 %v4992
        %v4994 = vpop.xlane.xlu0 %4993
        %v4995 = vsel %vm702, %v4973, -inf
        %4996 = vmax.xlane.f32.xlu0 %v4995
        %v4997 = vpop.xlane.xlu0 %4996
        %v4998 = vsub.f32 %v4966, %v4976
        %v4999 = vsub.f32 %v4967, %v4979
        %v5000 = vsub.f32 %v4968, %v4982
        %v5001 = vsub.f32 %v4969, %v4985
        %v5002 = vsub.f32 %v4970, %v4988
        %v5003 = vsub.f32 %v4971, %v4991
        %v5004 = vsub.f32 %v4972, %v4994
        %v5005 = vsub.f32 %v4973, %v4997
        %v5006 = vmul.f32 %v4998, 1.442695
        %v5007 = vpow.pop %v5006
        %v5008 = vmul.f32 %v4999, 1.442695
        %v5009 = vpow.pop %v5008
        %v5010 = vmul.f32 %v5000, 1.442695
        %v5011 = vpow.pop %v5010
        %v5012 = vmul.f32 %v5001, 1.442695
        %v5013 = vpow.pop %v5012
        %v5014 = vmul.f32 %v5002, 1.442695
        %v5015 = vpow.pop %v5014
        %v5016 = vmul.f32 %v5003, 1.442695
        %v5017 = vpow.pop %v5016
        %v5018 = vmul.f32 %v5004, 1.442695
        %v5019 = vpow.pop %v5018
        %v5020 = vmul.f32 %v5005, 1.442695
        %v5021 = vpow.pop %v5020
        %v5022 = vsel %vm702, %v5007, 0.0
        %5023 = vadd.xlane.f32.xlu0 %v5022
        %v5024 = vpop.xlane.xlu0 %5023
        %v5025 = vsel %vm702, %v5009, 0.0
        %5026 = vadd.xlane.f32.xlu0 %v5025
        %v5027 = vpop.xlane.xlu0 %5026
        %v5028 = vsel %vm702, %v5011, 0.0
        %5029 = vadd.xlane.f32.xlu0 %v5028
        %v5030 = vpop.xlane.xlu0 %5029
        %v5031 = vsel %vm702, %v5013, 0.0
        %5032 = vadd.xlane.f32.xlu0 %v5031
        %v5033 = vpop.xlane.xlu0 %5032
        %v5034 = vsel %vm702, %v5015, 0.0
        %5035 = vadd.xlane.f32.xlu0 %v5034
        %v5036 = vpop.xlane.xlu0 %5035
        %v5037 = vsel %vm702, %v5017, 0.0
        %5038 = vadd.xlane.f32.xlu0 %v5037
        %v5039 = vpop.xlane.xlu0 %5038
        %v5040 = vsel %vm702, %v5019, 0.0
        %5041 = vadd.xlane.f32.xlu0 %v5040
        %v5042 = vpop.xlane.xlu0 %5041
        %v5043 = vsel %vm702, %v5021, 0.0
        %5044 = vadd.xlane.f32.xlu0 %v5043
        %v5045 = vpop.xlane.xlu0 %5044
        %v5046 = vrcp.pop %v5024
        %v5047 = vrcp.pop %v5027
        %v5048 = vrcp.pop %v5030
        %v5049 = vrcp.pop %v5033
        %v5050 = vrcp.pop %v5036
        %v5051 = vrcp.pop %v5039
        %v5052 = vrcp.pop %v5042
        %v5053 = vrcp.pop %v5045
        %v5054 = vmul.f32 %v5007, %v5046
        %v5055 = vmul.f32 %v5009, %v5047
        %v5056 = vmul.f32 %v5011, %v5048
        %v5057 = vmul.f32 %v5013, %v5049
        %v5058 = vmul.f32 %v5015, %v5050
        %v5059 = vmul.f32 %v5017, %v5051
        %v5060 = vmul.f32 %v5019, %v5052
        %v5061 = vmul.f32 %v5021, %v5053
        %5062 = vrot.lane.b32.xlu0 %v1161, 112
        %v5063 = vpop.permute.xlu0 %5062
        %5064 = vrot.lane.b32.xlu0 %v1166, 112
        %v5065 = vpop.permute.xlu0 %5064
        %v5069 = vsel %vm702, %v5054, 0
        %5071 = vmatprep.subr.mxu0 0.0
        %5072 = vmatpush1.msra.mxu0 %v5063
        %5073 = vmatprep.subr.mxu0 0.0
        %5074 = vmatpush1.msra.mxu0 %v5065
        %5075 = vmatprep.subr.mxu0 0.0
        %5076 = vmatpush1.msra.mxu0 0.0
        %5077 = vmatprep.subr.mxu0 0.0
        %5078 = vmatpush1.msra.mxu0 0.0
        %5079 = vmatprep.subr.mxu0 0.0
        %5080 = vmatpush1.msra.mxu0 0.0
        %5081 = vmatprep.subr.mxu0 0.0
        %5082 = vmatpush1.msra.mxu0 0.0
        %5083 = vmatprep.subr.mxu0 0.0
        %5084 = vmatpush1.msra.mxu0 0.0
        %5085 = vmatprep.subr.mxu0 0.0
        %5086 = vmatpush1.msra.mxu0 0.0
        %5087 = vmatprep.subr.mxu0 0.0
        %5088 = vmatpush1.msra.mxu0 0.0
        %5089 = vmatprep.subr.mxu0 0.0
        %5090 = vmatpush1.msra.mxu0 0.0
        %5091 = vmatprep.subr.mxu0 0.0
        %5092 = vmatpush1.msra.mxu0 0.0
        %5093 = vmatprep.subr.mxu0 0.0
        %5094 = vmatpush1.msra.mxu0 0.0
        %5095 = vmatprep.subr.mxu0 0.0
        %5096 = vmatpush1.msra.mxu0 0.0
        %5097 = vmatprep.subr.mxu0 0.0
        %5098 = vmatpush1.msra.mxu0 0.0
        %5099 = vmatprep.subr.mxu0 0.0
        %5100 = vmatpush1.msra.mxu0 0.0
        %5101 = vmatprep.subr.mxu0 0.0
        %5102 = vmatpush1.msra.mxu0 0.0
        %5103 = vmatprep.subr.mxu0 0.0
        %5104 = vmatpush1.msra.mxu0 0.0
        %5105 = vmatprep.subr.mxu0 0.0
        %5106 = vmatpush1.msra.mxu0 0.0
        %5107 = vmatprep.subr.mxu0 0.0
        %5108 = vmatpush1.msra.mxu0 0.0
        %5109 = vmatprep.subr.mxu0 0.0
        %5110 = vmatpush1.msra.mxu0 0.0
        %5111 = vmatprep.subr.mxu0 0.0
        %5112 = vmatpush1.msra.mxu0 0.0
        %5113 = vmatprep.subr.mxu0 0.0
        %5114 = vmatpush1.msra.mxu0 0.0
        %5115 = vmatprep.subr.mxu0 0.0
        %5116 = vmatpush1.msra.mxu0 0.0
        %5117 = vmatprep.subr.mxu0 0.0
        %5118 = vmatpush1.msra.mxu0 0.0
        %5119 = vmatprep.subr.mxu0 0.0
        %5120 = vmatpush1.msra.mxu0 0.0
        %5121 = vmatprep.subr.mxu0 0.0
        %5122 = vmatpush1.msra.mxu0 0.0
        %5123 = vmatprep.subr.mxu0 0.0
        %5124 = vmatpush1.msra.mxu0 0.0
        %5125 = vmatprep.subr.mxu0 0.0
        %5126 = vmatpush1.msra.mxu0 0.0
        %5127 = vmatprep.subr.mxu0 0.0
        %5128 = vmatpush1.msra.mxu0 0.0
        %5129 = vmatprep.subr.mxu0 0.0
        %5130 = vmatpush1.msra.mxu0 0.0
        %5131 = vmatprep.subr.mxu0 0.0
        %5132 = vmatpush1.msra.mxu0 0.0
        %5133 = vmatprep.subr.mxu0 0.0
        %5134 = vmatpush1.msra.mxu0 0.0
        %5135 = vmatprep.mubr.f32.mxu0 0.0
        %5136 = vmatmul.mubr.f32.gmra.mrb[0].mxu0 %v5069
        %v5137 = vpop.f32.mrb[0].mxu0
        %v5138 = vadd.f32 0.0, %v5137
        %v5139 = vpop.f32.mrb[0].mxu0
        %5140 = vdwg.mxu0
        %5141 = vrot.lane.b32.xlu0 %v1171, 112
        %v5142 = vpop.permute.xlu0 %5141
        %5143 = vrot.lane.b32.xlu0 %v1176, 112
        %v5144 = vpop.permute.xlu0 %5143
        %v5148 = vsel %vm702, %v5055, 0
        %5150 = vmatprep.subr.mxu0 0.0
        %5151 = vmatpush1.msra.mxu0 %v5142
        %5152 = vmatprep.subr.mxu0 0.0
        %5153 = vmatpush1.msra.mxu0 %v5144
        %5154 = vmatprep.subr.mxu0 0.0
        %5155 = vmatpush1.msra.mxu0 0.0
        %5156 = vmatprep.subr.mxu0 0.0
        %5157 = vmatpush1.msra.mxu0 0.0
        %5158 = vmatprep.subr.mxu0 0.0
        %5159 = vmatpush1.msra.mxu0 0.0
        %5160 = vmatprep.subr.mxu0 0.0
        %5161 = vmatpush1.msra.mxu0 0.0
        %5162 = vmatprep.subr.mxu0 0.0
        %5163 = vmatpush1.msra.mxu0 0.0
        %5164 = vmatprep.subr.mxu0 0.0
        %5165 = vmatpush1.msra.mxu0 0.0
        %5166 = vmatprep.subr.mxu0 0.0
        %5167 = vmatpush1.msra.mxu0 0.0
        %5168 = vmatprep.subr.mxu0 0.0
        %5169 = vmatpush1.msra.mxu0 0.0
        %5170 = vmatprep.subr.mxu0 0.0
        %5171 = vmatpush1.msra.mxu0 0.0
        %5172 = vmatprep.subr.mxu0 0.0
        %5173 = vmatpush1.msra.mxu0 0.0
        %5174 = vmatprep.subr.mxu0 0.0
        %5175 = vmatpush1.msra.mxu0 0.0
        %5176 = vmatprep.subr.mxu0 0.0
        %5177 = vmatpush1.msra.mxu0 0.0
        %5178 = vmatprep.subr.mxu0 0.0
        %5179 = vmatpush1.msra.mxu0 0.0
        %5180 = vmatprep.subr.mxu0 0.0
        %5181 = vmatpush1.msra.mxu0 0.0
        %5182 = vmatprep.subr.mxu0 0.0
        %5183 = vmatpush1.msra.mxu0 0.0
        %5184 = vmatprep.subr.mxu0 0.0
        %5185 = vmatpush1.msra.mxu0 0.0
        %5186 = vmatprep.subr.mxu0 0.0
        %5187 = vmatpush1.msra.mxu0 0.0
        %5188 = vmatprep.subr.mxu0 0.0
        %5189 = vmatpush1.msra.mxu0 0.0
        %5190 = vmatprep.subr.mxu0 0.0
        %5191 = vmatpush1.msra.mxu0 0.0
        %5192 = vmatprep.subr.mxu0 0.0
        %5193 = vmatpush1.msra.mxu0 0.0
        %5194 = vmatprep.subr.mxu0 0.0
        %5195 = vmatpush1.msra.mxu0 0.0
        %5196 = vmatprep.subr.mxu0 0.0
        %5197 = vmatpush1.msra.mxu0 0.0
        %5198 = vmatprep.subr.mxu0 0.0
        %5199 = vmatpush1.msra.mxu0 0.0
        %5200 = vmatprep.subr.mxu0 0.0
        %5201 = vmatpush1.msra.mxu0 0.0
        %5202 = vmatprep.subr.mxu0 0.0
        %5203 = vmatpush1.msra.mxu0 0.0
        %5204 = vmatprep.subr.mxu0 0.0
        %5205 = vmatpush1.msra.mxu0 0.0
        %5206 = vmatprep.subr.mxu0 0.0
        %5207 = vmatpush1.msra.mxu0 0.0
        %5208 = vmatprep.subr.mxu0 0.0
        %5209 = vmatpush1.msra.mxu0 0.0
        %5210 = vmatprep.subr.mxu0 0.0
        %5211 = vmatpush1.msra.mxu0 0.0
        %5212 = vmatprep.subr.mxu0 0.0
        %5213 = vmatpush1.msra.mxu0 0.0
        %5214 = vmatprep.mubr.f32.mxu0 0.0
        %5215 = vmatmul.mubr.f32.gmra.mrb[0].mxu0 %v5148
        %v5216 = vpop.f32.mrb[0].mxu0
        %v5217 = vadd.f32 0.0, %v5216
        %v5218 = vpop.f32.mrb[0].mxu0
        %5219 = vdwg.mxu0
        %5220 = vrot.lane.b32.xlu0 %v1181, 112
        %v5221 = vpop.permute.xlu0 %5220
        %5222 = vrot.lane.b32.xlu0 %v1186, 112
        %v5223 = vpop.permute.xlu0 %5222
        %v5227 = vsel %vm702, %v5056, 0
        %5229 = vmatprep.subr.mxu0 0.0
        %5230 = vmatpush1.msra.mxu0 %v5221
        %5231 = vmatprep.subr.mxu0 0.0
        %5232 = vmatpush1.msra.mxu0 %v5223
        %5233 = vmatprep.subr.mxu0 0.0
        %5234 = vmatpush1.msra.mxu0 0.0
        %5235 = vmatprep.subr.mxu0 0.0
        %5236 = vmatpush1.msra.mxu0 0.0
        %5237 = vmatprep.subr.mxu0 0.0
        %5238 = vmatpush1.msra.mxu0 0.0
        %5239 = vmatprep.subr.mxu0 0.0
        %5240 = vmatpush1.msra.mxu0 0.0
        %5241 = vmatprep.subr.mxu0 0.0
        %5242 = vmatpush1.msra.mxu0 0.0
        %5243 = vmatprep.subr.mxu0 0.0
        %5244 = vmatpush1.msra.mxu0 0.0
        %5245 = vmatprep.subr.mxu0 0.0
        %5246 = vmatpush1.msra.mxu0 0.0
        %5247 = vmatprep.subr.mxu0 0.0
        %5248 = vmatpush1.msra.mxu0 0.0
        %5249 = vmatprep.subr.mxu0 0.0
        %5250 = vmatpush1.msra.mxu0 0.0
        %5251 = vmatprep.subr.mxu0 0.0
        %5252 = vmatpush1.msra.mxu0 0.0
        %5253 = vmatprep.subr.mxu0 0.0
        %5254 = vmatpush1.msra.mxu0 0.0
        %5255 = vmatprep.subr.mxu0 0.0
        %5256 = vmatpush1.msra.mxu0 0.0
        %5257 = vmatprep.subr.mxu0 0.0
        %5258 = vmatpush1.msra.mxu0 0.0
        %5259 = vmatprep.subr.mxu0 0.0
        %5260 = vmatpush1.msra.mxu0 0.0
        %5261 = vmatprep.subr.mxu0 0.0
        %5262 = vmatpush1.msra.mxu0 0.0
        %5263 = vmatprep.subr.mxu0 0.0
        %5264 = vmatpush1.msra.mxu0 0.0
        %5265 = vmatprep.subr.mxu0 0.0
        %5266 = vmatpush1.msra.mxu0 0.0
        %5267 = vmatprep.subr.mxu0 0.0
        %5268 = vmatpush1.msra.mxu0 0.0
        %5269 = vmatprep.subr.mxu0 0.0
        %5270 = vmatpush1.msra.mxu0 0.0
        %5271 = vmatprep.subr.mxu0 0.0
        %5272 = vmatpush1.msra.mxu0 0.0
        %5273 = vmatprep.subr.mxu0 0.0
        %5274 = vmatpush1.msra.mxu0 0.0
        %5275 = vmatprep.subr.mxu0 0.0
        %5276 = vmatpush1.msra.mxu0 0.0
        %5277 = vmatprep.subr.mxu0 0.0
        %5278 = vmatpush1.msra.mxu0 0.0
        %5279 = vmatprep.subr.mxu0 0.0
        %5280 = vmatpush1.msra.mxu0 0.0
        %5281 = vmatprep.subr.mxu0 0.0
        %5282 = vmatpush1.msra.mxu0 0.0
        %5283 = vmatprep.subr.mxu0 0.0
        %5284 = vmatpush1.msra.mxu0 0.0
        %5285 = vmatprep.subr.mxu0 0.0
        %5286 = vmatpush1.msra.mxu0 0.0
        %5287 = vmatprep.subr.mxu0 0.0
        %5288 = vmatpush1.msra.mxu0 0.0
        %5289 = vmatprep.subr.mxu0 0.0
        %5290 = vmatpush1.msra.mxu0 0.0
        %5291 = vmatprep.subr.mxu0 0.0
        %5292 = vmatpush1.msra.mxu0 0.0
        %5293 = vmatprep.mubr.f32.mxu0 0.0
        %5294 = vmatmul.mubr.f32.gmra.mrb[0].mxu0 %v5227
        %v5295 = vpop.f32.mrb[0].mxu0
        %v5296 = vadd.f32 0.0, %v5295
        %v5297 = vpop.f32.mrb[0].mxu0
        %5298 = vdwg.mxu0
        %5299 = vrot.lane.b32.xlu0 %v1191, 112
        %v5300 = vpop.permute.xlu0 %5299
        %5301 = vrot.lane.b32.xlu0 %v1196, 112
        %v5302 = vpop.permute.xlu0 %5301
        %v5306 = vsel %vm702, %v5057, 0
        %5308 = vmatprep.subr.mxu0 0.0
        %5309 = vmatpush1.msra.mxu0 %v5300
        %5310 = vmatprep.subr.mxu0 0.0
        %5311 = vmatpush1.msra.mxu0 %v5302
        %5312 = vmatprep.subr.mxu0 0.0
        %5313 = vmatpush1.msra.mxu0 0.0
        %5314 = vmatprep.subr.mxu0 0.0
        %5315 = vmatpush1.msra.mxu0 0.0
        %5316 = vmatprep.subr.mxu0 0.0
        %5317 = vmatpush1.msra.mxu0 0.0
        %5318 = vmatprep.subr.mxu0 0.0
        %5319 = vmatpush1.msra.mxu0 0.0
        %5320 = vmatprep.subr.mxu0 0.0
        %5321 = vmatpush1.msra.mxu0 0.0
        %5322 = vmatprep.subr.mxu0 0.0
        %5323 = vmatpush1.msra.mxu0 0.0
        %5324 = vmatprep.subr.mxu0 0.0
        %5325 = vmatpush1.msra.mxu0 0.0
        %5326 = vmatprep.subr.mxu0 0.0
        %5327 = vmatpush1.msra.mxu0 0.0
        %5328 = vmatprep.subr.mxu0 0.0
        %5329 = vmatpush1.msra.mxu0 0.0
        %5330 = vmatprep.subr.mxu0 0.0
        %5331 = vmatpush1.msra.mxu0 0.0
        %5332 = vmatprep.subr.mxu0 0.0
        %5333 = vmatpush1.msra.mxu0 0.0
        %5334 = vmatprep.subr.mxu0 0.0
        %5335 = vmatpush1.msra.mxu0 0.0
        %5336 = vmatprep.subr.mxu0 0.0
        %5337 = vmatpush1.msra.mxu0 0.0
        %5338 = vmatprep.subr.mxu0 0.0
        %5339 = vmatpush1.msra.mxu0 0.0
        %5340 = vmatprep.subr.mxu0 0.0
        %5341 = vmatpush1.msra.mxu0 0.0
        %5342 = vmatprep.subr.mxu0 0.0
        %5343 = vmatpush1.msra.mxu0 0.0
        %5344 = vmatprep.subr.mxu0 0.0
        %5345 = vmatpush1.msra.mxu0 0.0
        %5346 = vmatprep.subr.mxu0 0.0
        %5347 = vmatpush1.msra.mxu0 0.0
        %5348 = vmatprep.subr.mxu0 0.0
        %5349 = vmatpush1.msra.mxu0 0.0
        %5350 = vmatprep.subr.mxu0 0.0
        %5351 = vmatpush1.msra.mxu0 0.0
        %5352 = vmatprep.subr.mxu0 0.0
        %5353 = vmatpush1.msra.mxu0 0.0
        %5354 = vmatprep.subr.mxu0 0.0
        %5355 = vmatpush1.msra.mxu0 0.0
        %5356 = vmatprep.subr.mxu0 0.0
        %5357 = vmatpush1.msra.mxu0 0.0
        %5358 = vmatprep.subr.mxu0 0.0
        %5359 = vmatpush1.msra.mxu0 0.0
        %5360 = vmatprep.subr.mxu0 0.0
        %5361 = vmatpush1.msra.mxu0 0.0
        %5362 = vmatprep.subr.mxu0 0.0
        %5363 = vmatpush1.msra.mxu0 0.0
        %5364 = vmatprep.subr.mxu0 0.0
        %5365 = vmatpush1.msra.mxu0 0.0
        %5366 = vmatprep.subr.mxu0 0.0
        %5367 = vmatpush1.msra.mxu0 0.0
        %5368 = vmatprep.subr.mxu0 0.0
        %5369 = vmatpush1.msra.mxu0 0.0
        %5370 = vmatprep.subr.mxu0 0.0
        %5371 = vmatpush1.msra.mxu0 0.0
        %5372 = vmatprep.mubr.f32.mxu0 0.0
        %5373 = vmatmul.mubr.f32.gmra.mrb[0].mxu0 %v5306
        %v5374 = vpop.f32.mrb[0].mxu0
        %v5375 = vadd.f32 0.0, %v5374
        %v5376 = vpop.f32.mrb[0].mxu0
        %5377 = vdwg.mxu0
        %5378 = vrot.lane.b32.xlu0 %v1201, 112
        %v5379 = vpop.permute.xlu0 %5378
        %5380 = vrot.lane.b32.xlu0 %v1206, 112
        %v5381 = vpop.permute.xlu0 %5380
        %v5385 = vsel %vm702, %v5058, 0
        %5387 = vmatprep.subr.mxu0 0.0
        %5388 = vmatpush1.msra.mxu0 %v5379
        %5389 = vmatprep.subr.mxu0 0.0
        %5390 = vmatpush1.msra.mxu0 %v5381
        %5391 = vmatprep.subr.mxu0 0.0
        %5392 = vmatpush1.msra.mxu0 0.0
        %5393 = vmatprep.subr.mxu0 0.0
        %5394 = vmatpush1.msra.mxu0 0.0
        %5395 = vmatprep.subr.mxu0 0.0
        %5396 = vmatpush1.msra.mxu0 0.0
        %5397 = vmatprep.subr.mxu0 0.0
        %5398 = vmatpush1.msra.mxu0 0.0
        %5399 = vmatprep.subr.mxu0 0.0
        %5400 = vmatpush1.msra.mxu0 0.0
        %5401 = vmatprep.subr.mxu0 0.0
        %5402 = vmatpush1.msra.mxu0 0.0
        %5403 = vmatprep.subr.mxu0 0.0
        %5404 = vmatpush1.msra.mxu0 0.0
        %5405 = vmatprep.subr.mxu0 0.0
        %5406 = vmatpush1.msra.mxu0 0.0
        %5407 = vmatprep.subr.mxu0 0.0
        %5408 = vmatpush1.msra.mxu0 0.0
        %5409 = vmatprep.subr.mxu0 0.0
        %5410 = vmatpush1.msra.mxu0 0.0
        %5411 = vmatprep.subr.mxu0 0.0
        %5412 = vmatpush1.msra.mxu0 0.0
        %5413 = vmatprep.subr.mxu0 0.0
        %5414 = vmatpush1.msra.mxu0 0.0
        %5415 = vmatprep.subr.mxu0 0.0
        %5416 = vmatpush1.msra.mxu0 0.0
        %5417 = vmatprep.subr.mxu0 0.0
        %5418 = vmatpush1.msra.mxu0 0.0
        %5419 = vmatprep.subr.mxu0 0.0
        %5420 = vmatpush1.msra.mxu0 0.0
        %5421 = vmatprep.subr.mxu0 0.0
        %5422 = vmatpush1.msra.mxu0 0.0
        %5423 = vmatprep.subr.mxu0 0.0
        %5424 = vmatpush1.msra.mxu0 0.0
        %5425 = vmatprep.subr.mxu0 0.0
        %5426 = vmatpush1.msra.mxu0 0.0
        %5427 = vmatprep.subr.mxu0 0.0
        %5428 = vmatpush1.msra.mxu0 0.0
        %5429 = vmatprep.subr.mxu0 0.0
        %5430 = vmatpush1.msra.mxu0 0.0
        %5431 = vmatprep.subr.mxu0 0.0
        %5432 = vmatpush1.msra.mxu0 0.0
        %5433 = vmatprep.subr.mxu0 0.0
        %5434 = vmatpush1.msra.mxu0 0.0
        %5435 = vmatprep.subr.mxu0 0.0
        %5436 = vmatpush1.msra.mxu0 0.0
        %5437 = vmatprep.subr.mxu0 0.0
        %5438 = vmatpush1.msra.mxu0 0.0
        %5439 = vmatprep.subr.mxu0 0.0
        %5440 = vmatpush1.msra.mxu0 0.0
        %5441 = vmatprep.subr.mxu0 0.0
        %5442 = vmatpush1.msra.mxu0 0.0
        %5443 = vmatprep.subr.mxu0 0.0
        %5444 = vmatpush1.msra.mxu0 0.0
        %5445 = vmatprep.subr.mxu0 0.0
        %5446 = vmatpush1.msra.mxu0 0.0
        %5447 = vmatprep.subr.mxu0 0.0
        %5448 = vmatpush1.msra.mxu0 0.0
        %5449 = vmatprep.subr.mxu0 0.0
        %5450 = vmatpush1.msra.mxu0 0.0
        %5451 = vmatprep.mubr.f32.mxu0 0.0
        %5452 = vmatmul.mubr.f32.gmra.mrb[0].mxu0 %v5385
        %v5453 = vpop.f32.mrb[0].mxu0
        %v5454 = vadd.f32 0.0, %v5453
        %v5455 = vpop.f32.mrb[0].mxu0
        %5456 = vdwg.mxu0
        %5457 = vrot.lane.b32.xlu0 %v1211, 112
        %v5458 = vpop.permute.xlu0 %5457
        %5459 = vrot.lane.b32.xlu0 %v1216, 112
        %v5460 = vpop.permute.xlu0 %5459
        %v5464 = vsel %vm702, %v5059, 0
        %5466 = vmatprep.subr.mxu0 0.0
        %5467 = vmatpush1.msra.mxu0 %v5458
        %5468 = vmatprep.subr.mxu0 0.0
        %5469 = vmatpush1.msra.mxu0 %v5460
        %5470 = vmatprep.subr.mxu0 0.0
        %5471 = vmatpush1.msra.mxu0 0.0
        %5472 = vmatprep.subr.mxu0 0.0
        %5473 = vmatpush1.msra.mxu0 0.0
        %5474 = vmatprep.subr.mxu0 0.0
        %5475 = vmatpush1.msra.mxu0 0.0
        %5476 = vmatprep.subr.mxu0 0.0
        %5477 = vmatpush1.msra.mxu0 0.0
        %5478 = vmatprep.subr.mxu0 0.0
        %5479 = vmatpush1.msra.mxu0 0.0
        %5480 = vmatprep.subr.mxu0 0.0
        %5481 = vmatpush1.msra.mxu0 0.0
        %5482 = vmatprep.subr.mxu0 0.0
        %5483 = vmatpush1.msra.mxu0 0.0
        %5484 = vmatprep.subr.mxu0 0.0
        %5485 = vmatpush1.msra.mxu0 0.0
        %5486 = vmatprep.subr.mxu0 0.0
        %5487 = vmatpush1.msra.mxu0 0.0
        %5488 = vmatprep.subr.mxu0 0.0
        %5489 = vmatpush1.msra.mxu0 0.0
        %5490 = vmatprep.subr.mxu0 0.0
        %5491 = vmatpush1.msra.mxu0 0.0
        %5492 = vmatprep.subr.mxu0 0.0
        %5493 = vmatpush1.msra.mxu0 0.0
        %5494 = vmatprep.subr.mxu0 0.0
        %5495 = vmatpush1.msra.mxu0 0.0
        %5496 = vmatprep.subr.mxu0 0.0
        %5497 = vmatpush1.msra.mxu0 0.0
        %5498 = vmatprep.subr.mxu0 0.0
        %5499 = vmatpush1.msra.mxu0 0.0
        %5500 = vmatprep.subr.mxu0 0.0
        %5501 = vmatpush1.msra.mxu0 0.0
        %5502 = vmatprep.subr.mxu0 0.0
        %5503 = vmatpush1.msra.mxu0 0.0
        %5504 = vmatprep.subr.mxu0 0.0
        %5505 = vmatpush1.msra.mxu0 0.0
        %5506 = vmatprep.subr.mxu0 0.0
        %5507 = vmatpush1.msra.mxu0 0.0
        %5508 = vmatprep.subr.mxu0 0.0
        %5509 = vmatpush1.msra.mxu0 0.0
        %5510 = vmatprep.subr.mxu0 0.0
        %5511 = vmatpush1.msra.mxu0 0.0
        %5512 = vmatprep.subr.mxu0 0.0
        %5513 = vmatpush1.msra.mxu0 0.0
        %5514 = vmatprep.subr.mxu0 0.0
        %5515 = vmatpush1.msra.mxu0 0.0
        %5516 = vmatprep.subr.mxu0 0.0
        %5517 = vmatpush1.msra.mxu0 0.0
        %5518 = vmatprep.subr.mxu0 0.0
        %5519 = vmatpush1.msra.mxu0 0.0
        %5520 = vmatprep.subr.mxu0 0.0
        %5521 = vmatpush1.msra.mxu0 0.0
        %5522 = vmatprep.subr.mxu0 0.0
        %5523 = vmatpush1.msra.mxu0 0.0
        %5524 = vmatprep.subr.mxu0 0.0
        %5525 = vmatpush1.msra.mxu0 0.0
        %5526 = vmatprep.subr.mxu0 0.0
        %5527 = vmatpush1.msra.mxu0 0.0
        %5528 = vmatprep.subr.mxu0 0.0
        %5529 = vmatpush1.msra.mxu0 0.0
        %5530 = vmatprep.mubr.f32.mxu0 0.0
        %5531 = vmatmul.mubr.f32.gmra.mrb[0].mxu0 %v5464
        %v5532 = vpop.f32.mrb[0].mxu0
        %v5533 = vadd.f32 0.0, %v5532
        %v5534 = vpop.f32.mrb[0].mxu0
        %5535 = vdwg.mxu0
        %5536 = vrot.lane.b32.xlu0 %v1221, 112
        %v5537 = vpop.permute.xlu0 %5536
        %5538 = vrot.lane.b32.xlu0 %v1226, 112
        %v5539 = vpop.permute.xlu0 %5538
        %v5543 = vsel %vm702, %v5060, 0
        %5545 = vmatprep.subr.mxu0 0.0
        %5546 = vmatpush1.msra.mxu0 %v5537
        %5547 = vmatprep.subr.mxu0 0.0
        %5548 = vmatpush1.msra.mxu0 %v5539
        %5549 = vmatprep.subr.mxu0 0.0
        %5550 = vmatpush1.msra.mxu0 0.0
        %5551 = vmatprep.subr.mxu0 0.0
        %5552 = vmatpush1.msra.mxu0 0.0
        %5553 = vmatprep.subr.mxu0 0.0
        %5554 = vmatpush1.msra.mxu0 0.0
        %5555 = vmatprep.subr.mxu0 0.0
        %5556 = vmatpush1.msra.mxu0 0.0
        %5557 = vmatprep.subr.mxu0 0.0
        %5558 = vmatpush1.msra.mxu0 0.0
        %5559 = vmatprep.subr.mxu0 0.0
        %5560 = vmatpush1.msra.mxu0 0.0
        %5561 = vmatprep.subr.mxu0 0.0
        %5562 = vmatpush1.msra.mxu0 0.0
        %5563 = vmatprep.subr.mxu0 0.0
        %5564 = vmatpush1.msra.mxu0 0.0
        %5565 = vmatprep.subr.mxu0 0.0
        %5566 = vmatpush1.msra.mxu0 0.0
        %5567 = vmatprep.subr.mxu0 0.0
        %5568 = vmatpush1.msra.mxu0 0.0
        %5569 = vmatprep.subr.mxu0 0.0
        %5570 = vmatpush1.msra.mxu0 0.0
        %5571 = vmatprep.subr.mxu0 0.0
        %5572 = vmatpush1.msra.mxu0 0.0
        %5573 = vmatprep.subr.mxu0 0.0
        %5574 = vmatpush1.msra.mxu0 0.0
        %5575 = vmatprep.subr.mxu0 0.0
        %5576 = vmatpush1.msra.mxu0 0.0
        %5577 = vmatprep.subr.mxu0 0.0
        %5578 = vmatpush1.msra.mxu0 0.0
        %5579 = vmatprep.subr.mxu0 0.0
        %5580 = vmatpush1.msra.mxu0 0.0
        %5581 = vmatprep.subr.mxu0 0.0
        %5582 = vmatpush1.msra.mxu0 0.0
        %5583 = vmatprep.subr.mxu0 0.0
        %5584 = vmatpush1.msra.mxu0 0.0
        %5585 = vmatprep.subr.mxu0 0.0
        %5586 = vmatpush1.msra.mxu0 0.0
        %5587 = vmatprep.subr.mxu0 0.0
        %5588 = vmatpush1.msra.mxu0 0.0
        %5589 = vmatprep.subr.mxu0 0.0
        %5590 = vmatpush1.msra.mxu0 0.0
        %5591 = vmatprep.subr.mxu0 0.0
        %5592 = vmatpush1.msra.mxu0 0.0
        %5593 = vmatprep.subr.mxu0 0.0
        %5594 = vmatpush1.msra.mxu0 0.0
        %5595 = vmatprep.subr.mxu0 0.0
        %5596 = vmatpush1.msra.mxu0 0.0
        %5597 = vmatprep.subr.mxu0 0.0
        %5598 = vmatpush1.msra.mxu0 0.0
        %5599 = vmatprep.subr.mxu0 0.0
        %5600 = vmatpush1.msra.mxu0 0.0
        %5601 = vmatprep.subr.mxu0 0.0
        %5602 = vmatpush1.msra.mxu0 0.0
        %5603 = vmatprep.subr.mxu0 0.0
        %5604 = vmatpush1.msra.mxu0 0.0
        %5605 = vmatprep.subr.mxu0 0.0
        %5606 = vmatpush1.msra.mxu0 0.0
        %5607 = vmatprep.subr.mxu0 0.0
        %5608 = vmatpush1.msra.mxu0 0.0
        %5609 = vmatprep.mubr.f32.mxu0 0.0
        %5610 = vmatmul.mubr.f32.gmra.mrb[0].mxu0 %v5543
        %v5611 = vpop.f32.mrb[0].mxu0
        %v5612 = vadd.f32 0.0, %v5611
        %v5613 = vpop.f32.mrb[0].mxu0
        %5614 = vdwg.mxu0
        %5615 = vrot.lane.b32.xlu0 %v1231, 112
        %v5616 = vpop.permute.xlu0 %5615
        %5617 = vrot.lane.b32.xlu0 %v1236, 112
        %v5618 = vpop.permute.xlu0 %5617
        %v5622 = vsel %vm702, %v5061, 0
        %5624 = vmatprep.subr.mxu0 0.0
        %5625 = vmatpush1.msra.mxu0 %v5616
        %5626 = vmatprep.subr.mxu0 0.0
        %5627 = vmatpush1.msra.mxu0 %v5618
        %5628 = vmatprep.subr.mxu0 0.0
        %5629 = vmatpush1.msra.mxu0 0.0
        %5630 = vmatprep.subr.mxu0 0.0
        %5631 = vmatpush1.msra.mxu0 0.0
        %5632 = vmatprep.subr.mxu0 0.0
        %5633 = vmatpush1.msra.mxu0 0.0
        %5634 = vmatprep.subr.mxu0 0.0
        %5635 = vmatpush1.msra.mxu0 0.0
        %5636 = vmatprep.subr.mxu0 0.0
        %5637 = vmatpush1.msra.mxu0 0.0
        %5638 = vmatprep.subr.mxu0 0.0
        %5639 = vmatpush1.msra.mxu0 0.0
        %5640 = vmatprep.subr.mxu0 0.0
        %5641 = vmatpush1.msra.mxu0 0.0
        %5642 = vmatprep.subr.mxu0 0.0
        %5643 = vmatpush1.msra.mxu0 0.0
        %5644 = vmatprep.subr.mxu0 0.0
        %5645 = vmatpush1.msra.mxu0 0.0
        %5646 = vmatprep.subr.mxu0 0.0
        %5647 = vmatpush1.msra.mxu0 0.0
        %5648 = vmatprep.subr.mxu0 0.0
        %5649 = vmatpush1.msra.mxu0 0.0
        %5650 = vmatprep.subr.mxu0 0.0
        %5651 = vmatpush1.msra.mxu0 0.0
        %5652 = vmatprep.subr.mxu0 0.0
        %5653 = vmatpush1.msra.mxu0 0.0
        %5654 = vmatprep.subr.mxu0 0.0
        %5655 = vmatpush1.msra.mxu0 0.0
        %5656 = vmatprep.subr.mxu0 0.0
        %5657 = vmatpush1.msra.mxu0 0.0
        %5658 = vmatprep.subr.mxu0 0.0
        %5659 = vmatpush1.msra.mxu0 0.0
        %5660 = vmatprep.subr.mxu0 0.0
        %5661 = vmatpush1.msra.mxu0 0.0
        %5662 = vmatprep.subr.mxu0 0.0
        %5663 = vmatpush1.msra.mxu0 0.0
        %5664 = vmatprep.subr.mxu0 0.0
        %5665 = vmatpush1.msra.mxu0 0.0
        %5666 = vmatprep.subr.mxu0 0.0
        %5667 = vmatpush1.msra.mxu0 0.0
        %5668 = vmatprep.subr.mxu0 0.0
        %5669 = vmatpush1.msra.mxu0 0.0
        %5670 = vmatprep.subr.mxu0 0.0
        %5671 = vmatpush1.msra.mxu0 0.0
        %5672 = vmatprep.subr.mxu0 0.0
        %5673 = vmatpush1.msra.mxu0 0.0
        %5674 = vmatprep.subr.mxu0 0.0
        %5675 = vmatpush1.msra.mxu0 0.0
        %5676 = vmatprep.subr.mxu0 0.0
        %5677 = vmatpush1.msra.mxu0 0.0
        %5678 = vmatprep.subr.mxu0 0.0
        %5679 = vmatpush1.msra.mxu0 0.0
        %5680 = vmatprep.subr.mxu0 0.0
        %5681 = vmatpush1.msra.mxu0 0.0
        %5682 = vmatprep.subr.mxu0 0.0
        %5683 = vmatpush1.msra.mxu0 0.0
        %5684 = vmatprep.subr.mxu0 0.0
        %5685 = vmatpush1.msra.mxu0 0.0
        %5686 = vmatprep.subr.mxu0 0.0
        %5687 = vmatpush1.msra.mxu0 0.0
        %5688 = vmatprep.mubr.f32.mxu0 0.0
        %5689 = vmatmul.mubr.f32.gmra.mrb[0].mxu0 %v5622
        %v5690 = vpop.f32.mrb[0].mxu0
        %v5691 = vadd.f32 0.0, %v5690
        %v5692 = vpop.f32.mrb[0].mxu0
        %5693 = vdwg.mxu0
        %v5695 = vsel %vm1315, %v5138, 0
        %v5698 = vsel %vm1315, %v5217, 0
        %v5701 = vsel %vm1315, %v5296, 0
        %v5704 = vsel %vm1315, %v5375, 0
        %v5707 = vsel %vm1315, %v5454, 0
        %v5710 = vsel %vm1315, %v5533, 0
        %v5713 = vsel %vm1315, %v5612, 0
        %v5716 = vsel %vm1315, %v5691, 0
        %5718 = vmatprep.subr.mxu0 0.0
        %5719 = vmatpush1.msra.mxu0 %v1313
        %5720 = vmatprep.subr.mxu0 0.0
        %5721 = vmatpush1.msra.mxu0 0.0
        %5722 = vmatprep.subr.mxu0 0.0
        %5723 = vmatpush1.msra.mxu0 0.0
        %5724 = vmatprep.subr.mxu0 0.0
        %5725 = vmatpush1.msra.mxu0 0.0
        %5726 = vmatprep.subr.mxu0 0.0
        %5727 = vmatpush1.msra.mxu0 0.0
        %5728 = vmatprep.subr.mxu0 0.0
        %5729 = vmatpush1.msra.mxu0 0.0
        %5730 = vmatprep.subr.mxu0 0.0
        %5731 = vmatpush1.msra.mxu0 0.0
        %5732 = vmatprep.subr.mxu0 0.0
        %5733 = vmatpush1.msra.mxu0 0.0
        %5734 = vmatprep.subr.mxu0 0.0
        %5735 = vmatpush1.msra.mxu0 0.0
        %5736 = vmatprep.subr.mxu0 0.0
        %5737 = vmatpush1.msra.mxu0 0.0
        %5738 = vmatprep.subr.mxu0 0.0
        %5739 = vmatpush1.msra.mxu0 0.0
        %5740 = vmatprep.subr.mxu0 0.0
        %5741 = vmatpush1.msra.mxu0 0.0
        %5742 = vmatprep.subr.mxu0 0.0
        %5743 = vmatpush1.msra.mxu0 0.0
        %5744 = vmatprep.subr.mxu0 0.0
        %5745 = vmatpush1.msra.mxu0 0.0
        %5746 = vmatprep.subr.mxu0 0.0
        %5747 = vmatpush1.msra.mxu0 0.0
        %5748 = vmatprep.subr.mxu0 0.0
        %5749 = vmatpush1.msra.mxu0 0.0
        %5750 = vmatprep.subr.mxu0 0.0
        %5751 = vmatpush1.msra.mxu0 0.0
        %5752 = vmatprep.subr.mxu0 0.0
        %5753 = vmatpush1.msra.mxu0 0.0
        %5754 = vmatprep.subr.mxu0 0.0
        %5755 = vmatpush1.msra.mxu0 0.0
        %5756 = vmatprep.subr.mxu0 0.0
        %5757 = vmatpush1.msra.mxu0 0.0
        %5758 = vmatprep.subr.mxu0 0.0
        %5759 = vmatpush1.msra.mxu0 0.0
        %5760 = vmatprep.subr.mxu0 0.0
        %5761 = vmatpush1.msra.mxu0 0.0
        %5762 = vmatprep.subr.mxu0 0.0
        %5763 = vmatpush1.msra.mxu0 0.0
        %5764 = vmatprep.subr.mxu0 0.0
        %5765 = vmatpush1.msra.mxu0 0.0
        %5766 = vmatprep.subr.mxu0 0.0
        %5767 = vmatpush1.msra.mxu0 0.0
        %5768 = vmatprep.subr.mxu0 0.0
        %5769 = vmatpush1.msra.mxu0 0.0
        %5770 = vmatprep.subr.mxu0 0.0
        %5771 = vmatpush1.msra.mxu0 0.0
        %5772 = vmatprep.subr.mxu0 0.0
        %5773 = vmatpush1.msra.mxu0 0.0
        %5774 = vmatprep.subr.mxu0 0.0
        %5775 = vmatpush1.msra.mxu0 0.0
        %5776 = vmatprep.subr.mxu0 0.0
        %5777 = vmatpush1.msra.mxu0 0.0
        %5778 = vmatprep.subr.mxu0 0.0
        %5779 = vmatpush1.msra.mxu0 0.0
        %5780 = vmatprep.subr.mxu0 0.0
        %5781 = vmatpush1.msra.mxu0 0.0
        %5782 = vmatprep.mubr.f32.mxu0 0.0
        %5783 = vmatmul.mubr.f32.gmra.mrb[0].mxu0 %v5695
        %v5784 = vpop.f32.mrb[0].mxu0
        %v5785 = vadd.f32 0.0, %v5784
        %v5786 = vpop.f32.mrb[0].mxu0
        %5787 = vmatprep.mubr.f32.mxu0 0.0
        %5788 = vmatmul.mubr.f32.gmra.mrb[0].mxu0 %v5698
        %v5789 = vpop.f32.mrb[0].mxu0
        %v5790 = vadd.f32 0.0, %v5789
        %v5791 = vpop.f32.mrb[0].mxu0
        %5792 = vmatprep.mubr.f32.mxu0 0.0
        %5793 = vmatmul.mubr.f32.gmra.mrb[0].mxu0 %v5701
        %v5794 = vpop.f32.mrb[0].mxu0
        %v5795 = vadd.f32 0.0, %v5794
        %v5796 = vpop.f32.mrb[0].mxu0
        %5797 = vmatprep.mubr.f32.mxu0 0.0
        %5798 = vmatmul.mubr.f32.gmra.mrb[0].mxu0 %v5704
        %v5799 = vpop.f32.mrb[0].mxu0
        %v5800 = vadd.f32 0.0, %v5799
        %v5801 = vpop.f32.mrb[0].mxu0
        %5802 = vmatprep.mubr.f32.mxu0 0.0
        %5803 = vmatmul.mubr.f32.gmra.mrb[0].mxu0 %v5707
        %v5804 = vpop.f32.mrb[0].mxu0
        %v5805 = vadd.f32 0.0, %v5804
        %v5806 = vpop.f32.mrb[0].mxu0
        %5807 = vmatprep.mubr.f32.mxu0 0.0
        %5808 = vmatmul.mubr.f32.gmra.mrb[0].mxu0 %v5710
        %v5809 = vpop.f32.mrb[0].mxu0
        %v5810 = vadd.f32 0.0, %v5809
        %v5811 = vpop.f32.mrb[0].mxu0
        %5812 = vmatprep.mubr.f32.mxu0 0.0
        %5813 = vmatmul.mubr.f32.gmra.mrb[0].mxu0 %v5713
        %v5814 = vpop.f32.mrb[0].mxu0
        %v5815 = vadd.f32 0.0, %v5814
        %v5816 = vpop.f32.mrb[0].mxu0
        %5817 = vmatprep.mubr.f32.mxu0 0.0
        %5818 = vmatmul.mubr.f32.gmra.mrb[0].mxu0 %v5716
        %v5819 = vpop.f32.mrb[0].mxu0
        %v5820 = vadd.f32 0.0, %v5819
        %v5821 = vpop.f32.mrb[0].mxu0
        %5822 = vdwg.mxu0
        %v5823 = vadd.f32 %v4264, %v5785
        %v5824 = vadd.f32 %v4269, %v5790
        %v5825 = vadd.f32 %v4274, %v5795
        %v5826 = vadd.f32 %v4279, %v5800
        %v5827 = vadd.f32 %v4284, %v5805
        %v5828 = vadd.f32 %v4289, %v5810
        %v5829 = vadd.f32 %v4294, %v5815
        %v5830 = vadd.f32 %v4299, %v5820
        %5831 = vrot.lane.b32.xlu0 %v794, 104
        %v5832 = vpop.permute.xlu0 %5831
        %5833 = vrot.lane.b32.xlu0 %v958, 104
        %v5834 = vpop.permute.xlu0 %5833
        %5835 = vrot.lane.b32.xlu0 %v963, 104
        %v5836 = vpop.permute.xlu0 %5835
        %v5837 = vsel %vm1315, %v5832, 0
        %v5839 = vsel %vm1315, %v5834, 0
        %v5841 = vsel %vm1315, %v5836, 0
        %5843 = vmatprep.subr.mxu0 0.0
        %5844 = vmatpush1.xpose.msra.mxu0 %v5839
        %5845 = vmatprep.subr.mxu0 0.0
        %5846 = vmatpush1.xpose.msra.mxu0 %v5841
        %5847 = vmatprep.subr.mxu0 0.0
        %5848 = vmatpush1.xpose.msra.mxu0 0.0
        %5849 = vmatprep.subr.mxu0 0.0
        %5850 = vmatpush1.xpose.msra.mxu0 0.0
        %5851 = vmatprep.subr.mxu0 0.0
        %5852 = vmatpush1.xpose.msra.mxu0 0.0
        %5853 = vmatprep.subr.mxu0 0.0
        %5854 = vmatpush1.xpose.msra.mxu0 0.0
        %5855 = vmatprep.subr.mxu0 0.0
        %5856 = vmatpush1.xpose.msra.mxu0 0.0
        %5857 = vmatprep.subr.mxu0 0.0
        %5858 = vmatpush1.xpose.msra.mxu0 0.0
        %5859 = vmatprep.subr.mxu0 0.0
        %5860 = vmatpush1.xpose.msra.mxu0 0.0
        %5861 = vmatprep.subr.mxu0 0.0
        %5862 = vmatpush1.xpose.msra.mxu0 0.0
        %5863 = vmatprep.subr.mxu0 0.0
        %5864 = vmatpush1.xpose.msra.mxu0 0.0
        %5865 = vmatprep.subr.mxu0 0.0
        %5866 = vmatpush1.xpose.msra.mxu0 0.0
        %5867 = vmatprep.subr.mxu0 0.0
        %5868 = vmatpush1.xpose.msra.mxu0 0.0
        %5869 = vmatprep.subr.mxu0 0.0
        %5870 = vmatpush1.xpose.msra.mxu0 0.0
        %5871 = vmatprep.subr.mxu0 0.0
        %5872 = vmatpush1.xpose.msra.mxu0 0.0
        %5873 = vmatprep.subr.mxu0 0.0
        %5874 = vmatpush1.xpose.msra.mxu0 0.0
        %5875 = vmatprep.subr.mxu0 0.0
        %5876 = vmatpush1.xpose.msra.mxu0 0.0
        %5877 = vmatprep.subr.mxu0 0.0
        %5878 = vmatpush1.xpose.msra.mxu0 0.0
        %5879 = vmatprep.subr.mxu0 0.0
        %5880 = vmatpush1.xpose.msra.mxu0 0.0
        %5881 = vmatprep.subr.mxu0 0.0
        %5882 = vmatpush1.xpose.msra.mxu0 0.0
        %5883 = vmatprep.subr.mxu0 0.0
        %5884 = vmatpush1.xpose.msra.mxu0 0.0
        %5885 = vmatprep.subr.mxu0 0.0
        %5886 = vmatpush1.xpose.msra.mxu0 0.0
        %5887 = vmatprep.subr.mxu0 0.0
        %5888 = vmatpush1.xpose.msra.mxu0 0.0
        %5889 = vmatprep.subr.mxu0 0.0
        %5890 = vmatpush1.xpose.msra.mxu0 0.0
        %5891 = vmatprep.subr.mxu0 0.0
        %5892 = vmatpush1.xpose.msra.mxu0 0.0
        %5893 = vmatprep.subr.mxu0 0.0
        %5894 = vmatpush1.xpose.msra.mxu0 0.0
        %5895 = vmatprep.subr.mxu0 0.0
        %5896 = vmatpush1.xpose.msra.mxu0 0.0
        %5897 = vmatprep.subr.mxu0 0.0
        %5898 = vmatpush1.xpose.msra.mxu0 0.0
        %5899 = vmatprep.subr.mxu0 0.0
        %5900 = vmatpush1.xpose.msra.mxu0 0.0
        %5901 = vmatprep.subr.mxu0 0.0
        %5902 = vmatpush1.xpose.msra.mxu0 0.0
        %5903 = vmatprep.subr.mxu0 0.0
        %5904 = vmatpush1.xpose.msra.mxu0 0.0
        %5905 = vmatprep.subr.mxu0 0.0
        %5906 = vmatpush1.xpose.msra.mxu0 0.0
        %5907 = vmatprep.mubr.f32.mxu0 0.0
        %5908 = vmatmul.mubr.f32.gmra.mrb[0].mxu0 %v5837
        %v5909 = vpop.f32.mrb[0].mxu0
        %v5910 = vadd.f32 0.0, %v5909
        %v5911 = vpop.f32.mrb[0].mxu0
        %5912 = vdwg.mxu0
        %5913 = vrot.lane.b32.xlu0 %v799, 104
        %v5914 = vpop.permute.xlu0 %5913
        %5915 = vrot.lane.b32.xlu0 %v968, 104
        %v5916 = vpop.permute.xlu0 %5915
        %5917 = vrot.lane.b32.xlu0 %v973, 104
        %v5918 = vpop.permute.xlu0 %5917
        %v5919 = vsel %vm1315, %v5914, 0
        %v5921 = vsel %vm1315, %v5916, 0
        %v5923 = vsel %vm1315, %v5918, 0
        %5925 = vmatprep.subr.mxu0 0.0
        %5926 = vmatpush1.xpose.msra.mxu0 %v5921
        %5927 = vmatprep.subr.mxu0 0.0
        %5928 = vmatpush1.xpose.msra.mxu0 %v5923
        %5929 = vmatprep.subr.mxu0 0.0
        %5930 = vmatpush1.xpose.msra.mxu0 0.0
        %5931 = vmatprep.subr.mxu0 0.0
        %5932 = vmatpush1.xpose.msra.mxu0 0.0
        %5933 = vmatprep.subr.mxu0 0.0
        %5934 = vmatpush1.xpose.msra.mxu0 0.0
        %5935 = vmatprep.subr.mxu0 0.0
        %5936 = vmatpush1.xpose.msra.mxu0 0.0
        %5937 = vmatprep.subr.mxu0 0.0
        %5938 = vmatpush1.xpose.msra.mxu0 0.0
        %5939 = vmatprep.subr.mxu0 0.0
        %5940 = vmatpush1.xpose.msra.mxu0 0.0
        %5941 = vmatprep.subr.mxu0 0.0
        %5942 = vmatpush1.xpose.msra.mxu0 0.0
        %5943 = vmatprep.subr.mxu0 0.0
        %5944 = vmatpush1.xpose.msra.mxu0 0.0
        %5945 = vmatprep.subr.mxu0 0.0
        %5946 = vmatpush1.xpose.msra.mxu0 0.0
        %5947 = vmatprep.subr.mxu0 0.0
        %5948 = vmatpush1.xpose.msra.mxu0 0.0
        %5949 = vmatprep.subr.mxu0 0.0
        %5950 = vmatpush1.xpose.msra.mxu0 0.0
        %5951 = vmatprep.subr.mxu0 0.0
        %5952 = vmatpush1.xpose.msra.mxu0 0.0
        %5953 = vmatprep.subr.mxu0 0.0
        %5954 = vmatpush1.xpose.msra.mxu0 0.0
        %5955 = vmatprep.subr.mxu0 0.0
        %5956 = vmatpush1.xpose.msra.mxu0 0.0
        %5957 = vmatprep.subr.mxu0 0.0
        %5958 = vmatpush1.xpose.msra.mxu0 0.0
        %5959 = vmatprep.subr.mxu0 0.0
        %5960 = vmatpush1.xpose.msra.mxu0 0.0
        %5961 = vmatprep.subr.mxu0 0.0
        %5962 = vmatpush1.xpose.msra.mxu0 0.0
        %5963 = vmatprep.subr.mxu0 0.0
        %5964 = vmatpush1.xpose.msra.mxu0 0.0
        %5965 = vmatprep.subr.mxu0 0.0
        %5966 = vmatpush1.xpose.msra.mxu0 0.0
        %5967 = vmatprep.subr.mxu0 0.0
        %5968 = vmatpush1.xpose.msra.mxu0 0.0
        %5969 = vmatprep.subr.mxu0 0.0
        %5970 = vmatpush1.xpose.msra.mxu0 0.0
        %5971 = vmatprep.subr.mxu0 0.0
        %5972 = vmatpush1.xpose.msra.mxu0 0.0
        %5973 = vmatprep.subr.mxu0 0.0
        %5974 = vmatpush1.xpose.msra.mxu0 0.0
        %5975 = vmatprep.subr.mxu0 0.0
        %5976 = vmatpush1.xpose.msra.mxu0 0.0
        %5977 = vmatprep.subr.mxu0 0.0
        %5978 = vmatpush1.xpose.msra.mxu0 0.0
        %5979 = vmatprep.subr.mxu0 0.0
        %5980 = vmatpush1.xpose.msra.mxu0 0.0
        %5981 = vmatprep.subr.mxu0 0.0
        %5982 = vmatpush1.xpose.msra.mxu0 0.0
        %5983 = vmatprep.subr.mxu0 0.0
        %5984 = vmatpush1.xpose.msra.mxu0 0.0
        %5985 = vmatprep.subr.mxu0 0.0
        %5986 = vmatpush1.xpose.msra.mxu0 0.0
        %5987 = vmatprep.subr.mxu0 0.0
        %5988 = vmatpush1.xpose.msra.mxu0 0.0
        %5989 = vmatprep.mubr.f32.mxu0 0.0
        %5990 = vmatmul.mubr.f32.gmra.mrb[0].mxu0 %v5919
        %v5991 = vpop.f32.mrb[0].mxu0
        %v5992 = vadd.f32 0.0, %v5991
        %v5993 = vpop.f32.mrb[0].mxu0
        %5994 = vdwg.mxu0
        %5995 = vrot.lane.b32.xlu0 %v804, 104
        %v5996 = vpop.permute.xlu0 %5995
        %5997 = vrot.lane.b32.xlu0 %v978, 104
        %v5998 = vpop.permute.xlu0 %5997
        %5999 = vrot.lane.b32.xlu0 %v983, 104
        %v6000 = vpop.permute.xlu0 %5999
        %v6001 = vsel %vm1315, %v5996, 0
        %v6003 = vsel %vm1315, %v5998, 0
        %v6005 = vsel %vm1315, %v6000, 0
        %6007 = vmatprep.subr.mxu0 0.0
        %6008 = vmatpush1.xpose.msra.mxu0 %v6003
        %6009 = vmatprep.subr.mxu0 0.0
        %6010 = vmatpush1.xpose.msra.mxu0 %v6005
        %6011 = vmatprep.subr.mxu0 0.0
        %6012 = vmatpush1.xpose.msra.mxu0 0.0
        %6013 = vmatprep.subr.mxu0 0.0
        %6014 = vmatpush1.xpose.msra.mxu0 0.0
        %6015 = vmatprep.subr.mxu0 0.0
        %6016 = vmatpush1.xpose.msra.mxu0 0.0
        %6017 = vmatprep.subr.mxu0 0.0
        %6018 = vmatpush1.xpose.msra.mxu0 0.0
        %6019 = vmatprep.subr.mxu0 0.0
        %6020 = vmatpush1.xpose.msra.mxu0 0.0
        %6021 = vmatprep.subr.mxu0 0.0
        %6022 = vmatpush1.xpose.msra.mxu0 0.0
        %6023 = vmatprep.subr.mxu0 0.0
        %6024 = vmatpush1.xpose.msra.mxu0 0.0
        %6025 = vmatprep.subr.mxu0 0.0
        %6026 = vmatpush1.xpose.msra.mxu0 0.0
        %6027 = vmatprep.subr.mxu0 0.0
        %6028 = vmatpush1.xpose.msra.mxu0 0.0
        %6029 = vmatprep.subr.mxu0 0.0
        %6030 = vmatpush1.xpose.msra.mxu0 0.0
        %6031 = vmatprep.subr.mxu0 0.0
        %6032 = vmatpush1.xpose.msra.mxu0 0.0
        %6033 = vmatprep.subr.mxu0 0.0
        %6034 = vmatpush1.xpose.msra.mxu0 0.0
        %6035 = vmatprep.subr.mxu0 0.0
        %6036 = vmatpush1.xpose.msra.mxu0 0.0
        %6037 = vmatprep.subr.mxu0 0.0
        %6038 = vmatpush1.xpose.msra.mxu0 0.0
        %6039 = vmatprep.subr.mxu0 0.0
        %6040 = vmatpush1.xpose.msra.mxu0 0.0
        %6041 = vmatprep.subr.mxu0 0.0
        %6042 = vmatpush1.xpose.msra.mxu0 0.0
        %6043 = vmatprep.subr.mxu0 0.0
        %6044 = vmatpush1.xpose.msra.mxu0 0.0
        %6045 = vmatprep.subr.mxu0 0.0
        %6046 = vmatpush1.xpose.msra.mxu0 0.0
        %6047 = vmatprep.subr.mxu0 0.0
        %6048 = vmatpush1.xpose.msra.mxu0 0.0
        %6049 = vmatprep.subr.mxu0 0.0
        %6050 = vmatpush1.xpose.msra.mxu0 0.0
        %6051 = vmatprep.subr.mxu0 0.0
        %6052 = vmatpush1.xpose.msra.mxu0 0.0
        %6053 = vmatprep.subr.mxu0 0.0
        %6054 = vmatpush1.xpose.msra.mxu0 0.0
        %6055 = vmatprep.subr.mxu0 0.0
        %6056 = vmatpush1.xpose.msra.mxu0 0.0
        %6057 = vmatprep.subr.mxu0 0.0
        %6058 = vmatpush1.xpose.msra.mxu0 0.0
        %6059 = vmatprep.subr.mxu0 0.0
        %6060 = vmatpush1.xpose.msra.mxu0 0.0
        %6061 = vmatprep.subr.mxu0 0.0
        %6062 = vmatpush1.xpose.msra.mxu0 0.0
        %6063 = vmatprep.subr.mxu0 0.0
        %6064 = vmatpush1.xpose.msra.mxu0 0.0
        %6065 = vmatprep.subr.mxu0 0.0
        %6066 = vmatpush1.xpose.msra.mxu0 0.0
        %6067 = vmatprep.subr.mxu0 0.0
        %6068 = vmatpush1.xpose.msra.mxu0 0.0
        %6069 = vmatprep.subr.mxu0 0.0
        %6070 = vmatpush1.xpose.msra.mxu0 0.0
        %6071 = vmatprep.mubr.f32.mxu0 0.0
        %6072 = vmatmul.mubr.f32.gmra.mrb[0].mxu0 %v6001
        %v6073 = vpop.f32.mrb[0].mxu0
        %v6074 = vadd.f32 0.0, %v6073
        %v6075 = vpop.f32.mrb[0].mxu0
        %6076 = vdwg.mxu0
        %6077 = vrot.lane.b32.xlu0 %v809, 104
        %v6078 = vpop.permute.xlu0 %6077
        %6079 = vrot.lane.b32.xlu0 %v988, 104
        %v6080 = vpop.permute.xlu0 %6079
        %6081 = vrot.lane.b32.xlu0 %v993, 104
        %v6082 = vpop.permute.xlu0 %6081
        %v6083 = vsel %vm1315, %v6078, 0
        %v6085 = vsel %vm1315, %v6080, 0
        %v6087 = vsel %vm1315, %v6082, 0
        %6089 = vmatprep.subr.mxu0 0.0
        %6090 = vmatpush1.xpose.msra.mxu0 %v6085
        %6091 = vmatprep.subr.mxu0 0.0
        %6092 = vmatpush1.xpose.msra.mxu0 %v6087
        %6093 = vmatprep.subr.mxu0 0.0
        %6094 = vmatpush1.xpose.msra.mxu0 0.0
        %6095 = vmatprep.subr.mxu0 0.0
        %6096 = vmatpush1.xpose.msra.mxu0 0.0
        %6097 = vmatprep.subr.mxu0 0.0
        %6098 = vmatpush1.xpose.msra.mxu0 0.0
        %6099 = vmatprep.subr.mxu0 0.0
        %6100 = vmatpush1.xpose.msra.mxu0 0.0
        %6101 = vmatprep.subr.mxu0 0.0
        %6102 = vmatpush1.xpose.msra.mxu0 0.0
        %6103 = vmatprep.subr.mxu0 0.0
        %6104 = vmatpush1.xpose.msra.mxu0 0.0
        %6105 = vmatprep.subr.mxu0 0.0
        %6106 = vmatpush1.xpose.msra.mxu0 0.0
        %6107 = vmatprep.subr.mxu0 0.0
        %6108 = vmatpush1.xpose.msra.mxu0 0.0
        %6109 = vmatprep.subr.mxu0 0.0
        %6110 = vmatpush1.xpose.msra.mxu0 0.0
        %6111 = vmatprep.subr.mxu0 0.0
        %6112 = vmatpush1.xpose.msra.mxu0 0.0
        %6113 = vmatprep.subr.mxu0 0.0
        %6114 = vmatpush1.xpose.msra.mxu0 0.0
        %6115 = vmatprep.subr.mxu0 0.0
        %6116 = vmatpush1.xpose.msra.mxu0 0.0
        %6117 = vmatprep.subr.mxu0 0.0
        %6118 = vmatpush1.xpose.msra.mxu0 0.0
        %6119 = vmatprep.subr.mxu0 0.0
        %6120 = vmatpush1.xpose.msra.mxu0 0.0
        %6121 = vmatprep.subr.mxu0 0.0
        %6122 = vmatpush1.xpose.msra.mxu0 0.0
        %6123 = vmatprep.subr.mxu0 0.0
        %6124 = vmatpush1.xpose.msra.mxu0 0.0
        %6125 = vmatprep.subr.mxu0 0.0
        %6126 = vmatpush1.xpose.msra.mxu0 0.0
        %6127 = vmatprep.subr.mxu0 0.0
        %6128 = vmatpush1.xpose.msra.mxu0 0.0
        %6129 = vmatprep.subr.mxu0 0.0
        %6130 = vmatpush1.xpose.msra.mxu0 0.0
        %6131 = vmatprep.subr.mxu0 0.0
        %6132 = vmatpush1.xpose.msra.mxu0 0.0
        %6133 = vmatprep.subr.mxu0 0.0
        %6134 = vmatpush1.xpose.msra.mxu0 0.0
        %6135 = vmatprep.subr.mxu0 0.0
        %6136 = vmatpush1.xpose.msra.mxu0 0.0
        %6137 = vmatprep.subr.mxu0 0.0
        %6138 = vmatpush1.xpose.msra.mxu0 0.0
        %6139 = vmatprep.subr.mxu0 0.0
        %6140 = vmatpush1.xpose.msra.mxu0 0.0
        %6141 = vmatprep.subr.mxu0 0.0
        %6142 = vmatpush1.xpose.msra.mxu0 0.0
        %6143 = vmatprep.subr.mxu0 0.0
        %6144 = vmatpush1.xpose.msra.mxu0 0.0
        %6145 = vmatprep.subr.mxu0 0.0
        %6146 = vmatpush1.xpose.msra.mxu0 0.0
        %6147 = vmatprep.subr.mxu0 0.0
        %6148 = vmatpush1.xpose.msra.mxu0 0.0
        %6149 = vmatprep.subr.mxu0 0.0
        %6150 = vmatpush1.xpose.msra.mxu0 0.0
        %6151 = vmatprep.subr.mxu0 0.0
        %6152 = vmatpush1.xpose.msra.mxu0 0.0
        %6153 = vmatprep.mubr.f32.mxu0 0.0
        %6154 = vmatmul.mubr.f32.gmra.mrb[0].mxu0 %v6083
        %v6155 = vpop.f32.mrb[0].mxu0
        %v6156 = vadd.f32 0.0, %v6155
        %v6157 = vpop.f32.mrb[0].mxu0
        %6158 = vdwg.mxu0
        %6159 = vrot.lane.b32.xlu0 %v814, 104
        %v6160 = vpop.permute.xlu0 %6159
        %6161 = vrot.lane.b32.xlu0 %v998, 104
        %v6162 = vpop.permute.xlu0 %6161
        %6163 = vrot.lane.b32.xlu0 %v1003, 104
        %v6164 = vpop.permute.xlu0 %6163
        %v6165 = vsel %vm1315, %v6160, 0
        %v6167 = vsel %vm1315, %v6162, 0
        %v6169 = vsel %vm1315, %v6164, 0
        %6171 = vmatprep.subr.mxu0 0.0
        %6172 = vmatpush1.xpose.msra.mxu0 %v6167
        %6173 = vmatprep.subr.mxu0 0.0
        %6174 = vmatpush1.xpose.msra.mxu0 %v6169
        %6175 = vmatprep.subr.mxu0 0.0
        %6176 = vmatpush1.xpose.msra.mxu0 0.0
        %6177 = vmatprep.subr.mxu0 0.0
        %6178 = vmatpush1.xpose.msra.mxu0 0.0
        %6179 = vmatprep.subr.mxu0 0.0
        %6180 = vmatpush1.xpose.msra.mxu0 0.0
        %6181 = vmatprep.subr.mxu0 0.0
        %6182 = vmatpush1.xpose.msra.mxu0 0.0
        %6183 = vmatprep.subr.mxu0 0.0
        %6184 = vmatpush1.xpose.msra.mxu0 0.0
        %6185 = vmatprep.subr.mxu0 0.0
        %6186 = vmatpush1.xpose.msra.mxu0 0.0
        %6187 = vmatprep.subr.mxu0 0.0
        %6188 = vmatpush1.xpose.msra.mxu0 0.0
        %6189 = vmatprep.subr.mxu0 0.0
        %6190 = vmatpush1.xpose.msra.mxu0 0.0
        %6191 = vmatprep.subr.mxu0 0.0
        %6192 = vmatpush1.xpose.msra.mxu0 0.0
        %6193 = vmatprep.subr.mxu0 0.0
        %6194 = vmatpush1.xpose.msra.mxu0 0.0
        %6195 = vmatprep.subr.mxu0 0.0
        %6196 = vmatpush1.xpose.msra.mxu0 0.0
        %6197 = vmatprep.subr.mxu0 0.0
        %6198 = vmatpush1.xpose.msra.mxu0 0.0
        %6199 = vmatprep.subr.mxu0 0.0
        %6200 = vmatpush1.xpose.msra.mxu0 0.0
        %6201 = vmatprep.subr.mxu0 0.0
        %6202 = vmatpush1.xpose.msra.mxu0 0.0
        %6203 = vmatprep.subr.mxu0 0.0
        %6204 = vmatpush1.xpose.msra.mxu0 0.0
        %6205 = vmatprep.subr.mxu0 0.0
        %6206 = vmatpush1.xpose.msra.mxu0 0.0
        %6207 = vmatprep.subr.mxu0 0.0
        %6208 = vmatpush1.xpose.msra.mxu0 0.0
        %6209 = vmatprep.subr.mxu0 0.0
        %6210 = vmatpush1.xpose.msra.mxu0 0.0
        %6211 = vmatprep.subr.mxu0 0.0
        %6212 = vmatpush1.xpose.msra.mxu0 0.0
        %6213 = vmatprep.subr.mxu0 0.0
        %6214 = vmatpush1.xpose.msra.mxu0 0.0
        %6215 = vmatprep.subr.mxu0 0.0
        %6216 = vmatpush1.xpose.msra.mxu0 0.0
        %6217 = vmatprep.subr.mxu0 0.0
        %6218 = vmatpush1.xpose.msra.mxu0 0.0
        %6219 = vmatprep.subr.mxu0 0.0
        %6220 = vmatpush1.xpose.msra.mxu0 0.0
        %6221 = vmatprep.subr.mxu0 0.0
        %6222 = vmatpush1.xpose.msra.mxu0 0.0
        %6223 = vmatprep.subr.mxu0 0.0
        %6224 = vmatpush1.xpose.msra.mxu0 0.0
        %6225 = vmatprep.subr.mxu0 0.0
        %6226 = vmatpush1.xpose.msra.mxu0 0.0
        %6227 = vmatprep.subr.mxu0 0.0
        %6228 = vmatpush1.xpose.msra.mxu0 0.0
        %6229 = vmatprep.subr.mxu0 0.0
        %6230 = vmatpush1.xpose.msra.mxu0 0.0
        %6231 = vmatprep.subr.mxu0 0.0
        %6232 = vmatpush1.xpose.msra.mxu0 0.0
        %6233 = vmatprep.subr.mxu0 0.0
        %6234 = vmatpush1.xpose.msra.mxu0 0.0
        %6235 = vmatprep.mubr.f32.mxu0 0.0
        %6236 = vmatmul.mubr.f32.gmra.mrb[0].mxu0 %v6165
        %v6237 = vpop.f32.mrb[0].mxu0
        %v6238 = vadd.f32 0.0, %v6237
        %v6239 = vpop.f32.mrb[0].mxu0
        %6240 = vdwg.mxu0
        %6241 = vrot.lane.b32.xlu0 %v819, 104
        %v6242 = vpop.permute.xlu0 %6241
        %6243 = vrot.lane.b32.xlu0 %v1008, 104
        %v6244 = vpop.permute.xlu0 %6243
        %6245 = vrot.lane.b32.xlu0 %v1013, 104
        %v6246 = vpop.permute.xlu0 %6245
        %v6247 = vsel %vm1315, %v6242, 0
        %v6249 = vsel %vm1315, %v6244, 0
        %v6251 = vsel %vm1315, %v6246, 0
        %6253 = vmatprep.subr.mxu0 0.0
        %6254 = vmatpush1.xpose.msra.mxu0 %v6249
        %6255 = vmatprep.subr.mxu0 0.0
        %6256 = vmatpush1.xpose.msra.mxu0 %v6251
        %6257 = vmatprep.subr.mxu0 0.0
        %6258 = vmatpush1.xpose.msra.mxu0 0.0
        %6259 = vmatprep.subr.mxu0 0.0
        %6260 = vmatpush1.xpose.msra.mxu0 0.0
        %6261 = vmatprep.subr.mxu0 0.0
        %6262 = vmatpush1.xpose.msra.mxu0 0.0
        %6263 = vmatprep.subr.mxu0 0.0
        %6264 = vmatpush1.xpose.msra.mxu0 0.0
        %6265 = vmatprep.subr.mxu0 0.0
        %6266 = vmatpush1.xpose.msra.mxu0 0.0
        %6267 = vmatprep.subr.mxu0 0.0
        %6268 = vmatpush1.xpose.msra.mxu0 0.0
        %6269 = vmatprep.subr.mxu0 0.0
        %6270 = vmatpush1.xpose.msra.mxu0 0.0
        %6271 = vmatprep.subr.mxu0 0.0
        %6272 = vmatpush1.xpose.msra.mxu0 0.0
        %6273 = vmatprep.subr.mxu0 0.0
        %6274 = vmatpush1.xpose.msra.mxu0 0.0
        %6275 = vmatprep.subr.mxu0 0.0
        %6276 = vmatpush1.xpose.msra.mxu0 0.0
        %6277 = vmatprep.subr.mxu0 0.0
        %6278 = vmatpush1.xpose.msra.mxu0 0.0
        %6279 = vmatprep.subr.mxu0 0.0
        %6280 = vmatpush1.xpose.msra.mxu0 0.0
        %6281 = vmatprep.subr.mxu0 0.0
        %6282 = vmatpush1.xpose.msra.mxu0 0.0
        %6283 = vmatprep.subr.mxu0 0.0
        %6284 = vmatpush1.xpose.msra.mxu0 0.0
        %6285 = vmatprep.subr.mxu0 0.0
        %6286 = vmatpush1.xpose.msra.mxu0 0.0
        %6287 = vmatprep.subr.mxu0 0.0
        %6288 = vmatpush1.xpose.msra.mxu0 0.0
        %6289 = vmatprep.subr.mxu0 0.0
        %6290 = vmatpush1.xpose.msra.mxu0 0.0
        %6291 = vmatprep.subr.mxu0 0.0
        %6292 = vmatpush1.xpose.msra.mxu0 0.0
        %6293 = vmatprep.subr.mxu0 0.0
        %6294 = vmatpush1.xpose.msra.mxu0 0.0
        %6295 = vmatprep.subr.mxu0 0.0
        %6296 = vmatpush1.xpose.msra.mxu0 0.0
        %6297 = vmatprep.subr.mxu0 0.0
        %6298 = vmatpush1.xpose.msra.mxu0 0.0
        %6299 = vmatprep.subr.mxu0 0.0
        %6300 = vmatpush1.xpose.msra.mxu0 0.0
        %6301 = vmatprep.subr.mxu0 0.0
        %6302 = vmatpush1.xpose.msra.mxu0 0.0
        %6303 = vmatprep.subr.mxu0 0.0
        %6304 = vmatpush1.xpose.msra.mxu0 0.0
        %6305 = vmatprep.subr.mxu0 0.0
        %6306 = vmatpush1.xpose.msra.mxu0 0.0
        %6307 = vmatprep.subr.mxu0 0.0
        %6308 = vmatpush1.xpose.msra.mxu0 0.0
        %6309 = vmatprep.subr.mxu0 0.0
        %6310 = vmatpush1.xpose.msra.mxu0 0.0
        %6311 = vmatprep.subr.mxu0 0.0
        %6312 = vmatpush1.xpose.msra.mxu0 0.0
        %6313 = vmatprep.subr.mxu0 0.0
        %6314 = vmatpush1.xpose.msra.mxu0 0.0
        %6315 = vmatprep.subr.mxu0 0.0
        %6316 = vmatpush1.xpose.msra.mxu0 0.0
        %6317 = vmatprep.mubr.f32.mxu0 0.0
        %6318 = vmatmul.mubr.f32.gmra.mrb[0].mxu0 %v6247
        %v6319 = vpop.f32.mrb[0].mxu0
        %v6320 = vadd.f32 0.0, %v6319
        %v6321 = vpop.f32.mrb[0].mxu0
        %6322 = vdwg.mxu0
        %6323 = vrot.lane.b32.xlu0 %v824, 104
        %v6324 = vpop.permute.xlu0 %6323
        %6325 = vrot.lane.b32.xlu0 %v1018, 104
        %v6326 = vpop.permute.xlu0 %6325
        %6327 = vrot.lane.b32.xlu0 %v1023, 104
        %v6328 = vpop.permute.xlu0 %6327
        %v6329 = vsel %vm1315, %v6324, 0
        %v6331 = vsel %vm1315, %v6326, 0
        %v6333 = vsel %vm1315, %v6328, 0
        %6335 = vmatprep.subr.mxu0 0.0
        %6336 = vmatpush1.xpose.msra.mxu0 %v6331
        %6337 = vmatprep.subr.mxu0 0.0
        %6338 = vmatpush1.xpose.msra.mxu0 %v6333
        %6339 = vmatprep.subr.mxu0 0.0
        %6340 = vmatpush1.xpose.msra.mxu0 0.0
        %6341 = vmatprep.subr.mxu0 0.0
        %6342 = vmatpush1.xpose.msra.mxu0 0.0
        %6343 = vmatprep.subr.mxu0 0.0
        %6344 = vmatpush1.xpose.msra.mxu0 0.0
        %6345 = vmatprep.subr.mxu0 0.0
        %6346 = vmatpush1.xpose.msra.mxu0 0.0
        %6347 = vmatprep.subr.mxu0 0.0
        %6348 = vmatpush1.xpose.msra.mxu0 0.0
        %6349 = vmatprep.subr.mxu0 0.0
        %6350 = vmatpush1.xpose.msra.mxu0 0.0
        %6351 = vmatprep.subr.mxu0 0.0
        %6352 = vmatpush1.xpose.msra.mxu0 0.0
        %6353 = vmatprep.subr.mxu0 0.0
        %6354 = vmatpush1.xpose.msra.mxu0 0.0
        %6355 = vmatprep.subr.mxu0 0.0
        %6356 = vmatpush1.xpose.msra.mxu0 0.0
        %6357 = vmatprep.subr.mxu0 0.0
        %6358 = vmatpush1.xpose.msra.mxu0 0.0
        %6359 = vmatprep.subr.mxu0 0.0
        %6360 = vmatpush1.xpose.msra.mxu0 0.0
        %6361 = vmatprep.subr.mxu0 0.0
        %6362 = vmatpush1.xpose.msra.mxu0 0.0
        %6363 = vmatprep.subr.mxu0 0.0
        %6364 = vmatpush1.xpose.msra.mxu0 0.0
        %6365 = vmatprep.subr.mxu0 0.0
        %6366 = vmatpush1.xpose.msra.mxu0 0.0
        %6367 = vmatprep.subr.mxu0 0.0
        %6368 = vmatpush1.xpose.msra.mxu0 0.0
        %6369 = vmatprep.subr.mxu0 0.0
        %6370 = vmatpush1.xpose.msra.mxu0 0.0
        %6371 = vmatprep.subr.mxu0 0.0
        %6372 = vmatpush1.xpose.msra.mxu0 0.0
        %6373 = vmatprep.subr.mxu0 0.0
        %6374 = vmatpush1.xpose.msra.mxu0 0.0
        %6375 = vmatprep.subr.mxu0 0.0
        %6376 = vmatpush1.xpose.msra.mxu0 0.0
        %6377 = vmatprep.subr.mxu0 0.0
        %6378 = vmatpush1.xpose.msra.mxu0 0.0
        %6379 = vmatprep.subr.mxu0 0.0
        %6380 = vmatpush1.xpose.msra.mxu0 0.0
        %6381 = vmatprep.subr.mxu0 0.0
        %6382 = vmatpush1.xpose.msra.mxu0 0.0
        %6383 = vmatprep.subr.mxu0 0.0
        %6384 = vmatpush1.xpose.msra.mxu0 0.0
        %6385 = vmatprep.subr.mxu0 0.0
        %6386 = vmatpush1.xpose.msra.mxu0 0.0
        %6387 = vmatprep.subr.mxu0 0.0
        %6388 = vmatpush1.xpose.msra.mxu0 0.0
        %6389 = vmatprep.subr.mxu0 0.0
        %6390 = vmatpush1.xpose.msra.mxu0 0.0
        %6391 = vmatprep.subr.mxu0 0.0
        %6392 = vmatpush1.xpose.msra.mxu0 0.0
        %6393 = vmatprep.subr.mxu0 0.0
        %6394 = vmatpush1.xpose.msra.mxu0 0.0
        %6395 = vmatprep.subr.mxu0 0.0
        %6396 = vmatpush1.xpose.msra.mxu0 0.0
        %6397 = vmatprep.subr.mxu0 0.0
        %6398 = vmatpush1.xpose.msra.mxu0 0.0
        %6399 = vmatprep.mubr.f32.mxu0 0.0
        %6400 = vmatmul.mubr.f32.gmra.mrb[0].mxu0 %v6329
        %v6401 = vpop.f32.mrb[0].mxu0
        %v6402 = vadd.f32 0.0, %v6401
        %v6403 = vpop.f32.mrb[0].mxu0
        %6404 = vdwg.mxu0
        %6405 = vrot.lane.b32.xlu0 %v829, 104
        %v6406 = vpop.permute.xlu0 %6405
        %6407 = vrot.lane.b32.xlu0 %v1028, 104
        %v6408 = vpop.permute.xlu0 %6407
        %6409 = vrot.lane.b32.xlu0 %v1033, 104
        %v6410 = vpop.permute.xlu0 %6409
        %v6411 = vsel %vm1315, %v6406, 0
        %v6413 = vsel %vm1315, %v6408, 0
        %v6415 = vsel %vm1315, %v6410, 0
        %6417 = vmatprep.subr.mxu0 0.0
        %6418 = vmatpush1.xpose.msra.mxu0 %v6413
        %6419 = vmatprep.subr.mxu0 0.0
        %6420 = vmatpush1.xpose.msra.mxu0 %v6415
        %6421 = vmatprep.subr.mxu0 0.0
        %6422 = vmatpush1.xpose.msra.mxu0 0.0
        %6423 = vmatprep.subr.mxu0 0.0
        %6424 = vmatpush1.xpose.msra.mxu0 0.0
        %6425 = vmatprep.subr.mxu0 0.0
        %6426 = vmatpush1.xpose.msra.mxu0 0.0
        %6427 = vmatprep.subr.mxu0 0.0
        %6428 = vmatpush1.xpose.msra.mxu0 0.0
        %6429 = vmatprep.subr.mxu0 0.0
        %6430 = vmatpush1.xpose.msra.mxu0 0.0
        %6431 = vmatprep.subr.mxu0 0.0
        %6432 = vmatpush1.xpose.msra.mxu0 0.0
        %6433 = vmatprep.subr.mxu0 0.0
        %6434 = vmatpush1.xpose.msra.mxu0 0.0
        %6435 = vmatprep.subr.mxu0 0.0
        %6436 = vmatpush1.xpose.msra.mxu0 0.0
        %6437 = vmatprep.subr.mxu0 0.0
        %6438 = vmatpush1.xpose.msra.mxu0 0.0
        %6439 = vmatprep.subr.mxu0 0.0
        %6440 = vmatpush1.xpose.msra.mxu0 0.0
        %6441 = vmatprep.subr.mxu0 0.0
        %6442 = vmatpush1.xpose.msra.mxu0 0.0
        %6443 = vmatprep.subr.mxu0 0.0
        %6444 = vmatpush1.xpose.msra.mxu0 0.0
        %6445 = vmatprep.subr.mxu0 0.0
        %6446 = vmatpush1.xpose.msra.mxu0 0.0
        %6447 = vmatprep.subr.mxu0 0.0
        %6448 = vmatpush1.xpose.msra.mxu0 0.0
        %6449 = vmatprep.subr.mxu0 0.0
        %6450 = vmatpush1.xpose.msra.mxu0 0.0
        %6451 = vmatprep.subr.mxu0 0.0
        %6452 = vmatpush1.xpose.msra.mxu0 0.0
        %6453 = vmatprep.subr.mxu0 0.0
        %6454 = vmatpush1.xpose.msra.mxu0 0.0
        %6455 = vmatprep.subr.mxu0 0.0
        %6456 = vmatpush1.xpose.msra.mxu0 0.0
        %6457 = vmatprep.subr.mxu0 0.0
        %6458 = vmatpush1.xpose.msra.mxu0 0.0
        %6459 = vmatprep.subr.mxu0 0.0
        %6460 = vmatpush1.xpose.msra.mxu0 0.0
        %6461 = vmatprep.subr.mxu0 0.0
        %6462 = vmatpush1.xpose.msra.mxu0 0.0
        %6463 = vmatprep.subr.mxu0 0.0
        %6464 = vmatpush1.xpose.msra.mxu0 0.0
        %6465 = vmatprep.subr.mxu0 0.0
        %6466 = vmatpush1.xpose.msra.mxu0 0.0
        %6467 = vmatprep.subr.mxu0 0.0
        %6468 = vmatpush1.xpose.msra.mxu0 0.0
        %6469 = vmatprep.subr.mxu0 0.0
        %6470 = vmatpush1.xpose.msra.mxu0 0.0
        %6471 = vmatprep.subr.mxu0 0.0
        %6472 = vmatpush1.xpose.msra.mxu0 0.0
        %6473 = vmatprep.subr.mxu0 0.0
        %6474 = vmatpush1.xpose.msra.mxu0 0.0
        %6475 = vmatprep.subr.mxu0 0.0
        %6476 = vmatpush1.xpose.msra.mxu0 0.0
        %6477 = vmatprep.subr.mxu0 0.0
        %6478 = vmatpush1.xpose.msra.mxu0 0.0
        %6479 = vmatprep.subr.mxu0 0.0
        %6480 = vmatpush1.xpose.msra.mxu0 0.0
        %6481 = vmatprep.mubr.f32.mxu0 0.0
        %6482 = vmatmul.mubr.f32.gmra.mrb[0].mxu0 %v6411
        %v6483 = vpop.f32.mrb[0].mxu0
        %v6484 = vadd.f32 0.0, %v6483
        %v6485 = vpop.f32.mrb[0].mxu0
        %6486 = vdwg.mxu0
        %v6487 = vmul.f32 %v5910, 0.2
        %v6488 = vmul.f32 %v5992, 0.2
        %v6489 = vmul.f32 %v6074, 0.2
        %v6490 = vmul.f32 %v6156, 0.2
        %v6491 = vmul.f32 %v6238, 0.2
        %v6492 = vmul.f32 %v6320, 0.2
        %v6493 = vmul.f32 %v6402, 0.2
        %v6494 = vmul.f32 %v6484, 0.2
        %v6495 = vadd.f32 %v6487, %v1274
        %v6496 = vadd.f32 %v6488, %v1278
        %v6497 = vadd.f32 %v6489, %v1282
        %v6498 = vadd.f32 %v6490, %v1286
        %v6499 = vadd.f32 %v6491, %v1290
        %v6500 = vadd.f32 %v6492, %v1294
        %v6501 = vadd.f32 %v6493, %v1298
        %v6502 = vadd.f32 %v6494, %v1302
        %v6503 = vsel %vm702, %v6495, -inf
        %6504 = vmax.xlane.f32.xlu0 %v6503
        %v6505 = vpop.xlane.xlu0 %6504
        %v6506 = vsel %vm702, %v6496, -inf
        %6507 = vmax.xlane.f32.xlu0 %v6506
        %v6508 = vpop.xlane.xlu0 %6507
        %v6509 = vsel %vm702, %v6497, -inf
        %6510 = vmax.xlane.f32.xlu0 %v6509
        %v6511 = vpop.xlane.xlu0 %6510
        %v6512 = vsel %vm702, %v6498, -inf
        %6513 = vmax.xlane.f32.xlu0 %v6512
        %v6514 = vpop.xlane.xlu0 %6513
        %v6515 = vsel %vm702, %v6499, -inf
        %6516 = vmax.xlane.f32.xlu0 %v6515
        %v6517 = vpop.xlane.xlu0 %6516
        %v6518 = vsel %vm702, %v6500, -inf
        %6519 = vmax.xlane.f32.xlu0 %v6518
        %v6520 = vpop.xlane.xlu0 %6519
        %v6521 = vsel %vm702, %v6501, -inf
        %6522 = vmax.xlane.f32.xlu0 %v6521
        %v6523 = vpop.xlane.xlu0 %6522
        %v6524 = vsel %vm702, %v6502, -inf
        %6525 = vmax.xlane.f32.xlu0 %v6524
        %v6526 = vpop.xlane.xlu0 %6525
        %v6527 = vsub.f32 %v6495, %v6505
        %v6528 = vsub.f32 %v6496, %v6508
        %v6529 = vsub.f32 %v6497, %v6511
        %v6530 = vsub.f32 %v6498, %v6514
        %v6531 = vsub.f32 %v6499, %v6517
        %v6532 = vsub.f32 %v6500, %v6520
        %v6533 = vsub.f32 %v6501, %v6523
        %v6534 = vsub.f32 %v6502, %v6526
        %v6535 = vmul.f32 %v6527, 1.442695
        %v6536 = vpow.pop %v6535
        %v6537 = vmul.f32 %v6528, 1.442695
        %v6538 = vpow.pop %v6537
        %v6539 = vmul.f32 %v6529, 1.442695
        %v6540 = vpow.pop %v6539
        %v6541 = vmul.f32 %v6530, 1.442695
        %v6542 = vpow.pop %v6541
        %v6543 = vmul.f32 %v6531, 1.442695
        %v6544 = vpow.pop %v6543
        %v6545 = vmul.f32 %v6532, 1.442695
        %v6546 = vpow.pop %v6545
        %v6547 = vmul.f32 %v6533, 1.442695
        %v6548 = vpow.pop %v6547
        %v6549 = vmul.f32 %v6534, 1.442695
        %v6550 = vpow.pop %v6549
        %v6551 = vsel %vm702, %v6536, 0.0
        %6552 = vadd.xlane.f32.xlu0 %v6551
        %v6553 = vpop.xlane.xlu0 %6552
        %v6554 = vsel %vm702, %v6538, 0.0
        %6555 = vadd.xlane.f32.xlu0 %v6554
        %v6556 = vpop.xlane.xlu0 %6555
        %v6557 = vsel %vm702, %v6540, 0.0
        %6558 = vadd.xlane.f32.xlu0 %v6557
        %v6559 = vpop.xlane.xlu0 %6558
        %v6560 = vsel %vm702, %v6542, 0.0
        %6561 = vadd.xlane.f32.xlu0 %v6560
        %v6562 = vpop.xlane.xlu0 %6561
        %v6563 = vsel %vm702, %v6544, 0.0
        %6564 = vadd.xlane.f32.xlu0 %v6563
        %v6565 = vpop.xlane.xlu0 %6564
        %v6566 = vsel %vm702, %v6546, 0.0
        %6567 = vadd.xlane.f32.xlu0 %v6566
        %v6568 = vpop.xlane.xlu0 %6567
        %v6569 = vsel %vm702, %v6548, 0.0
        %6570 = vadd.xlane.f32.xlu0 %v6569
        %v6571 = vpop.xlane.xlu0 %6570
        %v6572 = vsel %vm702, %v6550, 0.0
        %6573 = vadd.xlane.f32.xlu0 %v6572
        %v6574 = vpop.xlane.xlu0 %6573
        %v6575 = vrcp.pop %v6553
        %v6576 = vrcp.pop %v6556
        %v6577 = vrcp.pop %v6559
        %v6578 = vrcp.pop %v6562
        %v6579 = vrcp.pop %v6565
        %v6580 = vrcp.pop %v6568
        %v6581 = vrcp.pop %v6571
        %v6582 = vrcp.pop %v6574
        %v6583 = vmul.f32 %v6536, %v6575
        %v6584 = vmul.f32 %v6538, %v6576
        %v6585 = vmul.f32 %v6540, %v6577
        %v6586 = vmul.f32 %v6542, %v6578
        %v6587 = vmul.f32 %v6544, %v6579
        %v6588 = vmul.f32 %v6546, %v6580
        %v6589 = vmul.f32 %v6548, %v6581
        %v6590 = vmul.f32 %v6550, %v6582
        %6591 = vrot.lane.b32.xlu0 %v1161, 104
        %v6592 = vpop.permute.xlu0 %6591
        %6593 = vrot.lane.b32.xlu0 %v1166, 104
        %v6594 = vpop.permute.xlu0 %6593
        %v6598 = vsel %vm702, %v6583, 0
        %6600 = vmatprep.subr.mxu0 0.0
        %6601 = vmatpush1.msra.mxu0 %v6592
        %6602 = vmatprep.subr.mxu0 0.0
        %6603 = vmatpush1.msra.mxu0 %v6594
        %6604 = vmatprep.subr.mxu0 0.0
        %6605 = vmatpush1.msra.mxu0 0.0
        %6606 = vmatprep.subr.mxu0 0.0
        %6607 = vmatpush1.msra.mxu0 0.0
        %6608 = vmatprep.subr.mxu0 0.0
        %6609 = vmatpush1.msra.mxu0 0.0
        %6610 = vmatprep.subr.mxu0 0.0
        %6611 = vmatpush1.msra.mxu0 0.0
        %6612 = vmatprep.subr.mxu0 0.0
        %6613 = vmatpush1.msra.mxu0 0.0
        %6614 = vmatprep.subr.mxu0 0.0
        %6615 = vmatpush1.msra.mxu0 0.0
        %6616 = vmatprep.subr.mxu0 0.0
        %6617 = vmatpush1.msra.mxu0 0.0
        %6618 = vmatprep.subr.mxu0 0.0
        %6619 = vmatpush1.msra.mxu0 0.0
        %6620 = vmatprep.subr.mxu0 0.0
        %6621 = vmatpush1.msra.mxu0 0.0
        %6622 = vmatprep.subr.mxu0 0.0
        %6623 = vmatpush1.msra.mxu0 0.0
        %6624 = vmatprep.subr.mxu0 0.0
        %6625 = vmatpush1.msra.mxu0 0.0
        %6626 = vmatprep.subr.mxu0 0.0
        %6627 = vmatpush1.msra.mxu0 0.0
        %6628 = vmatprep.subr.mxu0 0.0
        %6629 = vmatpush1.msra.mxu0 0.0
        %6630 = vmatprep.subr.mxu0 0.0
        %6631 = vmatpush1.msra.mxu0 0.0
        %6632 = vmatprep.subr.mxu0 0.0
        %6633 = vmatpush1.msra.mxu0 0.0
        %6634 = vmatprep.subr.mxu0 0.0
        %6635 = vmatpush1.msra.mxu0 0.0
        %6636 = vmatprep.subr.mxu0 0.0
        %6637 = vmatpush1.msra.mxu0 0.0
        %6638 = vmatprep.subr.mxu0 0.0
        %6639 = vmatpush1.msra.mxu0 0.0
        %6640 = vmatprep.subr.mxu0 0.0
        %6641 = vmatpush1.msra.mxu0 0.0
        %6642 = vmatprep.subr.mxu0 0.0
        %6643 = vmatpush1.msra.mxu0 0.0
        %6644 = vmatprep.subr.mxu0 0.0
        %6645 = vmatpush1.msra.mxu0 0.0
        %6646 = vmatprep.subr.mxu0 0.0
        %6647 = vmatpush1.msra.mxu0 0.0
        %6648 = vmatprep.subr.mxu0 0.0
        %6649 = vmatpush1.msra.mxu0 0.0
        %6650 = vmatprep.subr.mxu0 0.0
        %6651 = vmatpush1.msra.mxu0 0.0
        %6652 = vmatprep.subr.mxu0 0.0
        %6653 = vmatpush1.msra.mxu0 0.0
        %6654 = vmatprep.subr.mxu0 0.0
        %6655 = vmatpush1.msra.mxu0 0.0
        %6656 = vmatprep.subr.mxu0 0.0
        %6657 = vmatpush1.msra.mxu0 0.0
        %6658 = vmatprep.subr.mxu0 0.0
        %6659 = vmatpush1.msra.mxu0 0.0
        %6660 = vmatprep.subr.mxu0 0.0
        %6661 = vmatpush1.msra.mxu0 0.0
        %6662 = vmatprep.subr.mxu0 0.0
        %6663 = vmatpush1.msra.mxu0 0.0
        %6664 = vmatprep.mubr.f32.mxu0 0.0
        %6665 = vmatmul.mubr.f32.gmra.mrb[0].mxu0 %v6598
        %v6666 = vpop.f32.mrb[0].mxu0
        %v6667 = vadd.f32 0.0, %v6666
        %v6668 = vpop.f32.mrb[0].mxu0
        %6669 = vdwg.mxu0
        %6670 = vrot.lane.b32.xlu0 %v1171, 104
        %v6671 = vpop.permute.xlu0 %6670
        %6672 = vrot.lane.b32.xlu0 %v1176, 104
        %v6673 = vpop.permute.xlu0 %6672
        %v6677 = vsel %vm702, %v6584, 0
        %6679 = vmatprep.subr.mxu0 0.0
        %6680 = vmatpush1.msra.mxu0 %v6671
        %6681 = vmatprep.subr.mxu0 0.0
        %6682 = vmatpush1.msra.mxu0 %v6673
        %6683 = vmatprep.subr.mxu0 0.0
        %6684 = vmatpush1.msra.mxu0 0.0
        %6685 = vmatprep.subr.mxu0 0.0
        %6686 = vmatpush1.msra.mxu0 0.0
        %6687 = vmatprep.subr.mxu0 0.0
        %6688 = vmatpush1.msra.mxu0 0.0
        %6689 = vmatprep.subr.mxu0 0.0
        %6690 = vmatpush1.msra.mxu0 0.0
        %6691 = vmatprep.subr.mxu0 0.0
        %6692 = vmatpush1.msra.mxu0 0.0
        %6693 = vmatprep.subr.mxu0 0.0
        %6694 = vmatpush1.msra.mxu0 0.0
        %6695 = vmatprep.subr.mxu0 0.0
        %6696 = vmatpush1.msra.mxu0 0.0
        %6697 = vmatprep.subr.mxu0 0.0
        %6698 = vmatpush1.msra.mxu0 0.0
        %6699 = vmatprep.subr.mxu0 0.0
        %6700 = vmatpush1.msra.mxu0 0.0
        %6701 = vmatprep.subr.mxu0 0.0
        %6702 = vmatpush1.msra.mxu0 0.0
        %6703 = vmatprep.subr.mxu0 0.0
        %6704 = vmatpush1.msra.mxu0 0.0
        %6705 = vmatprep.subr.mxu0 0.0
        %6706 = vmatpush1.msra.mxu0 0.0
        %6707 = vmatprep.subr.mxu0 0.0
        %6708 = vmatpush1.msra.mxu0 0.0
        %6709 = vmatprep.subr.mxu0 0.0
        %6710 = vmatpush1.msra.mxu0 0.0
        %6711 = vmatprep.subr.mxu0 0.0
        %6712 = vmatpush1.msra.mxu0 0.0
        %6713 = vmatprep.subr.mxu0 0.0
        %6714 = vmatpush1.msra.mxu0 0.0
        %6715 = vmatprep.subr.mxu0 0.0
        %6716 = vmatpush1.msra.mxu0 0.0
        %6717 = vmatprep.subr.mxu0 0.0
        %6718 = vmatpush1.msra.mxu0 0.0
        %6719 = vmatprep.subr.mxu0 0.0
        %6720 = vmatpush1.msra.mxu0 0.0
        %6721 = vmatprep.subr.mxu0 0.0
        %6722 = vmatpush1.msra.mxu0 0.0
        %6723 = vmatprep.subr.mxu0 0.0
        %6724 = vmatpush1.msra.mxu0 0.0
        %6725 = vmatprep.subr.mxu0 0.0
        %6726 = vmatpush1.msra.mxu0 0.0
        %6727 = vmatprep.subr.mxu0 0.0
        %6728 = vmatpush1.msra.mxu0 0.0
        %6729 = vmatprep.subr.mxu0 0.0
        %6730 = vmatpush1.msra.mxu0 0.0
        %6731 = vmatprep.subr.mxu0 0.0
        %6732 = vmatpush1.msra.mxu0 0.0
        %6733 = vmatprep.subr.mxu0 0.0
        %6734 = vmatpush1.msra.mxu0 0.0
        %6735 = vmatprep.subr.mxu0 0.0
        %6736 = vmatpush1.msra.mxu0 0.0
        %6737 = vmatprep.subr.mxu0 0.0
        %6738 = vmatpush1.msra.mxu0 0.0
        %6739 = vmatprep.subr.mxu0 0.0
        %6740 = vmatpush1.msra.mxu0 0.0
        %6741 = vmatprep.subr.mxu0 0.0
        %6742 = vmatpush1.msra.mxu0 0.0
        %6743 = vmatprep.mubr.f32.mxu0 0.0
        %6744 = vmatmul.mubr.f32.gmra.mrb[0].mxu0 %v6677
        %v6745 = vpop.f32.mrb[0].mxu0
        %v6746 = vadd.f32 0.0, %v6745
        %v6747 = vpop.f32.mrb[0].mxu0
        %6748 = vdwg.mxu0
        %6749 = vrot.lane.b32.xlu0 %v1181, 104
        %v6750 = vpop.permute.xlu0 %6749
        %6751 = vrot.lane.b32.xlu0 %v1186, 104
        %v6752 = vpop.permute.xlu0 %6751
        %v6756 = vsel %vm702, %v6585, 0
        %6758 = vmatprep.subr.mxu0 0.0
        %6759 = vmatpush1.msra.mxu0 %v6750
        %6760 = vmatprep.subr.mxu0 0.0
        %6761 = vmatpush1.msra.mxu0 %v6752
        %6762 = vmatprep.subr.mxu0 0.0
        %6763 = vmatpush1.msra.mxu0 0.0
        %6764 = vmatprep.subr.mxu0 0.0
        %6765 = vmatpush1.msra.mxu0 0.0
        %6766 = vmatprep.subr.mxu0 0.0
        %6767 = vmatpush1.msra.mxu0 0.0
        %6768 = vmatprep.subr.mxu0 0.0
        %6769 = vmatpush1.msra.mxu0 0.0
        %6770 = vmatprep.subr.mxu0 0.0
        %6771 = vmatpush1.msra.mxu0 0.0
        %6772 = vmatprep.subr.mxu0 0.0
        %6773 = vmatpush1.msra.mxu0 0.0
        %6774 = vmatprep.subr.mxu0 0.0
        %6775 = vmatpush1.msra.mxu0 0.0
        %6776 = vmatprep.subr.mxu0 0.0
        %6777 = vmatpush1.msra.mxu0 0.0
        %6778 = vmatprep.subr.mxu0 0.0
        %6779 = vmatpush1.msra.mxu0 0.0
        %6780 = vmatprep.subr.mxu0 0.0
        %6781 = vmatpush1.msra.mxu0 0.0
        %6782 = vmatprep.subr.mxu0 0.0
        %6783 = vmatpush1.msra.mxu0 0.0
        %6784 = vmatprep.subr.mxu0 0.0
        %6785 = vmatpush1.msra.mxu0 0.0
        %6786 = vmatprep.subr.mxu0 0.0
        %6787 = vmatpush1.msra.mxu0 0.0
        %6788 = vmatprep.subr.mxu0 0.0
        %6789 = vmatpush1.msra.mxu0 0.0
        %6790 = vmatprep.subr.mxu0 0.0
        %6791 = vmatpush1.msra.mxu0 0.0
        %6792 = vmatprep.subr.mxu0 0.0
        %6793 = vmatpush1.msra.mxu0 0.0
        %6794 = vmatprep.subr.mxu0 0.0
        %6795 = vmatpush1.msra.mxu0 0.0
        %6796 = vmatprep.subr.mxu0 0.0
        %6797 = vmatpush1.msra.mxu0 0.0
        %6798 = vmatprep.subr.mxu0 0.0
        %6799 = vmatpush1.msra.mxu0 0.0
        %6800 = vmatprep.subr.mxu0 0.0
        %6801 = vmatpush1.msra.mxu0 0.0
        %6802 = vmatprep.subr.mxu0 0.0
        %6803 = vmatpush1.msra.mxu0 0.0
        %6804 = vmatprep.subr.mxu0 0.0
        %6805 = vmatpush1.msra.mxu0 0.0
        %6806 = vmatprep.subr.mxu0 0.0
        %6807 = vmatpush1.msra.mxu0 0.0
        %6808 = vmatprep.subr.mxu0 0.0
        %6809 = vmatpush1.msra.mxu0 0.0
        %6810 = vmatprep.subr.mxu0 0.0
        %6811 = vmatpush1.msra.mxu0 0.0
        %6812 = vmatprep.subr.mxu0 0.0
        %6813 = vmatpush1.msra.mxu0 0.0
        %6814 = vmatprep.subr.mxu0 0.0
        %6815 = vmatpush1.msra.mxu0 0.0
        %6816 = vmatprep.subr.mxu0 0.0
        %6817 = vmatpush1.msra.mxu0 0.0
        %6818 = vmatprep.subr.mxu0 0.0
        %6819 = vmatpush1.msra.mxu0 0.0
        %6820 = vmatprep.subr.mxu0 0.0
        %6821 = vmatpush1.msra.mxu0 0.0
        %6822 = vmatprep.mubr.f32.mxu0 0.0
        %6823 = vmatmul.mubr.f32.gmra.mrb[0].mxu0 %v6756
        %v6824 = vpop.f32.mrb[0].mxu0
        %v6825 = vadd.f32 0.0, %v6824
        %v6826 = vpop.f32.mrb[0].mxu0
        %6827 = vdwg.mxu0
        %6828 = vrot.lane.b32.xlu0 %v1191, 104
        %v6829 = vpop.permute.xlu0 %6828
        %6830 = vrot.lane.b32.xlu0 %v1196, 104
        %v6831 = vpop.permute.xlu0 %6830
        %v6835 = vsel %vm702, %v6586, 0
        %6837 = vmatprep.subr.mxu0 0.0
        %6838 = vmatpush1.msra.mxu0 %v6829
        %6839 = vmatprep.subr.mxu0 0.0
        %6840 = vmatpush1.msra.mxu0 %v6831
        %6841 = vmatprep.subr.mxu0 0.0
        %6842 = vmatpush1.msra.mxu0 0.0
        %6843 = vmatprep.subr.mxu0 0.0
        %6844 = vmatpush1.msra.mxu0 0.0
        %6845 = vmatprep.subr.mxu0 0.0
        %6846 = vmatpush1.msra.mxu0 0.0
        %6847 = vmatprep.subr.mxu0 0.0
        %6848 = vmatpush1.msra.mxu0 0.0
        %6849 = vmatprep.subr.mxu0 0.0
        %6850 = vmatpush1.msra.mxu0 0.0
        %6851 = vmatprep.subr.mxu0 0.0
        %6852 = vmatpush1.msra.mxu0 0.0
        %6853 = vmatprep.subr.mxu0 0.0
        %6854 = vmatpush1.msra.mxu0 0.0
        %6855 = vmatprep.subr.mxu0 0.0
        %6856 = vmatpush1.msra.mxu0 0.0
        %6857 = vmatprep.subr.mxu0 0.0
        %6858 = vmatpush1.msra.mxu0 0.0
        %6859 = vmatprep.subr.mxu0 0.0
        %6860 = vmatpush1.msra.mxu0 0.0
        %6861 = vmatprep.subr.mxu0 0.0
        %6862 = vmatpush1.msra.mxu0 0.0
        %6863 = vmatprep.subr.mxu0 0.0
        %6864 = vmatpush1.msra.mxu0 0.0
        %6865 = vmatprep.subr.mxu0 0.0
        %6866 = vmatpush1.msra.mxu0 0.0
        %6867 = vmatprep.subr.mxu0 0.0
        %6868 = vmatpush1.msra.mxu0 0.0
        %6869 = vmatprep.subr.mxu0 0.0
        %6870 = vmatpush1.msra.mxu0 0.0
        %6871 = vmatprep.subr.mxu0 0.0
        %6872 = vmatpush1.msra.mxu0 0.0
        %6873 = vmatprep.subr.mxu0 0.0
        %6874 = vmatpush1.msra.mxu0 0.0
        %6875 = vmatprep.subr.mxu0 0.0
        %6876 = vmatpush1.msra.mxu0 0.0
        %6877 = vmatprep.subr.mxu0 0.0
        %6878 = vmatpush1.msra.mxu0 0.0
        %6879 = vmatprep.subr.mxu0 0.0
        %6880 = vmatpush1.msra.mxu0 0.0
        %6881 = vmatprep.subr.mxu0 0.0
        %6882 = vmatpush1.msra.mxu0 0.0
        %6883 = vmatprep.subr.mxu0 0.0
        %6884 = vmatpush1.msra.mxu0 0.0
        %6885 = vmatprep.subr.mxu0 0.0
        %6886 = vmatpush1.msra.mxu0 0.0
        %6887 = vmatprep.subr.mxu0 0.0
        %6888 = vmatpush1.msra.mxu0 0.0
        %6889 = vmatprep.subr.mxu0 0.0
        %6890 = vmatpush1.msra.mxu0 0.0
        %6891 = vmatprep.subr.mxu0 0.0
        %6892 = vmatpush1.msra.mxu0 0.0
        %6893 = vmatprep.subr.mxu0 0.0
        %6894 = vmatpush1.msra.mxu0 0.0
        %6895 = vmatprep.subr.mxu0 0.0
        %6896 = vmatpush1.msra.mxu0 0.0
        %6897 = vmatprep.subr.mxu0 0.0
        %6898 = vmatpush1.msra.mxu0 0.0
        %6899 = vmatprep.subr.mxu0 0.0
        %6900 = vmatpush1.msra.mxu0 0.0
        %6901 = vmatprep.mubr.f32.mxu0 0.0
        %6902 = vmatmul.mubr.f32.gmra.mrb[0].mxu0 %v6835
        %v6903 = vpop.f32.mrb[0].mxu0
        %v6904 = vadd.f32 0.0, %v6903
        %v6905 = vpop.f32.mrb[0].mxu0
        %6906 = vdwg.mxu0
        %6907 = vrot.lane.b32.xlu0 %v1201, 104
        %v6908 = vpop.permute.xlu0 %6907
        %6909 = vrot.lane.b32.xlu0 %v1206, 104
        %v6910 = vpop.permute.xlu0 %6909
        %v6914 = vsel %vm702, %v6587, 0
        %6916 = vmatprep.subr.mxu0 0.0
        %6917 = vmatpush1.msra.mxu0 %v6908
        %6918 = vmatprep.subr.mxu0 0.0
        %6919 = vmatpush1.msra.mxu0 %v6910
        %6920 = vmatprep.subr.mxu0 0.0
        %6921 = vmatpush1.msra.mxu0 0.0
        %6922 = vmatprep.subr.mxu0 0.0
        %6923 = vmatpush1.msra.mxu0 0.0
        %6924 = vmatprep.subr.mxu0 0.0
        %6925 = vmatpush1.msra.mxu0 0.0
        %6926 = vmatprep.subr.mxu0 0.0
        %6927 = vmatpush1.msra.mxu0 0.0
        %6928 = vmatprep.subr.mxu0 0.0
        %6929 = vmatpush1.msra.mxu0 0.0
        %6930 = vmatprep.subr.mxu0 0.0
        %6931 = vmatpush1.msra.mxu0 0.0
        %6932 = vmatprep.subr.mxu0 0.0
        %6933 = vmatpush1.msra.mxu0 0.0
        %6934 = vmatprep.subr.mxu0 0.0
        %6935 = vmatpush1.msra.mxu0 0.0
        %6936 = vmatprep.subr.mxu0 0.0
        %6937 = vmatpush1.msra.mxu0 0.0
        %6938 = vmatprep.subr.mxu0 0.0
        %6939 = vmatpush1.msra.mxu0 0.0
        %6940 = vmatprep.subr.mxu0 0.0
        %6941 = vmatpush1.msra.mxu0 0.0
        %6942 = vmatprep.subr.mxu0 0.0
        %6943 = vmatpush1.msra.mxu0 0.0
        %6944 = vmatprep.subr.mxu0 0.0
        %6945 = vmatpush1.msra.mxu0 0.0
        %6946 = vmatprep.subr.mxu0 0.0
        %6947 = vmatpush1.msra.mxu0 0.0
        %6948 = vmatprep.subr.mxu0 0.0
        %6949 = vmatpush1.msra.mxu0 0.0
        %6950 = vmatprep.subr.mxu0 0.0
        %6951 = vmatpush1.msra.mxu0 0.0
        %6952 = vmatprep.subr.mxu0 0.0
        %6953 = vmatpush1.msra.mxu0 0.0
        %6954 = vmatprep.subr.mxu0 0.0
        %6955 = vmatpush1.msra.mxu0 0.0
        %6956 = vmatprep.subr.mxu0 0.0
        %6957 = vmatpush1.msra.mxu0 0.0
        %6958 = vmatprep.subr.mxu0 0.0
        %6959 = vmatpush1.msra.mxu0 0.0
        %6960 = vmatprep.subr.mxu0 0.0
        %6961 = vmatpush1.msra.mxu0 0.0
        %6962 = vmatprep.subr.mxu0 0.0
        %6963 = vmatpush1.msra.mxu0 0.0
        %6964 = vmatprep.subr.mxu0 0.0
        %6965 = vmatpush1.msra.mxu0 0.0
        %6966 = vmatprep.subr.mxu0 0.0
        %6967 = vmatpush1.msra.mxu0 0.0
        %6968 = vmatprep.subr.mxu0 0.0
        %6969 = vmatpush1.msra.mxu0 0.0
        %6970 = vmatprep.subr.mxu0 0.0
        %6971 = vmatpush1.msra.mxu0 0.0
        %6972 = vmatprep.subr.mxu0 0.0
        %6973 = vmatpush1.msra.mxu0 0.0
        %6974 = vmatprep.subr.mxu0 0.0
        %6975 = vmatpush1.msra.mxu0 0.0
        %6976 = vmatprep.subr.mxu0 0.0
        %6977 = vmatpush1.msra.mxu0 0.0
        %6978 = vmatprep.subr.mxu0 0.0
        %6979 = vmatpush1.msra.mxu0 0.0
        %6980 = vmatprep.mubr.f32.mxu0 0.0
        %6981 = vmatmul.mubr.f32.gmra.mrb[0].mxu0 %v6914
        %v6982 = vpop.f32.mrb[0].mxu0
        %v6983 = vadd.f32 0.0, %v6982
        %v6984 = vpop.f32.mrb[0].mxu0
        %6985 = vdwg.mxu0
        %6986 = vrot.lane.b32.xlu0 %v1211, 104
        %v6987 = vpop.permute.xlu0 %6986
        %6988 = vrot.lane.b32.xlu0 %v1216, 104
        %v6989 = vpop.permute.xlu0 %6988
        %v6993 = vsel %vm702, %v6588, 0
        %6995 = vmatprep.subr.mxu0 0.0
        %6996 = vmatpush1.msra.mxu0 %v6987
        %6997 = vmatprep.subr.mxu0 0.0
        %6998 = vmatpush1.msra.mxu0 %v6989
        %6999 = vmatprep.subr.mxu0 0.0
        %7000 = vmatpush1.msra.mxu0 0.0
        %7001 = vmatprep.subr.mxu0 0.0
        %7002 = vmatpush1.msra.mxu0 0.0
        %7003 = vmatprep.subr.mxu0 0.0
        %7004 = vmatpush1.msra.mxu0 0.0
        %7005 = vmatprep.subr.mxu0 0.0
        %7006 = vmatpush1.msra.mxu0 0.0
        %7007 = vmatprep.subr.mxu0 0.0
        %7008 = vmatpush1.msra.mxu0 0.0
        %7009 = vmatprep.subr.mxu0 0.0
        %7010 = vmatpush1.msra.mxu0 0.0
        %7011 = vmatprep.subr.mxu0 0.0
        %7012 = vmatpush1.msra.mxu0 0.0
        %7013 = vmatprep.subr.mxu0 0.0
        %7014 = vmatpush1.msra.mxu0 0.0
        %7015 = vmatprep.subr.mxu0 0.0
        %7016 = vmatpush1.msra.mxu0 0.0
        %7017 = vmatprep.subr.mxu0 0.0
        %7018 = vmatpush1.msra.mxu0 0.0
        %7019 = vmatprep.subr.mxu0 0.0
        %7020 = vmatpush1.msra.mxu0 0.0
        %7021 = vmatprep.subr.mxu0 0.0
        %7022 = vmatpush1.msra.mxu0 0.0
        %7023 = vmatprep.subr.mxu0 0.0
        %7024 = vmatpush1.msra.mxu0 0.0
        %7025 = vmatprep.subr.mxu0 0.0
        %7026 = vmatpush1.msra.mxu0 0.0
        %7027 = vmatprep.subr.mxu0 0.0
        %7028 = vmatpush1.msra.mxu0 0.0
        %7029 = vmatprep.subr.mxu0 0.0
        %7030 = vmatpush1.msra.mxu0 0.0
        %7031 = vmatprep.subr.mxu0 0.0
        %7032 = vmatpush1.msra.mxu0 0.0
        %7033 = vmatprep.subr.mxu0 0.0
        %7034 = vmatpush1.msra.mxu0 0.0
        %7035 = vmatprep.subr.mxu0 0.0
        %7036 = vmatpush1.msra.mxu0 0.0
        %7037 = vmatprep.subr.mxu0 0.0
        %7038 = vmatpush1.msra.mxu0 0.0
        %7039 = vmatprep.subr.mxu0 0.0
        %7040 = vmatpush1.msra.mxu0 0.0
        %7041 = vmatprep.subr.mxu0 0.0
        %7042 = vmatpush1.msra.mxu0 0.0
        %7043 = vmatprep.subr.mxu0 0.0
        %7044 = vmatpush1.msra.mxu0 0.0
        %7045 = vmatprep.subr.mxu0 0.0
        %7046 = vmatpush1.msra.mxu0 0.0
        %7047 = vmatprep.subr.mxu0 0.0
        %7048 = vmatpush1.msra.mxu0 0.0
        %7049 = vmatprep.subr.mxu0 0.0
        %7050 = vmatpush1.msra.mxu0 0.0
        %7051 = vmatprep.subr.mxu0 0.0
        %7052 = vmatpush1.msra.mxu0 0.0
        %7053 = vmatprep.subr.mxu0 0.0
        %7054 = vmatpush1.msra.mxu0 0.0
        %7055 = vmatprep.subr.mxu0 0.0
        %7056 = vmatpush1.msra.mxu0 0.0
        %7057 = vmatprep.subr.mxu0 0.0
        %7058 = vmatpush1.msra.mxu0 0.0
        %7059 = vmatprep.mubr.f32.mxu0 0.0
        %7060 = vmatmul.mubr.f32.gmra.mrb[0].mxu0 %v6993
        %v7061 = vpop.f32.mrb[0].mxu0
        %v7062 = vadd.f32 0.0, %v7061
        %v7063 = vpop.f32.mrb[0].mxu0
        %7064 = vdwg.mxu0
        %7065 = vrot.lane.b32.xlu0 %v1221, 104
        %v7066 = vpop.permute.xlu0 %7065
        %7067 = vrot.lane.b32.xlu0 %v1226, 104
        %v7068 = vpop.permute.xlu0 %7067
        %v7072 = vsel %vm702, %v6589, 0
        %7074 = vmatprep.subr.mxu0 0.0
        %7075 = vmatpush1.msra.mxu0 %v7066
        %7076 = vmatprep.subr.mxu0 0.0
        %7077 = vmatpush1.msra.mxu0 %v7068
        %7078 = vmatprep.subr.mxu0 0.0
        %7079 = vmatpush1.msra.mxu0 0.0
        %7080 = vmatprep.subr.mxu0 0.0
        %7081 = vmatpush1.msra.mxu0 0.0
        %7082 = vmatprep.subr.mxu0 0.0
        %7083 = vmatpush1.msra.mxu0 0.0
        %7084 = vmatprep.subr.mxu0 0.0
        %7085 = vmatpush1.msra.mxu0 0.0
        %7086 = vmatprep.subr.mxu0 0.0
        %7087 = vmatpush1.msra.mxu0 0.0
        %7088 = vmatprep.subr.mxu0 0.0
        %7089 = vmatpush1.msra.mxu0 0.0
        %7090 = vmatprep.subr.mxu0 0.0
        %7091 = vmatpush1.msra.mxu0 0.0
        %7092 = vmatprep.subr.mxu0 0.0
        %7093 = vmatpush1.msra.mxu0 0.0
        %7094 = vmatprep.subr.mxu0 0.0
        %7095 = vmatpush1.msra.mxu0 0.0
        %7096 = vmatprep.subr.mxu0 0.0
        %7097 = vmatpush1.msra.mxu0 0.0
        %7098 = vmatprep.subr.mxu0 0.0
        %7099 = vmatpush1.msra.mxu0 0.0
        %7100 = vmatprep.subr.mxu0 0.0
        %7101 = vmatpush1.msra.mxu0 0.0
        %7102 = vmatprep.subr.mxu0 0.0
        %7103 = vmatpush1.msra.mxu0 0.0
        %7104 = vmatprep.subr.mxu0 0.0
        %7105 = vmatpush1.msra.mxu0 0.0
        %7106 = vmatprep.subr.mxu0 0.0
        %7107 = vmatpush1.msra.mxu0 0.0
        %7108 = vmatprep.subr.mxu0 0.0
        %7109 = vmatpush1.msra.mxu0 0.0
        %7110 = vmatprep.subr.mxu0 0.0
        %7111 = vmatpush1.msra.mxu0 0.0
        %7112 = vmatprep.subr.mxu0 0.0
        %7113 = vmatpush1.msra.mxu0 0.0
        %7114 = vmatprep.subr.mxu0 0.0
        %7115 = vmatpush1.msra.mxu0 0.0
        %7116 = vmatprep.subr.mxu0 0.0
        %7117 = vmatpush1.msra.mxu0 0.0
        %7118 = vmatprep.subr.mxu0 0.0
        %7119 = vmatpush1.msra.mxu0 0.0
        %7120 = vmatprep.subr.mxu0 0.0
        %7121 = vmatpush1.msra.mxu0 0.0
        %7122 = vmatprep.subr.mxu0 0.0
        %7123 = vmatpush1.msra.mxu0 0.0
        %7124 = vmatprep.subr.mxu0 0.0
        %7125 = vmatpush1.msra.mxu0 0.0
        %7126 = vmatprep.subr.mxu0 0.0
        %7127 = vmatpush1.msra.mxu0 0.0
        %7128 = vmatprep.subr.mxu0 0.0
        %7129 = vmatpush1.msra.mxu0 0.0
        %7130 = vmatprep.subr.mxu0 0.0
        %7131 = vmatpush1.msra.mxu0 0.0
        %7132 = vmatprep.subr.mxu0 0.0
        %7133 = vmatpush1.msra.mxu0 0.0
        %7134 = vmatprep.subr.mxu0 0.0
        %7135 = vmatpush1.msra.mxu0 0.0
        %7136 = vmatprep.subr.mxu0 0.0
        %7137 = vmatpush1.msra.mxu0 0.0
        %7138 = vmatprep.mubr.f32.mxu0 0.0
        %7139 = vmatmul.mubr.f32.gmra.mrb[0].mxu0 %v7072
        %v7140 = vpop.f32.mrb[0].mxu0
        %v7141 = vadd.f32 0.0, %v7140
        %v7142 = vpop.f32.mrb[0].mxu0
        %7143 = vdwg.mxu0
        %7144 = vrot.lane.b32.xlu0 %v1231, 104
        %v7145 = vpop.permute.xlu0 %7144
        %7146 = vrot.lane.b32.xlu0 %v1236, 104
        %v7147 = vpop.permute.xlu0 %7146
        %v7151 = vsel %vm702, %v6590, 0
        %7153 = vmatprep.subr.mxu0 0.0
        %7154 = vmatpush1.msra.mxu0 %v7145
        %7155 = vmatprep.subr.mxu0 0.0
        %7156 = vmatpush1.msra.mxu0 %v7147
        %7157 = vmatprep.subr.mxu0 0.0
        %7158 = vmatpush1.msra.mxu0 0.0
        %7159 = vmatprep.subr.mxu0 0.0
        %7160 = vmatpush1.msra.mxu0 0.0
        %7161 = vmatprep.subr.mxu0 0.0
        %7162 = vmatpush1.msra.mxu0 0.0
        %7163 = vmatprep.subr.mxu0 0.0
        %7164 = vmatpush1.msra.mxu0 0.0
        %7165 = vmatprep.subr.mxu0 0.0
        %7166 = vmatpush1.msra.mxu0 0.0
        %7167 = vmatprep.subr.mxu0 0.0
        %7168 = vmatpush1.msra.mxu0 0.0
        %7169 = vmatprep.subr.mxu0 0.0
        %7170 = vmatpush1.msra.mxu0 0.0
        %7171 = vmatprep.subr.mxu0 0.0
        %7172 = vmatpush1.msra.mxu0 0.0
        %7173 = vmatprep.subr.mxu0 0.0
        %7174 = vmatpush1.msra.mxu0 0.0
        %7175 = vmatprep.subr.mxu0 0.0
        %7176 = vmatpush1.msra.mxu0 0.0
        %7177 = vmatprep.subr.mxu0 0.0
        %7178 = vmatpush1.msra.mxu0 0.0
        %7179 = vmatprep.subr.mxu0 0.0
        %7180 = vmatpush1.msra.mxu0 0.0
        %7181 = vmatprep.subr.mxu0 0.0
        %7182 = vmatpush1.msra.mxu0 0.0
        %7183 = vmatprep.subr.mxu0 0.0
        %7184 = vmatpush1.msra.mxu0 0.0
        %7185 = vmatprep.subr.mxu0 0.0
        %7186 = vmatpush1.msra.mxu0 0.0
        %7187 = vmatprep.subr.mxu0 0.0
        %7188 = vmatpush1.msra.mxu0 0.0
        %7189 = vmatprep.subr.mxu0 0.0
        %7190 = vmatpush1.msra.mxu0 0.0
        %7191 = vmatprep.subr.mxu0 0.0
        %7192 = vmatpush1.msra.mxu0 0.0
        %7193 = vmatprep.subr.mxu0 0.0
        %7194 = vmatpush1.msra.mxu0 0.0
        %7195 = vmatprep.subr.mxu0 0.0
        %7196 = vmatpush1.msra.mxu0 0.0
        %7197 = vmatprep.subr.mxu0 0.0
        %7198 = vmatpush1.msra.mxu0 0.0
        %7199 = vmatprep.subr.mxu0 0.0
        %7200 = vmatpush1.msra.mxu0 0.0
        %7201 = vmatprep.subr.mxu0 0.0
        %7202 = vmatpush1.msra.mxu0 0.0
        %7203 = vmatprep.subr.mxu0 0.0
        %7204 = vmatpush1.msra.mxu0 0.0
        %7205 = vmatprep.subr.mxu0 0.0
        %7206 = vmatpush1.msra.mxu0 0.0
        %7207 = vmatprep.subr.mxu0 0.0
        %7208 = vmatpush1.msra.mxu0 0.0
        %7209 = vmatprep.subr.mxu0 0.0
        %7210 = vmatpush1.msra.mxu0 0.0
        %7211 = vmatprep.subr.mxu0 0.0
        %7212 = vmatpush1.msra.mxu0 0.0
        %7213 = vmatprep.subr.mxu0 0.0
        %7214 = vmatpush1.msra.mxu0 0.0
        %7215 = vmatprep.subr.mxu0 0.0
        %7216 = vmatpush1.msra.mxu0 0.0
        %7217 = vmatprep.mubr.f32.mxu0 0.0
        %7218 = vmatmul.mubr.f32.gmra.mrb[0].mxu0 %v7151
        %v7219 = vpop.f32.mrb[0].mxu0
        %v7220 = vadd.f32 0.0, %v7219
        %v7221 = vpop.f32.mrb[0].mxu0
        %7222 = vdwg.mxu0
        %v7224 = vsel %vm1315, %v6667, 0
        %v7227 = vsel %vm1315, %v6746, 0
        %v7230 = vsel %vm1315, %v6825, 0
        %v7233 = vsel %vm1315, %v6904, 0
        %v7236 = vsel %vm1315, %v6983, 0
        %v7239 = vsel %vm1315, %v7062, 0
        %v7242 = vsel %vm1315, %v7141, 0
        %v7245 = vsel %vm1315, %v7220, 0
        %7247 = vmatprep.subr.mxu0 0.0
        %7248 = vmatpush1.msra.mxu0 %v1314
        %7249 = vmatprep.subr.mxu0 0.0
        %7250 = vmatpush1.msra.mxu0 0.0
        %7251 = vmatprep.subr.mxu0 0.0
        %7252 = vmatpush1.msra.mxu0 0.0
        %7253 = vmatprep.subr.mxu0 0.0
        %7254 = vmatpush1.msra.mxu0 0.0
        %7255 = vmatprep.subr.mxu0 0.0
        %7256 = vmatpush1.msra.mxu0 0.0
        %7257 = vmatprep.subr.mxu0 0.0
        %7258 = vmatpush1.msra.mxu0 0.0
        %7259 = vmatprep.subr.mxu0 0.0
        %7260 = vmatpush1.msra.mxu0 0.0
        %7261 = vmatprep.subr.mxu0 0.0
        %7262 = vmatpush1.msra.mxu0 0.0
        %7263 = vmatprep.subr.mxu0 0.0
        %7264 = vmatpush1.msra.mxu0 0.0
        %7265 = vmatprep.subr.mxu0 0.0
        %7266 = vmatpush1.msra.mxu0 0.0
        %7267 = vmatprep.subr.mxu0 0.0
        %7268 = vmatpush1.msra.mxu0 0.0
        %7269 = vmatprep.subr.mxu0 0.0
        %7270 = vmatpush1.msra.mxu0 0.0
        %7271 = vmatprep.subr.mxu0 0.0
        %7272 = vmatpush1.msra.mxu0 0.0
        %7273 = vmatprep.subr.mxu0 0.0
        %7274 = vmatpush1.msra.mxu0 0.0
        %7275 = vmatprep.subr.mxu0 0.0
        %7276 = vmatpush1.msra.mxu0 0.0
        %7277 = vmatprep.subr.mxu0 0.0
        %7278 = vmatpush1.msra.mxu0 0.0
        %7279 = vmatprep.subr.mxu0 0.0
        %7280 = vmatpush1.msra.mxu0 0.0
        %7281 = vmatprep.subr.mxu0 0.0
        %7282 = vmatpush1.msra.mxu0 0.0
        %7283 = vmatprep.subr.mxu0 0.0
        %7284 = vmatpush1.msra.mxu0 0.0
        %7285 = vmatprep.subr.mxu0 0.0
        %7286 = vmatpush1.msra.mxu0 0.0
        %7287 = vmatprep.subr.mxu0 0.0
        %7288 = vmatpush1.msra.mxu0 0.0
        %7289 = vmatprep.subr.mxu0 0.0
        %7290 = vmatpush1.msra.mxu0 0.0
        %7291 = vmatprep.subr.mxu0 0.0
        %7292 = vmatpush1.msra.mxu0 0.0
        %7293 = vmatprep.subr.mxu0 0.0
        %7294 = vmatpush1.msra.mxu0 0.0
        %7295 = vmatprep.subr.mxu0 0.0
        %7296 = vmatpush1.msra.mxu0 0.0
        %7297 = vmatprep.subr.mxu0 0.0
        %7298 = vmatpush1.msra.mxu0 0.0
        %7299 = vmatprep.subr.mxu0 0.0
        %7300 = vmatpush1.msra.mxu0 0.0
        %7301 = vmatprep.subr.mxu0 0.0
        %7302 = vmatpush1.msra.mxu0 0.0
        %7303 = vmatprep.subr.mxu0 0.0
        %7304 = vmatpush1.msra.mxu0 0.0
        %7305 = vmatprep.subr.mxu0 0.0
        %7306 = vmatpush1.msra.mxu0 0.0
        %7307 = vmatprep.subr.mxu0 0.0
        %7308 = vmatpush1.msra.mxu0 0.0
        %7309 = vmatprep.subr.mxu0 0.0
        %7310 = vmatpush1.msra.mxu0 0.0
        %7311 = vmatprep.mubr.f32.mxu0 0.0
        %7312 = vmatmul.mubr.f32.gmra.mrb[0].mxu0 %v7224
        %v7313 = vpop.f32.mrb[0].mxu0
        %v7314 = vadd.f32 0.0, %v7313
        %v7315 = vpop.f32.mrb[0].mxu0
        %7316 = vmatprep.mubr.f32.mxu0 0.0
        %7317 = vmatmul.mubr.f32.gmra.mrb[0].mxu0 %v7227
        %v7318 = vpop.f32.mrb[0].mxu0
        %v7319 = vadd.f32 0.0, %v7318
        %v7320 = vpop.f32.mrb[0].mxu0
        %7321 = vmatprep.mubr.f32.mxu0 0.0
        %7322 = vmatmul.mubr.f32.gmra.mrb[0].mxu0 %v7230
        %v7323 = vpop.f32.mrb[0].mxu0
        %v7324 = vadd.f32 0.0, %v7323
        %v7325 = vpop.f32.mrb[0].mxu0
        %7326 = vmatprep.mubr.f32.mxu0 0.0
        %7327 = vmatmul.mubr.f32.gmra.mrb[0].mxu0 %v7233
        %v7328 = vpop.f32.mrb[0].mxu0
        %v7329 = vadd.f32 0.0, %v7328
        %v7330 = vpop.f32.mrb[0].mxu0
        %7331 = vmatprep.mubr.f32.mxu0 0.0
        %7332 = vmatmul.mubr.f32.gmra.mrb[0].mxu0 %v7236
        %v7333 = vpop.f32.mrb[0].mxu0
        %v7334 = vadd.f32 0.0, %v7333
        %v7335 = vpop.f32.mrb[0].mxu0
        %7336 = vmatprep.mubr.f32.mxu0 0.0
        %7337 = vmatmul.mubr.f32.gmra.mrb[0].mxu0 %v7239
        %v7338 = vpop.f32.mrb[0].mxu0
        %v7339 = vadd.f32 0.0, %v7338
        %v7340 = vpop.f32.mrb[0].mxu0
        %7341 = vmatprep.mubr.f32.mxu0 0.0
        %7342 = vmatmul.mubr.f32.gmra.mrb[0].mxu0 %v7242
        %v7343 = vpop.f32.mrb[0].mxu0
        %v7344 = vadd.f32 0.0, %v7343
        %v7345 = vpop.f32.mrb[0].mxu0
        %7346 = vmatprep.mubr.f32.mxu0 0.0
        %7347 = vmatmul.mubr.f32.gmra.mrb[0].mxu0 %v7245
        %v7348 = vpop.f32.mrb[0].mxu0
        %v7349 = vadd.f32 0.0, %v7348
        %v7350 = vpop.f32.mrb[0].mxu0
        %7351 = vdwg.mxu0
        %v7352 = vadd.f32 %v5823, %v7314
        %v7353 = vadd.f32 %v5824, %v7319
        %v7354 = vadd.f32 %v5825, %v7324
        %v7355 = vadd.f32 %v5826, %v7329
        %v7356 = vadd.f32 %v5827, %v7334
        %v7357 = vadd.f32 %v5828, %v7339
        %v7358 = vadd.f32 %v5829, %v7344
        %v7359 = vadd.f32 %v5830, %v7349
        %v7360 = vld [vmem:[%s11] sm:$0x1]
        %v7362 = vlaneseq
        %v7363 = vshrl.u32 %v7362, 7
        %v7364 = vsub.s32 0, %v7363
        %v7365 = vrot.slane %v7360, %v7364
        %v7367 = vadd.f32 %v7352, %v7365
        %v7368 = vadd.f32 %v7353, %v7365
        %v7369 = vadd.f32 %v7354, %v7365
        %v7370 = vadd.f32 %v7355, %v7365
        %v7371 = vadd.f32 %v7356, %v7365
        %v7372 = vadd.f32 %v7357, %v7365
        %v7373 = vadd.f32 %v7358, %v7365
        %v7374 = vadd.f32 %v7359, %v7365
        %7375 = vrot.lane.b32.xlu0 %v794, 96
        %v7376 = vpop.permute.xlu0 %7375
        %7377 = vrot.lane.b32.xlu0 %v799, 96
        %v7378 = vpop.permute.xlu0 %7377
        %7379 = vrot.lane.b32.xlu0 %v804, 96
        %v7380 = vpop.permute.xlu0 %7379
        %7381 = vrot.lane.b32.xlu0 %v809, 96
        %v7382 = vpop.permute.xlu0 %7381
        %7383 = vrot.lane.b32.xlu0 %v814, 96
        %v7384 = vpop.permute.xlu0 %7383
        %7385 = vrot.lane.b32.xlu0 %v819, 96
        %v7386 = vpop.permute.xlu0 %7385
        %7387 = vrot.lane.b32.xlu0 %v824, 96
        %v7388 = vpop.permute.xlu0 %7387
        %7389 = vrot.lane.b32.xlu0 %v829, 96
        %v7390 = vpop.permute.xlu0 %7389
        %v7399 = vadd.f32 %v7367, %v7376
        %v7400 = vadd.f32 %v7368, %v7378
        %v7401 = vadd.f32 %v7369, %v7380
        %v7402 = vadd.f32 %v7370, %v7382
        %v7403 = vadd.f32 %v7371, %v7384
        %v7404 = vadd.f32 %v7372, %v7386
        %v7405 = vadd.f32 %v7373, %v7388
        %v7406 = vadd.f32 %v7374, %v7390
        %vm7407 = vcmask 261120
        %v7408 = vsel %vm7407, %v7399, 0.0
        %7409 = vadd.xlane.f32.xlu0 %v7408
        %v7410 = vpop.xlane.xlu0 %7409
        %v7411 = vsel %vm7407, %v7400, 0.0
        %7412 = vadd.xlane.f32.xlu0 %v7411
        %v7413 = vpop.xlane.xlu0 %7412
        %v7414 = vsel %vm7407, %v7401, 0.0
        %7415 = vadd.xlane.f32.xlu0 %v7414
        %v7416 = vpop.xlane.xlu0 %7415
        %v7417 = vsel %vm7407, %v7402, 0.0
        %7418 = vadd.xlane.f32.xlu0 %v7417
        %v7419 = vpop.xlane.xlu0 %7418
        %v7420 = vsel %vm7407, %v7403, 0.0
        %7421 = vadd.xlane.f32.xlu0 %v7420
        %v7422 = vpop.xlane.xlu0 %7421
        %v7423 = vsel %vm7407, %v7404, 0.0
        %7424 = vadd.xlane.f32.xlu0 %v7423
        %v7425 = vpop.xlane.xlu0 %7424
        %v7426 = vsel %vm7407, %v7405, 0.0
        %7427 = vadd.xlane.f32.xlu0 %v7426
        %v7428 = vpop.xlane.xlu0 %7427
        %v7429 = vsel %vm7407, %v7406, 0.0
        %7430 = vadd.xlane.f32.xlu0 %v7429
        %v7431 = vpop.xlane.xlu0 %7430
        %v7432 = vrcp.pop 32.0
        %v7433 = vmul.f32 %v7410, %v7432
        %v7434 = vmul.f32 %v7413, %v7432
        %v7435 = vmul.f32 %v7416, %v7432
        %v7436 = vmul.f32 %v7419, %v7432
        %v7437 = vmul.f32 %v7422, %v7432
        %v7438 = vmul.f32 %v7425, %v7432
        %v7439 = vmul.f32 %v7428, %v7432
        %v7440 = vmul.f32 %v7431, %v7432
        %v7441 = vsub.f32 %v7399, %v7433
        %v7442 = vsub.f32 %v7400, %v7434
        %v7443 = vsub.f32 %v7401, %v7435
        %v7444 = vsub.f32 %v7402, %v7436
        %v7445 = vsub.f32 %v7403, %v7437
        %v7446 = vsub.f32 %v7404, %v7438
        %v7447 = vsub.f32 %v7405, %v7439
        %v7448 = vsub.f32 %v7406, %v7440
        %v7449 = vmul.f32 %v7441, %v7441
        %v7450 = vmul.f32 %v7442, %v7442
        %v7451 = vmul.f32 %v7443, %v7443
        %v7452 = vmul.f32 %v7444, %v7444
        %v7453 = vmul.f32 %v7445, %v7445
        %v7454 = vmul.f32 %v7446, %v7446
        %v7455 = vmul.f32 %v7447, %v7447
        %v7456 = vmul.f32 %v7448, %v7448
        %v7457 = vsel %vm7407, %v7449, 0.0
        %7458 = vadd.xlane.f32.xlu0 %v7457
        %v7459 = vpop.xlane.xlu0 %7458
        %v7460 = vsel %vm7407, %v7450, 0.0
        %7461 = vadd.xlane.f32.xlu0 %v7460
        %v7462 = vpop.xlane.xlu0 %7461
        %v7463 = vsel %vm7407, %v7451, 0.0
        %7464 = vadd.xlane.f32.xlu0 %v7463
        %v7465 = vpop.xlane.xlu0 %7464
        %v7466 = vsel %vm7407, %v7452, 0.0
        %7467 = vadd.xlane.f32.xlu0 %v7466
        %v7468 = vpop.xlane.xlu0 %7467
        %v7469 = vsel %vm7407, %v7453, 0.0
        %7470 = vadd.xlane.f32.xlu0 %v7469
        %v7471 = vpop.xlane.xlu0 %7470
        %v7472 = vsel %vm7407, %v7454, 0.0
        %7473 = vadd.xlane.f32.xlu0 %v7472
        %v7474 = vpop.xlane.xlu0 %7473
        %v7475 = vsel %vm7407, %v7455, 0.0
        %7476 = vadd.xlane.f32.xlu0 %v7475
        %v7477 = vpop.xlane.xlu0 %7476
        %v7478 = vsel %vm7407, %v7456, 0.0
        %7479 = vadd.xlane.f32.xlu0 %v7478
        %v7480 = vpop.xlane.xlu0 %7479
        %v7481 = vmul.f32 %v7459, %v7432
        %v7482 = vmul.f32 %v7462, %v7432
        %v7483 = vmul.f32 %v7465, %v7432
        %v7484 = vmul.f32 %v7468, %v7432
        %v7485 = vmul.f32 %v7471, %v7432
        %v7486 = vmul.f32 %v7474, %v7432
        %v7487 = vmul.f32 %v7477, %v7432
        %v7488 = vmul.f32 %v7480, %v7432
        %v7489 = vadd.f32 %v7481, 1e-05
        %v7490 = vadd.f32 %v7482, 1e-05
        %v7491 = vadd.f32 %v7483, 1e-05
        %v7492 = vadd.f32 %v7484, 1e-05
        %v7493 = vadd.f32 %v7485, 1e-05
        %v7494 = vadd.f32 %v7486, 1e-05
        %v7495 = vadd.f32 %v7487, 1e-05
        %v7496 = vadd.f32 %v7488, 1e-05
        %v7497 = vrsqrt.pop %v7489
        %v7498 = vrsqrt.pop %v7490
        %v7499 = vrsqrt.pop %v7491
        %v7500 = vrsqrt.pop %v7492
        %v7501 = vrsqrt.pop %v7493
        %v7502 = vrsqrt.pop %v7494
        %v7503 = vrsqrt.pop %v7495
        %v7504 = vrsqrt.pop %v7496
        %v7505 = vmul.f32 %v7441, %v7497
        %v7506 = vmul.f32 %v7442, %v7498
        %v7507 = vmul.f32 %v7443, %v7499
        %v7508 = vmul.f32 %v7444, %v7500
        %v7509 = vmul.f32 %v7445, %v7501
        %v7510 = vmul.f32 %v7446, %v7502
        %v7511 = vmul.f32 %v7447, %v7503
        %v7512 = vmul.f32 %v7448, %v7504
        %v7513 = vld [vmem:[%s12] sm:$0x1]
        %v7515 = vlaneseq
        %v7516 = vshrl.u32 %v7515, 7
        %v7517 = vsub.s32 0, %v7516
        %v7518 = vrot.slane %v7513, %v7517
        %v7520 = vmul.f32 %v7505, %v7518
        %v7521 = vmul.f32 %v7506, %v7518
        %v7522 = vmul.f32 %v7507, %v7518
        %v7523 = vmul.f32 %v7508, %v7518
        %v7524 = vmul.f32 %v7509, %v7518
        %v7525 = vmul.f32 %v7510, %v7518
        %v7526 = vmul.f32 %v7511, %v7518
        %v7527 = vmul.f32 %v7512, %v7518
        %v7528 = vld [vmem:[%s13] sm:$0x1]
        %v7530 = vlaneseq
        %v7531 = vshrl.u32 %v7530, 7
        %v7532 = vsub.s32 0, %v7531
        %v7533 = vrot.slane %v7528, %v7532
        %v7535 = vadd.f32 %v7520, %v7533
        %v7536 = vadd.f32 %v7521, %v7533
        %v7537 = vadd.f32 %v7522, %v7533
        %v7538 = vadd.f32 %v7523, %v7533
        %v7539 = vadd.f32 %v7524, %v7533
        %v7540 = vadd.f32 %v7525, %v7533
        %v7541 = vadd.f32 %v7526, %v7533
        %v7542 = vadd.f32 %v7527, %v7533
        %7543 = vst.msk [vmem:[%s647] sm:$0xff] %vm7407, %v7535
        %7544 = vst.msk [vmem:[%s647 + $0x8] sm:$0xff] %vm7407, %v7536
        %7545 = vst.msk [vmem:[%s647 + $0x10] sm:$0xff] %vm7407, %v7537
        %7546 = vst.msk [vmem:[%s647 + $0x18] sm:$0xff] %vm7407, %v7538
        %7547 = vst.msk [vmem:[%s647 + $0x20] sm:$0xff] %vm7407, %v7539
        %7548 = vst.msk [vmem:[%s647 + $0x28] sm:$0xff] %vm7407, %v7540
        %7549 = vst.msk [vmem:[%s647 + $0x30] sm:$0xff] %vm7407, %v7541
        %7550 = vst.msk [vmem:[%s647 + $0x38] sm:$0xff] %vm7407, %v7542
        %s7551 = sand.u32 %s360, 1
        %s7552 = scalar_lea.sflag [#allocation4], %s7551
        %s7553 = sand.u32 %s360, 1
        %s7554 = smul.addr %s7553, 64
        %s7555 = scalar_lea.vmem [#allocation14], %s7554
        // Predicated region
        $region105: #{tpu_custom_call.1} parent=75 // pred_check
          %p7556 = pneg %p370
        $region106: #{tpu_custom_call.1} parent=75 // pred_check_branch
          %7558 = sbr.rel (%p7556) target = $region108
        $region107: #{tpu_custom_call.1} parent=75 // pred_region
          %s7559 = smul.u32 8, %s38
          %s7561 = ssub.s32 1024, 1024
          %7562 = vsyncadd %s7552, %s7561
          %s7563 = smul.addr %s7559, 128
          %s7564 = scalar_lea.hbm %s14, %s7563
          %s7565 = sshll.u32 %s7555, 4
          %s7566 = int_to_ptr.vmem [resolvable:$true] %s7565
          %7571 = dma.vmem_to_hbm [thread:$0]  %s7566, 1024, %s7564, %s7552, 128, 128, 8
        $region108: #{tpu_custom_call.1} parent=75 // pred_fallthru
          _
      $region76: #{tpu_custom_call.1} parent=5 // pred_fallthru
        _
      %p7572 = scmp.le.s32.totalorder 2, %s33
      // Predicated region
      $region109: #{tpu_custom_call.1} parent=5 // pred_check
        %p7573 = pneg %p7572
      $region110: #{tpu_custom_call.1} parent=5 // pred_check_branch
        %7575 = sbr.rel (%p7573) target = $region112
      $region111: #{tpu_custom_call.1} parent=5 // pred_region
        %s7576 = ssub.s32 %s33, 2
        // Predicated region
        $region113: #{tpu_custom_call.1} parent=111 // pred_check
          %p7577 = pneg %p376
        $region114: #{tpu_custom_call.1} parent=111 // pred_check_branch
          %7579 = sbr.rel (%p7577) target = $region116
        $region115: #{tpu_custom_call.1} parent=111 // pred_region
          %s7580 = sand.u32 %s361, 1
          %s7581 = scalar_lea.sflag [#allocation4], %s7580
          %s7582 = sand.u32 %s361, 1
          %s7583 = smul.addr %s7582, 64
          %s7584 = scalar_lea.vmem [#allocation14], %s7583
          %7585 = dma.done %s7581, 1024
        $region116: #{tpu_custom_call.1} parent=111 // pred_fallthru
          _
      $region112: #{tpu_custom_call.1} parent=5 // pred_fallthru
        _
    $region6: #{tpu_custom_call.1} parent=1 // loop_footer
      %s37 = sadd.s32 1, %s33
    $region7: #{tpu_custom_call.1} parent=1 // loop_footer_branch
      %32 = sbr.rel target = $region3
    $region8: #{tpu_custom_call.1} parent=1 // loop_exit
      _
    %7586 = vsyncpa [#allocation3], 1
    %s7587 = scalar_lea.sflag [#allocation3], 1
    %7588 = vsyncpa %s7587, 1
    %7589 = vsyncpa [#allocation6], 1
    %s7590 = scalar_lea.sflag [#allocation6], 1
    %7591 = vsyncpa %s7590, 1
    %7592 = vsyncpa [#allocation9], 1
    %s7593 = scalar_lea.sflag [#allocation9], 1
    %7594 = vsyncpa %s7593, 1
    %7595 = vsyncpa [#allocation12], 1
    %7596 = vsyncpa [#allocation4], 1
    %s7597 = scalar_lea.sflag [#allocation4], 1
    %7598 = vsyncpa %s7597, 1

</llo_original>
